<compile_context>
chip_gen: v7x
topology: tpu7x:2x2x1
jax: 0.10.0
libtpu: 0.0.40
codegen_flags: <defaults>
</compile_context>

<pallas_src>
import functools

import jax
import jax.numpy as jnp
from jax.experimental import pallas as pl
from jax.experimental.pallas import tpu as pltpu


def _round_up(x, m):
    return ((x + m - 1) // m) * m


def choose_tile_n(n_points, *, max_tile=8192, min_tiles=2):
    """Pick the N-tile width: >= `min_tiles` tiles (v7x megacore parallelism),
    otherwise as large as possible (per-grid-step overhead dominates this kernel).
    Use min_tiles=1 on single-TensorCore chips (v5e/v6e) for a single big DMA."""
    per_tile = pl.cdiv(n_points, min_tiles)
    return max(128, min(max_tile, _round_up(per_tile, 128)))


# ----------------------------- Pallas kernel --------------------------------

def _urdf_pts_kernel(a_ref, p_ref, lid_ref, out_ref, *, n_links):
    # a_ref   : (L, R, 4)   A[l, b*3+i, k] = TWL[b, l, i, k]   (tiny, resident across tiles)
    # p_ref   : (4, TN)     p_local[k, n] = (TLV[n] @ [p_n; 1])[k]   (streamed once total)
    # lid_ref : (1, TN)     link id of point n                        (streamed once total)
    # out_ref : (R, TN)     rows b*3+{0,1,2} = world x/y/z; rows >= 3B are sublane padding
    p = p_ref[...]
    lid = lid_ref[...]
    acc = jnp.zeros(out_ref.shape, jnp.float32)
    # Static unroll over links: L is tiny (8).  Each dot is an (R,4)@(4,TN) MXU op
    # and the select runs on the otherwise-idle VPU -- the kernel stays HBM-bound
    # on the now-much-smaller p_local/link-id streams.
    for l in range(n_links):
        contrib = jnp.dot(a_ref[l], p,
                          preferred_element_type=jnp.float32,
                          precision=jax.lax.Precision.HIGHEST)        # (R, TN)
        acc = acc + jnp.where(lid == l, contrib, 0.0)
    out_ref[...] = acc


# ------------------------ batch-invariant precompute -------------------------

def build_point_tables(pts, TLV, pts_link_ids, *, tile_n):
    """One-time precompute (plays the role of the module's registered buffers).

    pts: (N, 3); TLV: (N, 4, 4); pts_link_ids: (N,) int.
    Returns:
      p_local  : (4, N_pad) f32,  p_local[k, n] = (TLV[n] @ [p_n; 1])[k]
      link_ids : (1, N_pad) i32
    with N padded to a multiple of tile_n (pad columns are zeros / link 0; the
    corresponding output columns are ignored downstream).
    """
    N = pts.shape[0]
    p_h = jnp.concatenate([pts.astype(jnp.float32),
                           jnp.ones((N, 1), jnp.float32)], axis=1)            # (N, 4)
    # p_local[k, n] = sum_j TLV[n, k, j] * p_h[n, j]  (exact f32 VPU math)
    p_local = jnp.sum(TLV.astype(jnp.float32) * p_h[:, None, :], axis=2).T    # (4, N)
    link_ids = jnp.asarray(pts_link_ids, jnp.int32).reshape(1, N)             # (1, N)
    N_pad = _round_up(N, tile_n)
    if N_pad != N:
        p_local = jnp.pad(p_local, ((0, 0), (0, N_pad - N)))
        link_ids = jnp.pad(link_ids, ((0, 0), (0, N_pad - N)))
    return p_local, link_ids


# --------------------------------- forward -----------------------------------

def urdf_forward_pallas(TWL, p_local, link_ids, *, n_points, tile_n, out_layout="b3n"):
    """TWL: (B, n_links, 4, 4); p_local (4, N_pad) / link_ids (1, N_pad) from
    build_point_tables.

    out_layout:
      "b3n" (default, recommended): (B, 3, N_pad), lane-dense, no transpose and no
            non-128-aligned slice; columns >= n_points are padding.
      "bn3": (B, n_points, 3), matching UrdfLayer.forward(q) exactly (adds one
            wrapper-side relayout).
    """
    B, L = TWL.shape[0], TWL.shape[1]
    N_pad = p_local.shape[1]
    assert N_pad % tile_n == 0
    assert link_ids.shape == (1, N_pad)

    # A[l, b*3+i, k] = TWL[b, l, i, k] for i in {0,1,2} (homogeneous row dropped),
    # rows padded up to R = round_up(3B, 8) for sublane alignment.
    R = _round_up(3 * B, 8)
    A = jnp.transpose(TWL[:, :, :3, :].astype(jnp.float32), (1, 0, 2, 3))
    A = A.reshape(L, 3 * B, 4)
    if R != 3 * B:
        A = jnp.pad(A, ((0, 0), (0, R - 3 * B), (0, 0)))

    grid = (N_pad // tile_n,)
    out = pl.pallas_call(
        functools.partial(_urdf_pts_kernel, n_links=L),
        out_shape=jax.ShapeDtypeStruct((R, N_pad), jnp.float32),
        grid=grid,
        in_specs=[
            pl.BlockSpec((L, R, 4), lambda n: (0, 0, 0)),    # A: resident across tiles
            pl.BlockSpec((4, tile_n), lambda n: (0, n)),     # p_local: streamed once
            pl.BlockSpec((1, tile_n), lambda n: (0, n)),     # link ids: streamed once
        ],
        out_specs=pl.BlockSpec((R, tile_n), lambda n: (0, n)),
        compiler_params=pltpu.CompilerParams(
            dimension_semantics=("parallel",)),              # lets v7x split tiles over 2 TCs
    )(A, p_local, link_ids)                                  # (R, N_pad), lane-dense

    world = out[:3 * B].reshape(B, 3, N_pad)                 # cheap sublane-only slice/reshape
    if out_layout == "b3n":
        return world                                         # recommended: keep lane-dense
    # PyTorch-matching layout (extra lane slice + (B,3,N)->(B,N,3) transpose).
    return world[:, :, :n_points].transpose(0, 2, 1)


# --------------------------- glue: synthetic FK ------------------------------
# TODO(synk): URDF parsing, trimesh surface sampling and the keypoint/joint-limit
# tables have no Pallas equivalent; the kinematic chain (robot.link_fk_batch) is a
# tiny serial B x n_links chain of 4x4 products and is synthesized in plain JAX.

def _rot_z_h(theta):
    """Homogeneous rotation about z. theta: (...,) -> (..., 4, 4)."""
    c, s = jnp.cos(theta), jnp.sin(theta)
    z, o = jnp.zeros_like(c), jnp.ones_like(c)
    return jnp.stack([
        jnp.stack([c, -s, z, z], -1),
        jnp.stack([s, c, z, z], -1),
        jnp.stack([z, z, o, z], -1),
        jnp.stack([z, z, z, o], -1)], axis=-2)


def get_TWL(q, T_origin, global_scale=1.0):
    """Serial-chain FK (replaces robot.link_fk_batch). q: (B, n_dof) -> (B, n_dof+1, 4, 4)."""
    B, n_dof = q.shape
    frames = [jnp.broadcast_to(jnp.eye(4, dtype=q.dtype), (B, 4, 4))]
    for i in range(n_dof):
        Tj = _rot_z_h(q[:, i])                                     # (B, 4, 4)
        frames.append(frames[-1] @ T_origin[i][None] @ Tj)
    TWL = jnp.stack(frames, axis=1)                                # (B, n_links, 4, 4)
    TWL = TWL.at[..., :3, -1].multiply(global_scale)
    return TWL


def forward_reference(q, T_origin, pts, link_ids, TLV, global_scale=1.0):
    """Pure-JAX replica of UrdfLayer.forward for correctness checking."""
    TWL = get_TWL(q, T_origin, global_scale)                       # (B, L, 4, 4)
    pts_TWL = TWL[:, link_ids]                                     # (B, N, 4, 4)
    pts_TWV = pts_TWL @ TLV[None]                                  # (B, N, 4, 4)
    out = pts_TWV[:, :, :3, :3] @ pts[None, :, :, None] + pts_TWV[:, :, :3, 3:4]
    return out[..., 0]                                             # (B, N, 3)


# ---------------------------------- main -------------------------------------

if __name__ == "__main__":
    B = 2            # batch
    n_links = 8
    n_dof = n_links - 1
    N = 1000         # number of surface points (not 128-aligned; exercises padding)
    global_scale = 1.0

    TILE_N = choose_tile_n(N)          # -> 512 here (2 parallel tiles); ~8192 at N=20000

    key = jax.random.PRNGKey(0)
    k_origin, k_theta, k_trans, k_pts, k_ids, k_q = jax.random.split(key, 6)

    # Fixed joint-origin transforms (identity rotation + small translation).
    T_origin = jnp.tile(jnp.eye(4, dtype=jnp.float32), (n_dof, 1, 1))
    T_origin = T_origin.at[:, :3, 3].set(
        jax.random.normal(k_origin, (n_dof, 3), dtype=jnp.float32) * 0.1)

    # Per-point visual-frame transforms pts_TLV (valid SE(3): Rz + translation).
    theta = jax.random.uniform(k_theta, (N,), dtype=jnp.float32,
                               minval=-jnp.pi, maxval=jnp.pi)
    TLV = _rot_z_h(theta)
    TLV = TLV.at[:, :3, 3].set(
        jax.random.normal(k_trans, (N, 3), dtype=jnp.float32) * 0.05)

    # Sampled surface points and their link assignments.
    pts = jax.random.normal(k_pts, (N, 3), dtype=jnp.float32) * 0.1
    pts_link_ids = jax.random.randint(k_ids, (N,), 0, n_links)

    # Joint configuration q.
    q = jax.random.uniform(k_q, (B, n_dof), dtype=jnp.float32, minval=-1.0, maxval=1.0)

    # ---- one-time, batch-invariant precompute (plays the role of module buffers) ----
    p_local, link_ids_row = build_point_tables(pts, TLV, pts_link_ids, tile_n=TILE_N)
    p_local, link_ids_row = jax.block_until_ready((p_local, link_ids_row))

    # ---- forward ----
    TWL = get_TWL(q, T_origin, global_scale)                   # (B, L, 4, 4), FK glue

    run_b3n = jax.jit(functools.partial(
        urdf_forward_pallas, n_points=N, tile_n=TILE_N, out_layout="b3n"))
    run_bn3 = jax.jit(functools.partial(
        urdf_forward_pallas, n_points=N, tile_n=TILE_N, out_layout="bn3"))

    out_b3n = jax.block_until_ready(run_b3n(TWL, p_local, link_ids_row))   # (B, 3, N_pad)
    out_bn3 = jax.block_until_ready(run_bn3(TWL, p_local, link_ids_row))   # (B, N, 3)

    ref = forward_reference(q, T_origin, pts, pts_link_ids, TLV, global_scale)
    ref = jax.block_until_ready(ref)                                       # (B, N, 3)

    # PyTorch-matching layout check.
    assert out_bn3.shape == (B, N, 3) and out_bn3.dtype == jnp.float32
    assert jnp.allclose(out_bn3, ref, rtol=1e-5, atol=1e-5), \
        f"bn3 max abs err = {jnp.max(jnp.abs(out_bn3 - ref))}"

    # Lane-dense (recommended) layout check.
    N_pad = p_local.shape[1]
    assert out_b3n.shape == (B, 3, N_pad) and out_b3n.dtype == jnp.float32
    assert jnp.allclose(out_b3n[:, :, :N], ref.transpose(0, 2, 1), rtol=1e-5, atol=1e-5), \
        f"b3n max abs err = {jnp.max(jnp.abs(out_b3n[:, :, :N] - ref.transpose(0, 2, 1)))}"

    print("KERNEL_OK")
</pallas_src>

<mosaic_0001>
module attributes {stable_mosaic.version = 11 : i64} {
  func.func @_urdf_pts_kernel(%arg0: i32, %arg1: memref<8x8x4xf32, #tpu.memory_space<vmem>>, %arg2: memref<4x512xf32, #tpu.memory_space<vmem>>, %arg3: memref<1x512xi32, #tpu.memory_space<vmem>>, %arg4: memref<8x512xf32, #tpu.memory_space<vmem>>) attributes {dimension_semantics = [#tpu.dimension_semantics<parallel>], iteration_bounds = array<i64: 2>, scalar_prefetch = 0 : i64, scratch_operands = 0 : i64, tpu.core_type = #tpu.core_type<tc>, window_params = [{pipeline_mode = #tpu.pipeline_mode<synchronous>, transform_indices = @transform_0, window_bounds = array<i64: 8, 8, 4>}, {transform_indices = @transform_1, window_bounds = array<i64: 4, 512>}, {transform_indices = @transform_2, window_bounds = array<i64: 1, 512>}, {transform_indices = @transform_3, window_bounds = array<i64: 8, 512>}]} {
    %c0 = arith.constant 0 : index
    %c0_0 = arith.constant 0 : index
    %0 = vector.load %arg2[%c0, %c0_0] : memref<4x512xf32, #tpu.memory_space<vmem>>, vector<4x512xf32>
    %c0_1 = arith.constant 0 : index
    %c0_2 = arith.constant 0 : index
    %1 = vector.load %arg3[%c0_1, %c0_2] : memref<1x512xi32, #tpu.memory_space<vmem>>, vector<1x512xi32>
    %cst = arith.constant 0.000000e+00 : f32
    %2 = vector.broadcast %cst : f32 to vector<8x512xf32>
    %c0_3 = arith.constant 0 : index
    %c0_4 = arith.constant 0 : index
    %c0_5 = arith.constant 0 : index
    %3 = vector.load %arg1[%c0_3, %c0_4, %c0_5] : memref<8x8x4xf32, #tpu.memory_space<vmem>>, vector<1x8x4xf32>
    %4 = vector.shape_cast %3 : vector<1x8x4xf32> to vector<8x4xf32>
    %cst_6 = arith.constant dense<0.000000e+00> : vector<8x512xf32>
    %5 = tpu.matmul %4, %0, %cst_6 {dimension_numbers = #tpu.dot_dimension_numbers<[1], [0], [0], [1], [0, 0, 1, 1], [], []>, precision = #tpu.contract_precision<fp32>} : vector<8x4xf32>, vector<4x512xf32>, vector<8x512xf32> -> vector<8x512xf32>
    %c0_i32 = arith.constant 0 : i32
    %6 = vector.broadcast %c0_i32 : i32 to vector<1x512xi32>
    %7 = arith.cmpi eq, %1, %6 : vector<1x512xi32>
    %cst_7 = arith.constant 0.000000e+00 : f32
    %8 = vector.shape_cast %7 : vector<1x512xi1> to vector<1x512xi1>
    %9 = vector.broadcast %8 : vector<1x512xi1> to vector<8x512xi1>
    %10 = vector.broadcast %cst_7 : f32 to vector<8x512xf32>
    %11 = arith.select %9, %5, %10 : vector<8x512xi1>, vector<8x512xf32>
    %12 = arith.addf %2, %11 : vector<8x512xf32>
    %c1 = arith.constant 1 : index
    %c0_8 = arith.constant 0 : index
    %c0_9 = arith.constant 0 : index
    %13 = vector.load %arg1[%c1, %c0_8, %c0_9] : memref<8x8x4xf32, #tpu.memory_space<vmem>>, vector<1x8x4xf32>
    %14 = vector.shape_cast %13 : vector<1x8x4xf32> to vector<8x4xf32>
    %cst_10 = arith.constant dense<0.000000e+00> : vector<8x512xf32>
    %15 = tpu.matmul %14, %0, %cst_10 {dimension_numbers = #tpu.dot_dimension_numbers<[1], [0], [0], [1], [0, 0, 1, 1], [], []>, precision = #tpu.contract_precision<fp32>} : vector<8x4xf32>, vector<4x512xf32>, vector<8x512xf32> -> vector<8x512xf32>
    %c1_i32 = arith.constant 1 : i32
    %16 = vector.broadcast %c1_i32 : i32 to vector<1x512xi32>
    %17 = arith.cmpi eq, %1, %16 : vector<1x512xi32>
    %cst_11 = arith.constant 0.000000e+00 : f32
    %18 = vector.shape_cast %17 : vector<1x512xi1> to vector<1x512xi1>
    %19 = vector.broadcast %18 : vector<1x512xi1> to vector<8x512xi1>
    %20 = vector.broadcast %cst_11 : f32 to vector<8x512xf32>
    %21 = arith.select %19, %15, %20 : vector<8x512xi1>, vector<8x512xf32>
    %22 = arith.addf %12, %21 : vector<8x512xf32>
    %c2 = arith.constant 2 : index
    %c0_12 = arith.constant 0 : index
    %c0_13 = arith.constant 0 : index
    %23 = vector.load %arg1[%c2, %c0_12, %c0_13] : memref<8x8x4xf32, #tpu.memory_space<vmem>>, vector<1x8x4xf32>
    %24 = vector.shape_cast %23 : vector<1x8x4xf32> to vector<8x4xf32>
    %cst_14 = arith.constant dense<0.000000e+00> : vector<8x512xf32>
    %25 = tpu.matmul %24, %0, %cst_14 {dimension_numbers = #tpu.dot_dimension_numbers<[1], [0], [0], [1], [0, 0, 1, 1], [], []>, precision = #tpu.contract_precision<fp32>} : vector<8x4xf32>, vector<4x512xf32>, vector<8x512xf32> -> vector<8x512xf32>
    %c2_i32 = arith.constant 2 : i32
    %26 = vector.broadcast %c2_i32 : i32 to vector<1x512xi32>
    %27 = arith.cmpi eq, %1, %26 : vector<1x512xi32>
    %cst_15 = arith.constant 0.000000e+00 : f32
    %28 = vector.shape_cast %27 : vector<1x512xi1> to vector<1x512xi1>
    %29 = vector.broadcast %28 : vector<1x512xi1> to vector<8x512xi1>
    %30 = vector.broadcast %cst_15 : f32 to vector<8x512xf32>
    %31 = arith.select %29, %25, %30 : vector<8x512xi1>, vector<8x512xf32>
    %32 = arith.addf %22, %31 : vector<8x512xf32>
    %c3 = arith.constant 3 : index
    %c0_16 = arith.constant 0 : index
    %c0_17 = arith.constant 0 : index
    %33 = vector.load %arg1[%c3, %c0_16, %c0_17] : memref<8x8x4xf32, #tpu.memory_space<vmem>>, vector<1x8x4xf32>
    %34 = vector.shape_cast %33 : vector<1x8x4xf32> to vector<8x4xf32>
    %cst_18 = arith.constant dense<0.000000e+00> : vector<8x512xf32>
    %35 = tpu.matmul %34, %0, %cst_18 {dimension_numbers = #tpu.dot_dimension_numbers<[1], [0], [0], [1], [0, 0, 1, 1], [], []>, precision = #tpu.contract_precision<fp32>} : vector<8x4xf32>, vector<4x512xf32>, vector<8x512xf32> -> vector<8x512xf32>
    %c3_i32 = arith.constant 3 : i32
    %36 = vector.broadcast %c3_i32 : i32 to vector<1x512xi32>
    %37 = arith.cmpi eq, %1, %36 : vector<1x512xi32>
    %cst_19 = arith.constant 0.000000e+00 : f32
    %38 = vector.shape_cast %37 : vector<1x512xi1> to vector<1x512xi1>
    %39 = vector.broadcast %38 : vector<1x512xi1> to vector<8x512xi1>
    %40 = vector.broadcast %cst_19 : f32 to vector<8x512xf32>
    %41 = arith.select %39, %35, %40 : vector<8x512xi1>, vector<8x512xf32>
    %42 = arith.addf %32, %41 : vector<8x512xf32>
    %c4 = arith.constant 4 : index
    %c0_20 = arith.constant 0 : index
    %c0_21 = arith.constant 0 : index
    %43 = vector.load %arg1[%c4, %c0_20, %c0_21] : memref<8x8x4xf32, #tpu.memory_space<vmem>>, vector<1x8x4xf32>
    %44 = vector.shape_cast %43 : vector<1x8x4xf32> to vector<8x4xf32>
    %cst_22 = arith.constant dense<0.000000e+00> : vector<8x512xf32>
    %45 = tpu.matmul %44, %0, %cst_22 {dimension_numbers = #tpu.dot_dimension_numbers<[1], [0], [0], [1], [0, 0, 1, 1], [], []>, precision = #tpu.contract_precision<fp32>} : vector<8x4xf32>, vector<4x512xf32>, vector<8x512xf32> -> vector<8x512xf32>
    %c4_i32 = arith.constant 4 : i32
    %46 = vector.broadcast %c4_i32 : i32 to vector<1x512xi32>
    %47 = arith.cmpi eq, %1, %46 : vector<1x512xi32>
    %cst_23 = arith.constant 0.000000e+00 : f32
    %48 = vector.shape_cast %47 : vector<1x512xi1> to vector<1x512xi1>
    %49 = vector.broadcast %48 : vector<1x512xi1> to vector<8x512xi1>
    %50 = vector.broadcast %cst_23 : f32 to vector<8x512xf32>
    %51 = arith.select %49, %45, %50 : vector<8x512xi1>, vector<8x512xf32>
    %52 = arith.addf %42, %51 : vector<8x512xf32>
    %c5 = arith.constant 5 : index
    %c0_24 = arith.constant 0 : index
    %c0_25 = arith.constant 0 : index
    %53 = vector.load %arg1[%c5, %c0_24, %c0_25] : memref<8x8x4xf32, #tpu.memory_space<vmem>>, vector<1x8x4xf32>
    %54 = vector.shape_cast %53 : vector<1x8x4xf32> to vector<8x4xf32>
    %cst_26 = arith.constant dense<0.000000e+00> : vector<8x512xf32>
    %55 = tpu.matmul %54, %0, %cst_26 {dimension_numbers = #tpu.dot_dimension_numbers<[1], [0], [0], [1], [0, 0, 1, 1], [], []>, precision = #tpu.contract_precision<fp32>} : vector<8x4xf32>, vector<4x512xf32>, vector<8x512xf32> -> vector<8x512xf32>
    %c5_i32 = arith.constant 5 : i32
    %56 = vector.broadcast %c5_i32 : i32 to vector<1x512xi32>
    %57 = arith.cmpi eq, %1, %56 : vector<1x512xi32>
    %cst_27 = arith.constant 0.000000e+00 : f32
    %58 = vector.shape_cast %57 : vector<1x512xi1> to vector<1x512xi1>
    %59 = vector.broadcast %58 : vector<1x512xi1> to vector<8x512xi1>
    %60 = vector.broadcast %cst_27 : f32 to vector<8x512xf32>
    %61 = arith.select %59, %55, %60 : vector<8x512xi1>, vector<8x512xf32>
    %62 = arith.addf %52, %61 : vector<8x512xf32>
    %c6 = arith.constant 6 : index
    %c0_28 = arith.constant 0 : index
    %c0_29 = arith.constant 0 : index
    %63 = vector.load %arg1[%c6, %c0_28, %c0_29] : memref<8x8x4xf32, #tpu.memory_space<vmem>>, vector<1x8x4xf32>
    %64 = vector.shape_cast %63 : vector<1x8x4xf32> to vector<8x4xf32>
    %cst_30 = arith.constant dense<0.000000e+00> : vector<8x512xf32>
    %65 = tpu.matmul %64, %0, %cst_30 {dimension_numbers = #tpu.dot_dimension_numbers<[1], [0], [0], [1], [0, 0, 1, 1], [], []>, precision = #tpu.contract_precision<fp32>} : vector<8x4xf32>, vector<4x512xf32>, vector<8x512xf32> -> vector<8x512xf32>
    %c6_i32 = arith.constant 6 : i32
    %66 = vector.broadcast %c6_i32 : i32 to vector<1x512xi32>
    %67 = arith.cmpi eq, %1, %66 : vector<1x512xi32>
    %cst_31 = arith.constant 0.000000e+00 : f32
    %68 = vector.shape_cast %67 : vector<1x512xi1> to vector<1x512xi1>
    %69 = vector.broadcast %68 : vector<1x512xi1> to vector<8x512xi1>
    %70 = vector.broadcast %cst_31 : f32 to vector<8x512xf32>
    %71 = arith.select %69, %65, %70 : vector<8x512xi1>, vector<8x512xf32>
    %72 = arith.addf %62, %71 : vector<8x512xf32>
    %c7 = arith.constant 7 : index
    %c0_32 = arith.constant 0 : index
    %c0_33 = arith.constant 0 : index
    %73 = vector.load %arg1[%c7, %c0_32, %c0_33] : memref<8x8x4xf32, #tpu.memory_space<vmem>>, vector<1x8x4xf32>
    %74 = vector.shape_cast %73 : vector<1x8x4xf32> to vector<8x4xf32>
    %cst_34 = arith.constant dense<0.000000e+00> : vector<8x512xf32>
    %75 = tpu.matmul %74, %0, %cst_34 {dimension_numbers = #tpu.dot_dimension_numbers<[1], [0], [0], [1], [0, 0, 1, 1], [], []>, precision = #tpu.contract_precision<fp32>} : vector<8x4xf32>, vector<4x512xf32>, vector<8x512xf32> -> vector<8x512xf32>
    %c7_i32 = arith.constant 7 : i32
    %76 = vector.broadcast %c7_i32 : i32 to vector<1x512xi32>
    %77 = arith.cmpi eq, %1, %76 : vector<1x512xi32>
    %cst_35 = arith.constant 0.000000e+00 : f32
    %78 = vector.shape_cast %77 : vector<1x512xi1> to vector<1x512xi1>
    %79 = vector.broadcast %78 : vector<1x512xi1> to vector<8x512xi1>
    %80 = vector.broadcast %cst_35 : f32 to vector<8x512xf32>
    %81 = arith.select %79, %75, %80 : vector<8x512xi1>, vector<8x512xf32>
    %82 = arith.addf %72, %81 : vector<8x512xf32>
    %c0_36 = arith.constant 0 : index
    %c0_37 = arith.constant 0 : index
    %83 = vector.load %arg4[%c0_36, %c0_37] : memref<8x512xf32, #tpu.memory_space<vmem>>, vector<8x512xf32>
    tpu.vector_store %arg4[%c0_36, %c0_37], %82 {strides = array<i32>} : memref<8x512xf32, #tpu.memory_space<vmem>>, vector<8x512xf32>,
    return
  }
  func.func @transform_0(%arg0: i32) -> (i32, i32, i32) {
    %c0_i32 = arith.constant 0 : i32
    %c0_i32_0 = arith.constant 0 : i32
    %c0_i32_1 = arith.constant 0 : i32
    %c0_i32_2 = arith.constant 0 : i32
    return %c0_i32, %c0_i32_0, %c0_i32_1 : i32, i32, i32
  }
  func.func @transform_1(%arg0: i32) -> (i32, i32) {
    %c0_i32 = arith.constant 0 : i32
    %c0_i32_0 = arith.constant 0 : i32
    return %c0_i32, %arg0 : i32, i32
  }
  func.func @transform_2(%arg0: i32) -> (i32, i32) {
    %c0_i32 = arith.constant 0 : i32
    %c0_i32_0 = arith.constant 0 : i32
    return %c0_i32, %arg0 : i32, i32
  }
  func.func @transform_3(%arg0: i32) -> (i32, i32) {
    %c0_i32 = arith.constant 0 : i32
    %c0_i32_0 = arith.constant 0 : i32
    return %c0_i32, %arg0 : i32, i32
  }
}

</mosaic_0001>

<llo_original>
// kernel: urdf_forward_pallas.1
$region0: #{urdf_forward_pallas.1}
  #allocation0 [shape = 'u32[]', space=smem, size = 0x4, offset = 0x4, fixed_abs, tag = 'smem constant byte address 0x4 - core index']
  #allocation1 [shape = 'u32[144,128]{1,0:T(1,128)}', space=vmem, size = 0x12000, scoped, tag = 'internal scratch']
  %s0 = inlined_call_operand.vmem [shape: f32[8,8,4], index: 0, kind: input, shape index: {}]
  %s1 = inlined_call_operand.vmem [shape: f32[4,1024], index: 1, kind: input, shape index: {}]
  %s2 = inlined_call_operand.vmem [shape: s32[1,1024], index: 2, kind: input, shape index: {}]
  %s3 = inlined_call_operand.vmem [shape: f32[8,1024], index: 3, kind: output, shape index: {}]
  %s4 = sld [smem:[#allocation0]]
  $region45: #{urdf_forward_pallas.1} parent=0
    _
  %s6 = ssub.s32 1, %s4
  %s7 = scalar_select 0, %s6, %s4
  loop: start=0, step=1, limit=4
  $region2: #{urdf_forward_pallas.1} parent=0 // loop_pre_header
    _
  $region3: #{urdf_forward_pallas.1} parent=0 // loop_header
    %s9 = sphi 0, %s13
    %p10 = scmp.ge.s32.totalorder %s9, 4
    %s17 = sphi 0, %s17
    %s19 = sphi 0, %s17
    %s20 = sphi 0, %s19
    %s34 = sphi 0, %s20
    %s40 = sphi 0, %s42
    %s43 = sphi 0, %s40
    %s44 = sphi 0, %s43
    %s60 = sphi 0, %s44
    %s66 = sphi 0, %s68
    %s69 = sphi 0, %s66
    %s70 = sphi 0, %s69
    %s86 = sphi 0, %s70
    %s92 = sphi 0, %s94
    %s95 = sphi 0, %s92
    %s96 = sphi 0, %s95
    %s112 = sphi 0, %s96
  $region4: #{urdf_forward_pallas.1} parent=0 // loop_header_branch
    %12 = sbr.rel (%p10) target = $region8
  $region5: #{urdf_forward_pallas.1} parent=0 // loop_body
    %s14 = ssub.s32 %s9, 1
    %s15 = ssub.s32 %s9, 2
    %s16 = sadd.s32 %s9, 1
    %s18 = sadd.s32 %s17, 1
    %p21 = scmp.eq.s32.totalorder %s9, 1
    %p22 = scmp.ne.s32.totalorder %s17, %s19
    %p23 = scmp.eq.s32.totalorder %s9, 0
    %p24 = por %p22, %p23
    %p25 = scmp.ne.s32.totalorder %s17, %s19
    %p26 = scmp.eq.s32.totalorder %s14, 1
    %p27 = por %p25, %p26
    %p28 = scmp.ne.s32.totalorder %s19, %s20
    %p29 = scmp.eq.s32.totalorder %s14, 0
    %p30 = por %p28, %p29
    %p31 = scmp.ne.s32.totalorder %s19, %s20
    %p32 = scmp.eq.s32.totalorder %s15, 1
    %p33 = por %p31, %p32
    %p35 = scmp.ne.s32.totalorder %s20, %s34
    %p36 = scmp.eq.s32.totalorder %s15, 0
    %p37 = por %p35, %p36
    %s38 = ssub.s32 %s9, %s16
    %p39 = scmp.eq.s32.totalorder %s38, 0
    %s41 = sadd.s32 %s40, 1
    %s42 = scalar_select %p39, %s40, %s41
    %p45 = pneg %p39
    %p46 = scmp.eq.s32.totalorder %s9, 1
    %p47 = por %p45, %p46
    %p48 = scmp.ne.s32.totalorder %s40, %s43
    %p49 = scmp.eq.s32.totalorder %s9, 0
    %p50 = por %p48, %p49
    %p51 = scmp.ne.s32.totalorder %s40, %s43
    %p52 = scmp.eq.s32.totalorder %s14, 1
    %p53 = por %p51, %p52
    %p54 = scmp.ne.s32.totalorder %s43, %s44
    %p55 = scmp.eq.s32.totalorder %s14, 0
    %p56 = por %p54, %p55
    %p57 = scmp.ne.s32.totalorder %s43, %s44
    %p58 = scmp.eq.s32.totalorder %s15, 1
    %p59 = por %p57, %p58
    %p61 = scmp.ne.s32.totalorder %s44, %s60
    %p62 = scmp.eq.s32.totalorder %s15, 0
    %p63 = por %p61, %p62
    %s64 = ssub.s32 %s9, %s16
    %p65 = scmp.eq.s32.totalorder %s64, 0
    %s67 = sadd.s32 %s66, 1
    %s68 = scalar_select %p65, %s66, %s67
    %p71 = pneg %p65
    %p72 = scmp.eq.s32.totalorder %s9, 1
    %p73 = por %p71, %p72
    %p74 = scmp.ne.s32.totalorder %s66, %s69
    %p75 = scmp.eq.s32.totalorder %s9, 0
    %p76 = por %p74, %p75
    %p77 = scmp.ne.s32.totalorder %s66, %s69
    %p78 = scmp.eq.s32.totalorder %s14, 1
    %p79 = por %p77, %p78
    %p80 = scmp.ne.s32.totalorder %s69, %s70
    %p81 = scmp.eq.s32.totalorder %s14, 0
    %p82 = por %p80, %p81
    %p83 = scmp.ne.s32.totalorder %s69, %s70
    %p84 = scmp.eq.s32.totalorder %s15, 1
    %p85 = por %p83, %p84
    %p87 = scmp.ne.s32.totalorder %s70, %s86
    %p88 = scmp.eq.s32.totalorder %s15, 0
    %p89 = por %p87, %p88
    %s90 = ssub.s32 %s9, %s16
    %p91 = scmp.eq.s32.totalorder %s90, 0
    %s93 = sadd.s32 %s92, 1
    %s94 = scalar_select %p91, %s92, %s93
    %p97 = pneg %p91
    %p98 = scmp.eq.s32.totalorder %s9, 1
    %p99 = por %p97, %p98
    %p100 = scmp.ne.s32.totalorder %s92, %s95
    %p101 = scmp.eq.s32.totalorder %s9, 0
    %p102 = por %p100, %p101
    %p103 = scmp.ne.s32.totalorder %s92, %s95
    %p104 = scmp.eq.s32.totalorder %s14, 1
    %p105 = por %p103, %p104
    %p106 = scmp.ne.s32.totalorder %s95, %s96
    %p107 = scmp.eq.s32.totalorder %s14, 0
    %p108 = por %p106, %p107
    %p109 = scmp.ne.s32.totalorder %s95, %s96
    %p110 = scmp.eq.s32.totalorder %s15, 1
    %p111 = por %p109, %p110
    %p113 = scmp.ne.s32.totalorder %s96, %s112
    %p114 = scmp.eq.s32.totalorder %s15, 0
    %p115 = por %p113, %p114
    %p116 = scmp.le.s32.totalorder 1, %s9
    %p117 = scmp.lt.s32.totalorder %s9, 3
    %p118 = pnand %p116, %p117
    %p119 = pneg %p118
    // Predicated region
    $region9: #{urdf_forward_pallas.1} parent=5 // pred_check
      _
    $region10: #{urdf_forward_pallas.1} parent=5 // pred_check_branch
      %121 = sbr.rel (%p118) target = $region12
    $region11: #{urdf_forward_pallas.1} parent=5 // pred_region
      %s122 = ssub.s32 %s9, 1
      // Predicated region
      $region13: #{urdf_forward_pallas.1} parent=11 // pred_check
        %p123 = pneg %p30
      $region14: #{urdf_forward_pallas.1} parent=11 // pred_check_branch
        %125 = sbr.rel (%p123) target = $region16
      $region15: #{urdf_forward_pallas.1} parent=11 // pred_region
        _
      $region16: #{urdf_forward_pallas.1} parent=11 // pred_fallthru
        _
    $region12: #{urdf_forward_pallas.1} parent=5 // pred_fallthru
      _
    %p126 = scmp.lt.s32.totalorder %s9, 2
    // Predicated region
    $region17: #{urdf_forward_pallas.1} parent=5 // pred_check
      %p127 = pneg %p126
    $region18: #{urdf_forward_pallas.1} parent=5 // pred_check_branch
      %129 = sbr.rel (%p127) target = $region20
    $region19: #{urdf_forward_pallas.1} parent=5 // pred_region
      // Predicated region
      $region21: #{urdf_forward_pallas.1} parent=19 // pred_check
        %p130 = pneg %p50
      $region22: #{urdf_forward_pallas.1} parent=19 // pred_check_branch
        %132 = sbr.rel (%p130) target = $region24
      $region23: #{urdf_forward_pallas.1} parent=19 // pred_region
        %s133 = smul.u32 4, %s9
        %p134 = scmp.lt.s32.totalorder %s133, 7
        %s135 = scalar_select %p134, %s133, 7
        %s136 = smul.addr %s135, 4
        %s137 = scalar_lea.vmem %s1, %s136
        %s138 = smul.u32 4, %s9
      $region24: #{urdf_forward_pallas.1} parent=19 // pred_fallthru
        _
      // Predicated region
      $region25: #{urdf_forward_pallas.1} parent=19 // pred_check
        %p139 = pneg %p76
      $region26: #{urdf_forward_pallas.1} parent=19 // pred_check_branch
        %141 = sbr.rel (%p139) target = $region28
      $region27: #{urdf_forward_pallas.1} parent=19 // pred_region
        %s142 = smul.u32 4, %s9
        %p143 = scmp.lt.s32.totalorder %s142, 7
        %s144 = scalar_select %p143, %s142, 7
        %s145 = scalar_lea.vmem %s2, %s144
        %s146 = smul.u32 4, %s9
      $region28: #{urdf_forward_pallas.1} parent=19 // pred_fallthru
        _
    $region20: #{urdf_forward_pallas.1} parent=5 // pred_fallthru
      _
    %p147 = scmp.le.s32.totalorder 1, %s9
    %p148 = scmp.lt.s32.totalorder %s9, 3
    %p149 = pnand %p147, %p148
    %p150 = pneg %p149
    // Predicated region
    $region29: #{urdf_forward_pallas.1} parent=5 // pred_check
      _
    $region30: #{urdf_forward_pallas.1} parent=5 // pred_check_branch
      %152 = sbr.rel (%p149) target = $region32
    $region31: #{urdf_forward_pallas.1} parent=5 // pred_region
      %s153 = ssub.s32 %s9, 1
      %p154 = pneg %p30
      %p155 = pneg %p27
      %s156 = smul.u32 4, %s14
      %p157 = scmp.lt.s32.totalorder %s156, 7
      %s158 = scalar_select %p157, %s156, 7
      %s159 = smul.addr %s158, 4
      %s160 = scalar_lea.vmem %s1, %s159
      %p161 = pneg %p56
      %p162 = pneg %p53
      %s163 = smul.u32 4, %s14
      %p164 = scmp.lt.s32.totalorder %s163, 7
      %s165 = scalar_select %p164, %s163, 7
      %s166 = scalar_lea.vmem %s2, %s165
      %p167 = pneg %p82
      %p168 = pneg %p79
      %p169 = pneg %p108
      %p170 = pneg %p105
      %s171 = smul.u32 4, %s14
      %p172 = scmp.lt.s32.totalorder %s171, 7
      %s173 = scalar_select %p172, %s171, 7
      %s174 = smul.addr %s173, 8
      %s175 = scalar_lea.vmem %s3, %s174
      %s176 = smul.u32 4, %s14
      %p177 = scmp.lt.s32.totalorder %s176, 7
      %s178 = scalar_select %p177, %s176, 7
      %s179 = smul.addr %s178, 4
      %s180 = scalar_lea.vmem %s1, %s179
      %s181 = smul.u32 4, %s14
      %s182 = smul.u32 4, %s14
      %p183 = scmp.lt.s32.totalorder %s182, 7
      %s184 = scalar_select %p183, %s182, 7
      %s185 = scalar_lea.vmem %s2, %s184
      %s186 = smul.u32 4, %s14
      %s187 = smul.u32 4, %s14
      %p188 = scmp.lt.s32.totalorder %s187, 7
      %s189 = scalar_select %p188, %s187, 7
      %s190 = smul.addr %s189, 8
      %s191 = scalar_lea.vmem %s3, %s190
      %s192 = smul.u32 4, %s14
      %v193 = vld [vmem:[%s180] sm:$0xff]
      %v194 = vld [vmem:[%s180 + $0x8] sm:$0xff]
      %v195 = vld [vmem:[%s185] sm:$0xf]
      %v196 = vld [vmem:[%s0] sm:$0xff]
      %v199 = vcombine.high %v193, %v193
      %v200 = vcombine.high %v194, %v194
      %vm201 = vcmask 31744
      %v203 = vsel %vm201, %v196, 0
      %vm205 = vcmask 1043456
      %v206 = vsel %vm205, %v193, 0
      %v208 = vsel %vm205, %v199, 0
      %v210 = vsel %vm205, %v194, 0
      %v212 = vsel %vm205, %v200, 0
      %v214 = vand.u32 %v208, 4294901760
      %215 = vmatprep.subr.mxu0 %v214
      %v216 = vand.u32 %v206, 4294901760
      %217 = vmatpush1.msra.mxu0 %v216
      %218 = vmatprep.subr.mxu0 0.0
      %219 = vmatpush1.msra.mxu0 0.0
      %220 = vmatprep.subr.mxu0 0.0
      %221 = vmatpush1.msra.mxu0 0.0
      %222 = vmatprep.subr.mxu0 0.0
      %223 = vmatpush1.msra.mxu0 0.0
      %224 = vmatprep.subr.mxu0 0.0
      %225 = vmatpush1.msra.mxu0 0.0
      %226 = vmatprep.subr.mxu0 0.0
      %227 = vmatpush1.msra.mxu0 0.0
      %228 = vmatprep.subr.mxu0 0.0
      %229 = vmatpush1.msra.mxu0 0.0
      %230 = vmatprep.subr.mxu0 0.0
      %231 = vmatpush1.msra.mxu0 0.0
      %232 = vmatprep.subr.mxu0 0.0
      %233 = vmatpush1.msra.mxu0 0.0
      %234 = vmatprep.subr.mxu0 0.0
      %235 = vmatpush1.msra.mxu0 0.0
      %236 = vmatprep.subr.mxu0 0.0
      %237 = vmatpush1.msra.mxu0 0.0
      %238 = vmatprep.subr.mxu0 0.0
      %239 = vmatpush1.msra.mxu0 0.0
      %240 = vmatprep.subr.mxu0 0.0
      %241 = vmatpush1.msra.mxu0 0.0
      %242 = vmatprep.subr.mxu0 0.0
      %243 = vmatpush1.msra.mxu0 0.0
      %244 = vmatprep.subr.mxu0 0.0
      %245 = vmatpush1.msra.mxu0 0.0
      %246 = vmatprep.subr.mxu0 0.0
      %247 = vmatpush1.msra.mxu0 0.0
      %248 = vmatprep.subr.mxu0 0.0
      %249 = vmatpush1.msra.mxu0 0.0
      %250 = vmatprep.subr.mxu0 0.0
      %251 = vmatpush1.msra.mxu0 0.0
      %252 = vmatprep.subr.mxu0 0.0
      %253 = vmatpush1.msra.mxu0 0.0
      %254 = vmatprep.subr.mxu0 0.0
      %255 = vmatpush1.msra.mxu0 0.0
      %256 = vmatprep.subr.mxu0 0.0
      %257 = vmatpush1.msra.mxu0 0.0
      %258 = vmatprep.subr.mxu0 0.0
      %259 = vmatpush1.msra.mxu0 0.0
      %260 = vmatprep.subr.mxu0 0.0
      %261 = vmatpush1.msra.mxu0 0.0
      %262 = vmatprep.subr.mxu0 0.0
      %263 = vmatpush1.msra.mxu0 0.0
      %264 = vmatprep.subr.mxu0 0.0
      %265 = vmatpush1.msra.mxu0 0.0
      %266 = vmatprep.subr.mxu0 0.0
      %267 = vmatpush1.msra.mxu0 0.0
      %268 = vmatprep.subr.mxu0 0.0
      %269 = vmatpush1.msra.mxu0 0.0
      %270 = vmatprep.subr.mxu0 0.0
      %271 = vmatpush1.msra.mxu0 0.0
      %272 = vmatprep.subr.mxu0 0.0
      %273 = vmatpush1.msra.mxu0 0.0
      %274 = vmatprep.subr.mxu0 0.0
      %275 = vmatpush1.msra.mxu0 0.0
      %276 = vmatprep.subr.mxu0 0.0
      %277 = vmatpush1.msra.mxu0 0.0
      %278 = vmatprep.subr.mxu0 0.0
      %279 = vmatpush1.msra.mxu0 0.0
      %280 = vmatprep.mubr.f32.mxu0 0.0
      %v281 = vand.u32 %v203, 4294901760
      %v282 = vsub.f32 %v203, %v281
      %v283 = vand.u32 %v282, 4294901760
      %v284 = vsub.f32 %v282, %v283
      %v285 = vand.u32 %v284, 4294901760
      %286 = vmatmul.mubr.f32.gmra.mrb[0].mxu0 %v285
      %v287 = vpop.f32.mrb[0].mxu0
      %v288 = vadd.f32 0.0, %v287
      %v289 = vpop.f32.mrb[0].mxu0
      %v290 = vadd.f32 0.0, %v289
      %291 = vdwg.mxu0
      %v292 = vand.u32 %v208, 4294901760
      %v293 = vsub.f32 %v208, %v292
      %v294 = vand.u32 %v293, 4294901760
      %v295 = vsub.f32 %v293, %v294
      %v296 = vand.u32 %v295, 4294901760
      %297 = vmatprep.subr.mxu0 %v296
      %v298 = vand.u32 %v206, 4294901760
      %v299 = vsub.f32 %v206, %v298
      %v300 = vand.u32 %v299, 4294901760
      %v301 = vsub.f32 %v299, %v300
      %v302 = vand.u32 %v301, 4294901760
      %303 = vmatpush1.msra.mxu0 %v302
      %304 = vmatprep.subr.mxu0 0.0
      %305 = vmatpush1.msra.mxu0 0.0
      %306 = vmatprep.subr.mxu0 0.0
      %307 = vmatpush1.msra.mxu0 0.0
      %308 = vmatprep.subr.mxu0 0.0
      %309 = vmatpush1.msra.mxu0 0.0
      %310 = vmatprep.subr.mxu0 0.0
      %311 = vmatpush1.msra.mxu0 0.0
      %312 = vmatprep.subr.mxu0 0.0
      %313 = vmatpush1.msra.mxu0 0.0
      %314 = vmatprep.subr.mxu0 0.0
      %315 = vmatpush1.msra.mxu0 0.0
      %316 = vmatprep.subr.mxu0 0.0
      %317 = vmatpush1.msra.mxu0 0.0
      %318 = vmatprep.subr.mxu0 0.0
      %319 = vmatpush1.msra.mxu0 0.0
      %320 = vmatprep.subr.mxu0 0.0
      %321 = vmatpush1.msra.mxu0 0.0
      %322 = vmatprep.subr.mxu0 0.0
      %323 = vmatpush1.msra.mxu0 0.0
      %324 = vmatprep.subr.mxu0 0.0
      %325 = vmatpush1.msra.mxu0 0.0
      %326 = vmatprep.subr.mxu0 0.0
      %327 = vmatpush1.msra.mxu0 0.0
      %328 = vmatprep.subr.mxu0 0.0
      %329 = vmatpush1.msra.mxu0 0.0
      %330 = vmatprep.subr.mxu0 0.0
      %331 = vmatpush1.msra.mxu0 0.0
      %332 = vmatprep.subr.mxu0 0.0
      %333 = vmatpush1.msra.mxu0 0.0
      %334 = vmatprep.subr.mxu0 0.0
      %335 = vmatpush1.msra.mxu0 0.0
      %336 = vmatprep.subr.mxu0 0.0
      %337 = vmatpush1.msra.mxu0 0.0
      %338 = vmatprep.subr.mxu0 0.0
      %339 = vmatpush1.msra.mxu0 0.0
      %340 = vmatprep.subr.mxu0 0.0
      %341 = vmatpush1.msra.mxu0 0.0
      %342 = vmatprep.subr.mxu0 0.0
      %343 = vmatpush1.msra.mxu0 0.0
      %344 = vmatprep.subr.mxu0 0.0
      %345 = vmatpush1.msra.mxu0 0.0
      %346 = vmatprep.subr.mxu0 0.0
      %347 = vmatpush1.msra.mxu0 0.0
      %348 = vmatprep.subr.mxu0 0.0
      %349 = vmatpush1.msra.mxu0 0.0
      %350 = vmatprep.subr.mxu0 0.0
      %351 = vmatpush1.msra.mxu0 0.0
      %352 = vmatprep.subr.mxu0 0.0
      %353 = vmatpush1.msra.mxu0 0.0
      %354 = vmatprep.subr.mxu0 0.0
      %355 = vmatpush1.msra.mxu0 0.0
      %356 = vmatprep.subr.mxu0 0.0
      %357 = vmatpush1.msra.mxu0 0.0
      %358 = vmatprep.subr.mxu0 0.0
      %359 = vmatpush1.msra.mxu0 0.0
      %360 = vmatprep.subr.mxu0 0.0
      %361 = vmatpush1.msra.mxu0 0.0
      %362 = vmatprep.subr.mxu0 0.0
      %363 = vmatpush1.msra.mxu0 0.0
      %364 = vmatprep.subr.mxu0 0.0
      %365 = vmatpush1.msra.mxu0 0.0
      %366 = vmatprep.mubr.f32.mxu0 0.0
      %v367 = vand.u32 %v203, 4294901760
      %368 = vmatmul.mubr.f32.gmra.mrb[0].mxu0 %v367
      %v369 = vpop.f32.mrb[0].mxu0
      %v370 = vadd.f32 %v288, %v369
      %v371 = vpop.f32.mrb[0].mxu0
      %v372 = vadd.f32 %v290, %v371
      %373 = vdwg.mxu0
      %v374 = vand.u32 %v208, 4294901760
      %v375 = vsub.f32 %v208, %v374
      %376 = vmatprep.subr.mxu0 %v375
      %v377 = vand.u32 %v206, 4294901760
      %v378 = vsub.f32 %v206, %v377
      %379 = vmatpush1.msra.mxu0 %v378
      %380 = vmatprep.subr.mxu0 0.0
      %381 = vmatpush1.msra.mxu0 0.0
      %382 = vmatprep.subr.mxu0 0.0
      %383 = vmatpush1.msra.mxu0 0.0
      %384 = vmatprep.subr.mxu0 0.0
      %385 = vmatpush1.msra.mxu0 0.0
      %386 = vmatprep.subr.mxu0 0.0
      %387 = vmatpush1.msra.mxu0 0.0
      %388 = vmatprep.subr.mxu0 0.0
      %389 = vmatpush1.msra.mxu0 0.0
      %390 = vmatprep.subr.mxu0 0.0
      %391 = vmatpush1.msra.mxu0 0.0
      %392 = vmatprep.subr.mxu0 0.0
      %393 = vmatpush1.msra.mxu0 0.0
      %394 = vmatprep.subr.mxu0 0.0
      %395 = vmatpush1.msra.mxu0 0.0
      %396 = vmatprep.subr.mxu0 0.0
      %397 = vmatpush1.msra.mxu0 0.0
      %398 = vmatprep.subr.mxu0 0.0
      %399 = vmatpush1.msra.mxu0 0.0
      %400 = vmatprep.subr.mxu0 0.0
      %401 = vmatpush1.msra.mxu0 0.0
      %402 = vmatprep.subr.mxu0 0.0
      %403 = vmatpush1.msra.mxu0 0.0
      %404 = vmatprep.subr.mxu0 0.0
      %405 = vmatpush1.msra.mxu0 0.0
      %406 = vmatprep.subr.mxu0 0.0
      %407 = vmatpush1.msra.mxu0 0.0
      %408 = vmatprep.subr.mxu0 0.0
      %409 = vmatpush1.msra.mxu0 0.0
      %410 = vmatprep.subr.mxu0 0.0
      %411 = vmatpush1.msra.mxu0 0.0
      %412 = vmatprep.subr.mxu0 0.0
      %413 = vmatpush1.msra.mxu0 0.0
      %414 = vmatprep.subr.mxu0 0.0
      %415 = vmatpush1.msra.mxu0 0.0
      %416 = vmatprep.subr.mxu0 0.0
      %417 = vmatpush1.msra.mxu0 0.0
      %418 = vmatprep.subr.mxu0 0.0
      %419 = vmatpush1.msra.mxu0 0.0
      %420 = vmatprep.subr.mxu0 0.0
      %421 = vmatpush1.msra.mxu0 0.0
      %422 = vmatprep.subr.mxu0 0.0
      %423 = vmatpush1.msra.mxu0 0.0
      %424 = vmatprep.subr.mxu0 0.0
      %425 = vmatpush1.msra.mxu0 0.0
      %426 = vmatprep.subr.mxu0 0.0
      %427 = vmatpush1.msra.mxu0 0.0
      %428 = vmatprep.subr.mxu0 0.0
      %429 = vmatpush1.msra.mxu0 0.0
      %430 = vmatprep.subr.mxu0 0.0
      %431 = vmatpush1.msra.mxu0 0.0
      %432 = vmatprep.subr.mxu0 0.0
      %433 = vmatpush1.msra.mxu0 0.0
      %434 = vmatprep.subr.mxu0 0.0
      %435 = vmatpush1.msra.mxu0 0.0
      %436 = vmatprep.subr.mxu0 0.0
      %437 = vmatpush1.msra.mxu0 0.0
      %438 = vmatprep.subr.mxu0 0.0
      %439 = vmatpush1.msra.mxu0 0.0
      %440 = vmatprep.subr.mxu0 0.0
      %441 = vmatpush1.msra.mxu0 0.0
      %442 = vmatprep.mubr.f32.mxu0 0.0
      %v443 = vand.u32 %v203, 4294901760
      %v444 = vsub.f32 %v203, %v443
      %445 = vmatmul.mubr.f32.gmra.mrb[0].mxu0 %v444
      %v446 = vpop.f32.mrb[0].mxu0
      %v447 = vadd.f32 %v370, %v446
      %v448 = vpop.f32.mrb[0].mxu0
      %v449 = vadd.f32 %v372, %v448
      %450 = vdwg.mxu0
      %v451 = vand.u32 %v208, 4294901760
      %452 = vmatprep.subr.mxu0 %v451
      %v453 = vand.u32 %v206, 4294901760
      %454 = vmatpush1.msra.mxu0 %v453
      %455 = vmatprep.subr.mxu0 0.0
      %456 = vmatpush1.msra.mxu0 0.0
      %457 = vmatprep.subr.mxu0 0.0
      %458 = vmatpush1.msra.mxu0 0.0
      %459 = vmatprep.subr.mxu0 0.0
      %460 = vmatpush1.msra.mxu0 0.0
      %461 = vmatprep.subr.mxu0 0.0
      %462 = vmatpush1.msra.mxu0 0.0
      %463 = vmatprep.subr.mxu0 0.0
      %464 = vmatpush1.msra.mxu0 0.0
      %465 = vmatprep.subr.mxu0 0.0
      %466 = vmatpush1.msra.mxu0 0.0
      %467 = vmatprep.subr.mxu0 0.0
      %468 = vmatpush1.msra.mxu0 0.0
      %469 = vmatprep.subr.mxu0 0.0
      %470 = vmatpush1.msra.mxu0 0.0
      %471 = vmatprep.subr.mxu0 0.0
      %472 = vmatpush1.msra.mxu0 0.0
      %473 = vmatprep.subr.mxu0 0.0
      %474 = vmatpush1.msra.mxu0 0.0
      %475 = vmatprep.subr.mxu0 0.0
      %476 = vmatpush1.msra.mxu0 0.0
      %477 = vmatprep.subr.mxu0 0.0
      %478 = vmatpush1.msra.mxu0 0.0
      %479 = vmatprep.subr.mxu0 0.0
      %480 = vmatpush1.msra.mxu0 0.0
      %481 = vmatprep.subr.mxu0 0.0
      %482 = vmatpush1.msra.mxu0 0.0
      %483 = vmatprep.subr.mxu0 0.0
      %484 = vmatpush1.msra.mxu0 0.0
      %485 = vmatprep.subr.mxu0 0.0
      %486 = vmatpush1.msra.mxu0 0.0
      %487 = vmatprep.subr.mxu0 0.0
      %488 = vmatpush1.msra.mxu0 0.0
      %489 = vmatprep.subr.mxu0 0.0
      %490 = vmatpush1.msra.mxu0 0.0
      %491 = vmatprep.subr.mxu0 0.0
      %492 = vmatpush1.msra.mxu0 0.0
      %493 = vmatprep.subr.mxu0 0.0
      %494 = vmatpush1.msra.mxu0 0.0
      %495 = vmatprep.subr.mxu0 0.0
      %496 = vmatpush1.msra.mxu0 0.0
      %497 = vmatprep.subr.mxu0 0.0
      %498 = vmatpush1.msra.mxu0 0.0
      %499 = vmatprep.subr.mxu0 0.0
      %500 = vmatpush1.msra.mxu0 0.0
      %501 = vmatprep.subr.mxu0 0.0
      %502 = vmatpush1.msra.mxu0 0.0
      %503 = vmatprep.subr.mxu0 0.0
      %504 = vmatpush1.msra.mxu0 0.0
      %505 = vmatprep.subr.mxu0 0.0
      %506 = vmatpush1.msra.mxu0 0.0
      %507 = vmatprep.subr.mxu0 0.0
      %508 = vmatpush1.msra.mxu0 0.0
      %509 = vmatprep.subr.mxu0 0.0
      %510 = vmatpush1.msra.mxu0 0.0
      %511 = vmatprep.subr.mxu0 0.0
      %512 = vmatpush1.msra.mxu0 0.0
      %513 = vmatprep.subr.mxu0 0.0
      %514 = vmatpush1.msra.mxu0 0.0
      %515 = vmatprep.subr.mxu0 0.0
      %516 = vmatpush1.msra.mxu0 0.0
      %517 = vmatprep.mubr.f32.mxu0 0.0
      %v518 = vand.u32 %v203, 4294901760
      %v519 = vsub.f32 %v203, %v518
      %v520 = vand.u32 %v519, 4294901760
      %521 = vmatmul.mubr.f32.gmra.mrb[0].mxu0 %v520
      %v522 = vpop.f32.mrb[0].mxu0
      %v523 = vadd.f32 %v447, %v522
      %v524 = vpop.f32.mrb[0].mxu0
      %v525 = vadd.f32 %v449, %v524
      %526 = vdwg.mxu0
      %v527 = vand.u32 %v208, 4294901760
      %v528 = vsub.f32 %v208, %v527
      %v529 = vand.u32 %v528, 4294901760
      %530 = vmatprep.subr.mxu0 %v529
      %v531 = vand.u32 %v206, 4294901760
      %v532 = vsub.f32 %v206, %v531
      %v533 = vand.u32 %v532, 4294901760
      %534 = vmatpush1.msra.mxu0 %v533
      %535 = vmatprep.subr.mxu0 0.0
      %536 = vmatpush1.msra.mxu0 0.0
      %537 = vmatprep.subr.mxu0 0.0
      %538 = vmatpush1.msra.mxu0 0.0
      %539 = vmatprep.subr.mxu0 0.0
      %540 = vmatpush1.msra.mxu0 0.0
      %541 = vmatprep.subr.mxu0 0.0
      %542 = vmatpush1.msra.mxu0 0.0
      %543 = vmatprep.subr.mxu0 0.0
      %544 = vmatpush1.msra.mxu0 0.0
      %545 = vmatprep.subr.mxu0 0.0
      %546 = vmatpush1.msra.mxu0 0.0
      %547 = vmatprep.subr.mxu0 0.0
      %548 = vmatpush1.msra.mxu0 0.0
      %549 = vmatprep.subr.mxu0 0.0
      %550 = vmatpush1.msra.mxu0 0.0
      %551 = vmatprep.subr.mxu0 0.0
      %552 = vmatpush1.msra.mxu0 0.0
      %553 = vmatprep.subr.mxu0 0.0
      %554 = vmatpush1.msra.mxu0 0.0
      %555 = vmatprep.subr.mxu0 0.0
      %556 = vmatpush1.msra.mxu0 0.0
      %557 = vmatprep.subr.mxu0 0.0
      %558 = vmatpush1.msra.mxu0 0.0
      %559 = vmatprep.subr.mxu0 0.0
      %560 = vmatpush1.msra.mxu0 0.0
      %561 = vmatprep.subr.mxu0 0.0
      %562 = vmatpush1.msra.mxu0 0.0
      %563 = vmatprep.subr.mxu0 0.0
      %564 = vmatpush1.msra.mxu0 0.0
      %565 = vmatprep.subr.mxu0 0.0
      %566 = vmatpush1.msra.mxu0 0.0
      %567 = vmatprep.subr.mxu0 0.0
      %568 = vmatpush1.msra.mxu0 0.0
      %569 = vmatprep.subr.mxu0 0.0
      %570 = vmatpush1.msra.mxu0 0.0
      %571 = vmatprep.subr.mxu0 0.0
      %572 = vmatpush1.msra.mxu0 0.0
      %573 = vmatprep.subr.mxu0 0.0
      %574 = vmatpush1.msra.mxu0 0.0
      %575 = vmatprep.subr.mxu0 0.0
      %576 = vmatpush1.msra.mxu0 0.0
      %577 = vmatprep.subr.mxu0 0.0
      %578 = vmatpush1.msra.mxu0 0.0
      %579 = vmatprep.subr.mxu0 0.0
      %580 = vmatpush1.msra.mxu0 0.0
      %581 = vmatprep.subr.mxu0 0.0
      %582 = vmatpush1.msra.mxu0 0.0
      %583 = vmatprep.subr.mxu0 0.0
      %584 = vmatpush1.msra.mxu0 0.0
      %585 = vmatprep.subr.mxu0 0.0
      %586 = vmatpush1.msra.mxu0 0.0
      %587 = vmatprep.subr.mxu0 0.0
      %588 = vmatpush1.msra.mxu0 0.0
      %589 = vmatprep.subr.mxu0 0.0
      %590 = vmatpush1.msra.mxu0 0.0
      %591 = vmatprep.subr.mxu0 0.0
      %592 = vmatpush1.msra.mxu0 0.0
      %593 = vmatprep.subr.mxu0 0.0
      %594 = vmatpush1.msra.mxu0 0.0
      %595 = vmatprep.subr.mxu0 0.0
      %596 = vmatpush1.msra.mxu0 0.0
      %597 = vmatprep.mubr.f32.mxu0 0.0
      %v598 = vand.u32 %v203, 4294901760
      %599 = vmatmul.mubr.f32.gmra.mrb[0].mxu0 %v598
      %v600 = vpop.f32.mrb[0].mxu0
      %v601 = vadd.f32 %v523, %v600
      %v602 = vpop.f32.mrb[0].mxu0
      %v603 = vadd.f32 %v525, %v602
      %604 = vdwg.mxu0
      %v605 = vand.u32 %v208, 4294901760
      %606 = vmatprep.subr.mxu0 %v605
      %v607 = vand.u32 %v206, 4294901760
      %608 = vmatpush1.msra.mxu0 %v607
      %609 = vmatprep.subr.mxu0 0.0
      %610 = vmatpush1.msra.mxu0 0.0
      %611 = vmatprep.subr.mxu0 0.0
      %612 = vmatpush1.msra.mxu0 0.0
      %613 = vmatprep.subr.mxu0 0.0
      %614 = vmatpush1.msra.mxu0 0.0
      %615 = vmatprep.subr.mxu0 0.0
      %616 = vmatpush1.msra.mxu0 0.0
      %617 = vmatprep.subr.mxu0 0.0
      %618 = vmatpush1.msra.mxu0 0.0
      %619 = vmatprep.subr.mxu0 0.0
      %620 = vmatpush1.msra.mxu0 0.0
      %621 = vmatprep.subr.mxu0 0.0
      %622 = vmatpush1.msra.mxu0 0.0
      %623 = vmatprep.subr.mxu0 0.0
      %624 = vmatpush1.msra.mxu0 0.0
      %625 = vmatprep.subr.mxu0 0.0
      %626 = vmatpush1.msra.mxu0 0.0
      %627 = vmatprep.subr.mxu0 0.0
      %628 = vmatpush1.msra.mxu0 0.0
      %629 = vmatprep.subr.mxu0 0.0
      %630 = vmatpush1.msra.mxu0 0.0
      %631 = vmatprep.subr.mxu0 0.0
      %632 = vmatpush1.msra.mxu0 0.0
      %633 = vmatprep.subr.mxu0 0.0
      %634 = vmatpush1.msra.mxu0 0.0
      %635 = vmatprep.subr.mxu0 0.0
      %636 = vmatpush1.msra.mxu0 0.0
      %637 = vmatprep.subr.mxu0 0.0
      %638 = vmatpush1.msra.mxu0 0.0
      %639 = vmatprep.subr.mxu0 0.0
      %640 = vmatpush1.msra.mxu0 0.0
      %641 = vmatprep.subr.mxu0 0.0
      %642 = vmatpush1.msra.mxu0 0.0
      %643 = vmatprep.subr.mxu0 0.0
      %644 = vmatpush1.msra.mxu0 0.0
      %645 = vmatprep.subr.mxu0 0.0
      %646 = vmatpush1.msra.mxu0 0.0
      %647 = vmatprep.subr.mxu0 0.0
      %648 = vmatpush1.msra.mxu0 0.0
      %649 = vmatprep.subr.mxu0 0.0
      %650 = vmatpush1.msra.mxu0 0.0
      %651 = vmatprep.subr.mxu0 0.0
      %652 = vmatpush1.msra.mxu0 0.0
      %653 = vmatprep.subr.mxu0 0.0
      %654 = vmatpush1.msra.mxu0 0.0
      %655 = vmatprep.subr.mxu0 0.0
      %656 = vmatpush1.msra.mxu0 0.0
      %657 = vmatprep.subr.mxu0 0.0
      %658 = vmatpush1.msra.mxu0 0.0
      %659 = vmatprep.subr.mxu0 0.0
      %660 = vmatpush1.msra.mxu0 0.0
      %661 = vmatprep.subr.mxu0 0.0
      %662 = vmatpush1.msra.mxu0 0.0
      %663 = vmatprep.subr.mxu0 0.0
      %664 = vmatpush1.msra.mxu0 0.0
      %665 = vmatprep.subr.mxu0 0.0
      %666 = vmatpush1.msra.mxu0 0.0
      %667 = vmatprep.subr.mxu0 0.0
      %668 = vmatpush1.msra.mxu0 0.0
      %669 = vmatprep.subr.mxu0 0.0
      %670 = vmatpush1.msra.mxu0 0.0
      %671 = vmatprep.mubr.f32.mxu0 0.0
      %v672 = vand.u32 %v203, 4294901760
      %673 = vmatmul.mubr.f32.gmra.mrb[0].mxu0 %v672
      %v674 = vpop.f32.mrb[0].mxu0
      %v675 = vadd.f32 %v601, %v674
      %v676 = vpop.f32.mrb[0].mxu0
      %v677 = vadd.f32 %v603, %v676
      %678 = vdwg.mxu0
      %v679 = vand.u32 %v212, 4294901760
      %680 = vmatprep.subr.mxu0 %v679
      %v681 = vand.u32 %v210, 4294901760
      %682 = vmatpush1.msra.mxu0 %v681
      %683 = vmatprep.subr.mxu0 0.0
      %684 = vmatpush1.msra.mxu0 0.0
      %685 = vmatprep.subr.mxu0 0.0
      %686 = vmatpush1.msra.mxu0 0.0
      %687 = vmatprep.subr.mxu0 0.0
      %688 = vmatpush1.msra.mxu0 0.0
      %689 = vmatprep.subr.mxu0 0.0
      %690 = vmatpush1.msra.mxu0 0.0
      %691 = vmatprep.subr.mxu0 0.0
      %692 = vmatpush1.msra.mxu0 0.0
      %693 = vmatprep.subr.mxu0 0.0
      %694 = vmatpush1.msra.mxu0 0.0
      %695 = vmatprep.subr.mxu0 0.0
      %696 = vmatpush1.msra.mxu0 0.0
      %697 = vmatprep.subr.mxu0 0.0
      %698 = vmatpush1.msra.mxu0 0.0
      %699 = vmatprep.subr.mxu0 0.0
      %700 = vmatpush1.msra.mxu0 0.0
      %701 = vmatprep.subr.mxu0 0.0
      %702 = vmatpush1.msra.mxu0 0.0
      %703 = vmatprep.subr.mxu0 0.0
      %704 = vmatpush1.msra.mxu0 0.0
      %705 = vmatprep.subr.mxu0 0.0
      %706 = vmatpush1.msra.mxu0 0.0
      %707 = vmatprep.subr.mxu0 0.0
      %708 = vmatpush1.msra.mxu0 0.0
      %709 = vmatprep.subr.mxu0 0.0
      %710 = vmatpush1.msra.mxu0 0.0
      %711 = vmatprep.subr.mxu0 0.0
      %712 = vmatpush1.msra.mxu0 0.0
      %713 = vmatprep.subr.mxu0 0.0
      %714 = vmatpush1.msra.mxu0 0.0
      %715 = vmatprep.subr.mxu0 0.0
      %716 = vmatpush1.msra.mxu0 0.0
      %717 = vmatprep.subr.mxu0 0.0
      %718 = vmatpush1.msra.mxu0 0.0
      %719 = vmatprep.subr.mxu0 0.0
      %720 = vmatpush1.msra.mxu0 0.0
      %721 = vmatprep.subr.mxu0 0.0
      %722 = vmatpush1.msra.mxu0 0.0
      %723 = vmatprep.subr.mxu0 0.0
      %724 = vmatpush1.msra.mxu0 0.0
      %725 = vmatprep.subr.mxu0 0.0
      %726 = vmatpush1.msra.mxu0 0.0
      %727 = vmatprep.subr.mxu0 0.0
      %728 = vmatpush1.msra.mxu0 0.0
      %729 = vmatprep.subr.mxu0 0.0
      %730 = vmatpush1.msra.mxu0 0.0
      %731 = vmatprep.subr.mxu0 0.0
      %732 = vmatpush1.msra.mxu0 0.0
      %733 = vmatprep.subr.mxu0 0.0
      %734 = vmatpush1.msra.mxu0 0.0
      %735 = vmatprep.subr.mxu0 0.0
      %736 = vmatpush1.msra.mxu0 0.0
      %737 = vmatprep.subr.mxu0 0.0
      %738 = vmatpush1.msra.mxu0 0.0
      %739 = vmatprep.subr.mxu0 0.0
      %740 = vmatpush1.msra.mxu0 0.0
      %741 = vmatprep.subr.mxu0 0.0
      %742 = vmatpush1.msra.mxu0 0.0
      %743 = vmatprep.subr.mxu0 0.0
      %744 = vmatpush1.msra.mxu0 0.0
      %745 = vmatprep.mubr.f32.mxu0 0.0
      %v746 = vand.u32 %v203, 4294901760
      %v747 = vsub.f32 %v203, %v746
      %v748 = vand.u32 %v747, 4294901760
      %v749 = vsub.f32 %v747, %v748
      %v750 = vand.u32 %v749, 4294901760
      %751 = vmatmul.mubr.f32.gmra.mrb[0].mxu0 %v750
      %v752 = vpop.f32.mrb[0].mxu0
      %v753 = vadd.f32 0.0, %v752
      %v754 = vpop.f32.mrb[0].mxu0
      %v755 = vadd.f32 0.0, %v754
      %756 = vdwg.mxu0
      %v757 = vand.u32 %v212, 4294901760
      %v758 = vsub.f32 %v212, %v757
      %v759 = vand.u32 %v758, 4294901760
      %v760 = vsub.f32 %v758, %v759
      %v761 = vand.u32 %v760, 4294901760
      %762 = vmatprep.subr.mxu0 %v761
      %v763 = vand.u32 %v210, 4294901760
      %v764 = vsub.f32 %v210, %v763
      %v765 = vand.u32 %v764, 4294901760
      %v766 = vsub.f32 %v764, %v765
      %v767 = vand.u32 %v766, 4294901760
      %768 = vmatpush1.msra.mxu0 %v767
      %769 = vmatprep.subr.mxu0 0.0
      %770 = vmatpush1.msra.mxu0 0.0
      %771 = vmatprep.subr.mxu0 0.0
      %772 = vmatpush1.msra.mxu0 0.0
      %773 = vmatprep.subr.mxu0 0.0
      %774 = vmatpush1.msra.mxu0 0.0
      %775 = vmatprep.subr.mxu0 0.0
      %776 = vmatpush1.msra.mxu0 0.0
      %777 = vmatprep.subr.mxu0 0.0
      %778 = vmatpush1.msra.mxu0 0.0
      %779 = vmatprep.subr.mxu0 0.0
      %780 = vmatpush1.msra.mxu0 0.0
      %781 = vmatprep.subr.mxu0 0.0
      %782 = vmatpush1.msra.mxu0 0.0
      %783 = vmatprep.subr.mxu0 0.0
      %784 = vmatpush1.msra.mxu0 0.0
      %785 = vmatprep.subr.mxu0 0.0
      %786 = vmatpush1.msra.mxu0 0.0
      %787 = vmatprep.subr.mxu0 0.0
      %788 = vmatpush1.msra.mxu0 0.0
      %789 = vmatprep.subr.mxu0 0.0
      %790 = vmatpush1.msra.mxu0 0.0
      %791 = vmatprep.subr.mxu0 0.0
      %792 = vmatpush1.msra.mxu0 0.0
      %793 = vmatprep.subr.mxu0 0.0
      %794 = vmatpush1.msra.mxu0 0.0
      %795 = vmatprep.subr.mxu0 0.0
      %796 = vmatpush1.msra.mxu0 0.0
      %797 = vmatprep.subr.mxu0 0.0
      %798 = vmatpush1.msra.mxu0 0.0
      %799 = vmatprep.subr.mxu0 0.0
      %800 = vmatpush1.msra.mxu0 0.0
      %801 = vmatprep.subr.mxu0 0.0
      %802 = vmatpush1.msra.mxu0 0.0
      %803 = vmatprep.subr.mxu0 0.0
      %804 = vmatpush1.msra.mxu0 0.0
      %805 = vmatprep.subr.mxu0 0.0
      %806 = vmatpush1.msra.mxu0 0.0
      %807 = vmatprep.subr.mxu0 0.0
      %808 = vmatpush1.msra.mxu0 0.0
      %809 = vmatprep.subr.mxu0 0.0
      %810 = vmatpush1.msra.mxu0 0.0
      %811 = vmatprep.subr.mxu0 0.0
      %812 = vmatpush1.msra.mxu0 0.0
      %813 = vmatprep.subr.mxu0 0.0
      %814 = vmatpush1.msra.mxu0 0.0
      %815 = vmatprep.subr.mxu0 0.0
      %816 = vmatpush1.msra.mxu0 0.0
      %817 = vmatprep.subr.mxu0 0.0
      %818 = vmatpush1.msra.mxu0 0.0
      %819 = vmatprep.subr.mxu0 0.0
      %820 = vmatpush1.msra.mxu0 0.0
      %821 = vmatprep.subr.mxu0 0.0
      %822 = vmatpush1.msra.mxu0 0.0
      %823 = vmatprep.subr.mxu0 0.0
      %824 = vmatpush1.msra.mxu0 0.0
      %825 = vmatprep.subr.mxu0 0.0
      %826 = vmatpush1.msra.mxu0 0.0
      %827 = vmatprep.subr.mxu0 0.0
      %828 = vmatpush1.msra.mxu0 0.0
      %829 = vmatprep.subr.mxu0 0.0
      %830 = vmatpush1.msra.mxu0 0.0
      %831 = vmatprep.mubr.f32.mxu0 0.0
      %v832 = vand.u32 %v203, 4294901760
      %833 = vmatmul.mubr.f32.gmra.mrb[0].mxu0 %v832
      %v834 = vpop.f32.mrb[0].mxu0
      %v835 = vadd.f32 %v753, %v834
      %v836 = vpop.f32.mrb[0].mxu0
      %v837 = vadd.f32 %v755, %v836
      %838 = vdwg.mxu0
      %v839 = vand.u32 %v212, 4294901760
      %v840 = vsub.f32 %v212, %v839
      %841 = vmatprep.subr.mxu0 %v840
      %v842 = vand.u32 %v210, 4294901760
      %v843 = vsub.f32 %v210, %v842
      %844 = vmatpush1.msra.mxu0 %v843
      %845 = vmatprep.subr.mxu0 0.0
      %846 = vmatpush1.msra.mxu0 0.0
      %847 = vmatprep.subr.mxu0 0.0
      %848 = vmatpush1.msra.mxu0 0.0
      %849 = vmatprep.subr.mxu0 0.0
      %850 = vmatpush1.msra.mxu0 0.0
      %851 = vmatprep.subr.mxu0 0.0
      %852 = vmatpush1.msra.mxu0 0.0
      %853 = vmatprep.subr.mxu0 0.0
      %854 = vmatpush1.msra.mxu0 0.0
      %855 = vmatprep.subr.mxu0 0.0
      %856 = vmatpush1.msra.mxu0 0.0
      %857 = vmatprep.subr.mxu0 0.0
      %858 = vmatpush1.msra.mxu0 0.0
      %859 = vmatprep.subr.mxu0 0.0
      %860 = vmatpush1.msra.mxu0 0.0
      %861 = vmatprep.subr.mxu0 0.0
      %862 = vmatpush1.msra.mxu0 0.0
      %863 = vmatprep.subr.mxu0 0.0
      %864 = vmatpush1.msra.mxu0 0.0
      %865 = vmatprep.subr.mxu0 0.0
      %866 = vmatpush1.msra.mxu0 0.0
      %867 = vmatprep.subr.mxu0 0.0
      %868 = vmatpush1.msra.mxu0 0.0
      %869 = vmatprep.subr.mxu0 0.0
      %870 = vmatpush1.msra.mxu0 0.0
      %871 = vmatprep.subr.mxu0 0.0
      %872 = vmatpush1.msra.mxu0 0.0
      %873 = vmatprep.subr.mxu0 0.0
      %874 = vmatpush1.msra.mxu0 0.0
      %875 = vmatprep.subr.mxu0 0.0
      %876 = vmatpush1.msra.mxu0 0.0
      %877 = vmatprep.subr.mxu0 0.0
      %878 = vmatpush1.msra.mxu0 0.0
      %879 = vmatprep.subr.mxu0 0.0
      %880 = vmatpush1.msra.mxu0 0.0
      %881 = vmatprep.subr.mxu0 0.0
      %882 = vmatpush1.msra.mxu0 0.0
      %883 = vmatprep.subr.mxu0 0.0
      %884 = vmatpush1.msra.mxu0 0.0
      %885 = vmatprep.subr.mxu0 0.0
      %886 = vmatpush1.msra.mxu0 0.0
      %887 = vmatprep.subr.mxu0 0.0
      %888 = vmatpush1.msra.mxu0 0.0
      %889 = vmatprep.subr.mxu0 0.0
      %890 = vmatpush1.msra.mxu0 0.0
      %891 = vmatprep.subr.mxu0 0.0
      %892 = vmatpush1.msra.mxu0 0.0
      %893 = vmatprep.subr.mxu0 0.0
      %894 = vmatpush1.msra.mxu0 0.0
      %895 = vmatprep.subr.mxu0 0.0
      %896 = vmatpush1.msra.mxu0 0.0
      %897 = vmatprep.subr.mxu0 0.0
      %898 = vmatpush1.msra.mxu0 0.0
      %899 = vmatprep.subr.mxu0 0.0
      %900 = vmatpush1.msra.mxu0 0.0
      %901 = vmatprep.subr.mxu0 0.0
      %902 = vmatpush1.msra.mxu0 0.0
      %903 = vmatprep.subr.mxu0 0.0
      %904 = vmatpush1.msra.mxu0 0.0
      %905 = vmatprep.subr.mxu0 0.0
      %906 = vmatpush1.msra.mxu0 0.0
      %907 = vmatprep.mubr.f32.mxu0 0.0
      %v908 = vand.u32 %v203, 4294901760
      %v909 = vsub.f32 %v203, %v908
      %910 = vmatmul.mubr.f32.gmra.mrb[0].mxu0 %v909
      %v911 = vpop.f32.mrb[0].mxu0
      %v912 = vadd.f32 %v835, %v911
      %v913 = vpop.f32.mrb[0].mxu0
      %v914 = vadd.f32 %v837, %v913
      %915 = vdwg.mxu0
      %v916 = vand.u32 %v212, 4294901760
      %917 = vmatprep.subr.mxu0 %v916
      %v918 = vand.u32 %v210, 4294901760
      %919 = vmatpush1.msra.mxu0 %v918
      %920 = vmatprep.subr.mxu0 0.0
      %921 = vmatpush1.msra.mxu0 0.0
      %922 = vmatprep.subr.mxu0 0.0
      %923 = vmatpush1.msra.mxu0 0.0
      %924 = vmatprep.subr.mxu0 0.0
      %925 = vmatpush1.msra.mxu0 0.0
      %926 = vmatprep.subr.mxu0 0.0
      %927 = vmatpush1.msra.mxu0 0.0
      %928 = vmatprep.subr.mxu0 0.0
      %929 = vmatpush1.msra.mxu0 0.0
      %930 = vmatprep.subr.mxu0 0.0
      %931 = vmatpush1.msra.mxu0 0.0
      %932 = vmatprep.subr.mxu0 0.0
      %933 = vmatpush1.msra.mxu0 0.0
      %934 = vmatprep.subr.mxu0 0.0
      %935 = vmatpush1.msra.mxu0 0.0
      %936 = vmatprep.subr.mxu0 0.0
      %937 = vmatpush1.msra.mxu0 0.0
      %938 = vmatprep.subr.mxu0 0.0
      %939 = vmatpush1.msra.mxu0 0.0
      %940 = vmatprep.subr.mxu0 0.0
      %941 = vmatpush1.msra.mxu0 0.0
      %942 = vmatprep.subr.mxu0 0.0
      %943 = vmatpush1.msra.mxu0 0.0
      %944 = vmatprep.subr.mxu0 0.0
      %945 = vmatpush1.msra.mxu0 0.0
      %946 = vmatprep.subr.mxu0 0.0
      %947 = vmatpush1.msra.mxu0 0.0
      %948 = vmatprep.subr.mxu0 0.0
      %949 = vmatpush1.msra.mxu0 0.0
      %950 = vmatprep.subr.mxu0 0.0
      %951 = vmatpush1.msra.mxu0 0.0
      %952 = vmatprep.subr.mxu0 0.0
      %953 = vmatpush1.msra.mxu0 0.0
      %954 = vmatprep.subr.mxu0 0.0
      %955 = vmatpush1.msra.mxu0 0.0
      %956 = vmatprep.subr.mxu0 0.0
      %957 = vmatpush1.msra.mxu0 0.0
      %958 = vmatprep.subr.mxu0 0.0
      %959 = vmatpush1.msra.mxu0 0.0
      %960 = vmatprep.subr.mxu0 0.0
      %961 = vmatpush1.msra.mxu0 0.0
      %962 = vmatprep.subr.mxu0 0.0
      %963 = vmatpush1.msra.mxu0 0.0
      %964 = vmatprep.subr.mxu0 0.0
      %965 = vmatpush1.msra.mxu0 0.0
      %966 = vmatprep.subr.mxu0 0.0
      %967 = vmatpush1.msra.mxu0 0.0
      %968 = vmatprep.subr.mxu0 0.0
      %969 = vmatpush1.msra.mxu0 0.0
      %970 = vmatprep.subr.mxu0 0.0
      %971 = vmatpush1.msra.mxu0 0.0
      %972 = vmatprep.subr.mxu0 0.0
      %973 = vmatpush1.msra.mxu0 0.0
      %974 = vmatprep.subr.mxu0 0.0
      %975 = vmatpush1.msra.mxu0 0.0
      %976 = vmatprep.subr.mxu0 0.0
      %977 = vmatpush1.msra.mxu0 0.0
      %978 = vmatprep.subr.mxu0 0.0
      %979 = vmatpush1.msra.mxu0 0.0
      %980 = vmatprep.subr.mxu0 0.0
      %981 = vmatpush1.msra.mxu0 0.0
      %982 = vmatprep.mubr.f32.mxu0 0.0
      %v983 = vand.u32 %v203, 4294901760
      %v984 = vsub.f32 %v203, %v983
      %v985 = vand.u32 %v984, 4294901760
      %986 = vmatmul.mubr.f32.gmra.mrb[0].mxu0 %v985
      %v987 = vpop.f32.mrb[0].mxu0
      %v988 = vadd.f32 %v912, %v987
      %v989 = vpop.f32.mrb[0].mxu0
      %v990 = vadd.f32 %v914, %v989
      %991 = vdwg.mxu0
      %v992 = vand.u32 %v212, 4294901760
      %v993 = vsub.f32 %v212, %v992
      %v994 = vand.u32 %v993, 4294901760
      %995 = vmatprep.subr.mxu0 %v994
      %v996 = vand.u32 %v210, 4294901760
      %v997 = vsub.f32 %v210, %v996
      %v998 = vand.u32 %v997, 4294901760
      %999 = vmatpush1.msra.mxu0 %v998
      %1000 = vmatprep.subr.mxu0 0.0
      %1001 = vmatpush1.msra.mxu0 0.0
      %1002 = vmatprep.subr.mxu0 0.0
      %1003 = vmatpush1.msra.mxu0 0.0
      %1004 = vmatprep.subr.mxu0 0.0
      %1005 = vmatpush1.msra.mxu0 0.0
      %1006 = vmatprep.subr.mxu0 0.0
      %1007 = vmatpush1.msra.mxu0 0.0
      %1008 = vmatprep.subr.mxu0 0.0
      %1009 = vmatpush1.msra.mxu0 0.0
      %1010 = vmatprep.subr.mxu0 0.0
      %1011 = vmatpush1.msra.mxu0 0.0
      %1012 = vmatprep.subr.mxu0 0.0
      %1013 = vmatpush1.msra.mxu0 0.0
      %1014 = vmatprep.subr.mxu0 0.0
      %1015 = vmatpush1.msra.mxu0 0.0
      %1016 = vmatprep.subr.mxu0 0.0
      %1017 = vmatpush1.msra.mxu0 0.0
      %1018 = vmatprep.subr.mxu0 0.0
      %1019 = vmatpush1.msra.mxu0 0.0
      %1020 = vmatprep.subr.mxu0 0.0
      %1021 = vmatpush1.msra.mxu0 0.0
      %1022 = vmatprep.subr.mxu0 0.0
      %1023 = vmatpush1.msra.mxu0 0.0
      %1024 = vmatprep.subr.mxu0 0.0
      %1025 = vmatpush1.msra.mxu0 0.0
      %1026 = vmatprep.subr.mxu0 0.0
      %1027 = vmatpush1.msra.mxu0 0.0
      %1028 = vmatprep.subr.mxu0 0.0
      %1029 = vmatpush1.msra.mxu0 0.0
      %1030 = vmatprep.subr.mxu0 0.0
      %1031 = vmatpush1.msra.mxu0 0.0
      %1032 = vmatprep.subr.mxu0 0.0
      %1033 = vmatpush1.msra.mxu0 0.0
      %1034 = vmatprep.subr.mxu0 0.0
      %1035 = vmatpush1.msra.mxu0 0.0
      %1036 = vmatprep.subr.mxu0 0.0
      %1037 = vmatpush1.msra.mxu0 0.0
      %1038 = vmatprep.subr.mxu0 0.0
      %1039 = vmatpush1.msra.mxu0 0.0
      %1040 = vmatprep.subr.mxu0 0.0
      %1041 = vmatpush1.msra.mxu0 0.0
      %1042 = vmatprep.subr.mxu0 0.0
      %1043 = vmatpush1.msra.mxu0 0.0
      %1044 = vmatprep.subr.mxu0 0.0
      %1045 = vmatpush1.msra.mxu0 0.0
      %1046 = vmatprep.subr.mxu0 0.0
      %1047 = vmatpush1.msra.mxu0 0.0
      %1048 = vmatprep.subr.mxu0 0.0
      %1049 = vmatpush1.msra.mxu0 0.0
      %1050 = vmatprep.subr.mxu0 0.0
      %1051 = vmatpush1.msra.mxu0 0.0
      %1052 = vmatprep.subr.mxu0 0.0
      %1053 = vmatpush1.msra.mxu0 0.0
      %1054 = vmatprep.subr.mxu0 0.0
      %1055 = vmatpush1.msra.mxu0 0.0
      %1056 = vmatprep.subr.mxu0 0.0
      %1057 = vmatpush1.msra.mxu0 0.0
      %1058 = vmatprep.subr.mxu0 0.0
      %1059 = vmatpush1.msra.mxu0 0.0
      %1060 = vmatprep.subr.mxu0 0.0
      %1061 = vmatpush1.msra.mxu0 0.0
      %1062 = vmatprep.mubr.f32.mxu0 0.0
      %v1063 = vand.u32 %v203, 4294901760
      %1064 = vmatmul.mubr.f32.gmra.mrb[0].mxu0 %v1063
      %v1065 = vpop.f32.mrb[0].mxu0
      %v1066 = vadd.f32 %v988, %v1065
      %v1067 = vpop.f32.mrb[0].mxu0
      %v1068 = vadd.f32 %v990, %v1067
      %1069 = vdwg.mxu0
      %v1070 = vand.u32 %v212, 4294901760
      %1071 = vmatprep.subr.mxu0 %v1070
      %v1072 = vand.u32 %v210, 4294901760
      %1073 = vmatpush1.msra.mxu0 %v1072
      %1074 = vmatprep.subr.mxu0 0.0
      %1075 = vmatpush1.msra.mxu0 0.0
      %1076 = vmatprep.subr.mxu0 0.0
      %1077 = vmatpush1.msra.mxu0 0.0
      %1078 = vmatprep.subr.mxu0 0.0
      %1079 = vmatpush1.msra.mxu0 0.0
      %1080 = vmatprep.subr.mxu0 0.0
      %1081 = vmatpush1.msra.mxu0 0.0
      %1082 = vmatprep.subr.mxu0 0.0
      %1083 = vmatpush1.msra.mxu0 0.0
      %1084 = vmatprep.subr.mxu0 0.0
      %1085 = vmatpush1.msra.mxu0 0.0
      %1086 = vmatprep.subr.mxu0 0.0
      %1087 = vmatpush1.msra.mxu0 0.0
      %1088 = vmatprep.subr.mxu0 0.0
      %1089 = vmatpush1.msra.mxu0 0.0
      %1090 = vmatprep.subr.mxu0 0.0
      %1091 = vmatpush1.msra.mxu0 0.0
      %1092 = vmatprep.subr.mxu0 0.0
      %1093 = vmatpush1.msra.mxu0 0.0
      %1094 = vmatprep.subr.mxu0 0.0
      %1095 = vmatpush1.msra.mxu0 0.0
      %1096 = vmatprep.subr.mxu0 0.0
      %1097 = vmatpush1.msra.mxu0 0.0
      %1098 = vmatprep.subr.mxu0 0.0
      %1099 = vmatpush1.msra.mxu0 0.0
      %1100 = vmatprep.subr.mxu0 0.0
      %1101 = vmatpush1.msra.mxu0 0.0
      %1102 = vmatprep.subr.mxu0 0.0
      %1103 = vmatpush1.msra.mxu0 0.0
      %1104 = vmatprep.subr.mxu0 0.0
      %1105 = vmatpush1.msra.mxu0 0.0
      %1106 = vmatprep.subr.mxu0 0.0
      %1107 = vmatpush1.msra.mxu0 0.0
      %1108 = vmatprep.subr.mxu0 0.0
      %1109 = vmatpush1.msra.mxu0 0.0
      %1110 = vmatprep.subr.mxu0 0.0
      %1111 = vmatpush1.msra.mxu0 0.0
      %1112 = vmatprep.subr.mxu0 0.0
      %1113 = vmatpush1.msra.mxu0 0.0
      %1114 = vmatprep.subr.mxu0 0.0
      %1115 = vmatpush1.msra.mxu0 0.0
      %1116 = vmatprep.subr.mxu0 0.0
      %1117 = vmatpush1.msra.mxu0 0.0
      %1118 = vmatprep.subr.mxu0 0.0
      %1119 = vmatpush1.msra.mxu0 0.0
      %1120 = vmatprep.subr.mxu0 0.0
      %1121 = vmatpush1.msra.mxu0 0.0
      %1122 = vmatprep.subr.mxu0 0.0
      %1123 = vmatpush1.msra.mxu0 0.0
      %1124 = vmatprep.subr.mxu0 0.0
      %1125 = vmatpush1.msra.mxu0 0.0
      %1126 = vmatprep.subr.mxu0 0.0
      %1127 = vmatpush1.msra.mxu0 0.0
      %1128 = vmatprep.subr.mxu0 0.0
      %1129 = vmatpush1.msra.mxu0 0.0
      %1130 = vmatprep.subr.mxu0 0.0
      %1131 = vmatpush1.msra.mxu0 0.0
      %1132 = vmatprep.subr.mxu0 0.0
      %1133 = vmatpush1.msra.mxu0 0.0
      %1134 = vmatprep.subr.mxu0 0.0
      %1135 = vmatpush1.msra.mxu0 0.0
      %1136 = vmatprep.mubr.f32.mxu0 0.0
      %v1137 = vand.u32 %v203, 4294901760
      %1138 = vmatmul.mubr.f32.gmra.mrb[0].mxu0 %v1137
      %v1139 = vpop.f32.mrb[0].mxu0
      %v1140 = vadd.f32 %v1066, %v1139
      %v1141 = vpop.f32.mrb[0].mxu0
      %v1142 = vadd.f32 %v1068, %v1141
      %1143 = vdwg.mxu0
      %vm1144 = vcmp.eq.s32.totalorder %v195, 0
      %v1145 = vsel %vm1144, 1, 0
      %v1146 = vlaneseq
      %v1147 = vshrl.u32 %v1146, 7
      %v1148 = vsub.s32 0, %v1147
      %v1149 = vrot.slane %v1145, %v1148
      %v1150 = vlaneseq
      %v1151 = vshrl.u32 %v1150, 7
      %v1152 = vsub.s32 1, %v1151
      %v1153 = vrot.slane %v1145, %v1152
      %v1154 = vlaneseq
      %v1155 = vshrl.u32 %v1154, 7
      %v1156 = vsub.s32 2, %v1155
      %v1157 = vrot.slane %v1145, %v1156
      %v1158 = vlaneseq
      %v1159 = vshrl.u32 %v1158, 7
      %v1160 = vsub.s32 3, %v1159
      %v1161 = vrot.slane %v1145, %v1160
      %vm1162 = vcmp.eq.s32.totalorder %v1149, 1
      %vm1163 = vcmp.eq.s32.totalorder %v1153, 1
      %vm1164 = vcmp.eq.s32.totalorder %v1157, 1
      %vm1165 = vcmp.eq.s32.totalorder %v1161, 1
      %v1166 = vsel %vm1162, %v675, 0.0
      %v1167 = vsel %vm1163, %v677, 0.0
      %v1168 = vsel %vm1164, %v1140, 0.0
      %v1169 = vsel %vm1165, %v1142, 0.0
      %v1170 = vadd.f32 %v1166, 0.0
      %v1171 = vadd.f32 %v1167, 0.0
      %v1172 = vadd.f32 %v1168, 0.0
      %v1173 = vadd.f32 %v1169, 0.0
      %s1174 = scalar_lea.vmem %s0, 8
      %v1175 = vld [vmem:[%s1174] sm:$0xff]
      %v1177 = vsel %vm201, %v1175, 0
      %v1179 = vand.u32 %v208, 4294901760
      %1180 = vmatprep.subr.mxu0 %v1179
      %v1181 = vand.u32 %v206, 4294901760
      %1182 = vmatpush1.msra.mxu0 %v1181
      %1183 = vmatprep.subr.mxu0 0.0
      %1184 = vmatpush1.msra.mxu0 0.0
      %1185 = vmatprep.subr.mxu0 0.0
      %1186 = vmatpush1.msra.mxu0 0.0
      %1187 = vmatprep.subr.mxu0 0.0
      %1188 = vmatpush1.msra.mxu0 0.0
      %1189 = vmatprep.subr.mxu0 0.0
      %1190 = vmatpush1.msra.mxu0 0.0
      %1191 = vmatprep.subr.mxu0 0.0
      %1192 = vmatpush1.msra.mxu0 0.0
      %1193 = vmatprep.subr.mxu0 0.0
      %1194 = vmatpush1.msra.mxu0 0.0
      %1195 = vmatprep.subr.mxu0 0.0
      %1196 = vmatpush1.msra.mxu0 0.0
      %1197 = vmatprep.subr.mxu0 0.0
      %1198 = vmatpush1.msra.mxu0 0.0
      %1199 = vmatprep.subr.mxu0 0.0
      %1200 = vmatpush1.msra.mxu0 0.0
      %1201 = vmatprep.subr.mxu0 0.0
      %1202 = vmatpush1.msra.mxu0 0.0
      %1203 = vmatprep.subr.mxu0 0.0
      %1204 = vmatpush1.msra.mxu0 0.0
      %1205 = vmatprep.subr.mxu0 0.0
      %1206 = vmatpush1.msra.mxu0 0.0
      %1207 = vmatprep.subr.mxu0 0.0
      %1208 = vmatpush1.msra.mxu0 0.0
      %1209 = vmatprep.subr.mxu0 0.0
      %1210 = vmatpush1.msra.mxu0 0.0
      %1211 = vmatprep.subr.mxu0 0.0
      %1212 = vmatpush1.msra.mxu0 0.0
      %1213 = vmatprep.subr.mxu0 0.0
      %1214 = vmatpush1.msra.mxu0 0.0
      %1215 = vmatprep.subr.mxu0 0.0
      %1216 = vmatpush1.msra.mxu0 0.0
      %1217 = vmatprep.subr.mxu0 0.0
      %1218 = vmatpush1.msra.mxu0 0.0
      %1219 = vmatprep.subr.mxu0 0.0
      %1220 = vmatpush1.msra.mxu0 0.0
      %1221 = vmatprep.subr.mxu0 0.0
      %1222 = vmatpush1.msra.mxu0 0.0
      %1223 = vmatprep.subr.mxu0 0.0
      %1224 = vmatpush1.msra.mxu0 0.0
      %1225 = vmatprep.subr.mxu0 0.0
      %1226 = vmatpush1.msra.mxu0 0.0
      %1227 = vmatprep.subr.mxu0 0.0
      %1228 = vmatpush1.msra.mxu0 0.0
      %1229 = vmatprep.subr.mxu0 0.0
      %1230 = vmatpush1.msra.mxu0 0.0
      %1231 = vmatprep.subr.mxu0 0.0
      %1232 = vmatpush1.msra.mxu0 0.0
      %1233 = vmatprep.subr.mxu0 0.0
      %1234 = vmatpush1.msra.mxu0 0.0
      %1235 = vmatprep.subr.mxu0 0.0
      %1236 = vmatpush1.msra.mxu0 0.0
      %1237 = vmatprep.subr.mxu0 0.0
      %1238 = vmatpush1.msra.mxu0 0.0
      %1239 = vmatprep.subr.mxu0 0.0
      %1240 = vmatpush1.msra.mxu0 0.0
      %1241 = vmatprep.subr.mxu0 0.0
      %1242 = vmatpush1.msra.mxu0 0.0
      %1243 = vmatprep.subr.mxu0 0.0
      %1244 = vmatpush1.msra.mxu0 0.0
      %1245 = vmatprep.mubr.f32.mxu0 0.0
      %v1246 = vand.u32 %v1177, 4294901760
      %v1247 = vsub.f32 %v1177, %v1246
      %v1248 = vand.u32 %v1247, 4294901760
      %v1249 = vsub.f32 %v1247, %v1248
      %v1250 = vand.u32 %v1249, 4294901760
      %1251 = vmatmul.mubr.f32.gmra.mrb[0].mxu0 %v1250
      %v1252 = vpop.f32.mrb[0].mxu0
      %v1253 = vadd.f32 0.0, %v1252
      %v1254 = vpop.f32.mrb[0].mxu0
      %v1255 = vadd.f32 0.0, %v1254
      %1256 = vdwg.mxu0
      %v1257 = vand.u32 %v208, 4294901760
      %v1258 = vsub.f32 %v208, %v1257
      %v1259 = vand.u32 %v1258, 4294901760
      %v1260 = vsub.f32 %v1258, %v1259
      %v1261 = vand.u32 %v1260, 4294901760
      %1262 = vmatprep.subr.mxu0 %v1261
      %v1263 = vand.u32 %v206, 4294901760
      %v1264 = vsub.f32 %v206, %v1263
      %v1265 = vand.u32 %v1264, 4294901760
      %v1266 = vsub.f32 %v1264, %v1265
      %v1267 = vand.u32 %v1266, 4294901760
      %1268 = vmatpush1.msra.mxu0 %v1267
      %1269 = vmatprep.subr.mxu0 0.0
      %1270 = vmatpush1.msra.mxu0 0.0
      %1271 = vmatprep.subr.mxu0 0.0
      %1272 = vmatpush1.msra.mxu0 0.0
      %1273 = vmatprep.subr.mxu0 0.0
      %1274 = vmatpush1.msra.mxu0 0.0
      %1275 = vmatprep.subr.mxu0 0.0
      %1276 = vmatpush1.msra.mxu0 0.0
      %1277 = vmatprep.subr.mxu0 0.0
      %1278 = vmatpush1.msra.mxu0 0.0
      %1279 = vmatprep.subr.mxu0 0.0
      %1280 = vmatpush1.msra.mxu0 0.0
      %1281 = vmatprep.subr.mxu0 0.0
      %1282 = vmatpush1.msra.mxu0 0.0
      %1283 = vmatprep.subr.mxu0 0.0
      %1284 = vmatpush1.msra.mxu0 0.0
      %1285 = vmatprep.subr.mxu0 0.0
      %1286 = vmatpush1.msra.mxu0 0.0
      %1287 = vmatprep.subr.mxu0 0.0
      %1288 = vmatpush1.msra.mxu0 0.0
      %1289 = vmatprep.subr.mxu0 0.0
      %1290 = vmatpush1.msra.mxu0 0.0
      %1291 = vmatprep.subr.mxu0 0.0
      %1292 = vmatpush1.msra.mxu0 0.0
      %1293 = vmatprep.subr.mxu0 0.0
      %1294 = vmatpush1.msra.mxu0 0.0
      %1295 = vmatprep.subr.mxu0 0.0
      %1296 = vmatpush1.msra.mxu0 0.0
      %1297 = vmatprep.subr.mxu0 0.0
      %1298 = vmatpush1.msra.mxu0 0.0
      %1299 = vmatprep.subr.mxu0 0.0
      %1300 = vmatpush1.msra.mxu0 0.0
      %1301 = vmatprep.subr.mxu0 0.0
      %1302 = vmatpush1.msra.mxu0 0.0
      %1303 = vmatprep.subr.mxu0 0.0
      %1304 = vmatpush1.msra.mxu0 0.0
      %1305 = vmatprep.subr.mxu0 0.0
      %1306 = vmatpush1.msra.mxu0 0.0
      %1307 = vmatprep.subr.mxu0 0.0
      %1308 = vmatpush1.msra.mxu0 0.0
      %1309 = vmatprep.subr.mxu0 0.0
      %1310 = vmatpush1.msra.mxu0 0.0
      %1311 = vmatprep.subr.mxu0 0.0
      %1312 = vmatpush1.msra.mxu0 0.0
      %1313 = vmatprep.subr.mxu0 0.0
      %1314 = vmatpush1.msra.mxu0 0.0
      %1315 = vmatprep.subr.mxu0 0.0
      %1316 = vmatpush1.msra.mxu0 0.0
      %1317 = vmatprep.subr.mxu0 0.0
      %1318 = vmatpush1.msra.mxu0 0.0
      %1319 = vmatprep.subr.mxu0 0.0
      %1320 = vmatpush1.msra.mxu0 0.0
      %1321 = vmatprep.subr.mxu0 0.0
      %1322 = vmatpush1.msra.mxu0 0.0
      %1323 = vmatprep.subr.mxu0 0.0
      %1324 = vmatpush1.msra.mxu0 0.0
      %1325 = vmatprep.subr.mxu0 0.0
      %1326 = vmatpush1.msra.mxu0 0.0
      %1327 = vmatprep.subr.mxu0 0.0
      %1328 = vmatpush1.msra.mxu0 0.0
      %1329 = vmatprep.subr.mxu0 0.0
      %1330 = vmatpush1.msra.mxu0 0.0
      %1331 = vmatprep.mubr.f32.mxu0 0.0
      %v1332 = vand.u32 %v1177, 4294901760
      %1333 = vmatmul.mubr.f32.gmra.mrb[0].mxu0 %v1332
      %v1334 = vpop.f32.mrb[0].mxu0
      %v1335 = vadd.f32 %v1253, %v1334
      %v1336 = vpop.f32.mrb[0].mxu0
      %v1337 = vadd.f32 %v1255, %v1336
      %1338 = vdwg.mxu0
      %v1339 = vand.u32 %v208, 4294901760
      %v1340 = vsub.f32 %v208, %v1339
      %1341 = vmatprep.subr.mxu0 %v1340
      %v1342 = vand.u32 %v206, 4294901760
      %v1343 = vsub.f32 %v206, %v1342
      %1344 = vmatpush1.msra.mxu0 %v1343
      %1345 = vmatprep.subr.mxu0 0.0
      %1346 = vmatpush1.msra.mxu0 0.0
      %1347 = vmatprep.subr.mxu0 0.0
      %1348 = vmatpush1.msra.mxu0 0.0
      %1349 = vmatprep.subr.mxu0 0.0
      %1350 = vmatpush1.msra.mxu0 0.0
      %1351 = vmatprep.subr.mxu0 0.0
      %1352 = vmatpush1.msra.mxu0 0.0
      %1353 = vmatprep.subr.mxu0 0.0
      %1354 = vmatpush1.msra.mxu0 0.0
      %1355 = vmatprep.subr.mxu0 0.0
      %1356 = vmatpush1.msra.mxu0 0.0
      %1357 = vmatprep.subr.mxu0 0.0
      %1358 = vmatpush1.msra.mxu0 0.0
      %1359 = vmatprep.subr.mxu0 0.0
      %1360 = vmatpush1.msra.mxu0 0.0
      %1361 = vmatprep.subr.mxu0 0.0
      %1362 = vmatpush1.msra.mxu0 0.0
      %1363 = vmatprep.subr.mxu0 0.0
      %1364 = vmatpush1.msra.mxu0 0.0
      %1365 = vmatprep.subr.mxu0 0.0
      %1366 = vmatpush1.msra.mxu0 0.0
      %1367 = vmatprep.subr.mxu0 0.0
      %1368 = vmatpush1.msra.mxu0 0.0
      %1369 = vmatprep.subr.mxu0 0.0
      %1370 = vmatpush1.msra.mxu0 0.0
      %1371 = vmatprep.subr.mxu0 0.0
      %1372 = vmatpush1.msra.mxu0 0.0
      %1373 = vmatprep.subr.mxu0 0.0
      %1374 = vmatpush1.msra.mxu0 0.0
      %1375 = vmatprep.subr.mxu0 0.0
      %1376 = vmatpush1.msra.mxu0 0.0
      %1377 = vmatprep.subr.mxu0 0.0
      %1378 = vmatpush1.msra.mxu0 0.0
      %1379 = vmatprep.subr.mxu0 0.0
      %1380 = vmatpush1.msra.mxu0 0.0
      %1381 = vmatprep.subr.mxu0 0.0
      %1382 = vmatpush1.msra.mxu0 0.0
      %1383 = vmatprep.subr.mxu0 0.0
      %1384 = vmatpush1.msra.mxu0 0.0
      %1385 = vmatprep.subr.mxu0 0.0
      %1386 = vmatpush1.msra.mxu0 0.0
      %1387 = vmatprep.subr.mxu0 0.0
      %1388 = vmatpush1.msra.mxu0 0.0
      %1389 = vmatprep.subr.mxu0 0.0
      %1390 = vmatpush1.msra.mxu0 0.0
      %1391 = vmatprep.subr.mxu0 0.0
      %1392 = vmatpush1.msra.mxu0 0.0
      %1393 = vmatprep.subr.mxu0 0.0
      %1394 = vmatpush1.msra.mxu0 0.0
      %1395 = vmatprep.subr.mxu0 0.0
      %1396 = vmatpush1.msra.mxu0 0.0
      %1397 = vmatprep.subr.mxu0 0.0
      %1398 = vmatpush1.msra.mxu0 0.0
      %1399 = vmatprep.subr.mxu0 0.0
      %1400 = vmatpush1.msra.mxu0 0.0
      %1401 = vmatprep.subr.mxu0 0.0
      %1402 = vmatpush1.msra.mxu0 0.0
      %1403 = vmatprep.subr.mxu0 0.0
      %1404 = vmatpush1.msra.mxu0 0.0
      %1405 = vmatprep.subr.mxu0 0.0
      %1406 = vmatpush1.msra.mxu0 0.0
      %1407 = vmatprep.mubr.f32.mxu0 0.0
      %v1408 = vand.u32 %v1177, 4294901760
      %v1409 = vsub.f32 %v1177, %v1408
      %1410 = vmatmul.mubr.f32.gmra.mrb[0].mxu0 %v1409
      %v1411 = vpop.f32.mrb[0].mxu0
      %v1412 = vadd.f32 %v1335, %v1411
      %v1413 = vpop.f32.mrb[0].mxu0
      %v1414 = vadd.f32 %v1337, %v1413
      %1415 = vdwg.mxu0
      %v1416 = vand.u32 %v208, 4294901760
      %1417 = vmatprep.subr.mxu0 %v1416
      %v1418 = vand.u32 %v206, 4294901760
      %1419 = vmatpush1.msra.mxu0 %v1418
      %1420 = vmatprep.subr.mxu0 0.0
      %1421 = vmatpush1.msra.mxu0 0.0
      %1422 = vmatprep.subr.mxu0 0.0
      %1423 = vmatpush1.msra.mxu0 0.0
      %1424 = vmatprep.subr.mxu0 0.0
      %1425 = vmatpush1.msra.mxu0 0.0
      %1426 = vmatprep.subr.mxu0 0.0
      %1427 = vmatpush1.msra.mxu0 0.0
      %1428 = vmatprep.subr.mxu0 0.0
      %1429 = vmatpush1.msra.mxu0 0.0
      %1430 = vmatprep.subr.mxu0 0.0
      %1431 = vmatpush1.msra.mxu0 0.0
      %1432 = vmatprep.subr.mxu0 0.0
      %1433 = vmatpush1.msra.mxu0 0.0
      %1434 = vmatprep.subr.mxu0 0.0
      %1435 = vmatpush1.msra.mxu0 0.0
      %1436 = vmatprep.subr.mxu0 0.0
      %1437 = vmatpush1.msra.mxu0 0.0
      %1438 = vmatprep.subr.mxu0 0.0
      %1439 = vmatpush1.msra.mxu0 0.0
      %1440 = vmatprep.subr.mxu0 0.0
      %1441 = vmatpush1.msra.mxu0 0.0
      %1442 = vmatprep.subr.mxu0 0.0
      %1443 = vmatpush1.msra.mxu0 0.0
      %1444 = vmatprep.subr.mxu0 0.0
      %1445 = vmatpush1.msra.mxu0 0.0
      %1446 = vmatprep.subr.mxu0 0.0
      %1447 = vmatpush1.msra.mxu0 0.0
      %1448 = vmatprep.subr.mxu0 0.0
      %1449 = vmatpush1.msra.mxu0 0.0
      %1450 = vmatprep.subr.mxu0 0.0
      %1451 = vmatpush1.msra.mxu0 0.0
      %1452 = vmatprep.subr.mxu0 0.0
      %1453 = vmatpush1.msra.mxu0 0.0
      %1454 = vmatprep.subr.mxu0 0.0
      %1455 = vmatpush1.msra.mxu0 0.0
      %1456 = vmatprep.subr.mxu0 0.0
      %1457 = vmatpush1.msra.mxu0 0.0
      %1458 = vmatprep.subr.mxu0 0.0
      %1459 = vmatpush1.msra.mxu0 0.0
      %1460 = vmatprep.subr.mxu0 0.0
      %1461 = vmatpush1.msra.mxu0 0.0
      %1462 = vmatprep.subr.mxu0 0.0
      %1463 = vmatpush1.msra.mxu0 0.0
      %1464 = vmatprep.subr.mxu0 0.0
      %1465 = vmatpush1.msra.mxu0 0.0
      %1466 = vmatprep.subr.mxu0 0.0
      %1467 = vmatpush1.msra.mxu0 0.0
      %1468 = vmatprep.subr.mxu0 0.0
      %1469 = vmatpush1.msra.mxu0 0.0
      %1470 = vmatprep.subr.mxu0 0.0
      %1471 = vmatpush1.msra.mxu0 0.0
      %1472 = vmatprep.subr.mxu0 0.0
      %1473 = vmatpush1.msra.mxu0 0.0
      %1474 = vmatprep.subr.mxu0 0.0
      %1475 = vmatpush1.msra.mxu0 0.0
      %1476 = vmatprep.subr.mxu0 0.0
      %1477 = vmatpush1.msra.mxu0 0.0
      %1478 = vmatprep.subr.mxu0 0.0
      %1479 = vmatpush1.msra.mxu0 0.0
      %1480 = vmatprep.subr.mxu0 0.0
      %1481 = vmatpush1.msra.mxu0 0.0
      %1482 = vmatprep.mubr.f32.mxu0 0.0
      %v1483 = vand.u32 %v1177, 4294901760
      %v1484 = vsub.f32 %v1177, %v1483
      %v1485 = vand.u32 %v1484, 4294901760
      %1486 = vmatmul.mubr.f32.gmra.mrb[0].mxu0 %v1485
      %v1487 = vpop.f32.mrb[0].mxu0
      %v1488 = vadd.f32 %v1412, %v1487
      %v1489 = vpop.f32.mrb[0].mxu0
      %v1490 = vadd.f32 %v1414, %v1489
      %1491 = vdwg.mxu0
      %v1492 = vand.u32 %v208, 4294901760
      %v1493 = vsub.f32 %v208, %v1492
      %v1494 = vand.u32 %v1493, 4294901760
      %1495 = vmatprep.subr.mxu0 %v1494
      %v1496 = vand.u32 %v206, 4294901760
      %v1497 = vsub.f32 %v206, %v1496
      %v1498 = vand.u32 %v1497, 4294901760
      %1499 = vmatpush1.msra.mxu0 %v1498
      %1500 = vmatprep.subr.mxu0 0.0
      %1501 = vmatpush1.msra.mxu0 0.0
      %1502 = vmatprep.subr.mxu0 0.0
      %1503 = vmatpush1.msra.mxu0 0.0
      %1504 = vmatprep.subr.mxu0 0.0
      %1505 = vmatpush1.msra.mxu0 0.0
      %1506 = vmatprep.subr.mxu0 0.0
      %1507 = vmatpush1.msra.mxu0 0.0
      %1508 = vmatprep.subr.mxu0 0.0
      %1509 = vmatpush1.msra.mxu0 0.0
      %1510 = vmatprep.subr.mxu0 0.0
      %1511 = vmatpush1.msra.mxu0 0.0
      %1512 = vmatprep.subr.mxu0 0.0
      %1513 = vmatpush1.msra.mxu0 0.0
      %1514 = vmatprep.subr.mxu0 0.0
      %1515 = vmatpush1.msra.mxu0 0.0
      %1516 = vmatprep.subr.mxu0 0.0
      %1517 = vmatpush1.msra.mxu0 0.0
      %1518 = vmatprep.subr.mxu0 0.0
      %1519 = vmatpush1.msra.mxu0 0.0
      %1520 = vmatprep.subr.mxu0 0.0
      %1521 = vmatpush1.msra.mxu0 0.0
      %1522 = vmatprep.subr.mxu0 0.0
      %1523 = vmatpush1.msra.mxu0 0.0
      %1524 = vmatprep.subr.mxu0 0.0
      %1525 = vmatpush1.msra.mxu0 0.0
      %1526 = vmatprep.subr.mxu0 0.0
      %1527 = vmatpush1.msra.mxu0 0.0
      %1528 = vmatprep.subr.mxu0 0.0
      %1529 = vmatpush1.msra.mxu0 0.0
      %1530 = vmatprep.subr.mxu0 0.0
      %1531 = vmatpush1.msra.mxu0 0.0
      %1532 = vmatprep.subr.mxu0 0.0
      %1533 = vmatpush1.msra.mxu0 0.0
      %1534 = vmatprep.subr.mxu0 0.0
      %1535 = vmatpush1.msra.mxu0 0.0
      %1536 = vmatprep.subr.mxu0 0.0
      %1537 = vmatpush1.msra.mxu0 0.0
      %1538 = vmatprep.subr.mxu0 0.0
      %1539 = vmatpush1.msra.mxu0 0.0
      %1540 = vmatprep.subr.mxu0 0.0
      %1541 = vmatpush1.msra.mxu0 0.0
      %1542 = vmatprep.subr.mxu0 0.0
      %1543 = vmatpush1.msra.mxu0 0.0
      %1544 = vmatprep.subr.mxu0 0.0
      %1545 = vmatpush1.msra.mxu0 0.0
      %1546 = vmatprep.subr.mxu0 0.0
      %1547 = vmatpush1.msra.mxu0 0.0
      %1548 = vmatprep.subr.mxu0 0.0
      %1549 = vmatpush1.msra.mxu0 0.0
      %1550 = vmatprep.subr.mxu0 0.0
      %1551 = vmatpush1.msra.mxu0 0.0
      %1552 = vmatprep.subr.mxu0 0.0
      %1553 = vmatpush1.msra.mxu0 0.0
      %1554 = vmatprep.subr.mxu0 0.0
      %1555 = vmatpush1.msra.mxu0 0.0
      %1556 = vmatprep.subr.mxu0 0.0
      %1557 = vmatpush1.msra.mxu0 0.0
      %1558 = vmatprep.subr.mxu0 0.0
      %1559 = vmatpush1.msra.mxu0 0.0
      %1560 = vmatprep.subr.mxu0 0.0
      %1561 = vmatpush1.msra.mxu0 0.0
      %1562 = vmatprep.mubr.f32.mxu0 0.0
      %v1563 = vand.u32 %v1177, 4294901760
      %1564 = vmatmul.mubr.f32.gmra.mrb[0].mxu0 %v1563
      %v1565 = vpop.f32.mrb[0].mxu0
      %v1566 = vadd.f32 %v1488, %v1565
      %v1567 = vpop.f32.mrb[0].mxu0
      %v1568 = vadd.f32 %v1490, %v1567
      %1569 = vdwg.mxu0
      %v1570 = vand.u32 %v208, 4294901760
      %1571 = vmatprep.subr.mxu0 %v1570
      %v1572 = vand.u32 %v206, 4294901760
      %1573 = vmatpush1.msra.mxu0 %v1572
      %1574 = vmatprep.subr.mxu0 0.0
      %1575 = vmatpush1.msra.mxu0 0.0
      %1576 = vmatprep.subr.mxu0 0.0
      %1577 = vmatpush1.msra.mxu0 0.0
      %1578 = vmatprep.subr.mxu0 0.0
      %1579 = vmatpush1.msra.mxu0 0.0
      %1580 = vmatprep.subr.mxu0 0.0
      %1581 = vmatpush1.msra.mxu0 0.0
      %1582 = vmatprep.subr.mxu0 0.0
      %1583 = vmatpush1.msra.mxu0 0.0
      %1584 = vmatprep.subr.mxu0 0.0
      %1585 = vmatpush1.msra.mxu0 0.0
      %1586 = vmatprep.subr.mxu0 0.0
      %1587 = vmatpush1.msra.mxu0 0.0
      %1588 = vmatprep.subr.mxu0 0.0
      %1589 = vmatpush1.msra.mxu0 0.0
      %1590 = vmatprep.subr.mxu0 0.0
      %1591 = vmatpush1.msra.mxu0 0.0
      %1592 = vmatprep.subr.mxu0 0.0
      %1593 = vmatpush1.msra.mxu0 0.0
      %1594 = vmatprep.subr.mxu0 0.0
      %1595 = vmatpush1.msra.mxu0 0.0
      %1596 = vmatprep.subr.mxu0 0.0
      %1597 = vmatpush1.msra.mxu0 0.0
      %1598 = vmatprep.subr.mxu0 0.0
      %1599 = vmatpush1.msra.mxu0 0.0
      %1600 = vmatprep.subr.mxu0 0.0
      %1601 = vmatpush1.msra.mxu0 0.0
      %1602 = vmatprep.subr.mxu0 0.0
      %1603 = vmatpush1.msra.mxu0 0.0
      %1604 = vmatprep.subr.mxu0 0.0
      %1605 = vmatpush1.msra.mxu0 0.0
      %1606 = vmatprep.subr.mxu0 0.0
      %1607 = vmatpush1.msra.mxu0 0.0
      %1608 = vmatprep.subr.mxu0 0.0
      %1609 = vmatpush1.msra.mxu0 0.0
      %1610 = vmatprep.subr.mxu0 0.0
      %1611 = vmatpush1.msra.mxu0 0.0
      %1612 = vmatprep.subr.mxu0 0.0
      %1613 = vmatpush1.msra.mxu0 0.0
      %1614 = vmatprep.subr.mxu0 0.0
      %1615 = vmatpush1.msra.mxu0 0.0
      %1616 = vmatprep.subr.mxu0 0.0
      %1617 = vmatpush1.msra.mxu0 0.0
      %1618 = vmatprep.subr.mxu0 0.0
      %1619 = vmatpush1.msra.mxu0 0.0
      %1620 = vmatprep.subr.mxu0 0.0
      %1621 = vmatpush1.msra.mxu0 0.0
      %1622 = vmatprep.subr.mxu0 0.0
      %1623 = vmatpush1.msra.mxu0 0.0
      %1624 = vmatprep.subr.mxu0 0.0
      %1625 = vmatpush1.msra.mxu0 0.0
      %1626 = vmatprep.subr.mxu0 0.0
      %1627 = vmatpush1.msra.mxu0 0.0
      %1628 = vmatprep.subr.mxu0 0.0
      %1629 = vmatpush1.msra.mxu0 0.0
      %1630 = vmatprep.subr.mxu0 0.0
      %1631 = vmatpush1.msra.mxu0 0.0
      %1632 = vmatprep.subr.mxu0 0.0
      %1633 = vmatpush1.msra.mxu0 0.0
      %1634 = vmatprep.subr.mxu0 0.0
      %1635 = vmatpush1.msra.mxu0 0.0
      %1636 = vmatprep.mubr.f32.mxu0 0.0
      %v1637 = vand.u32 %v1177, 4294901760
      %1638 = vmatmul.mubr.f32.gmra.mrb[0].mxu0 %v1637
      %v1639 = vpop.f32.mrb[0].mxu0
      %v1640 = vadd.f32 %v1566, %v1639
      %v1641 = vpop.f32.mrb[0].mxu0
      %v1642 = vadd.f32 %v1568, %v1641
      %1643 = vdwg.mxu0
      %v1644 = vand.u32 %v212, 4294901760
      %1645 = vmatprep.subr.mxu0 %v1644
      %v1646 = vand.u32 %v210, 4294901760
      %1647 = vmatpush1.msra.mxu0 %v1646
      %1648 = vmatprep.subr.mxu0 0.0
      %1649 = vmatpush1.msra.mxu0 0.0
      %1650 = vmatprep.subr.mxu0 0.0
      %1651 = vmatpush1.msra.mxu0 0.0
      %1652 = vmatprep.subr.mxu0 0.0
      %1653 = vmatpush1.msra.mxu0 0.0
      %1654 = vmatprep.subr.mxu0 0.0
      %1655 = vmatpush1.msra.mxu0 0.0
      %1656 = vmatprep.subr.mxu0 0.0
      %1657 = vmatpush1.msra.mxu0 0.0
      %1658 = vmatprep.subr.mxu0 0.0
      %1659 = vmatpush1.msra.mxu0 0.0
      %1660 = vmatprep.subr.mxu0 0.0
      %1661 = vmatpush1.msra.mxu0 0.0
      %1662 = vmatprep.subr.mxu0 0.0
      %1663 = vmatpush1.msra.mxu0 0.0
      %1664 = vmatprep.subr.mxu0 0.0
      %1665 = vmatpush1.msra.mxu0 0.0
      %1666 = vmatprep.subr.mxu0 0.0
      %1667 = vmatpush1.msra.mxu0 0.0
      %1668 = vmatprep.subr.mxu0 0.0
      %1669 = vmatpush1.msra.mxu0 0.0
      %1670 = vmatprep.subr.mxu0 0.0
      %1671 = vmatpush1.msra.mxu0 0.0
      %1672 = vmatprep.subr.mxu0 0.0
      %1673 = vmatpush1.msra.mxu0 0.0
      %1674 = vmatprep.subr.mxu0 0.0
      %1675 = vmatpush1.msra.mxu0 0.0
      %1676 = vmatprep.subr.mxu0 0.0
      %1677 = vmatpush1.msra.mxu0 0.0
      %1678 = vmatprep.subr.mxu0 0.0
      %1679 = vmatpush1.msra.mxu0 0.0
      %1680 = vmatprep.subr.mxu0 0.0
      %1681 = vmatpush1.msra.mxu0 0.0
      %1682 = vmatprep.subr.mxu0 0.0
      %1683 = vmatpush1.msra.mxu0 0.0
      %1684 = vmatprep.subr.mxu0 0.0
      %1685 = vmatpush1.msra.mxu0 0.0
      %1686 = vmatprep.subr.mxu0 0.0
      %1687 = vmatpush1.msra.mxu0 0.0
      %1688 = vmatprep.subr.mxu0 0.0
      %1689 = vmatpush1.msra.mxu0 0.0
      %1690 = vmatprep.subr.mxu0 0.0
      %1691 = vmatpush1.msra.mxu0 0.0
      %1692 = vmatprep.subr.mxu0 0.0
      %1693 = vmatpush1.msra.mxu0 0.0
      %1694 = vmatprep.subr.mxu0 0.0
      %1695 = vmatpush1.msra.mxu0 0.0
      %1696 = vmatprep.subr.mxu0 0.0
      %1697 = vmatpush1.msra.mxu0 0.0
      %1698 = vmatprep.subr.mxu0 0.0
      %1699 = vmatpush1.msra.mxu0 0.0
      %1700 = vmatprep.subr.mxu0 0.0
      %1701 = vmatpush1.msra.mxu0 0.0
      %1702 = vmatprep.subr.mxu0 0.0
      %1703 = vmatpush1.msra.mxu0 0.0
      %1704 = vmatprep.subr.mxu0 0.0
      %1705 = vmatpush1.msra.mxu0 0.0
      %1706 = vmatprep.subr.mxu0 0.0
      %1707 = vmatpush1.msra.mxu0 0.0
      %1708 = vmatprep.subr.mxu0 0.0
      %1709 = vmatpush1.msra.mxu0 0.0
      %1710 = vmatprep.mubr.f32.mxu0 0.0
      %v1711 = vand.u32 %v1177, 4294901760
      %v1712 = vsub.f32 %v1177, %v1711
      %v1713 = vand.u32 %v1712, 4294901760
      %v1714 = vsub.f32 %v1712, %v1713
      %v1715 = vand.u32 %v1714, 4294901760
      %1716 = vmatmul.mubr.f32.gmra.mrb[0].mxu0 %v1715
      %v1717 = vpop.f32.mrb[0].mxu0
      %v1718 = vadd.f32 0.0, %v1717
      %v1719 = vpop.f32.mrb[0].mxu0
      %v1720 = vadd.f32 0.0, %v1719
      %1721 = vdwg.mxu0
      %v1722 = vand.u32 %v212, 4294901760
      %v1723 = vsub.f32 %v212, %v1722
      %v1724 = vand.u32 %v1723, 4294901760
      %v1725 = vsub.f32 %v1723, %v1724
      %v1726 = vand.u32 %v1725, 4294901760
      %1727 = vmatprep.subr.mxu0 %v1726
      %v1728 = vand.u32 %v210, 4294901760
      %v1729 = vsub.f32 %v210, %v1728
      %v1730 = vand.u32 %v1729, 4294901760
      %v1731 = vsub.f32 %v1729, %v1730
      %v1732 = vand.u32 %v1731, 4294901760
      %1733 = vmatpush1.msra.mxu0 %v1732
      %1734 = vmatprep.subr.mxu0 0.0
      %1735 = vmatpush1.msra.mxu0 0.0
      %1736 = vmatprep.subr.mxu0 0.0
      %1737 = vmatpush1.msra.mxu0 0.0
      %1738 = vmatprep.subr.mxu0 0.0
      %1739 = vmatpush1.msra.mxu0 0.0
      %1740 = vmatprep.subr.mxu0 0.0
      %1741 = vmatpush1.msra.mxu0 0.0
      %1742 = vmatprep.subr.mxu0 0.0
      %1743 = vmatpush1.msra.mxu0 0.0
      %1744 = vmatprep.subr.mxu0 0.0
      %1745 = vmatpush1.msra.mxu0 0.0
      %1746 = vmatprep.subr.mxu0 0.0
      %1747 = vmatpush1.msra.mxu0 0.0
      %1748 = vmatprep.subr.mxu0 0.0
      %1749 = vmatpush1.msra.mxu0 0.0
      %1750 = vmatprep.subr.mxu0 0.0
      %1751 = vmatpush1.msra.mxu0 0.0
      %1752 = vmatprep.subr.mxu0 0.0
      %1753 = vmatpush1.msra.mxu0 0.0
      %1754 = vmatprep.subr.mxu0 0.0
      %1755 = vmatpush1.msra.mxu0 0.0
      %1756 = vmatprep.subr.mxu0 0.0
      %1757 = vmatpush1.msra.mxu0 0.0
      %1758 = vmatprep.subr.mxu0 0.0
      %1759 = vmatpush1.msra.mxu0 0.0
      %1760 = vmatprep.subr.mxu0 0.0
      %1761 = vmatpush1.msra.mxu0 0.0
      %1762 = vmatprep.subr.mxu0 0.0
      %1763 = vmatpush1.msra.mxu0 0.0
      %1764 = vmatprep.subr.mxu0 0.0
      %1765 = vmatpush1.msra.mxu0 0.0
      %1766 = vmatprep.subr.mxu0 0.0
      %1767 = vmatpush1.msra.mxu0 0.0
      %1768 = vmatprep.subr.mxu0 0.0
      %1769 = vmatpush1.msra.mxu0 0.0
      %1770 = vmatprep.subr.mxu0 0.0
      %1771 = vmatpush1.msra.mxu0 0.0
      %1772 = vmatprep.subr.mxu0 0.0
      %1773 = vmatpush1.msra.mxu0 0.0
      %1774 = vmatprep.subr.mxu0 0.0
      %1775 = vmatpush1.msra.mxu0 0.0
      %1776 = vmatprep.subr.mxu0 0.0
      %1777 = vmatpush1.msra.mxu0 0.0
      %1778 = vmatprep.subr.mxu0 0.0
      %1779 = vmatpush1.msra.mxu0 0.0
      %1780 = vmatprep.subr.mxu0 0.0
      %1781 = vmatpush1.msra.mxu0 0.0
      %1782 = vmatprep.subr.mxu0 0.0
      %1783 = vmatpush1.msra.mxu0 0.0
      %1784 = vmatprep.subr.mxu0 0.0
      %1785 = vmatpush1.msra.mxu0 0.0
      %1786 = vmatprep.subr.mxu0 0.0
      %1787 = vmatpush1.msra.mxu0 0.0
      %1788 = vmatprep.subr.mxu0 0.0
      %1789 = vmatpush1.msra.mxu0 0.0
      %1790 = vmatprep.subr.mxu0 0.0
      %1791 = vmatpush1.msra.mxu0 0.0
      %1792 = vmatprep.subr.mxu0 0.0
      %1793 = vmatpush1.msra.mxu0 0.0
      %1794 = vmatprep.subr.mxu0 0.0
      %1795 = vmatpush1.msra.mxu0 0.0
      %1796 = vmatprep.mubr.f32.mxu0 0.0
      %v1797 = vand.u32 %v1177, 4294901760
      %1798 = vmatmul.mubr.f32.gmra.mrb[0].mxu0 %v1797
      %v1799 = vpop.f32.mrb[0].mxu0
      %v1800 = vadd.f32 %v1718, %v1799
      %v1801 = vpop.f32.mrb[0].mxu0
      %v1802 = vadd.f32 %v1720, %v1801
      %1803 = vdwg.mxu0
      %v1804 = vand.u32 %v212, 4294901760
      %v1805 = vsub.f32 %v212, %v1804
      %1806 = vmatprep.subr.mxu0 %v1805
      %v1807 = vand.u32 %v210, 4294901760
      %v1808 = vsub.f32 %v210, %v1807
      %1809 = vmatpush1.msra.mxu0 %v1808
      %1810 = vmatprep.subr.mxu0 0.0
      %1811 = vmatpush1.msra.mxu0 0.0
      %1812 = vmatprep.subr.mxu0 0.0
      %1813 = vmatpush1.msra.mxu0 0.0
      %1814 = vmatprep.subr.mxu0 0.0
      %1815 = vmatpush1.msra.mxu0 0.0
      %1816 = vmatprep.subr.mxu0 0.0
      %1817 = vmatpush1.msra.mxu0 0.0
      %1818 = vmatprep.subr.mxu0 0.0
      %1819 = vmatpush1.msra.mxu0 0.0
      %1820 = vmatprep.subr.mxu0 0.0
      %1821 = vmatpush1.msra.mxu0 0.0
      %1822 = vmatprep.subr.mxu0 0.0
      %1823 = vmatpush1.msra.mxu0 0.0
      %1824 = vmatprep.subr.mxu0 0.0
      %1825 = vmatpush1.msra.mxu0 0.0
      %1826 = vmatprep.subr.mxu0 0.0
      %1827 = vmatpush1.msra.mxu0 0.0
      %1828 = vmatprep.subr.mxu0 0.0
      %1829 = vmatpush1.msra.mxu0 0.0
      %1830 = vmatprep.subr.mxu0 0.0
      %1831 = vmatpush1.msra.mxu0 0.0
      %1832 = vmatprep.subr.mxu0 0.0
      %1833 = vmatpush1.msra.mxu0 0.0
      %1834 = vmatprep.subr.mxu0 0.0
      %1835 = vmatpush1.msra.mxu0 0.0
      %1836 = vmatprep.subr.mxu0 0.0
      %1837 = vmatpush1.msra.mxu0 0.0
      %1838 = vmatprep.subr.mxu0 0.0
      %1839 = vmatpush1.msra.mxu0 0.0
      %1840 = vmatprep.subr.mxu0 0.0
      %1841 = vmatpush1.msra.mxu0 0.0
      %1842 = vmatprep.subr.mxu0 0.0
      %1843 = vmatpush1.msra.mxu0 0.0
      %1844 = vmatprep.subr.mxu0 0.0
      %1845 = vmatpush1.msra.mxu0 0.0
      %1846 = vmatprep.subr.mxu0 0.0
      %1847 = vmatpush1.msra.mxu0 0.0
      %1848 = vmatprep.subr.mxu0 0.0
      %1849 = vmatpush1.msra.mxu0 0.0
      %1850 = vmatprep.subr.mxu0 0.0
      %1851 = vmatpush1.msra.mxu0 0.0
      %1852 = vmatprep.subr.mxu0 0.0
      %1853 = vmatpush1.msra.mxu0 0.0
      %1854 = vmatprep.subr.mxu0 0.0
      %1855 = vmatpush1.msra.mxu0 0.0
      %1856 = vmatprep.subr.mxu0 0.0
      %1857 = vmatpush1.msra.mxu0 0.0
      %1858 = vmatprep.subr.mxu0 0.0
      %1859 = vmatpush1.msra.mxu0 0.0
      %1860 = vmatprep.subr.mxu0 0.0
      %1861 = vmatpush1.msra.mxu0 0.0
      %1862 = vmatprep.subr.mxu0 0.0
      %1863 = vmatpush1.msra.mxu0 0.0
      %1864 = vmatprep.subr.mxu0 0.0
      %1865 = vmatpush1.msra.mxu0 0.0
      %1866 = vmatprep.subr.mxu0 0.0
      %1867 = vmatpush1.msra.mxu0 0.0
      %1868 = vmatprep.subr.mxu0 0.0
      %1869 = vmatpush1.msra.mxu0 0.0
      %1870 = vmatprep.subr.mxu0 0.0
      %1871 = vmatpush1.msra.mxu0 0.0
      %1872 = vmatprep.mubr.f32.mxu0 0.0
      %v1873 = vand.u32 %v1177, 4294901760
      %v1874 = vsub.f32 %v1177, %v1873
      %1875 = vmatmul.mubr.f32.gmra.mrb[0].mxu0 %v1874
      %v1876 = vpop.f32.mrb[0].mxu0
      %v1877 = vadd.f32 %v1800, %v1876
      %v1878 = vpop.f32.mrb[0].mxu0
      %v1879 = vadd.f32 %v1802, %v1878
      %1880 = vdwg.mxu0
      %v1881 = vand.u32 %v212, 4294901760
      %1882 = vmatprep.subr.mxu0 %v1881
      %v1883 = vand.u32 %v210, 4294901760
      %1884 = vmatpush1.msra.mxu0 %v1883
      %1885 = vmatprep.subr.mxu0 0.0
      %1886 = vmatpush1.msra.mxu0 0.0
      %1887 = vmatprep.subr.mxu0 0.0
      %1888 = vmatpush1.msra.mxu0 0.0
      %1889 = vmatprep.subr.mxu0 0.0
      %1890 = vmatpush1.msra.mxu0 0.0
      %1891 = vmatprep.subr.mxu0 0.0
      %1892 = vmatpush1.msra.mxu0 0.0
      %1893 = vmatprep.subr.mxu0 0.0
      %1894 = vmatpush1.msra.mxu0 0.0
      %1895 = vmatprep.subr.mxu0 0.0
      %1896 = vmatpush1.msra.mxu0 0.0
      %1897 = vmatprep.subr.mxu0 0.0
      %1898 = vmatpush1.msra.mxu0 0.0
      %1899 = vmatprep.subr.mxu0 0.0
      %1900 = vmatpush1.msra.mxu0 0.0
      %1901 = vmatprep.subr.mxu0 0.0
      %1902 = vmatpush1.msra.mxu0 0.0
      %1903 = vmatprep.subr.mxu0 0.0
      %1904 = vmatpush1.msra.mxu0 0.0
      %1905 = vmatprep.subr.mxu0 0.0
      %1906 = vmatpush1.msra.mxu0 0.0
      %1907 = vmatprep.subr.mxu0 0.0
      %1908 = vmatpush1.msra.mxu0 0.0
      %1909 = vmatprep.subr.mxu0 0.0
      %1910 = vmatpush1.msra.mxu0 0.0
      %1911 = vmatprep.subr.mxu0 0.0
      %1912 = vmatpush1.msra.mxu0 0.0
      %1913 = vmatprep.subr.mxu0 0.0
      %1914 = vmatpush1.msra.mxu0 0.0
      %1915 = vmatprep.subr.mxu0 0.0
      %1916 = vmatpush1.msra.mxu0 0.0
      %1917 = vmatprep.subr.mxu0 0.0
      %1918 = vmatpush1.msra.mxu0 0.0
      %1919 = vmatprep.subr.mxu0 0.0
      %1920 = vmatpush1.msra.mxu0 0.0
      %1921 = vmatprep.subr.mxu0 0.0
      %1922 = vmatpush1.msra.mxu0 0.0
      %1923 = vmatprep.subr.mxu0 0.0
      %1924 = vmatpush1.msra.mxu0 0.0
      %1925 = vmatprep.subr.mxu0 0.0
      %1926 = vmatpush1.msra.mxu0 0.0
      %1927 = vmatprep.subr.mxu0 0.0
      %1928 = vmatpush1.msra.mxu0 0.0
      %1929 = vmatprep.subr.mxu0 0.0
      %1930 = vmatpush1.msra.mxu0 0.0
      %1931 = vmatprep.subr.mxu0 0.0
      %1932 = vmatpush1.msra.mxu0 0.0
      %1933 = vmatprep.subr.mxu0 0.0
      %1934 = vmatpush1.msra.mxu0 0.0
      %1935 = vmatprep.subr.mxu0 0.0
      %1936 = vmatpush1.msra.mxu0 0.0
      %1937 = vmatprep.subr.mxu0 0.0
      %1938 = vmatpush1.msra.mxu0 0.0
      %1939 = vmatprep.subr.mxu0 0.0
      %1940 = vmatpush1.msra.mxu0 0.0
      %1941 = vmatprep.subr.mxu0 0.0
      %1942 = vmatpush1.msra.mxu0 0.0
      %1943 = vmatprep.subr.mxu0 0.0
      %1944 = vmatpush1.msra.mxu0 0.0
      %1945 = vmatprep.subr.mxu0 0.0
      %1946 = vmatpush1.msra.mxu0 0.0
      %1947 = vmatprep.mubr.f32.mxu0 0.0
      %v1948 = vand.u32 %v1177, 4294901760
      %v1949 = vsub.f32 %v1177, %v1948
      %v1950 = vand.u32 %v1949, 4294901760
      %1951 = vmatmul.mubr.f32.gmra.mrb[0].mxu0 %v1950
      %v1952 = vpop.f32.mrb[0].mxu0
      %v1953 = vadd.f32 %v1877, %v1952
      %v1954 = vpop.f32.mrb[0].mxu0
      %v1955 = vadd.f32 %v1879, %v1954
      %1956 = vdwg.mxu0
      %v1957 = vand.u32 %v212, 4294901760
      %v1958 = vsub.f32 %v212, %v1957
      %v1959 = vand.u32 %v1958, 4294901760
      %1960 = vmatprep.subr.mxu0 %v1959
      %v1961 = vand.u32 %v210, 4294901760
      %v1962 = vsub.f32 %v210, %v1961
      %v1963 = vand.u32 %v1962, 4294901760
      %1964 = vmatpush1.msra.mxu0 %v1963
      %1965 = vmatprep.subr.mxu0 0.0
      %1966 = vmatpush1.msra.mxu0 0.0
      %1967 = vmatprep.subr.mxu0 0.0
      %1968 = vmatpush1.msra.mxu0 0.0
      %1969 = vmatprep.subr.mxu0 0.0
      %1970 = vmatpush1.msra.mxu0 0.0
      %1971 = vmatprep.subr.mxu0 0.0
      %1972 = vmatpush1.msra.mxu0 0.0
      %1973 = vmatprep.subr.mxu0 0.0
      %1974 = vmatpush1.msra.mxu0 0.0
      %1975 = vmatprep.subr.mxu0 0.0
      %1976 = vmatpush1.msra.mxu0 0.0
      %1977 = vmatprep.subr.mxu0 0.0
      %1978 = vmatpush1.msra.mxu0 0.0
      %1979 = vmatprep.subr.mxu0 0.0
      %1980 = vmatpush1.msra.mxu0 0.0
      %1981 = vmatprep.subr.mxu0 0.0
      %1982 = vmatpush1.msra.mxu0 0.0
      %1983 = vmatprep.subr.mxu0 0.0
      %1984 = vmatpush1.msra.mxu0 0.0
      %1985 = vmatprep.subr.mxu0 0.0
      %1986 = vmatpush1.msra.mxu0 0.0
      %1987 = vmatprep.subr.mxu0 0.0
      %1988 = vmatpush1.msra.mxu0 0.0
      %1989 = vmatprep.subr.mxu0 0.0
      %1990 = vmatpush1.msra.mxu0 0.0
      %1991 = vmatprep.subr.mxu0 0.0
      %1992 = vmatpush1.msra.mxu0 0.0
      %1993 = vmatprep.subr.mxu0 0.0
      %1994 = vmatpush1.msra.mxu0 0.0
      %1995 = vmatprep.subr.mxu0 0.0
      %1996 = vmatpush1.msra.mxu0 0.0
      %1997 = vmatprep.subr.mxu0 0.0
      %1998 = vmatpush1.msra.mxu0 0.0
      %1999 = vmatprep.subr.mxu0 0.0
      %2000 = vmatpush1.msra.mxu0 0.0
      %2001 = vmatprep.subr.mxu0 0.0
      %2002 = vmatpush1.msra.mxu0 0.0
      %2003 = vmatprep.subr.mxu0 0.0
      %2004 = vmatpush1.msra.mxu0 0.0
      %2005 = vmatprep.subr.mxu0 0.0
      %2006 = vmatpush1.msra.mxu0 0.0
      %2007 = vmatprep.subr.mxu0 0.0
      %2008 = vmatpush1.msra.mxu0 0.0
      %2009 = vmatprep.subr.mxu0 0.0
      %2010 = vmatpush1.msra.mxu0 0.0
      %2011 = vmatprep.subr.mxu0 0.0
      %2012 = vmatpush1.msra.mxu0 0.0
      %2013 = vmatprep.subr.mxu0 0.0
      %2014 = vmatpush1.msra.mxu0 0.0
      %2015 = vmatprep.subr.mxu0 0.0
      %2016 = vmatpush1.msra.mxu0 0.0
      %2017 = vmatprep.subr.mxu0 0.0
      %2018 = vmatpush1.msra.mxu0 0.0
      %2019 = vmatprep.subr.mxu0 0.0
      %2020 = vmatpush1.msra.mxu0 0.0
      %2021 = vmatprep.subr.mxu0 0.0
      %2022 = vmatpush1.msra.mxu0 0.0
      %2023 = vmatprep.subr.mxu0 0.0
      %2024 = vmatpush1.msra.mxu0 0.0
      %2025 = vmatprep.subr.mxu0 0.0
      %2026 = vmatpush1.msra.mxu0 0.0
      %2027 = vmatprep.mubr.f32.mxu0 0.0
      %v2028 = vand.u32 %v1177, 4294901760
      %2029 = vmatmul.mubr.f32.gmra.mrb[0].mxu0 %v2028
      %v2030 = vpop.f32.mrb[0].mxu0
      %v2031 = vadd.f32 %v1953, %v2030
      %v2032 = vpop.f32.mrb[0].mxu0
      %v2033 = vadd.f32 %v1955, %v2032
      %2034 = vdwg.mxu0
      %v2035 = vand.u32 %v212, 4294901760
      %2036 = vmatprep.subr.mxu0 %v2035
      %v2037 = vand.u32 %v210, 4294901760
      %2038 = vmatpush1.msra.mxu0 %v2037
      %2039 = vmatprep.subr.mxu0 0.0
      %2040 = vmatpush1.msra.mxu0 0.0
      %2041 = vmatprep.subr.mxu0 0.0
      %2042 = vmatpush1.msra.mxu0 0.0
      %2043 = vmatprep.subr.mxu0 0.0
      %2044 = vmatpush1.msra.mxu0 0.0
      %2045 = vmatprep.subr.mxu0 0.0
      %2046 = vmatpush1.msra.mxu0 0.0
      %2047 = vmatprep.subr.mxu0 0.0
      %2048 = vmatpush1.msra.mxu0 0.0
      %2049 = vmatprep.subr.mxu0 0.0
      %2050 = vmatpush1.msra.mxu0 0.0
      %2051 = vmatprep.subr.mxu0 0.0
      %2052 = vmatpush1.msra.mxu0 0.0
      %2053 = vmatprep.subr.mxu0 0.0
      %2054 = vmatpush1.msra.mxu0 0.0
      %2055 = vmatprep.subr.mxu0 0.0
      %2056 = vmatpush1.msra.mxu0 0.0
      %2057 = vmatprep.subr.mxu0 0.0
      %2058 = vmatpush1.msra.mxu0 0.0
      %2059 = vmatprep.subr.mxu0 0.0
      %2060 = vmatpush1.msra.mxu0 0.0
      %2061 = vmatprep.subr.mxu0 0.0
      %2062 = vmatpush1.msra.mxu0 0.0
      %2063 = vmatprep.subr.mxu0 0.0
      %2064 = vmatpush1.msra.mxu0 0.0
      %2065 = vmatprep.subr.mxu0 0.0
      %2066 = vmatpush1.msra.mxu0 0.0
      %2067 = vmatprep.subr.mxu0 0.0
      %2068 = vmatpush1.msra.mxu0 0.0
      %2069 = vmatprep.subr.mxu0 0.0
      %2070 = vmatpush1.msra.mxu0 0.0
      %2071 = vmatprep.subr.mxu0 0.0
      %2072 = vmatpush1.msra.mxu0 0.0
      %2073 = vmatprep.subr.mxu0 0.0
      %2074 = vmatpush1.msra.mxu0 0.0
      %2075 = vmatprep.subr.mxu0 0.0
      %2076 = vmatpush1.msra.mxu0 0.0
      %2077 = vmatprep.subr.mxu0 0.0
      %2078 = vmatpush1.msra.mxu0 0.0
      %2079 = vmatprep.subr.mxu0 0.0
      %2080 = vmatpush1.msra.mxu0 0.0
      %2081 = vmatprep.subr.mxu0 0.0
      %2082 = vmatpush1.msra.mxu0 0.0
      %2083 = vmatprep.subr.mxu0 0.0
      %2084 = vmatpush1.msra.mxu0 0.0
      %2085 = vmatprep.subr.mxu0 0.0
      %2086 = vmatpush1.msra.mxu0 0.0
      %2087 = vmatprep.subr.mxu0 0.0
      %2088 = vmatpush1.msra.mxu0 0.0
      %2089 = vmatprep.subr.mxu0 0.0
      %2090 = vmatpush1.msra.mxu0 0.0
      %2091 = vmatprep.subr.mxu0 0.0
      %2092 = vmatpush1.msra.mxu0 0.0
      %2093 = vmatprep.subr.mxu0 0.0
      %2094 = vmatpush1.msra.mxu0 0.0
      %2095 = vmatprep.subr.mxu0 0.0
      %2096 = vmatpush1.msra.mxu0 0.0
      %2097 = vmatprep.subr.mxu0 0.0
      %2098 = vmatpush1.msra.mxu0 0.0
      %2099 = vmatprep.subr.mxu0 0.0
      %2100 = vmatpush1.msra.mxu0 0.0
      %2101 = vmatprep.mubr.f32.mxu0 0.0
      %v2102 = vand.u32 %v1177, 4294901760
      %2103 = vmatmul.mubr.f32.gmra.mrb[0].mxu0 %v2102
      %v2104 = vpop.f32.mrb[0].mxu0
      %v2105 = vadd.f32 %v2031, %v2104
      %v2106 = vpop.f32.mrb[0].mxu0
      %v2107 = vadd.f32 %v2033, %v2106
      %2108 = vdwg.mxu0
      %vm2109 = vcmp.eq.s32.totalorder %v195, 1
      %v2110 = vsel %vm2109, 1, 0
      %v2111 = vlaneseq
      %v2112 = vshrl.u32 %v2111, 7
      %v2113 = vsub.s32 0, %v2112
      %v2114 = vrot.slane %v2110, %v2113
      %v2115 = vlaneseq
      %v2116 = vshrl.u32 %v2115, 7
      %v2117 = vsub.s32 1, %v2116
      %v2118 = vrot.slane %v2110, %v2117
      %v2119 = vlaneseq
      %v2120 = vshrl.u32 %v2119, 7
      %v2121 = vsub.s32 2, %v2120
      %v2122 = vrot.slane %v2110, %v2121
      %v2123 = vlaneseq
      %v2124 = vshrl.u32 %v2123, 7
      %v2125 = vsub.s32 3, %v2124
      %v2126 = vrot.slane %v2110, %v2125
      %vm2127 = vcmp.eq.s32.totalorder %v2114, 1
      %vm2128 = vcmp.eq.s32.totalorder %v2118, 1
      %vm2129 = vcmp.eq.s32.totalorder %v2122, 1
      %vm2130 = vcmp.eq.s32.totalorder %v2126, 1
      %v2131 = vsel %vm2127, %v1640, 0.0
      %v2132 = vsel %vm2128, %v1642, 0.0
      %v2133 = vsel %vm2129, %v2105, 0.0
      %v2134 = vsel %vm2130, %v2107, 0.0
      %v2135 = vadd.f32 %v1170, %v2131
      %v2136 = vadd.f32 %v1171, %v2132
      %v2137 = vadd.f32 %v1172, %v2133
      %v2138 = vadd.f32 %v1173, %v2134
      %s2139 = scalar_lea.vmem %s0, 16
      %v2140 = vld [vmem:[%s2139] sm:$0xff]
      %v2142 = vsel %vm201, %v2140, 0
      %v2144 = vand.u32 %v208, 4294901760
      %2145 = vmatprep.subr.mxu0 %v2144
      %v2146 = vand.u32 %v206, 4294901760
      %2147 = vmatpush1.msra.mxu0 %v2146
      %2148 = vmatprep.subr.mxu0 0.0
      %2149 = vmatpush1.msra.mxu0 0.0
      %2150 = vmatprep.subr.mxu0 0.0
      %2151 = vmatpush1.msra.mxu0 0.0
      %2152 = vmatprep.subr.mxu0 0.0
      %2153 = vmatpush1.msra.mxu0 0.0
      %2154 = vmatprep.subr.mxu0 0.0
      %2155 = vmatpush1.msra.mxu0 0.0
      %2156 = vmatprep.subr.mxu0 0.0
      %2157 = vmatpush1.msra.mxu0 0.0
      %2158 = vmatprep.subr.mxu0 0.0
      %2159 = vmatpush1.msra.mxu0 0.0
      %2160 = vmatprep.subr.mxu0 0.0
      %2161 = vmatpush1.msra.mxu0 0.0
      %2162 = vmatprep.subr.mxu0 0.0
      %2163 = vmatpush1.msra.mxu0 0.0
      %2164 = vmatprep.subr.mxu0 0.0
      %2165 = vmatpush1.msra.mxu0 0.0
      %2166 = vmatprep.subr.mxu0 0.0
      %2167 = vmatpush1.msra.mxu0 0.0
      %2168 = vmatprep.subr.mxu0 0.0
      %2169 = vmatpush1.msra.mxu0 0.0
      %2170 = vmatprep.subr.mxu0 0.0
      %2171 = vmatpush1.msra.mxu0 0.0
      %2172 = vmatprep.subr.mxu0 0.0
      %2173 = vmatpush1.msra.mxu0 0.0
      %2174 = vmatprep.subr.mxu0 0.0
      %2175 = vmatpush1.msra.mxu0 0.0
      %2176 = vmatprep.subr.mxu0 0.0
      %2177 = vmatpush1.msra.mxu0 0.0
      %2178 = vmatprep.subr.mxu0 0.0
      %2179 = vmatpush1.msra.mxu0 0.0
      %2180 = vmatprep.subr.mxu0 0.0
      %2181 = vmatpush1.msra.mxu0 0.0
      %2182 = vmatprep.subr.mxu0 0.0
      %2183 = vmatpush1.msra.mxu0 0.0
      %2184 = vmatprep.subr.mxu0 0.0
      %2185 = vmatpush1.msra.mxu0 0.0
      %2186 = vmatprep.subr.mxu0 0.0
      %2187 = vmatpush1.msra.mxu0 0.0
      %2188 = vmatprep.subr.mxu0 0.0
      %2189 = vmatpush1.msra.mxu0 0.0
      %2190 = vmatprep.subr.mxu0 0.0
      %2191 = vmatpush1.msra.mxu0 0.0
      %2192 = vmatprep.subr.mxu0 0.0
      %2193 = vmatpush1.msra.mxu0 0.0
      %2194 = vmatprep.subr.mxu0 0.0
      %2195 = vmatpush1.msra.mxu0 0.0
      %2196 = vmatprep.subr.mxu0 0.0
      %2197 = vmatpush1.msra.mxu0 0.0
      %2198 = vmatprep.subr.mxu0 0.0
      %2199 = vmatpush1.msra.mxu0 0.0
      %2200 = vmatprep.subr.mxu0 0.0
      %2201 = vmatpush1.msra.mxu0 0.0
      %2202 = vmatprep.subr.mxu0 0.0
      %2203 = vmatpush1.msra.mxu0 0.0
      %2204 = vmatprep.subr.mxu0 0.0
      %2205 = vmatpush1.msra.mxu0 0.0
      %2206 = vmatprep.subr.mxu0 0.0
      %2207 = vmatpush1.msra.mxu0 0.0
      %2208 = vmatprep.subr.mxu0 0.0
      %2209 = vmatpush1.msra.mxu0 0.0
      %2210 = vmatprep.mubr.f32.mxu0 0.0
      %v2211 = vand.u32 %v2142, 4294901760
      %v2212 = vsub.f32 %v2142, %v2211
      %v2213 = vand.u32 %v2212, 4294901760
      %v2214 = vsub.f32 %v2212, %v2213
      %v2215 = vand.u32 %v2214, 4294901760
      %2216 = vmatmul.mubr.f32.gmra.mrb[0].mxu0 %v2215
      %v2217 = vpop.f32.mrb[0].mxu0
      %v2218 = vadd.f32 0.0, %v2217
      %v2219 = vpop.f32.mrb[0].mxu0
      %v2220 = vadd.f32 0.0, %v2219
      %2221 = vdwg.mxu0
      %v2222 = vand.u32 %v208, 4294901760
      %v2223 = vsub.f32 %v208, %v2222
      %v2224 = vand.u32 %v2223, 4294901760
      %v2225 = vsub.f32 %v2223, %v2224
      %v2226 = vand.u32 %v2225, 4294901760
      %2227 = vmatprep.subr.mxu0 %v2226
      %v2228 = vand.u32 %v206, 4294901760
      %v2229 = vsub.f32 %v206, %v2228
      %v2230 = vand.u32 %v2229, 4294901760
      %v2231 = vsub.f32 %v2229, %v2230
      %v2232 = vand.u32 %v2231, 4294901760
      %2233 = vmatpush1.msra.mxu0 %v2232
      %2234 = vmatprep.subr.mxu0 0.0
      %2235 = vmatpush1.msra.mxu0 0.0
      %2236 = vmatprep.subr.mxu0 0.0
      %2237 = vmatpush1.msra.mxu0 0.0
      %2238 = vmatprep.subr.mxu0 0.0
      %2239 = vmatpush1.msra.mxu0 0.0
      %2240 = vmatprep.subr.mxu0 0.0
      %2241 = vmatpush1.msra.mxu0 0.0
      %2242 = vmatprep.subr.mxu0 0.0
      %2243 = vmatpush1.msra.mxu0 0.0
      %2244 = vmatprep.subr.mxu0 0.0
      %2245 = vmatpush1.msra.mxu0 0.0
      %2246 = vmatprep.subr.mxu0 0.0
      %2247 = vmatpush1.msra.mxu0 0.0
      %2248 = vmatprep.subr.mxu0 0.0
      %2249 = vmatpush1.msra.mxu0 0.0
      %2250 = vmatprep.subr.mxu0 0.0
      %2251 = vmatpush1.msra.mxu0 0.0
      %2252 = vmatprep.subr.mxu0 0.0
      %2253 = vmatpush1.msra.mxu0 0.0
      %2254 = vmatprep.subr.mxu0 0.0
      %2255 = vmatpush1.msra.mxu0 0.0
      %2256 = vmatprep.subr.mxu0 0.0
      %2257 = vmatpush1.msra.mxu0 0.0
      %2258 = vmatprep.subr.mxu0 0.0
      %2259 = vmatpush1.msra.mxu0 0.0
      %2260 = vmatprep.subr.mxu0 0.0
      %2261 = vmatpush1.msra.mxu0 0.0
      %2262 = vmatprep.subr.mxu0 0.0
      %2263 = vmatpush1.msra.mxu0 0.0
      %2264 = vmatprep.subr.mxu0 0.0
      %2265 = vmatpush1.msra.mxu0 0.0
      %2266 = vmatprep.subr.mxu0 0.0
      %2267 = vmatpush1.msra.mxu0 0.0
      %2268 = vmatprep.subr.mxu0 0.0
      %2269 = vmatpush1.msra.mxu0 0.0
      %2270 = vmatprep.subr.mxu0 0.0
      %2271 = vmatpush1.msra.mxu0 0.0
      %2272 = vmatprep.subr.mxu0 0.0
      %2273 = vmatpush1.msra.mxu0 0.0
      %2274 = vmatprep.subr.mxu0 0.0
      %2275 = vmatpush1.msra.mxu0 0.0
      %2276 = vmatprep.subr.mxu0 0.0
      %2277 = vmatpush1.msra.mxu0 0.0
      %2278 = vmatprep.subr.mxu0 0.0
      %2279 = vmatpush1.msra.mxu0 0.0
      %2280 = vmatprep.subr.mxu0 0.0
      %2281 = vmatpush1.msra.mxu0 0.0
      %2282 = vmatprep.subr.mxu0 0.0
      %2283 = vmatpush1.msra.mxu0 0.0
      %2284 = vmatprep.subr.mxu0 0.0
      %2285 = vmatpush1.msra.mxu0 0.0
      %2286 = vmatprep.subr.mxu0 0.0
      %2287 = vmatpush1.msra.mxu0 0.0
      %2288 = vmatprep.subr.mxu0 0.0
      %2289 = vmatpush1.msra.mxu0 0.0
      %2290 = vmatprep.subr.mxu0 0.0
      %2291 = vmatpush1.msra.mxu0 0.0
      %2292 = vmatprep.subr.mxu0 0.0
      %2293 = vmatpush1.msra.mxu0 0.0
      %2294 = vmatprep.subr.mxu0 0.0
      %2295 = vmatpush1.msra.mxu0 0.0
      %2296 = vmatprep.mubr.f32.mxu0 0.0
      %v2297 = vand.u32 %v2142, 4294901760
      %2298 = vmatmul.mubr.f32.gmra.mrb[0].mxu0 %v2297
      %v2299 = vpop.f32.mrb[0].mxu0
      %v2300 = vadd.f32 %v2218, %v2299
      %v2301 = vpop.f32.mrb[0].mxu0
      %v2302 = vadd.f32 %v2220, %v2301
      %2303 = vdwg.mxu0
      %v2304 = vand.u32 %v208, 4294901760
      %v2305 = vsub.f32 %v208, %v2304
      %2306 = vmatprep.subr.mxu0 %v2305
      %v2307 = vand.u32 %v206, 4294901760
      %v2308 = vsub.f32 %v206, %v2307
      %2309 = vmatpush1.msra.mxu0 %v2308
      %2310 = vmatprep.subr.mxu0 0.0
      %2311 = vmatpush1.msra.mxu0 0.0
      %2312 = vmatprep.subr.mxu0 0.0
      %2313 = vmatpush1.msra.mxu0 0.0
      %2314 = vmatprep.subr.mxu0 0.0
      %2315 = vmatpush1.msra.mxu0 0.0
      %2316 = vmatprep.subr.mxu0 0.0
      %2317 = vmatpush1.msra.mxu0 0.0
      %2318 = vmatprep.subr.mxu0 0.0
      %2319 = vmatpush1.msra.mxu0 0.0
      %2320 = vmatprep.subr.mxu0 0.0
      %2321 = vmatpush1.msra.mxu0 0.0
      %2322 = vmatprep.subr.mxu0 0.0
      %2323 = vmatpush1.msra.mxu0 0.0
      %2324 = vmatprep.subr.mxu0 0.0
      %2325 = vmatpush1.msra.mxu0 0.0
      %2326 = vmatprep.subr.mxu0 0.0
      %2327 = vmatpush1.msra.mxu0 0.0
      %2328 = vmatprep.subr.mxu0 0.0
      %2329 = vmatpush1.msra.mxu0 0.0
      %2330 = vmatprep.subr.mxu0 0.0
      %2331 = vmatpush1.msra.mxu0 0.0
      %2332 = vmatprep.subr.mxu0 0.0
      %2333 = vmatpush1.msra.mxu0 0.0
      %2334 = vmatprep.subr.mxu0 0.0
      %2335 = vmatpush1.msra.mxu0 0.0
      %2336 = vmatprep.subr.mxu0 0.0
      %2337 = vmatpush1.msra.mxu0 0.0
      %2338 = vmatprep.subr.mxu0 0.0
      %2339 = vmatpush1.msra.mxu0 0.0
      %2340 = vmatprep.subr.mxu0 0.0
      %2341 = vmatpush1.msra.mxu0 0.0
      %2342 = vmatprep.subr.mxu0 0.0
      %2343 = vmatpush1.msra.mxu0 0.0
      %2344 = vmatprep.subr.mxu0 0.0
      %2345 = vmatpush1.msra.mxu0 0.0
      %2346 = vmatprep.subr.mxu0 0.0
      %2347 = vmatpush1.msra.mxu0 0.0
      %2348 = vmatprep.subr.mxu0 0.0
      %2349 = vmatpush1.msra.mxu0 0.0
      %2350 = vmatprep.subr.mxu0 0.0
      %2351 = vmatpush1.msra.mxu0 0.0
      %2352 = vmatprep.subr.mxu0 0.0
      %2353 = vmatpush1.msra.mxu0 0.0
      %2354 = vmatprep.subr.mxu0 0.0
      %2355 = vmatpush1.msra.mxu0 0.0
      %2356 = vmatprep.subr.mxu0 0.0
      %2357 = vmatpush1.msra.mxu0 0.0
      %2358 = vmatprep.subr.mxu0 0.0
      %2359 = vmatpush1.msra.mxu0 0.0
      %2360 = vmatprep.subr.mxu0 0.0
      %2361 = vmatpush1.msra.mxu0 0.0
      %2362 = vmatprep.subr.mxu0 0.0
      %2363 = vmatpush1.msra.mxu0 0.0
      %2364 = vmatprep.subr.mxu0 0.0
      %2365 = vmatpush1.msra.mxu0 0.0
      %2366 = vmatprep.subr.mxu0 0.0
      %2367 = vmatpush1.msra.mxu0 0.0
      %2368 = vmatprep.subr.mxu0 0.0
      %2369 = vmatpush1.msra.mxu0 0.0
      %2370 = vmatprep.subr.mxu0 0.0
      %2371 = vmatpush1.msra.mxu0 0.0
      %2372 = vmatprep.mubr.f32.mxu0 0.0
      %v2373 = vand.u32 %v2142, 4294901760
      %v2374 = vsub.f32 %v2142, %v2373
      %2375 = vmatmul.mubr.f32.gmra.mrb[0].mxu0 %v2374
      %v2376 = vpop.f32.mrb[0].mxu0
      %v2377 = vadd.f32 %v2300, %v2376
      %v2378 = vpop.f32.mrb[0].mxu0
      %v2379 = vadd.f32 %v2302, %v2378
      %2380 = vdwg.mxu0
      %v2381 = vand.u32 %v208, 4294901760
      %2382 = vmatprep.subr.mxu0 %v2381
      %v2383 = vand.u32 %v206, 4294901760
      %2384 = vmatpush1.msra.mxu0 %v2383
      %2385 = vmatprep.subr.mxu0 0.0
      %2386 = vmatpush1.msra.mxu0 0.0
      %2387 = vmatprep.subr.mxu0 0.0
      %2388 = vmatpush1.msra.mxu0 0.0
      %2389 = vmatprep.subr.mxu0 0.0
      %2390 = vmatpush1.msra.mxu0 0.0
      %2391 = vmatprep.subr.mxu0 0.0
      %2392 = vmatpush1.msra.mxu0 0.0
      %2393 = vmatprep.subr.mxu0 0.0
      %2394 = vmatpush1.msra.mxu0 0.0
      %2395 = vmatprep.subr.mxu0 0.0
      %2396 = vmatpush1.msra.mxu0 0.0
      %2397 = vmatprep.subr.mxu0 0.0
      %2398 = vmatpush1.msra.mxu0 0.0
      %2399 = vmatprep.subr.mxu0 0.0
      %2400 = vmatpush1.msra.mxu0 0.0
      %2401 = vmatprep.subr.mxu0 0.0
      %2402 = vmatpush1.msra.mxu0 0.0
      %2403 = vmatprep.subr.mxu0 0.0
      %2404 = vmatpush1.msra.mxu0 0.0
      %2405 = vmatprep.subr.mxu0 0.0
      %2406 = vmatpush1.msra.mxu0 0.0
      %2407 = vmatprep.subr.mxu0 0.0
      %2408 = vmatpush1.msra.mxu0 0.0
      %2409 = vmatprep.subr.mxu0 0.0
      %2410 = vmatpush1.msra.mxu0 0.0
      %2411 = vmatprep.subr.mxu0 0.0
      %2412 = vmatpush1.msra.mxu0 0.0
      %2413 = vmatprep.subr.mxu0 0.0
      %2414 = vmatpush1.msra.mxu0 0.0
      %2415 = vmatprep.subr.mxu0 0.0
      %2416 = vmatpush1.msra.mxu0 0.0
      %2417 = vmatprep.subr.mxu0 0.0
      %2418 = vmatpush1.msra.mxu0 0.0
      %2419 = vmatprep.subr.mxu0 0.0
      %2420 = vmatpush1.msra.mxu0 0.0
      %2421 = vmatprep.subr.mxu0 0.0
      %2422 = vmatpush1.msra.mxu0 0.0
      %2423 = vmatprep.subr.mxu0 0.0
      %2424 = vmatpush1.msra.mxu0 0.0
      %2425 = vmatprep.subr.mxu0 0.0
      %2426 = vmatpush1.msra.mxu0 0.0
      %2427 = vmatprep.subr.mxu0 0.0
      %2428 = vmatpush1.msra.mxu0 0.0
      %2429 = vmatprep.subr.mxu0 0.0
      %2430 = vmatpush1.msra.mxu0 0.0
      %2431 = vmatprep.subr.mxu0 0.0
      %2432 = vmatpush1.msra.mxu0 0.0
      %2433 = vmatprep.subr.mxu0 0.0
      %2434 = vmatpush1.msra.mxu0 0.0
      %2435 = vmatprep.subr.mxu0 0.0
      %2436 = vmatpush1.msra.mxu0 0.0
      %2437 = vmatprep.subr.mxu0 0.0
      %2438 = vmatpush1.msra.mxu0 0.0
      %2439 = vmatprep.subr.mxu0 0.0
      %2440 = vmatpush1.msra.mxu0 0.0
      %2441 = vmatprep.subr.mxu0 0.0
      %2442 = vmatpush1.msra.mxu0 0.0
      %2443 = vmatprep.subr.mxu0 0.0
      %2444 = vmatpush1.msra.mxu0 0.0
      %2445 = vmatprep.subr.mxu0 0.0
      %2446 = vmatpush1.msra.mxu0 0.0
      %2447 = vmatprep.mubr.f32.mxu0 0.0
      %v2448 = vand.u32 %v2142, 4294901760
      %v2449 = vsub.f32 %v2142, %v2448
      %v2450 = vand.u32 %v2449, 4294901760
      %2451 = vmatmul.mubr.f32.gmra.mrb[0].mxu0 %v2450
      %v2452 = vpop.f32.mrb[0].mxu0
      %v2453 = vadd.f32 %v2377, %v2452
      %v2454 = vpop.f32.mrb[0].mxu0
      %v2455 = vadd.f32 %v2379, %v2454
      %2456 = vdwg.mxu0
      %v2457 = vand.u32 %v208, 4294901760
      %v2458 = vsub.f32 %v208, %v2457
      %v2459 = vand.u32 %v2458, 4294901760
      %2460 = vmatprep.subr.mxu0 %v2459
      %v2461 = vand.u32 %v206, 4294901760
      %v2462 = vsub.f32 %v206, %v2461
      %v2463 = vand.u32 %v2462, 4294901760
      %2464 = vmatpush1.msra.mxu0 %v2463
      %2465 = vmatprep.subr.mxu0 0.0
      %2466 = vmatpush1.msra.mxu0 0.0
      %2467 = vmatprep.subr.mxu0 0.0
      %2468 = vmatpush1.msra.mxu0 0.0
      %2469 = vmatprep.subr.mxu0 0.0
      %2470 = vmatpush1.msra.mxu0 0.0
      %2471 = vmatprep.subr.mxu0 0.0
      %2472 = vmatpush1.msra.mxu0 0.0
      %2473 = vmatprep.subr.mxu0 0.0
      %2474 = vmatpush1.msra.mxu0 0.0
      %2475 = vmatprep.subr.mxu0 0.0
      %2476 = vmatpush1.msra.mxu0 0.0
      %2477 = vmatprep.subr.mxu0 0.0
      %2478 = vmatpush1.msra.mxu0 0.0
      %2479 = vmatprep.subr.mxu0 0.0
      %2480 = vmatpush1.msra.mxu0 0.0
      %2481 = vmatprep.subr.mxu0 0.0
      %2482 = vmatpush1.msra.mxu0 0.0
      %2483 = vmatprep.subr.mxu0 0.0
      %2484 = vmatpush1.msra.mxu0 0.0
      %2485 = vmatprep.subr.mxu0 0.0
      %2486 = vmatpush1.msra.mxu0 0.0
      %2487 = vmatprep.subr.mxu0 0.0
      %2488 = vmatpush1.msra.mxu0 0.0
      %2489 = vmatprep.subr.mxu0 0.0
      %2490 = vmatpush1.msra.mxu0 0.0
      %2491 = vmatprep.subr.mxu0 0.0
      %2492 = vmatpush1.msra.mxu0 0.0
      %2493 = vmatprep.subr.mxu0 0.0
      %2494 = vmatpush1.msra.mxu0 0.0
      %2495 = vmatprep.subr.mxu0 0.0
      %2496 = vmatpush1.msra.mxu0 0.0
      %2497 = vmatprep.subr.mxu0 0.0
      %2498 = vmatpush1.msra.mxu0 0.0
      %2499 = vmatprep.subr.mxu0 0.0
      %2500 = vmatpush1.msra.mxu0 0.0
      %2501 = vmatprep.subr.mxu0 0.0
      %2502 = vmatpush1.msra.mxu0 0.0
      %2503 = vmatprep.subr.mxu0 0.0
      %2504 = vmatpush1.msra.mxu0 0.0
      %2505 = vmatprep.subr.mxu0 0.0
      %2506 = vmatpush1.msra.mxu0 0.0
      %2507 = vmatprep.subr.mxu0 0.0
      %2508 = vmatpush1.msra.mxu0 0.0
      %2509 = vmatprep.subr.mxu0 0.0
      %2510 = vmatpush1.msra.mxu0 0.0
      %2511 = vmatprep.subr.mxu0 0.0
      %2512 = vmatpush1.msra.mxu0 0.0
      %2513 = vmatprep.subr.mxu0 0.0
      %2514 = vmatpush1.msra.mxu0 0.0
      %2515 = vmatprep.subr.mxu0 0.0
      %2516 = vmatpush1.msra.mxu0 0.0
      %2517 = vmatprep.subr.mxu0 0.0
      %2518 = vmatpush1.msra.mxu0 0.0
      %2519 = vmatprep.subr.mxu0 0.0
      %2520 = vmatpush1.msra.mxu0 0.0
      %2521 = vmatprep.subr.mxu0 0.0
      %2522 = vmatpush1.msra.mxu0 0.0
      %2523 = vmatprep.subr.mxu0 0.0
      %2524 = vmatpush1.msra.mxu0 0.0
      %2525 = vmatprep.subr.mxu0 0.0
      %2526 = vmatpush1.msra.mxu0 0.0
      %2527 = vmatprep.mubr.f32.mxu0 0.0
      %v2528 = vand.u32 %v2142, 4294901760
      %2529 = vmatmul.mubr.f32.gmra.mrb[0].mxu0 %v2528
      %v2530 = vpop.f32.mrb[0].mxu0
      %v2531 = vadd.f32 %v2453, %v2530
      %v2532 = vpop.f32.mrb[0].mxu0
      %v2533 = vadd.f32 %v2455, %v2532
      %2534 = vdwg.mxu0
      %v2535 = vand.u32 %v208, 4294901760
      %2536 = vmatprep.subr.mxu0 %v2535
      %v2537 = vand.u32 %v206, 4294901760
      %2538 = vmatpush1.msra.mxu0 %v2537
      %2539 = vmatprep.subr.mxu0 0.0
      %2540 = vmatpush1.msra.mxu0 0.0
      %2541 = vmatprep.subr.mxu0 0.0
      %2542 = vmatpush1.msra.mxu0 0.0
      %2543 = vmatprep.subr.mxu0 0.0
      %2544 = vmatpush1.msra.mxu0 0.0
      %2545 = vmatprep.subr.mxu0 0.0
      %2546 = vmatpush1.msra.mxu0 0.0
      %2547 = vmatprep.subr.mxu0 0.0
      %2548 = vmatpush1.msra.mxu0 0.0
      %2549 = vmatprep.subr.mxu0 0.0
      %2550 = vmatpush1.msra.mxu0 0.0
      %2551 = vmatprep.subr.mxu0 0.0
      %2552 = vmatpush1.msra.mxu0 0.0
      %2553 = vmatprep.subr.mxu0 0.0
      %2554 = vmatpush1.msra.mxu0 0.0
      %2555 = vmatprep.subr.mxu0 0.0
      %2556 = vmatpush1.msra.mxu0 0.0
      %2557 = vmatprep.subr.mxu0 0.0
      %2558 = vmatpush1.msra.mxu0 0.0
      %2559 = vmatprep.subr.mxu0 0.0
      %2560 = vmatpush1.msra.mxu0 0.0
      %2561 = vmatprep.subr.mxu0 0.0
      %2562 = vmatpush1.msra.mxu0 0.0
      %2563 = vmatprep.subr.mxu0 0.0
      %2564 = vmatpush1.msra.mxu0 0.0
      %2565 = vmatprep.subr.mxu0 0.0
      %2566 = vmatpush1.msra.mxu0 0.0
      %2567 = vmatprep.subr.mxu0 0.0
      %2568 = vmatpush1.msra.mxu0 0.0
      %2569 = vmatprep.subr.mxu0 0.0
      %2570 = vmatpush1.msra.mxu0 0.0
      %2571 = vmatprep.subr.mxu0 0.0
      %2572 = vmatpush1.msra.mxu0 0.0
      %2573 = vmatprep.subr.mxu0 0.0
      %2574 = vmatpush1.msra.mxu0 0.0
      %2575 = vmatprep.subr.mxu0 0.0
      %2576 = vmatpush1.msra.mxu0 0.0
      %2577 = vmatprep.subr.mxu0 0.0
      %2578 = vmatpush1.msra.mxu0 0.0
      %2579 = vmatprep.subr.mxu0 0.0
      %2580 = vmatpush1.msra.mxu0 0.0
      %2581 = vmatprep.subr.mxu0 0.0
      %2582 = vmatpush1.msra.mxu0 0.0
      %2583 = vmatprep.subr.mxu0 0.0
      %2584 = vmatpush1.msra.mxu0 0.0
      %2585 = vmatprep.subr.mxu0 0.0
      %2586 = vmatpush1.msra.mxu0 0.0
      %2587 = vmatprep.subr.mxu0 0.0
      %2588 = vmatpush1.msra.mxu0 0.0
      %2589 = vmatprep.subr.mxu0 0.0
      %2590 = vmatpush1.msra.mxu0 0.0
      %2591 = vmatprep.subr.mxu0 0.0
      %2592 = vmatpush1.msra.mxu0 0.0
      %2593 = vmatprep.subr.mxu0 0.0
      %2594 = vmatpush1.msra.mxu0 0.0
      %2595 = vmatprep.subr.mxu0 0.0
      %2596 = vmatpush1.msra.mxu0 0.0
      %2597 = vmatprep.subr.mxu0 0.0
      %2598 = vmatpush1.msra.mxu0 0.0
      %2599 = vmatprep.subr.mxu0 0.0
      %2600 = vmatpush1.msra.mxu0 0.0
      %2601 = vmatprep.mubr.f32.mxu0 0.0
      %v2602 = vand.u32 %v2142, 4294901760
      %2603 = vmatmul.mubr.f32.gmra.mrb[0].mxu0 %v2602
      %v2604 = vpop.f32.mrb[0].mxu0
      %v2605 = vadd.f32 %v2531, %v2604
      %v2606 = vpop.f32.mrb[0].mxu0
      %v2607 = vadd.f32 %v2533, %v2606
      %2608 = vdwg.mxu0
      %v2609 = vand.u32 %v212, 4294901760
      %2610 = vmatprep.subr.mxu0 %v2609
      %v2611 = vand.u32 %v210, 4294901760
      %2612 = vmatpush1.msra.mxu0 %v2611
      %2613 = vmatprep.subr.mxu0 0.0
      %2614 = vmatpush1.msra.mxu0 0.0
      %2615 = vmatprep.subr.mxu0 0.0
      %2616 = vmatpush1.msra.mxu0 0.0
      %2617 = vmatprep.subr.mxu0 0.0
      %2618 = vmatpush1.msra.mxu0 0.0
      %2619 = vmatprep.subr.mxu0 0.0
      %2620 = vmatpush1.msra.mxu0 0.0
      %2621 = vmatprep.subr.mxu0 0.0
      %2622 = vmatpush1.msra.mxu0 0.0
      %2623 = vmatprep.subr.mxu0 0.0
      %2624 = vmatpush1.msra.mxu0 0.0
      %2625 = vmatprep.subr.mxu0 0.0
      %2626 = vmatpush1.msra.mxu0 0.0
      %2627 = vmatprep.subr.mxu0 0.0
      %2628 = vmatpush1.msra.mxu0 0.0
      %2629 = vmatprep.subr.mxu0 0.0
      %2630 = vmatpush1.msra.mxu0 0.0
      %2631 = vmatprep.subr.mxu0 0.0
      %2632 = vmatpush1.msra.mxu0 0.0
      %2633 = vmatprep.subr.mxu0 0.0
      %2634 = vmatpush1.msra.mxu0 0.0
      %2635 = vmatprep.subr.mxu0 0.0
      %2636 = vmatpush1.msra.mxu0 0.0
      %2637 = vmatprep.subr.mxu0 0.0
      %2638 = vmatpush1.msra.mxu0 0.0
      %2639 = vmatprep.subr.mxu0 0.0
      %2640 = vmatpush1.msra.mxu0 0.0
      %2641 = vmatprep.subr.mxu0 0.0
      %2642 = vmatpush1.msra.mxu0 0.0
      %2643 = vmatprep.subr.mxu0 0.0
      %2644 = vmatpush1.msra.mxu0 0.0
      %2645 = vmatprep.subr.mxu0 0.0
      %2646 = vmatpush1.msra.mxu0 0.0
      %2647 = vmatprep.subr.mxu0 0.0
      %2648 = vmatpush1.msra.mxu0 0.0
      %2649 = vmatprep.subr.mxu0 0.0
      %2650 = vmatpush1.msra.mxu0 0.0
      %2651 = vmatprep.subr.mxu0 0.0
      %2652 = vmatpush1.msra.mxu0 0.0
      %2653 = vmatprep.subr.mxu0 0.0
      %2654 = vmatpush1.msra.mxu0 0.0
      %2655 = vmatprep.subr.mxu0 0.0
      %2656 = vmatpush1.msra.mxu0 0.0
      %2657 = vmatprep.subr.mxu0 0.0
      %2658 = vmatpush1.msra.mxu0 0.0
      %2659 = vmatprep.subr.mxu0 0.0
      %2660 = vmatpush1.msra.mxu0 0.0
      %2661 = vmatprep.subr.mxu0 0.0
      %2662 = vmatpush1.msra.mxu0 0.0
      %2663 = vmatprep.subr.mxu0 0.0
      %2664 = vmatpush1.msra.mxu0 0.0
      %2665 = vmatprep.subr.mxu0 0.0
      %2666 = vmatpush1.msra.mxu0 0.0
      %2667 = vmatprep.subr.mxu0 0.0
      %2668 = vmatpush1.msra.mxu0 0.0
      %2669 = vmatprep.subr.mxu0 0.0
      %2670 = vmatpush1.msra.mxu0 0.0
      %2671 = vmatprep.subr.mxu0 0.0
      %2672 = vmatpush1.msra.mxu0 0.0
      %2673 = vmatprep.subr.mxu0 0.0
      %2674 = vmatpush1.msra.mxu0 0.0
      %2675 = vmatprep.mubr.f32.mxu0 0.0
      %v2676 = vand.u32 %v2142, 4294901760
      %v2677 = vsub.f32 %v2142, %v2676
      %v2678 = vand.u32 %v2677, 4294901760
      %v2679 = vsub.f32 %v2677, %v2678
      %v2680 = vand.u32 %v2679, 4294901760
      %2681 = vmatmul.mubr.f32.gmra.mrb[0].mxu0 %v2680
      %v2682 = vpop.f32.mrb[0].mxu0
      %v2683 = vadd.f32 0.0, %v2682
      %v2684 = vpop.f32.mrb[0].mxu0
      %v2685 = vadd.f32 0.0, %v2684
      %2686 = vdwg.mxu0
      %v2687 = vand.u32 %v212, 4294901760
      %v2688 = vsub.f32 %v212, %v2687
      %v2689 = vand.u32 %v2688, 4294901760
      %v2690 = vsub.f32 %v2688, %v2689
      %v2691 = vand.u32 %v2690, 4294901760
      %2692 = vmatprep.subr.mxu0 %v2691
      %v2693 = vand.u32 %v210, 4294901760
      %v2694 = vsub.f32 %v210, %v2693
      %v2695 = vand.u32 %v2694, 4294901760
      %v2696 = vsub.f32 %v2694, %v2695
      %v2697 = vand.u32 %v2696, 4294901760
      %2698 = vmatpush1.msra.mxu0 %v2697
      %2699 = vmatprep.subr.mxu0 0.0
      %2700 = vmatpush1.msra.mxu0 0.0
      %2701 = vmatprep.subr.mxu0 0.0
      %2702 = vmatpush1.msra.mxu0 0.0
      %2703 = vmatprep.subr.mxu0 0.0
      %2704 = vmatpush1.msra.mxu0 0.0
      %2705 = vmatprep.subr.mxu0 0.0
      %2706 = vmatpush1.msra.mxu0 0.0
      %2707 = vmatprep.subr.mxu0 0.0
      %2708 = vmatpush1.msra.mxu0 0.0
      %2709 = vmatprep.subr.mxu0 0.0
      %2710 = vmatpush1.msra.mxu0 0.0
      %2711 = vmatprep.subr.mxu0 0.0
      %2712 = vmatpush1.msra.mxu0 0.0
      %2713 = vmatprep.subr.mxu0 0.0
      %2714 = vmatpush1.msra.mxu0 0.0
      %2715 = vmatprep.subr.mxu0 0.0
      %2716 = vmatpush1.msra.mxu0 0.0
      %2717 = vmatprep.subr.mxu0 0.0
      %2718 = vmatpush1.msra.mxu0 0.0
      %2719 = vmatprep.subr.mxu0 0.0
      %2720 = vmatpush1.msra.mxu0 0.0
      %2721 = vmatprep.subr.mxu0 0.0
      %2722 = vmatpush1.msra.mxu0 0.0
      %2723 = vmatprep.subr.mxu0 0.0
      %2724 = vmatpush1.msra.mxu0 0.0
      %2725 = vmatprep.subr.mxu0 0.0
      %2726 = vmatpush1.msra.mxu0 0.0
      %2727 = vmatprep.subr.mxu0 0.0
      %2728 = vmatpush1.msra.mxu0 0.0
      %2729 = vmatprep.subr.mxu0 0.0
      %2730 = vmatpush1.msra.mxu0 0.0
      %2731 = vmatprep.subr.mxu0 0.0
      %2732 = vmatpush1.msra.mxu0 0.0
      %2733 = vmatprep.subr.mxu0 0.0
      %2734 = vmatpush1.msra.mxu0 0.0
      %2735 = vmatprep.subr.mxu0 0.0
      %2736 = vmatpush1.msra.mxu0 0.0
      %2737 = vmatprep.subr.mxu0 0.0
      %2738 = vmatpush1.msra.mxu0 0.0
      %2739 = vmatprep.subr.mxu0 0.0
      %2740 = vmatpush1.msra.mxu0 0.0
      %2741 = vmatprep.subr.mxu0 0.0
      %2742 = vmatpush1.msra.mxu0 0.0
      %2743 = vmatprep.subr.mxu0 0.0
      %2744 = vmatpush1.msra.mxu0 0.0
      %2745 = vmatprep.subr.mxu0 0.0
      %2746 = vmatpush1.msra.mxu0 0.0
      %2747 = vmatprep.subr.mxu0 0.0
      %2748 = vmatpush1.msra.mxu0 0.0
      %2749 = vmatprep.subr.mxu0 0.0
      %2750 = vmatpush1.msra.mxu0 0.0
      %2751 = vmatprep.subr.mxu0 0.0
      %2752 = vmatpush1.msra.mxu0 0.0
      %2753 = vmatprep.subr.mxu0 0.0
      %2754 = vmatpush1.msra.mxu0 0.0
      %2755 = vmatprep.subr.mxu0 0.0
      %2756 = vmatpush1.msra.mxu0 0.0
      %2757 = vmatprep.subr.mxu0 0.0
      %2758 = vmatpush1.msra.mxu0 0.0
      %2759 = vmatprep.subr.mxu0 0.0
      %2760 = vmatpush1.msra.mxu0 0.0
      %2761 = vmatprep.mubr.f32.mxu0 0.0
      %v2762 = vand.u32 %v2142, 4294901760
      %2763 = vmatmul.mubr.f32.gmra.mrb[0].mxu0 %v2762
      %v2764 = vpop.f32.mrb[0].mxu0
      %v2765 = vadd.f32 %v2683, %v2764
      %v2766 = vpop.f32.mrb[0].mxu0
      %v2767 = vadd.f32 %v2685, %v2766
      %2768 = vdwg.mxu0
      %v2769 = vand.u32 %v212, 4294901760
      %v2770 = vsub.f32 %v212, %v2769
      %2771 = vmatprep.subr.mxu0 %v2770
      %v2772 = vand.u32 %v210, 4294901760
      %v2773 = vsub.f32 %v210, %v2772
      %2774 = vmatpush1.msra.mxu0 %v2773
      %2775 = vmatprep.subr.mxu0 0.0
      %2776 = vmatpush1.msra.mxu0 0.0
      %2777 = vmatprep.subr.mxu0 0.0
      %2778 = vmatpush1.msra.mxu0 0.0
      %2779 = vmatprep.subr.mxu0 0.0
      %2780 = vmatpush1.msra.mxu0 0.0
      %2781 = vmatprep.subr.mxu0 0.0
      %2782 = vmatpush1.msra.mxu0 0.0
      %2783 = vmatprep.subr.mxu0 0.0
      %2784 = vmatpush1.msra.mxu0 0.0
      %2785 = vmatprep.subr.mxu0 0.0
      %2786 = vmatpush1.msra.mxu0 0.0
      %2787 = vmatprep.subr.mxu0 0.0
      %2788 = vmatpush1.msra.mxu0 0.0
      %2789 = vmatprep.subr.mxu0 0.0
      %2790 = vmatpush1.msra.mxu0 0.0
      %2791 = vmatprep.subr.mxu0 0.0
      %2792 = vmatpush1.msra.mxu0 0.0
      %2793 = vmatprep.subr.mxu0 0.0
      %2794 = vmatpush1.msra.mxu0 0.0
      %2795 = vmatprep.subr.mxu0 0.0
      %2796 = vmatpush1.msra.mxu0 0.0
      %2797 = vmatprep.subr.mxu0 0.0
      %2798 = vmatpush1.msra.mxu0 0.0
      %2799 = vmatprep.subr.mxu0 0.0
      %2800 = vmatpush1.msra.mxu0 0.0
      %2801 = vmatprep.subr.mxu0 0.0
      %2802 = vmatpush1.msra.mxu0 0.0
      %2803 = vmatprep.subr.mxu0 0.0
      %2804 = vmatpush1.msra.mxu0 0.0
      %2805 = vmatprep.subr.mxu0 0.0
      %2806 = vmatpush1.msra.mxu0 0.0
      %2807 = vmatprep.subr.mxu0 0.0
      %2808 = vmatpush1.msra.mxu0 0.0
      %2809 = vmatprep.subr.mxu0 0.0
      %2810 = vmatpush1.msra.mxu0 0.0
      %2811 = vmatprep.subr.mxu0 0.0
      %2812 = vmatpush1.msra.mxu0 0.0
      %2813 = vmatprep.subr.mxu0 0.0
      %2814 = vmatpush1.msra.mxu0 0.0
      %2815 = vmatprep.subr.mxu0 0.0
      %2816 = vmatpush1.msra.mxu0 0.0
      %2817 = vmatprep.subr.mxu0 0.0
      %2818 = vmatpush1.msra.mxu0 0.0
      %2819 = vmatprep.subr.mxu0 0.0
      %2820 = vmatpush1.msra.mxu0 0.0
      %2821 = vmatprep.subr.mxu0 0.0
      %2822 = vmatpush1.msra.mxu0 0.0
      %2823 = vmatprep.subr.mxu0 0.0
      %2824 = vmatpush1.msra.mxu0 0.0
      %2825 = vmatprep.subr.mxu0 0.0
      %2826 = vmatpush1.msra.mxu0 0.0
      %2827 = vmatprep.subr.mxu0 0.0
      %2828 = vmatpush1.msra.mxu0 0.0
      %2829 = vmatprep.subr.mxu0 0.0
      %2830 = vmatpush1.msra.mxu0 0.0
      %2831 = vmatprep.subr.mxu0 0.0
      %2832 = vmatpush1.msra.mxu0 0.0
      %2833 = vmatprep.subr.mxu0 0.0
      %2834 = vmatpush1.msra.mxu0 0.0
      %2835 = vmatprep.subr.mxu0 0.0
      %2836 = vmatpush1.msra.mxu0 0.0
      %2837 = vmatprep.mubr.f32.mxu0 0.0
      %v2838 = vand.u32 %v2142, 4294901760
      %v2839 = vsub.f32 %v2142, %v2838
      %2840 = vmatmul.mubr.f32.gmra.mrb[0].mxu0 %v2839
      %v2841 = vpop.f32.mrb[0].mxu0
      %v2842 = vadd.f32 %v2765, %v2841
      %v2843 = vpop.f32.mrb[0].mxu0
      %v2844 = vadd.f32 %v2767, %v2843
      %2845 = vdwg.mxu0
      %v2846 = vand.u32 %v212, 4294901760
      %2847 = vmatprep.subr.mxu0 %v2846
      %v2848 = vand.u32 %v210, 4294901760
      %2849 = vmatpush1.msra.mxu0 %v2848
      %2850 = vmatprep.subr.mxu0 0.0
      %2851 = vmatpush1.msra.mxu0 0.0
      %2852 = vmatprep.subr.mxu0 0.0
      %2853 = vmatpush1.msra.mxu0 0.0
      %2854 = vmatprep.subr.mxu0 0.0
      %2855 = vmatpush1.msra.mxu0 0.0
      %2856 = vmatprep.subr.mxu0 0.0
      %2857 = vmatpush1.msra.mxu0 0.0
      %2858 = vmatprep.subr.mxu0 0.0
      %2859 = vmatpush1.msra.mxu0 0.0
      %2860 = vmatprep.subr.mxu0 0.0
      %2861 = vmatpush1.msra.mxu0 0.0
      %2862 = vmatprep.subr.mxu0 0.0
      %2863 = vmatpush1.msra.mxu0 0.0
      %2864 = vmatprep.subr.mxu0 0.0
      %2865 = vmatpush1.msra.mxu0 0.0
      %2866 = vmatprep.subr.mxu0 0.0
      %2867 = vmatpush1.msra.mxu0 0.0
      %2868 = vmatprep.subr.mxu0 0.0
      %2869 = vmatpush1.msra.mxu0 0.0
      %2870 = vmatprep.subr.mxu0 0.0
      %2871 = vmatpush1.msra.mxu0 0.0
      %2872 = vmatprep.subr.mxu0 0.0
      %2873 = vmatpush1.msra.mxu0 0.0
      %2874 = vmatprep.subr.mxu0 0.0
      %2875 = vmatpush1.msra.mxu0 0.0
      %2876 = vmatprep.subr.mxu0 0.0
      %2877 = vmatpush1.msra.mxu0 0.0
      %2878 = vmatprep.subr.mxu0 0.0
      %2879 = vmatpush1.msra.mxu0 0.0
      %2880 = vmatprep.subr.mxu0 0.0
      %2881 = vmatpush1.msra.mxu0 0.0
      %2882 = vmatprep.subr.mxu0 0.0
      %2883 = vmatpush1.msra.mxu0 0.0
      %2884 = vmatprep.subr.mxu0 0.0
      %2885 = vmatpush1.msra.mxu0 0.0
      %2886 = vmatprep.subr.mxu0 0.0
      %2887 = vmatpush1.msra.mxu0 0.0
      %2888 = vmatprep.subr.mxu0 0.0
      %2889 = vmatpush1.msra.mxu0 0.0
      %2890 = vmatprep.subr.mxu0 0.0
      %2891 = vmatpush1.msra.mxu0 0.0
      %2892 = vmatprep.subr.mxu0 0.0
      %2893 = vmatpush1.msra.mxu0 0.0
      %2894 = vmatprep.subr.mxu0 0.0
      %2895 = vmatpush1.msra.mxu0 0.0
      %2896 = vmatprep.subr.mxu0 0.0
      %2897 = vmatpush1.msra.mxu0 0.0
      %2898 = vmatprep.subr.mxu0 0.0
      %2899 = vmatpush1.msra.mxu0 0.0
      %2900 = vmatprep.subr.mxu0 0.0
      %2901 = vmatpush1.msra.mxu0 0.0
      %2902 = vmatprep.subr.mxu0 0.0
      %2903 = vmatpush1.msra.mxu0 0.0
      %2904 = vmatprep.subr.mxu0 0.0
      %2905 = vmatpush1.msra.mxu0 0.0
      %2906 = vmatprep.subr.mxu0 0.0
      %2907 = vmatpush1.msra.mxu0 0.0
      %2908 = vmatprep.subr.mxu0 0.0
      %2909 = vmatpush1.msra.mxu0 0.0
      %2910 = vmatprep.subr.mxu0 0.0
      %2911 = vmatpush1.msra.mxu0 0.0
      %2912 = vmatprep.mubr.f32.mxu0 0.0
      %v2913 = vand.u32 %v2142, 4294901760
      %v2914 = vsub.f32 %v2142, %v2913
      %v2915 = vand.u32 %v2914, 4294901760
      %2916 = vmatmul.mubr.f32.gmra.mrb[0].mxu0 %v2915
      %v2917 = vpop.f32.mrb[0].mxu0
      %v2918 = vadd.f32 %v2842, %v2917
      %v2919 = vpop.f32.mrb[0].mxu0
      %v2920 = vadd.f32 %v2844, %v2919
      %2921 = vdwg.mxu0
      %v2922 = vand.u32 %v212, 4294901760
      %v2923 = vsub.f32 %v212, %v2922
      %v2924 = vand.u32 %v2923, 4294901760
      %2925 = vmatprep.subr.mxu0 %v2924
      %v2926 = vand.u32 %v210, 4294901760
      %v2927 = vsub.f32 %v210, %v2926
      %v2928 = vand.u32 %v2927, 4294901760
      %2929 = vmatpush1.msra.mxu0 %v2928
      %2930 = vmatprep.subr.mxu0 0.0
      %2931 = vmatpush1.msra.mxu0 0.0
      %2932 = vmatprep.subr.mxu0 0.0
      %2933 = vmatpush1.msra.mxu0 0.0
      %2934 = vmatprep.subr.mxu0 0.0
      %2935 = vmatpush1.msra.mxu0 0.0
      %2936 = vmatprep.subr.mxu0 0.0
      %2937 = vmatpush1.msra.mxu0 0.0
      %2938 = vmatprep.subr.mxu0 0.0
      %2939 = vmatpush1.msra.mxu0 0.0
      %2940 = vmatprep.subr.mxu0 0.0
      %2941 = vmatpush1.msra.mxu0 0.0
      %2942 = vmatprep.subr.mxu0 0.0
      %2943 = vmatpush1.msra.mxu0 0.0
      %2944 = vmatprep.subr.mxu0 0.0
      %2945 = vmatpush1.msra.mxu0 0.0
      %2946 = vmatprep.subr.mxu0 0.0
      %2947 = vmatpush1.msra.mxu0 0.0
      %2948 = vmatprep.subr.mxu0 0.0
      %2949 = vmatpush1.msra.mxu0 0.0
      %2950 = vmatprep.subr.mxu0 0.0
      %2951 = vmatpush1.msra.mxu0 0.0
      %2952 = vmatprep.subr.mxu0 0.0
      %2953 = vmatpush1.msra.mxu0 0.0
      %2954 = vmatprep.subr.mxu0 0.0
      %2955 = vmatpush1.msra.mxu0 0.0
      %2956 = vmatprep.subr.mxu0 0.0
      %2957 = vmatpush1.msra.mxu0 0.0
      %2958 = vmatprep.subr.mxu0 0.0
      %2959 = vmatpush1.msra.mxu0 0.0
      %2960 = vmatprep.subr.mxu0 0.0
      %2961 = vmatpush1.msra.mxu0 0.0
      %2962 = vmatprep.subr.mxu0 0.0
      %2963 = vmatpush1.msra.mxu0 0.0
      %2964 = vmatprep.subr.mxu0 0.0
      %2965 = vmatpush1.msra.mxu0 0.0
      %2966 = vmatprep.subr.mxu0 0.0
      %2967 = vmatpush1.msra.mxu0 0.0
      %2968 = vmatprep.subr.mxu0 0.0
      %2969 = vmatpush1.msra.mxu0 0.0
      %2970 = vmatprep.subr.mxu0 0.0
      %2971 = vmatpush1.msra.mxu0 0.0
      %2972 = vmatprep.subr.mxu0 0.0
      %2973 = vmatpush1.msra.mxu0 0.0
      %2974 = vmatprep.subr.mxu0 0.0
      %2975 = vmatpush1.msra.mxu0 0.0
      %2976 = vmatprep.subr.mxu0 0.0
      %2977 = vmatpush1.msra.mxu0 0.0
      %2978 = vmatprep.subr.mxu0 0.0
      %2979 = vmatpush1.msra.mxu0 0.0
      %2980 = vmatprep.subr.mxu0 0.0
      %2981 = vmatpush1.msra.mxu0 0.0
      %2982 = vmatprep.subr.mxu0 0.0
      %2983 = vmatpush1.msra.mxu0 0.0
      %2984 = vmatprep.subr.mxu0 0.0
      %2985 = vmatpush1.msra.mxu0 0.0
      %2986 = vmatprep.subr.mxu0 0.0
      %2987 = vmatpush1.msra.mxu0 0.0
      %2988 = vmatprep.subr.mxu0 0.0
      %2989 = vmatpush1.msra.mxu0 0.0
      %2990 = vmatprep.subr.mxu0 0.0
      %2991 = vmatpush1.msra.mxu0 0.0
      %2992 = vmatprep.mubr.f32.mxu0 0.0
      %v2993 = vand.u32 %v2142, 4294901760
      %2994 = vmatmul.mubr.f32.gmra.mrb[0].mxu0 %v2993
      %v2995 = vpop.f32.mrb[0].mxu0
      %v2996 = vadd.f32 %v2918, %v2995
      %v2997 = vpop.f32.mrb[0].mxu0
      %v2998 = vadd.f32 %v2920, %v2997
      %2999 = vdwg.mxu0
      %v3000 = vand.u32 %v212, 4294901760
      %3001 = vmatprep.subr.mxu0 %v3000
      %v3002 = vand.u32 %v210, 4294901760
      %3003 = vmatpush1.msra.mxu0 %v3002
      %3004 = vmatprep.subr.mxu0 0.0
      %3005 = vmatpush1.msra.mxu0 0.0
      %3006 = vmatprep.subr.mxu0 0.0
      %3007 = vmatpush1.msra.mxu0 0.0
      %3008 = vmatprep.subr.mxu0 0.0
      %3009 = vmatpush1.msra.mxu0 0.0
      %3010 = vmatprep.subr.mxu0 0.0
      %3011 = vmatpush1.msra.mxu0 0.0
      %3012 = vmatprep.subr.mxu0 0.0
      %3013 = vmatpush1.msra.mxu0 0.0
      %3014 = vmatprep.subr.mxu0 0.0
      %3015 = vmatpush1.msra.mxu0 0.0
      %3016 = vmatprep.subr.mxu0 0.0
      %3017 = vmatpush1.msra.mxu0 0.0
      %3018 = vmatprep.subr.mxu0 0.0
      %3019 = vmatpush1.msra.mxu0 0.0
      %3020 = vmatprep.subr.mxu0 0.0
      %3021 = vmatpush1.msra.mxu0 0.0
      %3022 = vmatprep.subr.mxu0 0.0
      %3023 = vmatpush1.msra.mxu0 0.0
      %3024 = vmatprep.subr.mxu0 0.0
      %3025 = vmatpush1.msra.mxu0 0.0
      %3026 = vmatprep.subr.mxu0 0.0
      %3027 = vmatpush1.msra.mxu0 0.0
      %3028 = vmatprep.subr.mxu0 0.0
      %3029 = vmatpush1.msra.mxu0 0.0
      %3030 = vmatprep.subr.mxu0 0.0
      %3031 = vmatpush1.msra.mxu0 0.0
      %3032 = vmatprep.subr.mxu0 0.0
      %3033 = vmatpush1.msra.mxu0 0.0
      %3034 = vmatprep.subr.mxu0 0.0
      %3035 = vmatpush1.msra.mxu0 0.0
      %3036 = vmatprep.subr.mxu0 0.0
      %3037 = vmatpush1.msra.mxu0 0.0
      %3038 = vmatprep.subr.mxu0 0.0
      %3039 = vmatpush1.msra.mxu0 0.0
      %3040 = vmatprep.subr.mxu0 0.0
      %3041 = vmatpush1.msra.mxu0 0.0
      %3042 = vmatprep.subr.mxu0 0.0
      %3043 = vmatpush1.msra.mxu0 0.0
      %3044 = vmatprep.subr.mxu0 0.0
      %3045 = vmatpush1.msra.mxu0 0.0
      %3046 = vmatprep.subr.mxu0 0.0
      %3047 = vmatpush1.msra.mxu0 0.0
      %3048 = vmatprep.subr.mxu0 0.0
      %3049 = vmatpush1.msra.mxu0 0.0
      %3050 = vmatprep.subr.mxu0 0.0
      %3051 = vmatpush1.msra.mxu0 0.0
      %3052 = vmatprep.subr.mxu0 0.0
      %3053 = vmatpush1.msra.mxu0 0.0
      %3054 = vmatprep.subr.mxu0 0.0
      %3055 = vmatpush1.msra.mxu0 0.0
      %3056 = vmatprep.subr.mxu0 0.0
      %3057 = vmatpush1.msra.mxu0 0.0
      %3058 = vmatprep.subr.mxu0 0.0
      %3059 = vmatpush1.msra.mxu0 0.0
      %3060 = vmatprep.subr.mxu0 0.0
      %3061 = vmatpush1.msra.mxu0 0.0
      %3062 = vmatprep.subr.mxu0 0.0
      %3063 = vmatpush1.msra.mxu0 0.0
      %3064 = vmatprep.subr.mxu0 0.0
      %3065 = vmatpush1.msra.mxu0 0.0
      %3066 = vmatprep.mubr.f32.mxu0 0.0
      %v3067 = vand.u32 %v2142, 4294901760
      %3068 = vmatmul.mubr.f32.gmra.mrb[0].mxu0 %v3067
      %v3069 = vpop.f32.mrb[0].mxu0
      %v3070 = vadd.f32 %v2996, %v3069
      %v3071 = vpop.f32.mrb[0].mxu0
      %v3072 = vadd.f32 %v2998, %v3071
      %3073 = vdwg.mxu0
      %vm3074 = vcmp.eq.s32.totalorder %v195, 2
      %v3075 = vsel %vm3074, 1, 0
      %v3076 = vlaneseq
      %v3077 = vshrl.u32 %v3076, 7
      %v3078 = vsub.s32 0, %v3077
      %v3079 = vrot.slane %v3075, %v3078
      %v3080 = vlaneseq
      %v3081 = vshrl.u32 %v3080, 7
      %v3082 = vsub.s32 1, %v3081
      %v3083 = vrot.slane %v3075, %v3082
      %v3084 = vlaneseq
      %v3085 = vshrl.u32 %v3084, 7
      %v3086 = vsub.s32 2, %v3085
      %v3087 = vrot.slane %v3075, %v3086
      %v3088 = vlaneseq
      %v3089 = vshrl.u32 %v3088, 7
      %v3090 = vsub.s32 3, %v3089
      %v3091 = vrot.slane %v3075, %v3090
      %vm3092 = vcmp.eq.s32.totalorder %v3079, 1
      %vm3093 = vcmp.eq.s32.totalorder %v3083, 1
      %vm3094 = vcmp.eq.s32.totalorder %v3087, 1
      %vm3095 = vcmp.eq.s32.totalorder %v3091, 1
      %v3096 = vsel %vm3092, %v2605, 0.0
      %v3097 = vsel %vm3093, %v2607, 0.0
      %v3098 = vsel %vm3094, %v3070, 0.0
      %v3099 = vsel %vm3095, %v3072, 0.0
      %v3100 = vadd.f32 %v2135, %v3096
      %v3101 = vadd.f32 %v2136, %v3097
      %v3102 = vadd.f32 %v2137, %v3098
      %v3103 = vadd.f32 %v2138, %v3099
      %s3104 = scalar_lea.vmem %s0, 24
      %v3105 = vld [vmem:[%s3104] sm:$0xff]
      %v3107 = vsel %vm201, %v3105, 0
      %v3109 = vand.u32 %v208, 4294901760
      %3110 = vmatprep.subr.mxu0 %v3109
      %v3111 = vand.u32 %v206, 4294901760
      %3112 = vmatpush1.msra.mxu0 %v3111
      %3113 = vmatprep.subr.mxu0 0.0
      %3114 = vmatpush1.msra.mxu0 0.0
      %3115 = vmatprep.subr.mxu0 0.0
      %3116 = vmatpush1.msra.mxu0 0.0
      %3117 = vmatprep.subr.mxu0 0.0
      %3118 = vmatpush1.msra.mxu0 0.0
      %3119 = vmatprep.subr.mxu0 0.0
      %3120 = vmatpush1.msra.mxu0 0.0
      %3121 = vmatprep.subr.mxu0 0.0
      %3122 = vmatpush1.msra.mxu0 0.0
      %3123 = vmatprep.subr.mxu0 0.0
      %3124 = vmatpush1.msra.mxu0 0.0
      %3125 = vmatprep.subr.mxu0 0.0
      %3126 = vmatpush1.msra.mxu0 0.0
      %3127 = vmatprep.subr.mxu0 0.0
      %3128 = vmatpush1.msra.mxu0 0.0
      %3129 = vmatprep.subr.mxu0 0.0
      %3130 = vmatpush1.msra.mxu0 0.0
      %3131 = vmatprep.subr.mxu0 0.0
      %3132 = vmatpush1.msra.mxu0 0.0
      %3133 = vmatprep.subr.mxu0 0.0
      %3134 = vmatpush1.msra.mxu0 0.0
      %3135 = vmatprep.subr.mxu0 0.0
      %3136 = vmatpush1.msra.mxu0 0.0
      %3137 = vmatprep.subr.mxu0 0.0
      %3138 = vmatpush1.msra.mxu0 0.0
      %3139 = vmatprep.subr.mxu0 0.0
      %3140 = vmatpush1.msra.mxu0 0.0
      %3141 = vmatprep.subr.mxu0 0.0
      %3142 = vmatpush1.msra.mxu0 0.0
      %3143 = vmatprep.subr.mxu0 0.0
      %3144 = vmatpush1.msra.mxu0 0.0
      %3145 = vmatprep.subr.mxu0 0.0
      %3146 = vmatpush1.msra.mxu0 0.0
      %3147 = vmatprep.subr.mxu0 0.0
      %3148 = vmatpush1.msra.mxu0 0.0
      %3149 = vmatprep.subr.mxu0 0.0
      %3150 = vmatpush1.msra.mxu0 0.0
      %3151 = vmatprep.subr.mxu0 0.0
      %3152 = vmatpush1.msra.mxu0 0.0
      %3153 = vmatprep.subr.mxu0 0.0
      %3154 = vmatpush1.msra.mxu0 0.0
      %3155 = vmatprep.subr.mxu0 0.0
      %3156 = vmatpush1.msra.mxu0 0.0
      %3157 = vmatprep.subr.mxu0 0.0
      %3158 = vmatpush1.msra.mxu0 0.0
      %3159 = vmatprep.subr.mxu0 0.0
      %3160 = vmatpush1.msra.mxu0 0.0
      %3161 = vmatprep.subr.mxu0 0.0
      %3162 = vmatpush1.msra.mxu0 0.0
      %3163 = vmatprep.subr.mxu0 0.0
      %3164 = vmatpush1.msra.mxu0 0.0
      %3165 = vmatprep.subr.mxu0 0.0
      %3166 = vmatpush1.msra.mxu0 0.0
      %3167 = vmatprep.subr.mxu0 0.0
      %3168 = vmatpush1.msra.mxu0 0.0
      %3169 = vmatprep.subr.mxu0 0.0
      %3170 = vmatpush1.msra.mxu0 0.0
      %3171 = vmatprep.subr.mxu0 0.0
      %3172 = vmatpush1.msra.mxu0 0.0
      %3173 = vmatprep.subr.mxu0 0.0
      %3174 = vmatpush1.msra.mxu0 0.0
      %3175 = vmatprep.mubr.f32.mxu0 0.0
      %v3176 = vand.u32 %v3107, 4294901760
      %v3177 = vsub.f32 %v3107, %v3176
      %v3178 = vand.u32 %v3177, 4294901760
      %v3179 = vsub.f32 %v3177, %v3178
      %v3180 = vand.u32 %v3179, 4294901760
      %3181 = vmatmul.mubr.f32.gmra.mrb[0].mxu0 %v3180
      %v3182 = vpop.f32.mrb[0].mxu0
      %v3183 = vadd.f32 0.0, %v3182
      %v3184 = vpop.f32.mrb[0].mxu0
      %v3185 = vadd.f32 0.0, %v3184
      %3186 = vdwg.mxu0
      %v3187 = vand.u32 %v208, 4294901760
      %v3188 = vsub.f32 %v208, %v3187
      %v3189 = vand.u32 %v3188, 4294901760
      %v3190 = vsub.f32 %v3188, %v3189
      %v3191 = vand.u32 %v3190, 4294901760
      %3192 = vmatprep.subr.mxu0 %v3191
      %v3193 = vand.u32 %v206, 4294901760
      %v3194 = vsub.f32 %v206, %v3193
      %v3195 = vand.u32 %v3194, 4294901760
      %v3196 = vsub.f32 %v3194, %v3195
      %v3197 = vand.u32 %v3196, 4294901760
      %3198 = vmatpush1.msra.mxu0 %v3197
      %3199 = vmatprep.subr.mxu0 0.0
      %3200 = vmatpush1.msra.mxu0 0.0
      %3201 = vmatprep.subr.mxu0 0.0
      %3202 = vmatpush1.msra.mxu0 0.0
      %3203 = vmatprep.subr.mxu0 0.0
      %3204 = vmatpush1.msra.mxu0 0.0
      %3205 = vmatprep.subr.mxu0 0.0
      %3206 = vmatpush1.msra.mxu0 0.0
      %3207 = vmatprep.subr.mxu0 0.0
      %3208 = vmatpush1.msra.mxu0 0.0
      %3209 = vmatprep.subr.mxu0 0.0
      %3210 = vmatpush1.msra.mxu0 0.0
      %3211 = vmatprep.subr.mxu0 0.0
      %3212 = vmatpush1.msra.mxu0 0.0
      %3213 = vmatprep.subr.mxu0 0.0
      %3214 = vmatpush1.msra.mxu0 0.0
      %3215 = vmatprep.subr.mxu0 0.0
      %3216 = vmatpush1.msra.mxu0 0.0
      %3217 = vmatprep.subr.mxu0 0.0
      %3218 = vmatpush1.msra.mxu0 0.0
      %3219 = vmatprep.subr.mxu0 0.0
      %3220 = vmatpush1.msra.mxu0 0.0
      %3221 = vmatprep.subr.mxu0 0.0
      %3222 = vmatpush1.msra.mxu0 0.0
      %3223 = vmatprep.subr.mxu0 0.0
      %3224 = vmatpush1.msra.mxu0 0.0
      %3225 = vmatprep.subr.mxu0 0.0
      %3226 = vmatpush1.msra.mxu0 0.0
      %3227 = vmatprep.subr.mxu0 0.0
      %3228 = vmatpush1.msra.mxu0 0.0
      %3229 = vmatprep.subr.mxu0 0.0
      %3230 = vmatpush1.msra.mxu0 0.0
      %3231 = vmatprep.subr.mxu0 0.0
      %3232 = vmatpush1.msra.mxu0 0.0
      %3233 = vmatprep.subr.mxu0 0.0
      %3234 = vmatpush1.msra.mxu0 0.0
      %3235 = vmatprep.subr.mxu0 0.0
      %3236 = vmatpush1.msra.mxu0 0.0
      %3237 = vmatprep.subr.mxu0 0.0
      %3238 = vmatpush1.msra.mxu0 0.0
      %3239 = vmatprep.subr.mxu0 0.0
      %3240 = vmatpush1.msra.mxu0 0.0
      %3241 = vmatprep.subr.mxu0 0.0
      %3242 = vmatpush1.msra.mxu0 0.0
      %3243 = vmatprep.subr.mxu0 0.0
      %3244 = vmatpush1.msra.mxu0 0.0
      %3245 = vmatprep.subr.mxu0 0.0
      %3246 = vmatpush1.msra.mxu0 0.0
      %3247 = vmatprep.subr.mxu0 0.0
      %3248 = vmatpush1.msra.mxu0 0.0
      %3249 = vmatprep.subr.mxu0 0.0
      %3250 = vmatpush1.msra.mxu0 0.0
      %3251 = vmatprep.subr.mxu0 0.0
      %3252 = vmatpush1.msra.mxu0 0.0
      %3253 = vmatprep.subr.mxu0 0.0
      %3254 = vmatpush1.msra.mxu0 0.0
      %3255 = vmatprep.subr.mxu0 0.0
      %3256 = vmatpush1.msra.mxu0 0.0
      %3257 = vmatprep.subr.mxu0 0.0
      %3258 = vmatpush1.msra.mxu0 0.0
      %3259 = vmatprep.subr.mxu0 0.0
      %3260 = vmatpush1.msra.mxu0 0.0
      %3261 = vmatprep.mubr.f32.mxu0 0.0
      %v3262 = vand.u32 %v3107, 4294901760
      %3263 = vmatmul.mubr.f32.gmra.mrb[0].mxu0 %v3262
      %v3264 = vpop.f32.mrb[0].mxu0
      %v3265 = vadd.f32 %v3183, %v3264
      %v3266 = vpop.f32.mrb[0].mxu0
      %v3267 = vadd.f32 %v3185, %v3266
      %3268 = vdwg.mxu0
      %v3269 = vand.u32 %v208, 4294901760
      %v3270 = vsub.f32 %v208, %v3269
      %3271 = vmatprep.subr.mxu0 %v3270
      %v3272 = vand.u32 %v206, 4294901760
      %v3273 = vsub.f32 %v206, %v3272
      %3274 = vmatpush1.msra.mxu0 %v3273
      %3275 = vmatprep.subr.mxu0 0.0
      %3276 = vmatpush1.msra.mxu0 0.0
      %3277 = vmatprep.subr.mxu0 0.0
      %3278 = vmatpush1.msra.mxu0 0.0
      %3279 = vmatprep.subr.mxu0 0.0
      %3280 = vmatpush1.msra.mxu0 0.0
      %3281 = vmatprep.subr.mxu0 0.0
      %3282 = vmatpush1.msra.mxu0 0.0
      %3283 = vmatprep.subr.mxu0 0.0
      %3284 = vmatpush1.msra.mxu0 0.0
      %3285 = vmatprep.subr.mxu0 0.0
      %3286 = vmatpush1.msra.mxu0 0.0
      %3287 = vmatprep.subr.mxu0 0.0
      %3288 = vmatpush1.msra.mxu0 0.0
      %3289 = vmatprep.subr.mxu0 0.0
      %3290 = vmatpush1.msra.mxu0 0.0
      %3291 = vmatprep.subr.mxu0 0.0
      %3292 = vmatpush1.msra.mxu0 0.0
      %3293 = vmatprep.subr.mxu0 0.0
      %3294 = vmatpush1.msra.mxu0 0.0
      %3295 = vmatprep.subr.mxu0 0.0
      %3296 = vmatpush1.msra.mxu0 0.0
      %3297 = vmatprep.subr.mxu0 0.0
      %3298 = vmatpush1.msra.mxu0 0.0
      %3299 = vmatprep.subr.mxu0 0.0
      %3300 = vmatpush1.msra.mxu0 0.0
      %3301 = vmatprep.subr.mxu0 0.0
      %3302 = vmatpush1.msra.mxu0 0.0
      %3303 = vmatprep.subr.mxu0 0.0
      %3304 = vmatpush1.msra.mxu0 0.0
      %3305 = vmatprep.subr.mxu0 0.0
      %3306 = vmatpush1.msra.mxu0 0.0
      %3307 = vmatprep.subr.mxu0 0.0
      %3308 = vmatpush1.msra.mxu0 0.0
      %3309 = vmatprep.subr.mxu0 0.0
      %3310 = vmatpush1.msra.mxu0 0.0
      %3311 = vmatprep.subr.mxu0 0.0
      %3312 = vmatpush1.msra.mxu0 0.0
      %3313 = vmatprep.subr.mxu0 0.0
      %3314 = vmatpush1.msra.mxu0 0.0
      %3315 = vmatprep.subr.mxu0 0.0
      %3316 = vmatpush1.msra.mxu0 0.0
      %3317 = vmatprep.subr.mxu0 0.0
      %3318 = vmatpush1.msra.mxu0 0.0
      %3319 = vmatprep.subr.mxu0 0.0
      %3320 = vmatpush1.msra.mxu0 0.0
      %3321 = vmatprep.subr.mxu0 0.0
      %3322 = vmatpush1.msra.mxu0 0.0
      %3323 = vmatprep.subr.mxu0 0.0
      %3324 = vmatpush1.msra.mxu0 0.0
      %3325 = vmatprep.subr.mxu0 0.0
      %3326 = vmatpush1.msra.mxu0 0.0
      %3327 = vmatprep.subr.mxu0 0.0
      %3328 = vmatpush1.msra.mxu0 0.0
      %3329 = vmatprep.subr.mxu0 0.0
      %3330 = vmatpush1.msra.mxu0 0.0
      %3331 = vmatprep.subr.mxu0 0.0
      %3332 = vmatpush1.msra.mxu0 0.0
      %3333 = vmatprep.subr.mxu0 0.0
      %3334 = vmatpush1.msra.mxu0 0.0
      %3335 = vmatprep.subr.mxu0 0.0
      %3336 = vmatpush1.msra.mxu0 0.0
      %3337 = vmatprep.mubr.f32.mxu0 0.0
      %v3338 = vand.u32 %v3107, 4294901760
      %v3339 = vsub.f32 %v3107, %v3338
      %3340 = vmatmul.mubr.f32.gmra.mrb[0].mxu0 %v3339
      %v3341 = vpop.f32.mrb[0].mxu0
      %v3342 = vadd.f32 %v3265, %v3341
      %v3343 = vpop.f32.mrb[0].mxu0
      %v3344 = vadd.f32 %v3267, %v3343
      %3345 = vdwg.mxu0
      %v3346 = vand.u32 %v208, 4294901760
      %3347 = vmatprep.subr.mxu0 %v3346
      %v3348 = vand.u32 %v206, 4294901760
      %3349 = vmatpush1.msra.mxu0 %v3348
      %3350 = vmatprep.subr.mxu0 0.0
      %3351 = vmatpush1.msra.mxu0 0.0
      %3352 = vmatprep.subr.mxu0 0.0
      %3353 = vmatpush1.msra.mxu0 0.0
      %3354 = vmatprep.subr.mxu0 0.0
      %3355 = vmatpush1.msra.mxu0 0.0
      %3356 = vmatprep.subr.mxu0 0.0
      %3357 = vmatpush1.msra.mxu0 0.0
      %3358 = vmatprep.subr.mxu0 0.0
      %3359 = vmatpush1.msra.mxu0 0.0
      %3360 = vmatprep.subr.mxu0 0.0
      %3361 = vmatpush1.msra.mxu0 0.0
      %3362 = vmatprep.subr.mxu0 0.0
      %3363 = vmatpush1.msra.mxu0 0.0
      %3364 = vmatprep.subr.mxu0 0.0
      %3365 = vmatpush1.msra.mxu0 0.0
      %3366 = vmatprep.subr.mxu0 0.0
      %3367 = vmatpush1.msra.mxu0 0.0
      %3368 = vmatprep.subr.mxu0 0.0
      %3369 = vmatpush1.msra.mxu0 0.0
      %3370 = vmatprep.subr.mxu0 0.0
      %3371 = vmatpush1.msra.mxu0 0.0
      %3372 = vmatprep.subr.mxu0 0.0
      %3373 = vmatpush1.msra.mxu0 0.0
      %3374 = vmatprep.subr.mxu0 0.0
      %3375 = vmatpush1.msra.mxu0 0.0
      %3376 = vmatprep.subr.mxu0 0.0
      %3377 = vmatpush1.msra.mxu0 0.0
      %3378 = vmatprep.subr.mxu0 0.0
      %3379 = vmatpush1.msra.mxu0 0.0
      %3380 = vmatprep.subr.mxu0 0.0
      %3381 = vmatpush1.msra.mxu0 0.0
      %3382 = vmatprep.subr.mxu0 0.0
      %3383 = vmatpush1.msra.mxu0 0.0
      %3384 = vmatprep.subr.mxu0 0.0
      %3385 = vmatpush1.msra.mxu0 0.0
      %3386 = vmatprep.subr.mxu0 0.0
      %3387 = vmatpush1.msra.mxu0 0.0
      %3388 = vmatprep.subr.mxu0 0.0
      %3389 = vmatpush1.msra.mxu0 0.0
      %3390 = vmatprep.subr.mxu0 0.0
      %3391 = vmatpush1.msra.mxu0 0.0
      %3392 = vmatprep.subr.mxu0 0.0
      %3393 = vmatpush1.msra.mxu0 0.0
      %3394 = vmatprep.subr.mxu0 0.0
      %3395 = vmatpush1.msra.mxu0 0.0
      %3396 = vmatprep.subr.mxu0 0.0
      %3397 = vmatpush1.msra.mxu0 0.0
      %3398 = vmatprep.subr.mxu0 0.0
      %3399 = vmatpush1.msra.mxu0 0.0
      %3400 = vmatprep.subr.mxu0 0.0
      %3401 = vmatpush1.msra.mxu0 0.0
      %3402 = vmatprep.subr.mxu0 0.0
      %3403 = vmatpush1.msra.mxu0 0.0
      %3404 = vmatprep.subr.mxu0 0.0
      %3405 = vmatpush1.msra.mxu0 0.0
      %3406 = vmatprep.subr.mxu0 0.0
      %3407 = vmatpush1.msra.mxu0 0.0
      %3408 = vmatprep.subr.mxu0 0.0
      %3409 = vmatpush1.msra.mxu0 0.0
      %3410 = vmatprep.subr.mxu0 0.0
      %3411 = vmatpush1.msra.mxu0 0.0
      %3412 = vmatprep.mubr.f32.mxu0 0.0
      %v3413 = vand.u32 %v3107, 4294901760
      %v3414 = vsub.f32 %v3107, %v3413
      %v3415 = vand.u32 %v3414, 4294901760
      %3416 = vmatmul.mubr.f32.gmra.mrb[0].mxu0 %v3415
      %v3417 = vpop.f32.mrb[0].mxu0
      %v3418 = vadd.f32 %v3342, %v3417
      %v3419 = vpop.f32.mrb[0].mxu0
      %v3420 = vadd.f32 %v3344, %v3419
      %3421 = vdwg.mxu0
      %v3422 = vand.u32 %v208, 4294901760
      %v3423 = vsub.f32 %v208, %v3422
      %v3424 = vand.u32 %v3423, 4294901760
      %3425 = vmatprep.subr.mxu0 %v3424
      %v3426 = vand.u32 %v206, 4294901760
      %v3427 = vsub.f32 %v206, %v3426
      %v3428 = vand.u32 %v3427, 4294901760
      %3429 = vmatpush1.msra.mxu0 %v3428
      %3430 = vmatprep.subr.mxu0 0.0
      %3431 = vmatpush1.msra.mxu0 0.0
      %3432 = vmatprep.subr.mxu0 0.0
      %3433 = vmatpush1.msra.mxu0 0.0
      %3434 = vmatprep.subr.mxu0 0.0
      %3435 = vmatpush1.msra.mxu0 0.0
      %3436 = vmatprep.subr.mxu0 0.0
      %3437 = vmatpush1.msra.mxu0 0.0
      %3438 = vmatprep.subr.mxu0 0.0
      %3439 = vmatpush1.msra.mxu0 0.0
      %3440 = vmatprep.subr.mxu0 0.0
      %3441 = vmatpush1.msra.mxu0 0.0
      %3442 = vmatprep.subr.mxu0 0.0
      %3443 = vmatpush1.msra.mxu0 0.0
      %3444 = vmatprep.subr.mxu0 0.0
      %3445 = vmatpush1.msra.mxu0 0.0
      %3446 = vmatprep.subr.mxu0 0.0
      %3447 = vmatpush1.msra.mxu0 0.0
      %3448 = vmatprep.subr.mxu0 0.0
      %3449 = vmatpush1.msra.mxu0 0.0
      %3450 = vmatprep.subr.mxu0 0.0
      %3451 = vmatpush1.msra.mxu0 0.0
      %3452 = vmatprep.subr.mxu0 0.0
      %3453 = vmatpush1.msra.mxu0 0.0
      %3454 = vmatprep.subr.mxu0 0.0
      %3455 = vmatpush1.msra.mxu0 0.0
      %3456 = vmatprep.subr.mxu0 0.0
      %3457 = vmatpush1.msra.mxu0 0.0
      %3458 = vmatprep.subr.mxu0 0.0
      %3459 = vmatpush1.msra.mxu0 0.0
      %3460 = vmatprep.subr.mxu0 0.0
      %3461 = vmatpush1.msra.mxu0 0.0
      %3462 = vmatprep.subr.mxu0 0.0
      %3463 = vmatpush1.msra.mxu0 0.0
      %3464 = vmatprep.subr.mxu0 0.0
      %3465 = vmatpush1.msra.mxu0 0.0
      %3466 = vmatprep.subr.mxu0 0.0
      %3467 = vmatpush1.msra.mxu0 0.0
      %3468 = vmatprep.subr.mxu0 0.0
      %3469 = vmatpush1.msra.mxu0 0.0
      %3470 = vmatprep.subr.mxu0 0.0
      %3471 = vmatpush1.msra.mxu0 0.0
      %3472 = vmatprep.subr.mxu0 0.0
      %3473 = vmatpush1.msra.mxu0 0.0
      %3474 = vmatprep.subr.mxu0 0.0
      %3475 = vmatpush1.msra.mxu0 0.0
      %3476 = vmatprep.subr.mxu0 0.0
      %3477 = vmatpush1.msra.mxu0 0.0
      %3478 = vmatprep.subr.mxu0 0.0
      %3479 = vmatpush1.msra.mxu0 0.0
      %3480 = vmatprep.subr.mxu0 0.0
      %3481 = vmatpush1.msra.mxu0 0.0
      %3482 = vmatprep.subr.mxu0 0.0
      %3483 = vmatpush1.msra.mxu0 0.0
      %3484 = vmatprep.subr.mxu0 0.0
      %3485 = vmatpush1.msra.mxu0 0.0
      %3486 = vmatprep.subr.mxu0 0.0
      %3487 = vmatpush1.msra.mxu0 0.0
      %3488 = vmatprep.subr.mxu0 0.0
      %3489 = vmatpush1.msra.mxu0 0.0
      %3490 = vmatprep.subr.mxu0 0.0
      %3491 = vmatpush1.msra.mxu0 0.0
      %3492 = vmatprep.mubr.f32.mxu0 0.0
      %v3493 = vand.u32 %v3107, 4294901760
      %3494 = vmatmul.mubr.f32.gmra.mrb[0].mxu0 %v3493
      %v3495 = vpop.f32.mrb[0].mxu0
      %v3496 = vadd.f32 %v3418, %v3495
      %v3497 = vpop.f32.mrb[0].mxu0
      %v3498 = vadd.f32 %v3420, %v3497
      %3499 = vdwg.mxu0
      %v3500 = vand.u32 %v208, 4294901760
      %3501 = vmatprep.subr.mxu0 %v3500
      %v3502 = vand.u32 %v206, 4294901760
      %3503 = vmatpush1.msra.mxu0 %v3502
      %3504 = vmatprep.subr.mxu0 0.0
      %3505 = vmatpush1.msra.mxu0 0.0
      %3506 = vmatprep.subr.mxu0 0.0
      %3507 = vmatpush1.msra.mxu0 0.0
      %3508 = vmatprep.subr.mxu0 0.0
      %3509 = vmatpush1.msra.mxu0 0.0
      %3510 = vmatprep.subr.mxu0 0.0
      %3511 = vmatpush1.msra.mxu0 0.0
      %3512 = vmatprep.subr.mxu0 0.0
      %3513 = vmatpush1.msra.mxu0 0.0
      %3514 = vmatprep.subr.mxu0 0.0
      %3515 = vmatpush1.msra.mxu0 0.0
      %3516 = vmatprep.subr.mxu0 0.0
      %3517 = vmatpush1.msra.mxu0 0.0
      %3518 = vmatprep.subr.mxu0 0.0
      %3519 = vmatpush1.msra.mxu0 0.0
      %3520 = vmatprep.subr.mxu0 0.0
      %3521 = vmatpush1.msra.mxu0 0.0
      %3522 = vmatprep.subr.mxu0 0.0
      %3523 = vmatpush1.msra.mxu0 0.0
      %3524 = vmatprep.subr.mxu0 0.0
      %3525 = vmatpush1.msra.mxu0 0.0
      %3526 = vmatprep.subr.mxu0 0.0
      %3527 = vmatpush1.msra.mxu0 0.0
      %3528 = vmatprep.subr.mxu0 0.0
      %3529 = vmatpush1.msra.mxu0 0.0
      %3530 = vmatprep.subr.mxu0 0.0
      %3531 = vmatpush1.msra.mxu0 0.0
      %3532 = vmatprep.subr.mxu0 0.0
      %3533 = vmatpush1.msra.mxu0 0.0
      %3534 = vmatprep.subr.mxu0 0.0
      %3535 = vmatpush1.msra.mxu0 0.0
      %3536 = vmatprep.subr.mxu0 0.0
      %3537 = vmatpush1.msra.mxu0 0.0
      %3538 = vmatprep.subr.mxu0 0.0
      %3539 = vmatpush1.msra.mxu0 0.0
      %3540 = vmatprep.subr.mxu0 0.0
      %3541 = vmatpush1.msra.mxu0 0.0
      %3542 = vmatprep.subr.mxu0 0.0
      %3543 = vmatpush1.msra.mxu0 0.0
      %3544 = vmatprep.subr.mxu0 0.0
      %3545 = vmatpush1.msra.mxu0 0.0
      %3546 = vmatprep.subr.mxu0 0.0
      %3547 = vmatpush1.msra.mxu0 0.0
      %3548 = vmatprep.subr.mxu0 0.0
      %3549 = vmatpush1.msra.mxu0 0.0
      %3550 = vmatprep.subr.mxu0 0.0
      %3551 = vmatpush1.msra.mxu0 0.0
      %3552 = vmatprep.subr.mxu0 0.0
      %3553 = vmatpush1.msra.mxu0 0.0
      %3554 = vmatprep.subr.mxu0 0.0
      %3555 = vmatpush1.msra.mxu0 0.0
      %3556 = vmatprep.subr.mxu0 0.0
      %3557 = vmatpush1.msra.mxu0 0.0
      %3558 = vmatprep.subr.mxu0 0.0
      %3559 = vmatpush1.msra.mxu0 0.0
      %3560 = vmatprep.subr.mxu0 0.0
      %3561 = vmatpush1.msra.mxu0 0.0
      %3562 = vmatprep.subr.mxu0 0.0
      %3563 = vmatpush1.msra.mxu0 0.0
      %3564 = vmatprep.subr.mxu0 0.0
      %3565 = vmatpush1.msra.mxu0 0.0
      %3566 = vmatprep.mubr.f32.mxu0 0.0
      %v3567 = vand.u32 %v3107, 4294901760
      %3568 = vmatmul.mubr.f32.gmra.mrb[0].mxu0 %v3567
      %v3569 = vpop.f32.mrb[0].mxu0
      %v3570 = vadd.f32 %v3496, %v3569
      %v3571 = vpop.f32.mrb[0].mxu0
      %v3572 = vadd.f32 %v3498, %v3571
      %3573 = vdwg.mxu0
      %v3574 = vand.u32 %v212, 4294901760
      %3575 = vmatprep.subr.mxu0 %v3574
      %v3576 = vand.u32 %v210, 4294901760
      %3577 = vmatpush1.msra.mxu0 %v3576
      %3578 = vmatprep.subr.mxu0 0.0
      %3579 = vmatpush1.msra.mxu0 0.0
      %3580 = vmatprep.subr.mxu0 0.0
      %3581 = vmatpush1.msra.mxu0 0.0
      %3582 = vmatprep.subr.mxu0 0.0
      %3583 = vmatpush1.msra.mxu0 0.0
      %3584 = vmatprep.subr.mxu0 0.0
      %3585 = vmatpush1.msra.mxu0 0.0
      %3586 = vmatprep.subr.mxu0 0.0
      %3587 = vmatpush1.msra.mxu0 0.0
      %3588 = vmatprep.subr.mxu0 0.0
      %3589 = vmatpush1.msra.mxu0 0.0
      %3590 = vmatprep.subr.mxu0 0.0
      %3591 = vmatpush1.msra.mxu0 0.0
      %3592 = vmatprep.subr.mxu0 0.0
      %3593 = vmatpush1.msra.mxu0 0.0
      %3594 = vmatprep.subr.mxu0 0.0
      %3595 = vmatpush1.msra.mxu0 0.0
      %3596 = vmatprep.subr.mxu0 0.0
      %3597 = vmatpush1.msra.mxu0 0.0
      %3598 = vmatprep.subr.mxu0 0.0
      %3599 = vmatpush1.msra.mxu0 0.0
      %3600 = vmatprep.subr.mxu0 0.0
      %3601 = vmatpush1.msra.mxu0 0.0
      %3602 = vmatprep.subr.mxu0 0.0
      %3603 = vmatpush1.msra.mxu0 0.0
      %3604 = vmatprep.subr.mxu0 0.0
      %3605 = vmatpush1.msra.mxu0 0.0
      %3606 = vmatprep.subr.mxu0 0.0
      %3607 = vmatpush1.msra.mxu0 0.0
      %3608 = vmatprep.subr.mxu0 0.0
      %3609 = vmatpush1.msra.mxu0 0.0
      %3610 = vmatprep.subr.mxu0 0.0
      %3611 = vmatpush1.msra.mxu0 0.0
      %3612 = vmatprep.subr.mxu0 0.0
      %3613 = vmatpush1.msra.mxu0 0.0
      %3614 = vmatprep.subr.mxu0 0.0
      %3615 = vmatpush1.msra.mxu0 0.0
      %3616 = vmatprep.subr.mxu0 0.0
      %3617 = vmatpush1.msra.mxu0 0.0
      %3618 = vmatprep.subr.mxu0 0.0
      %3619 = vmatpush1.msra.mxu0 0.0
      %3620 = vmatprep.subr.mxu0 0.0
      %3621 = vmatpush1.msra.mxu0 0.0
      %3622 = vmatprep.subr.mxu0 0.0
      %3623 = vmatpush1.msra.mxu0 0.0
      %3624 = vmatprep.subr.mxu0 0.0
      %3625 = vmatpush1.msra.mxu0 0.0
      %3626 = vmatprep.subr.mxu0 0.0
      %3627 = vmatpush1.msra.mxu0 0.0
      %3628 = vmatprep.subr.mxu0 0.0
      %3629 = vmatpush1.msra.mxu0 0.0
      %3630 = vmatprep.subr.mxu0 0.0
      %3631 = vmatpush1.msra.mxu0 0.0
      %3632 = vmatprep.subr.mxu0 0.0
      %3633 = vmatpush1.msra.mxu0 0.0
      %3634 = vmatprep.subr.mxu0 0.0
      %3635 = vmatpush1.msra.mxu0 0.0
      %3636 = vmatprep.subr.mxu0 0.0
      %3637 = vmatpush1.msra.mxu0 0.0
      %3638 = vmatprep.subr.mxu0 0.0
      %3639 = vmatpush1.msra.mxu0 0.0
      %3640 = vmatprep.mubr.f32.mxu0 0.0
      %v3641 = vand.u32 %v3107, 4294901760
      %v3642 = vsub.f32 %v3107, %v3641
      %v3643 = vand.u32 %v3642, 4294901760
      %v3644 = vsub.f32 %v3642, %v3643
      %v3645 = vand.u32 %v3644, 4294901760
      %3646 = vmatmul.mubr.f32.gmra.mrb[0].mxu0 %v3645
      %v3647 = vpop.f32.mrb[0].mxu0
      %v3648 = vadd.f32 0.0, %v3647
      %v3649 = vpop.f32.mrb[0].mxu0
      %v3650 = vadd.f32 0.0, %v3649
      %3651 = vdwg.mxu0
      %v3652 = vand.u32 %v212, 4294901760
      %v3653 = vsub.f32 %v212, %v3652
      %v3654 = vand.u32 %v3653, 4294901760
      %v3655 = vsub.f32 %v3653, %v3654
      %v3656 = vand.u32 %v3655, 4294901760
      %3657 = vmatprep.subr.mxu0 %v3656
      %v3658 = vand.u32 %v210, 4294901760
      %v3659 = vsub.f32 %v210, %v3658
      %v3660 = vand.u32 %v3659, 4294901760
      %v3661 = vsub.f32 %v3659, %v3660
      %v3662 = vand.u32 %v3661, 4294901760
      %3663 = vmatpush1.msra.mxu0 %v3662
      %3664 = vmatprep.subr.mxu0 0.0
      %3665 = vmatpush1.msra.mxu0 0.0
      %3666 = vmatprep.subr.mxu0 0.0
      %3667 = vmatpush1.msra.mxu0 0.0
      %3668 = vmatprep.subr.mxu0 0.0
      %3669 = vmatpush1.msra.mxu0 0.0
      %3670 = vmatprep.subr.mxu0 0.0
      %3671 = vmatpush1.msra.mxu0 0.0
      %3672 = vmatprep.subr.mxu0 0.0
      %3673 = vmatpush1.msra.mxu0 0.0
      %3674 = vmatprep.subr.mxu0 0.0
      %3675 = vmatpush1.msra.mxu0 0.0
      %3676 = vmatprep.subr.mxu0 0.0
      %3677 = vmatpush1.msra.mxu0 0.0
      %3678 = vmatprep.subr.mxu0 0.0
      %3679 = vmatpush1.msra.mxu0 0.0
      %3680 = vmatprep.subr.mxu0 0.0
      %3681 = vmatpush1.msra.mxu0 0.0
      %3682 = vmatprep.subr.mxu0 0.0
      %3683 = vmatpush1.msra.mxu0 0.0
      %3684 = vmatprep.subr.mxu0 0.0
      %3685 = vmatpush1.msra.mxu0 0.0
      %3686 = vmatprep.subr.mxu0 0.0
      %3687 = vmatpush1.msra.mxu0 0.0
      %3688 = vmatprep.subr.mxu0 0.0
      %3689 = vmatpush1.msra.mxu0 0.0
      %3690 = vmatprep.subr.mxu0 0.0
      %3691 = vmatpush1.msra.mxu0 0.0
      %3692 = vmatprep.subr.mxu0 0.0
      %3693 = vmatpush1.msra.mxu0 0.0
      %3694 = vmatprep.subr.mxu0 0.0
      %3695 = vmatpush1.msra.mxu0 0.0
      %3696 = vmatprep.subr.mxu0 0.0
      %3697 = vmatpush1.msra.mxu0 0.0
      %3698 = vmatprep.subr.mxu0 0.0
      %3699 = vmatpush1.msra.mxu0 0.0
      %3700 = vmatprep.subr.mxu0 0.0
      %3701 = vmatpush1.msra.mxu0 0.0
      %3702 = vmatprep.subr.mxu0 0.0
      %3703 = vmatpush1.msra.mxu0 0.0
      %3704 = vmatprep.subr.mxu0 0.0
      %3705 = vmatpush1.msra.mxu0 0.0
      %3706 = vmatprep.subr.mxu0 0.0
      %3707 = vmatpush1.msra.mxu0 0.0
      %3708 = vmatprep.subr.mxu0 0.0
      %3709 = vmatpush1.msra.mxu0 0.0
      %3710 = vmatprep.subr.mxu0 0.0
      %3711 = vmatpush1.msra.mxu0 0.0
      %3712 = vmatprep.subr.mxu0 0.0
      %3713 = vmatpush1.msra.mxu0 0.0
      %3714 = vmatprep.subr.mxu0 0.0
      %3715 = vmatpush1.msra.mxu0 0.0
      %3716 = vmatprep.subr.mxu0 0.0
      %3717 = vmatpush1.msra.mxu0 0.0
      %3718 = vmatprep.subr.mxu0 0.0
      %3719 = vmatpush1.msra.mxu0 0.0
      %3720 = vmatprep.subr.mxu0 0.0
      %3721 = vmatpush1.msra.mxu0 0.0
      %3722 = vmatprep.subr.mxu0 0.0
      %3723 = vmatpush1.msra.mxu0 0.0
      %3724 = vmatprep.subr.mxu0 0.0
      %3725 = vmatpush1.msra.mxu0 0.0
      %3726 = vmatprep.mubr.f32.mxu0 0.0
      %v3727 = vand.u32 %v3107, 4294901760
      %3728 = vmatmul.mubr.f32.gmra.mrb[0].mxu0 %v3727
      %v3729 = vpop.f32.mrb[0].mxu0
      %v3730 = vadd.f32 %v3648, %v3729
      %v3731 = vpop.f32.mrb[0].mxu0
      %v3732 = vadd.f32 %v3650, %v3731
      %3733 = vdwg.mxu0
      %v3734 = vand.u32 %v212, 4294901760
      %v3735 = vsub.f32 %v212, %v3734
      %3736 = vmatprep.subr.mxu0 %v3735
      %v3737 = vand.u32 %v210, 4294901760
      %v3738 = vsub.f32 %v210, %v3737
      %3739 = vmatpush1.msra.mxu0 %v3738
      %3740 = vmatprep.subr.mxu0 0.0
      %3741 = vmatpush1.msra.mxu0 0.0
      %3742 = vmatprep.subr.mxu0 0.0
      %3743 = vmatpush1.msra.mxu0 0.0
      %3744 = vmatprep.subr.mxu0 0.0
      %3745 = vmatpush1.msra.mxu0 0.0
      %3746 = vmatprep.subr.mxu0 0.0
      %3747 = vmatpush1.msra.mxu0 0.0
      %3748 = vmatprep.subr.mxu0 0.0
      %3749 = vmatpush1.msra.mxu0 0.0
      %3750 = vmatprep.subr.mxu0 0.0
      %3751 = vmatpush1.msra.mxu0 0.0
      %3752 = vmatprep.subr.mxu0 0.0
      %3753 = vmatpush1.msra.mxu0 0.0
      %3754 = vmatprep.subr.mxu0 0.0
      %3755 = vmatpush1.msra.mxu0 0.0
      %3756 = vmatprep.subr.mxu0 0.0
      %3757 = vmatpush1.msra.mxu0 0.0
      %3758 = vmatprep.subr.mxu0 0.0
      %3759 = vmatpush1.msra.mxu0 0.0
      %3760 = vmatprep.subr.mxu0 0.0
      %3761 = vmatpush1.msra.mxu0 0.0
      %3762 = vmatprep.subr.mxu0 0.0
      %3763 = vmatpush1.msra.mxu0 0.0
      %3764 = vmatprep.subr.mxu0 0.0
      %3765 = vmatpush1.msra.mxu0 0.0
      %3766 = vmatprep.subr.mxu0 0.0
      %3767 = vmatpush1.msra.mxu0 0.0
      %3768 = vmatprep.subr.mxu0 0.0
      %3769 = vmatpush1.msra.mxu0 0.0
      %3770 = vmatprep.subr.mxu0 0.0
      %3771 = vmatpush1.msra.mxu0 0.0
      %3772 = vmatprep.subr.mxu0 0.0
      %3773 = vmatpush1.msra.mxu0 0.0
      %3774 = vmatprep.subr.mxu0 0.0
      %3775 = vmatpush1.msra.mxu0 0.0
      %3776 = vmatprep.subr.mxu0 0.0
      %3777 = vmatpush1.msra.mxu0 0.0
      %3778 = vmatprep.subr.mxu0 0.0
      %3779 = vmatpush1.msra.mxu0 0.0
      %3780 = vmatprep.subr.mxu0 0.0
      %3781 = vmatpush1.msra.mxu0 0.0
      %3782 = vmatprep.subr.mxu0 0.0
      %3783 = vmatpush1.msra.mxu0 0.0
      %3784 = vmatprep.subr.mxu0 0.0
      %3785 = vmatpush1.msra.mxu0 0.0
      %3786 = vmatprep.subr.mxu0 0.0
      %3787 = vmatpush1.msra.mxu0 0.0
      %3788 = vmatprep.subr.mxu0 0.0
      %3789 = vmatpush1.msra.mxu0 0.0
      %3790 = vmatprep.subr.mxu0 0.0
      %3791 = vmatpush1.msra.mxu0 0.0
      %3792 = vmatprep.subr.mxu0 0.0
      %3793 = vmatpush1.msra.mxu0 0.0
      %3794 = vmatprep.subr.mxu0 0.0
      %3795 = vmatpush1.msra.mxu0 0.0
      %3796 = vmatprep.subr.mxu0 0.0
      %3797 = vmatpush1.msra.mxu0 0.0
      %3798 = vmatprep.subr.mxu0 0.0
      %3799 = vmatpush1.msra.mxu0 0.0
      %3800 = vmatprep.subr.mxu0 0.0
      %3801 = vmatpush1.msra.mxu0 0.0
      %3802 = vmatprep.mubr.f32.mxu0 0.0
      %v3803 = vand.u32 %v3107, 4294901760
      %v3804 = vsub.f32 %v3107, %v3803
      %3805 = vmatmul.mubr.f32.gmra.mrb[0].mxu0 %v3804
      %v3806 = vpop.f32.mrb[0].mxu0
      %v3807 = vadd.f32 %v3730, %v3806
      %v3808 = vpop.f32.mrb[0].mxu0
      %v3809 = vadd.f32 %v3732, %v3808
      %3810 = vdwg.mxu0
      %v3811 = vand.u32 %v212, 4294901760
      %3812 = vmatprep.subr.mxu0 %v3811
      %v3813 = vand.u32 %v210, 4294901760
      %3814 = vmatpush1.msra.mxu0 %v3813
      %3815 = vmatprep.subr.mxu0 0.0
      %3816 = vmatpush1.msra.mxu0 0.0
      %3817 = vmatprep.subr.mxu0 0.0
      %3818 = vmatpush1.msra.mxu0 0.0
      %3819 = vmatprep.subr.mxu0 0.0
      %3820 = vmatpush1.msra.mxu0 0.0
      %3821 = vmatprep.subr.mxu0 0.0
      %3822 = vmatpush1.msra.mxu0 0.0
      %3823 = vmatprep.subr.mxu0 0.0
      %3824 = vmatpush1.msra.mxu0 0.0
      %3825 = vmatprep.subr.mxu0 0.0
      %3826 = vmatpush1.msra.mxu0 0.0
      %3827 = vmatprep.subr.mxu0 0.0
      %3828 = vmatpush1.msra.mxu0 0.0
      %3829 = vmatprep.subr.mxu0 0.0
      %3830 = vmatpush1.msra.mxu0 0.0
      %3831 = vmatprep.subr.mxu0 0.0
      %3832 = vmatpush1.msra.mxu0 0.0
      %3833 = vmatprep.subr.mxu0 0.0
      %3834 = vmatpush1.msra.mxu0 0.0
      %3835 = vmatprep.subr.mxu0 0.0
      %3836 = vmatpush1.msra.mxu0 0.0
      %3837 = vmatprep.subr.mxu0 0.0
      %3838 = vmatpush1.msra.mxu0 0.0
      %3839 = vmatprep.subr.mxu0 0.0
      %3840 = vmatpush1.msra.mxu0 0.0
      %3841 = vmatprep.subr.mxu0 0.0
      %3842 = vmatpush1.msra.mxu0 0.0
      %3843 = vmatprep.subr.mxu0 0.0
      %3844 = vmatpush1.msra.mxu0 0.0
      %3845 = vmatprep.subr.mxu0 0.0
      %3846 = vmatpush1.msra.mxu0 0.0
      %3847 = vmatprep.subr.mxu0 0.0
      %3848 = vmatpush1.msra.mxu0 0.0
      %3849 = vmatprep.subr.mxu0 0.0
      %3850 = vmatpush1.msra.mxu0 0.0
      %3851 = vmatprep.subr.mxu0 0.0
      %3852 = vmatpush1.msra.mxu0 0.0
      %3853 = vmatprep.subr.mxu0 0.0
      %3854 = vmatpush1.msra.mxu0 0.0
      %3855 = vmatprep.subr.mxu0 0.0
      %3856 = vmatpush1.msra.mxu0 0.0
      %3857 = vmatprep.subr.mxu0 0.0
      %3858 = vmatpush1.msra.mxu0 0.0
      %3859 = vmatprep.subr.mxu0 0.0
      %3860 = vmatpush1.msra.mxu0 0.0
      %3861 = vmatprep.subr.mxu0 0.0
      %3862 = vmatpush1.msra.mxu0 0.0
      %3863 = vmatprep.subr.mxu0 0.0
      %3864 = vmatpush1.msra.mxu0 0.0
      %3865 = vmatprep.subr.mxu0 0.0
      %3866 = vmatpush1.msra.mxu0 0.0
      %3867 = vmatprep.subr.mxu0 0.0
      %3868 = vmatpush1.msra.mxu0 0.0
      %3869 = vmatprep.subr.mxu0 0.0
      %3870 = vmatpush1.msra.mxu0 0.0
      %3871 = vmatprep.subr.mxu0 0.0
      %3872 = vmatpush1.msra.mxu0 0.0
      %3873 = vmatprep.subr.mxu0 0.0
      %3874 = vmatpush1.msra.mxu0 0.0
      %3875 = vmatprep.subr.mxu0 0.0
      %3876 = vmatpush1.msra.mxu0 0.0
      %3877 = vmatprep.mubr.f32.mxu0 0.0
      %v3878 = vand.u32 %v3107, 4294901760
      %v3879 = vsub.f32 %v3107, %v3878
      %v3880 = vand.u32 %v3879, 4294901760
      %3881 = vmatmul.mubr.f32.gmra.mrb[0].mxu0 %v3880
      %v3882 = vpop.f32.mrb[0].mxu0
      %v3883 = vadd.f32 %v3807, %v3882
      %v3884 = vpop.f32.mrb[0].mxu0
      %v3885 = vadd.f32 %v3809, %v3884
      %3886 = vdwg.mxu0
      %v3887 = vand.u32 %v212, 4294901760
      %v3888 = vsub.f32 %v212, %v3887
      %v3889 = vand.u32 %v3888, 4294901760
      %3890 = vmatprep.subr.mxu0 %v3889
      %v3891 = vand.u32 %v210, 4294901760
      %v3892 = vsub.f32 %v210, %v3891
      %v3893 = vand.u32 %v3892, 4294901760
      %3894 = vmatpush1.msra.mxu0 %v3893
      %3895 = vmatprep.subr.mxu0 0.0
      %3896 = vmatpush1.msra.mxu0 0.0
      %3897 = vmatprep.subr.mxu0 0.0
      %3898 = vmatpush1.msra.mxu0 0.0
      %3899 = vmatprep.subr.mxu0 0.0
      %3900 = vmatpush1.msra.mxu0 0.0
      %3901 = vmatprep.subr.mxu0 0.0
      %3902 = vmatpush1.msra.mxu0 0.0
      %3903 = vmatprep.subr.mxu0 0.0
      %3904 = vmatpush1.msra.mxu0 0.0
      %3905 = vmatprep.subr.mxu0 0.0
      %3906 = vmatpush1.msra.mxu0 0.0
      %3907 = vmatprep.subr.mxu0 0.0
      %3908 = vmatpush1.msra.mxu0 0.0
      %3909 = vmatprep.subr.mxu0 0.0
      %3910 = vmatpush1.msra.mxu0 0.0
      %3911 = vmatprep.subr.mxu0 0.0
      %3912 = vmatpush1.msra.mxu0 0.0
      %3913 = vmatprep.subr.mxu0 0.0
      %3914 = vmatpush1.msra.mxu0 0.0
      %3915 = vmatprep.subr.mxu0 0.0
      %3916 = vmatpush1.msra.mxu0 0.0
      %3917 = vmatprep.subr.mxu0 0.0
      %3918 = vmatpush1.msra.mxu0 0.0
      %3919 = vmatprep.subr.mxu0 0.0
      %3920 = vmatpush1.msra.mxu0 0.0
      %3921 = vmatprep.subr.mxu0 0.0
      %3922 = vmatpush1.msra.mxu0 0.0
      %3923 = vmatprep.subr.mxu0 0.0
      %3924 = vmatpush1.msra.mxu0 0.0
      %3925 = vmatprep.subr.mxu0 0.0
      %3926 = vmatpush1.msra.mxu0 0.0
      %3927 = vmatprep.subr.mxu0 0.0
      %3928 = vmatpush1.msra.mxu0 0.0
      %3929 = vmatprep.subr.mxu0 0.0
      %3930 = vmatpush1.msra.mxu0 0.0
      %3931 = vmatprep.subr.mxu0 0.0
      %3932 = vmatpush1.msra.mxu0 0.0
      %3933 = vmatprep.subr.mxu0 0.0
      %3934 = vmatpush1.msra.mxu0 0.0
      %3935 = vmatprep.subr.mxu0 0.0
      %3936 = vmatpush1.msra.mxu0 0.0
      %3937 = vmatprep.subr.mxu0 0.0
      %3938 = vmatpush1.msra.mxu0 0.0
      %3939 = vmatprep.subr.mxu0 0.0
      %3940 = vmatpush1.msra.mxu0 0.0
      %3941 = vmatprep.subr.mxu0 0.0
      %3942 = vmatpush1.msra.mxu0 0.0
      %3943 = vmatprep.subr.mxu0 0.0
      %3944 = vmatpush1.msra.mxu0 0.0
      %3945 = vmatprep.subr.mxu0 0.0
      %3946 = vmatpush1.msra.mxu0 0.0
      %3947 = vmatprep.subr.mxu0 0.0
      %3948 = vmatpush1.msra.mxu0 0.0
      %3949 = vmatprep.subr.mxu0 0.0
      %3950 = vmatpush1.msra.mxu0 0.0
      %3951 = vmatprep.subr.mxu0 0.0
      %3952 = vmatpush1.msra.mxu0 0.0
      %3953 = vmatprep.subr.mxu0 0.0
      %3954 = vmatpush1.msra.mxu0 0.0
      %3955 = vmatprep.subr.mxu0 0.0
      %3956 = vmatpush1.msra.mxu0 0.0
      %3957 = vmatprep.mubr.f32.mxu0 0.0
      %v3958 = vand.u32 %v3107, 4294901760
      %3959 = vmatmul.mubr.f32.gmra.mrb[0].mxu0 %v3958
      %v3960 = vpop.f32.mrb[0].mxu0
      %v3961 = vadd.f32 %v3883, %v3960
      %v3962 = vpop.f32.mrb[0].mxu0
      %v3963 = vadd.f32 %v3885, %v3962
      %3964 = vdwg.mxu0
      %v3965 = vand.u32 %v212, 4294901760
      %3966 = vmatprep.subr.mxu0 %v3965
      %v3967 = vand.u32 %v210, 4294901760
      %3968 = vmatpush1.msra.mxu0 %v3967
      %3969 = vmatprep.subr.mxu0 0.0
      %3970 = vmatpush1.msra.mxu0 0.0
      %3971 = vmatprep.subr.mxu0 0.0
      %3972 = vmatpush1.msra.mxu0 0.0
      %3973 = vmatprep.subr.mxu0 0.0
      %3974 = vmatpush1.msra.mxu0 0.0
      %3975 = vmatprep.subr.mxu0 0.0
      %3976 = vmatpush1.msra.mxu0 0.0
      %3977 = vmatprep.subr.mxu0 0.0
      %3978 = vmatpush1.msra.mxu0 0.0
      %3979 = vmatprep.subr.mxu0 0.0
      %3980 = vmatpush1.msra.mxu0 0.0
      %3981 = vmatprep.subr.mxu0 0.0
      %3982 = vmatpush1.msra.mxu0 0.0
      %3983 = vmatprep.subr.mxu0 0.0
      %3984 = vmatpush1.msra.mxu0 0.0
      %3985 = vmatprep.subr.mxu0 0.0
      %3986 = vmatpush1.msra.mxu0 0.0
      %3987 = vmatprep.subr.mxu0 0.0
      %3988 = vmatpush1.msra.mxu0 0.0
      %3989 = vmatprep.subr.mxu0 0.0
      %3990 = vmatpush1.msra.mxu0 0.0
      %3991 = vmatprep.subr.mxu0 0.0
      %3992 = vmatpush1.msra.mxu0 0.0
      %3993 = vmatprep.subr.mxu0 0.0
      %3994 = vmatpush1.msra.mxu0 0.0
      %3995 = vmatprep.subr.mxu0 0.0
      %3996 = vmatpush1.msra.mxu0 0.0
      %3997 = vmatprep.subr.mxu0 0.0
      %3998 = vmatpush1.msra.mxu0 0.0
      %3999 = vmatprep.subr.mxu0 0.0
      %4000 = vmatpush1.msra.mxu0 0.0
      %4001 = vmatprep.subr.mxu0 0.0
      %4002 = vmatpush1.msra.mxu0 0.0
      %4003 = vmatprep.subr.mxu0 0.0
      %4004 = vmatpush1.msra.mxu0 0.0
      %4005 = vmatprep.subr.mxu0 0.0
      %4006 = vmatpush1.msra.mxu0 0.0
      %4007 = vmatprep.subr.mxu0 0.0
      %4008 = vmatpush1.msra.mxu0 0.0
      %4009 = vmatprep.subr.mxu0 0.0
      %4010 = vmatpush1.msra.mxu0 0.0
      %4011 = vmatprep.subr.mxu0 0.0
      %4012 = vmatpush1.msra.mxu0 0.0
      %4013 = vmatprep.subr.mxu0 0.0
      %4014 = vmatpush1.msra.mxu0 0.0
      %4015 = vmatprep.subr.mxu0 0.0
      %4016 = vmatpush1.msra.mxu0 0.0
      %4017 = vmatprep.subr.mxu0 0.0
      %4018 = vmatpush1.msra.mxu0 0.0
      %4019 = vmatprep.subr.mxu0 0.0
      %4020 = vmatpush1.msra.mxu0 0.0
      %4021 = vmatprep.subr.mxu0 0.0
      %4022 = vmatpush1.msra.mxu0 0.0
      %4023 = vmatprep.subr.mxu0 0.0
      %4024 = vmatpush1.msra.mxu0 0.0
      %4025 = vmatprep.subr.mxu0 0.0
      %4026 = vmatpush1.msra.mxu0 0.0
      %4027 = vmatprep.subr.mxu0 0.0
      %4028 = vmatpush1.msra.mxu0 0.0
      %4029 = vmatprep.subr.mxu0 0.0
      %4030 = vmatpush1.msra.mxu0 0.0
      %4031 = vmatprep.mubr.f32.mxu0 0.0
      %v4032 = vand.u32 %v3107, 4294901760
      %4033 = vmatmul.mubr.f32.gmra.mrb[0].mxu0 %v4032
      %v4034 = vpop.f32.mrb[0].mxu0
      %v4035 = vadd.f32 %v3961, %v4034
      %v4036 = vpop.f32.mrb[0].mxu0
      %v4037 = vadd.f32 %v3963, %v4036
      %4038 = vdwg.mxu0
      %vm4039 = vcmp.eq.s32.totalorder %v195, 3
      %v4040 = vsel %vm4039, 1, 0
      %v4041 = vlaneseq
      %v4042 = vshrl.u32 %v4041, 7
      %v4043 = vsub.s32 0, %v4042
      %v4044 = vrot.slane %v4040, %v4043
      %v4045 = vlaneseq
      %v4046 = vshrl.u32 %v4045, 7
      %v4047 = vsub.s32 1, %v4046
      %v4048 = vrot.slane %v4040, %v4047
      %v4049 = vlaneseq
      %v4050 = vshrl.u32 %v4049, 7
      %v4051 = vsub.s32 2, %v4050
      %v4052 = vrot.slane %v4040, %v4051
      %v4053 = vlaneseq
      %v4054 = vshrl.u32 %v4053, 7
      %v4055 = vsub.s32 3, %v4054
      %v4056 = vrot.slane %v4040, %v4055
      %vm4057 = vcmp.eq.s32.totalorder %v4044, 1
      %vm4058 = vcmp.eq.s32.totalorder %v4048, 1
      %vm4059 = vcmp.eq.s32.totalorder %v4052, 1
      %vm4060 = vcmp.eq.s32.totalorder %v4056, 1
      %v4061 = vsel %vm4057, %v3570, 0.0
      %v4062 = vsel %vm4058, %v3572, 0.0
      %v4063 = vsel %vm4059, %v4035, 0.0
      %v4064 = vsel %vm4060, %v4037, 0.0
      %v4065 = vadd.f32 %v3100, %v4061
      %v4066 = vadd.f32 %v3101, %v4062
      %v4067 = vadd.f32 %v3102, %v4063
      %v4068 = vadd.f32 %v3103, %v4064
      %s4069 = scalar_lea.vmem %s0, 32
      %v4070 = vld [vmem:[%s4069] sm:$0xff]
      %v4072 = vsel %vm201, %v4070, 0
      %v4074 = vand.u32 %v208, 4294901760
      %4075 = vmatprep.subr.mxu0 %v4074
      %v4076 = vand.u32 %v206, 4294901760
      %4077 = vmatpush1.msra.mxu0 %v4076
      %4078 = vmatprep.subr.mxu0 0.0
      %4079 = vmatpush1.msra.mxu0 0.0
      %4080 = vmatprep.subr.mxu0 0.0
      %4081 = vmatpush1.msra.mxu0 0.0
      %4082 = vmatprep.subr.mxu0 0.0
      %4083 = vmatpush1.msra.mxu0 0.0
      %4084 = vmatprep.subr.mxu0 0.0
      %4085 = vmatpush1.msra.mxu0 0.0
      %4086 = vmatprep.subr.mxu0 0.0
      %4087 = vmatpush1.msra.mxu0 0.0
      %4088 = vmatprep.subr.mxu0 0.0
      %4089 = vmatpush1.msra.mxu0 0.0
      %4090 = vmatprep.subr.mxu0 0.0
      %4091 = vmatpush1.msra.mxu0 0.0
      %4092 = vmatprep.subr.mxu0 0.0
      %4093 = vmatpush1.msra.mxu0 0.0
      %4094 = vmatprep.subr.mxu0 0.0
      %4095 = vmatpush1.msra.mxu0 0.0
      %4096 = vmatprep.subr.mxu0 0.0
      %4097 = vmatpush1.msra.mxu0 0.0
      %4098 = vmatprep.subr.mxu0 0.0
      %4099 = vmatpush1.msra.mxu0 0.0
      %4100 = vmatprep.subr.mxu0 0.0
      %4101 = vmatpush1.msra.mxu0 0.0
      %4102 = vmatprep.subr.mxu0 0.0
      %4103 = vmatpush1.msra.mxu0 0.0
      %4104 = vmatprep.subr.mxu0 0.0
      %4105 = vmatpush1.msra.mxu0 0.0
      %4106 = vmatprep.subr.mxu0 0.0
      %4107 = vmatpush1.msra.mxu0 0.0
      %4108 = vmatprep.subr.mxu0 0.0
      %4109 = vmatpush1.msra.mxu0 0.0
      %4110 = vmatprep.subr.mxu0 0.0
      %4111 = vmatpush1.msra.mxu0 0.0
      %4112 = vmatprep.subr.mxu0 0.0
      %4113 = vmatpush1.msra.mxu0 0.0
      %4114 = vmatprep.subr.mxu0 0.0
      %4115 = vmatpush1.msra.mxu0 0.0
      %4116 = vmatprep.subr.mxu0 0.0
      %4117 = vmatpush1.msra.mxu0 0.0
      %4118 = vmatprep.subr.mxu0 0.0
      %4119 = vmatpush1.msra.mxu0 0.0
      %4120 = vmatprep.subr.mxu0 0.0
      %4121 = vmatpush1.msra.mxu0 0.0
      %4122 = vmatprep.subr.mxu0 0.0
      %4123 = vmatpush1.msra.mxu0 0.0
      %4124 = vmatprep.subr.mxu0 0.0
      %4125 = vmatpush1.msra.mxu0 0.0
      %4126 = vmatprep.subr.mxu0 0.0
      %4127 = vmatpush1.msra.mxu0 0.0
      %4128 = vmatprep.subr.mxu0 0.0
      %4129 = vmatpush1.msra.mxu0 0.0
      %4130 = vmatprep.subr.mxu0 0.0
      %4131 = vmatpush1.msra.mxu0 0.0
      %4132 = vmatprep.subr.mxu0 0.0
      %4133 = vmatpush1.msra.mxu0 0.0
      %4134 = vmatprep.subr.mxu0 0.0
      %4135 = vmatpush1.msra.mxu0 0.0
      %4136 = vmatprep.subr.mxu0 0.0
      %4137 = vmatpush1.msra.mxu0 0.0
      %4138 = vmatprep.subr.mxu0 0.0
      %4139 = vmatpush1.msra.mxu0 0.0
      %4140 = vmatprep.mubr.f32.mxu0 0.0
      %v4141 = vand.u32 %v4072, 4294901760
      %v4142 = vsub.f32 %v4072, %v4141
      %v4143 = vand.u32 %v4142, 4294901760
      %v4144 = vsub.f32 %v4142, %v4143
      %v4145 = vand.u32 %v4144, 4294901760
      %4146 = vmatmul.mubr.f32.gmra.mrb[0].mxu0 %v4145
      %v4147 = vpop.f32.mrb[0].mxu0
      %v4148 = vadd.f32 0.0, %v4147
      %v4149 = vpop.f32.mrb[0].mxu0
      %v4150 = vadd.f32 0.0, %v4149
      %4151 = vdwg.mxu0
      %v4152 = vand.u32 %v208, 4294901760
      %v4153 = vsub.f32 %v208, %v4152
      %v4154 = vand.u32 %v4153, 4294901760
      %v4155 = vsub.f32 %v4153, %v4154
      %v4156 = vand.u32 %v4155, 4294901760
      %4157 = vmatprep.subr.mxu0 %v4156
      %v4158 = vand.u32 %v206, 4294901760
      %v4159 = vsub.f32 %v206, %v4158
      %v4160 = vand.u32 %v4159, 4294901760
      %v4161 = vsub.f32 %v4159, %v4160
      %v4162 = vand.u32 %v4161, 4294901760
      %4163 = vmatpush1.msra.mxu0 %v4162
      %4164 = vmatprep.subr.mxu0 0.0
      %4165 = vmatpush1.msra.mxu0 0.0
      %4166 = vmatprep.subr.mxu0 0.0
      %4167 = vmatpush1.msra.mxu0 0.0
      %4168 = vmatprep.subr.mxu0 0.0
      %4169 = vmatpush1.msra.mxu0 0.0
      %4170 = vmatprep.subr.mxu0 0.0
      %4171 = vmatpush1.msra.mxu0 0.0
      %4172 = vmatprep.subr.mxu0 0.0
      %4173 = vmatpush1.msra.mxu0 0.0
      %4174 = vmatprep.subr.mxu0 0.0
      %4175 = vmatpush1.msra.mxu0 0.0
      %4176 = vmatprep.subr.mxu0 0.0
      %4177 = vmatpush1.msra.mxu0 0.0
      %4178 = vmatprep.subr.mxu0 0.0
      %4179 = vmatpush1.msra.mxu0 0.0
      %4180 = vmatprep.subr.mxu0 0.0
      %4181 = vmatpush1.msra.mxu0 0.0
      %4182 = vmatprep.subr.mxu0 0.0
      %4183 = vmatpush1.msra.mxu0 0.0
      %4184 = vmatprep.subr.mxu0 0.0
      %4185 = vmatpush1.msra.mxu0 0.0
      %4186 = vmatprep.subr.mxu0 0.0
      %4187 = vmatpush1.msra.mxu0 0.0
      %4188 = vmatprep.subr.mxu0 0.0
      %4189 = vmatpush1.msra.mxu0 0.0
      %4190 = vmatprep.subr.mxu0 0.0
      %4191 = vmatpush1.msra.mxu0 0.0
      %4192 = vmatprep.subr.mxu0 0.0
      %4193 = vmatpush1.msra.mxu0 0.0
      %4194 = vmatprep.subr.mxu0 0.0
      %4195 = vmatpush1.msra.mxu0 0.0
      %4196 = vmatprep.subr.mxu0 0.0
      %4197 = vmatpush1.msra.mxu0 0.0
      %4198 = vmatprep.subr.mxu0 0.0
      %4199 = vmatpush1.msra.mxu0 0.0
      %4200 = vmatprep.subr.mxu0 0.0
      %4201 = vmatpush1.msra.mxu0 0.0
      %4202 = vmatprep.subr.mxu0 0.0
      %4203 = vmatpush1.msra.mxu0 0.0
      %4204 = vmatprep.subr.mxu0 0.0
      %4205 = vmatpush1.msra.mxu0 0.0
      %4206 = vmatprep.subr.mxu0 0.0
      %4207 = vmatpush1.msra.mxu0 0.0
      %4208 = vmatprep.subr.mxu0 0.0
      %4209 = vmatpush1.msra.mxu0 0.0
      %4210 = vmatprep.subr.mxu0 0.0
      %4211 = vmatpush1.msra.mxu0 0.0
      %4212 = vmatprep.subr.mxu0 0.0
      %4213 = vmatpush1.msra.mxu0 0.0
      %4214 = vmatprep.subr.mxu0 0.0
      %4215 = vmatpush1.msra.mxu0 0.0
      %4216 = vmatprep.subr.mxu0 0.0
      %4217 = vmatpush1.msra.mxu0 0.0
      %4218 = vmatprep.subr.mxu0 0.0
      %4219 = vmatpush1.msra.mxu0 0.0
      %4220 = vmatprep.subr.mxu0 0.0
      %4221 = vmatpush1.msra.mxu0 0.0
      %4222 = vmatprep.subr.mxu0 0.0
      %4223 = vmatpush1.msra.mxu0 0.0
      %4224 = vmatprep.subr.mxu0 0.0
      %4225 = vmatpush1.msra.mxu0 0.0
      %4226 = vmatprep.mubr.f32.mxu0 0.0
      %v4227 = vand.u32 %v4072, 4294901760
      %4228 = vmatmul.mubr.f32.gmra.mrb[0].mxu0 %v4227
      %v4229 = vpop.f32.mrb[0].mxu0
      %v4230 = vadd.f32 %v4148, %v4229
      %v4231 = vpop.f32.mrb[0].mxu0
      %v4232 = vadd.f32 %v4150, %v4231
      %4233 = vdwg.mxu0
      %v4234 = vand.u32 %v208, 4294901760
      %v4235 = vsub.f32 %v208, %v4234
      %4236 = vmatprep.subr.mxu0 %v4235
      %v4237 = vand.u32 %v206, 4294901760
      %v4238 = vsub.f32 %v206, %v4237
      %4239 = vmatpush1.msra.mxu0 %v4238
      %4240 = vmatprep.subr.mxu0 0.0
      %4241 = vmatpush1.msra.mxu0 0.0
      %4242 = vmatprep.subr.mxu0 0.0
      %4243 = vmatpush1.msra.mxu0 0.0
      %4244 = vmatprep.subr.mxu0 0.0
      %4245 = vmatpush1.msra.mxu0 0.0
      %4246 = vmatprep.subr.mxu0 0.0
      %4247 = vmatpush1.msra.mxu0 0.0
      %4248 = vmatprep.subr.mxu0 0.0
      %4249 = vmatpush1.msra.mxu0 0.0
      %4250 = vmatprep.subr.mxu0 0.0
      %4251 = vmatpush1.msra.mxu0 0.0
      %4252 = vmatprep.subr.mxu0 0.0
      %4253 = vmatpush1.msra.mxu0 0.0
      %4254 = vmatprep.subr.mxu0 0.0
      %4255 = vmatpush1.msra.mxu0 0.0
      %4256 = vmatprep.subr.mxu0 0.0
      %4257 = vmatpush1.msra.mxu0 0.0
      %4258 = vmatprep.subr.mxu0 0.0
      %4259 = vmatpush1.msra.mxu0 0.0
      %4260 = vmatprep.subr.mxu0 0.0
      %4261 = vmatpush1.msra.mxu0 0.0
      %4262 = vmatprep.subr.mxu0 0.0
      %4263 = vmatpush1.msra.mxu0 0.0
      %4264 = vmatprep.subr.mxu0 0.0
      %4265 = vmatpush1.msra.mxu0 0.0
      %4266 = vmatprep.subr.mxu0 0.0
      %4267 = vmatpush1.msra.mxu0 0.0
      %4268 = vmatprep.subr.mxu0 0.0
      %4269 = vmatpush1.msra.mxu0 0.0
      %4270 = vmatprep.subr.mxu0 0.0
      %4271 = vmatpush1.msra.mxu0 0.0
      %4272 = vmatprep.subr.mxu0 0.0
      %4273 = vmatpush1.msra.mxu0 0.0
      %4274 = vmatprep.subr.mxu0 0.0
      %4275 = vmatpush1.msra.mxu0 0.0
      %4276 = vmatprep.subr.mxu0 0.0
      %4277 = vmatpush1.msra.mxu0 0.0
      %4278 = vmatprep.subr.mxu0 0.0
      %4279 = vmatpush1.msra.mxu0 0.0
      %4280 = vmatprep.subr.mxu0 0.0
      %4281 = vmatpush1.msra.mxu0 0.0
      %4282 = vmatprep.subr.mxu0 0.0
      %4283 = vmatpush1.msra.mxu0 0.0
      %4284 = vmatprep.subr.mxu0 0.0
      %4285 = vmatpush1.msra.mxu0 0.0
      %4286 = vmatprep.subr.mxu0 0.0
      %4287 = vmatpush1.msra.mxu0 0.0
      %4288 = vmatprep.subr.mxu0 0.0
      %4289 = vmatpush1.msra.mxu0 0.0
      %4290 = vmatprep.subr.mxu0 0.0
      %4291 = vmatpush1.msra.mxu0 0.0
      %4292 = vmatprep.subr.mxu0 0.0
      %4293 = vmatpush1.msra.mxu0 0.0
      %4294 = vmatprep.subr.mxu0 0.0
      %4295 = vmatpush1.msra.mxu0 0.0
      %4296 = vmatprep.subr.mxu0 0.0
      %4297 = vmatpush1.msra.mxu0 0.0
      %4298 = vmatprep.subr.mxu0 0.0
      %4299 = vmatpush1.msra.mxu0 0.0
      %4300 = vmatprep.subr.mxu0 0.0
      %4301 = vmatpush1.msra.mxu0 0.0
      %4302 = vmatprep.mubr.f32.mxu0 0.0
      %v4303 = vand.u32 %v4072, 4294901760
      %v4304 = vsub.f32 %v4072, %v4303
      %4305 = vmatmul.mubr.f32.gmra.mrb[0].mxu0 %v4304
      %v4306 = vpop.f32.mrb[0].mxu0
      %v4307 = vadd.f32 %v4230, %v4306
      %v4308 = vpop.f32.mrb[0].mxu0
      %v4309 = vadd.f32 %v4232, %v4308
      %4310 = vdwg.mxu0
      %v4311 = vand.u32 %v208, 4294901760
      %4312 = vmatprep.subr.mxu0 %v4311
      %v4313 = vand.u32 %v206, 4294901760
      %4314 = vmatpush1.msra.mxu0 %v4313
      %4315 = vmatprep.subr.mxu0 0.0
      %4316 = vmatpush1.msra.mxu0 0.0
      %4317 = vmatprep.subr.mxu0 0.0
      %4318 = vmatpush1.msra.mxu0 0.0
      %4319 = vmatprep.subr.mxu0 0.0
      %4320 = vmatpush1.msra.mxu0 0.0
      %4321 = vmatprep.subr.mxu0 0.0
      %4322 = vmatpush1.msra.mxu0 0.0
      %4323 = vmatprep.subr.mxu0 0.0
      %4324 = vmatpush1.msra.mxu0 0.0
      %4325 = vmatprep.subr.mxu0 0.0
      %4326 = vmatpush1.msra.mxu0 0.0
      %4327 = vmatprep.subr.mxu0 0.0
      %4328 = vmatpush1.msra.mxu0 0.0
      %4329 = vmatprep.subr.mxu0 0.0
      %4330 = vmatpush1.msra.mxu0 0.0
      %4331 = vmatprep.subr.mxu0 0.0
      %4332 = vmatpush1.msra.mxu0 0.0
      %4333 = vmatprep.subr.mxu0 0.0
      %4334 = vmatpush1.msra.mxu0 0.0
      %4335 = vmatprep.subr.mxu0 0.0
      %4336 = vmatpush1.msra.mxu0 0.0
      %4337 = vmatprep.subr.mxu0 0.0
      %4338 = vmatpush1.msra.mxu0 0.0
      %4339 = vmatprep.subr.mxu0 0.0
      %4340 = vmatpush1.msra.mxu0 0.0
      %4341 = vmatprep.subr.mxu0 0.0
      %4342 = vmatpush1.msra.mxu0 0.0
      %4343 = vmatprep.subr.mxu0 0.0
      %4344 = vmatpush1.msra.mxu0 0.0
      %4345 = vmatprep.subr.mxu0 0.0
      %4346 = vmatpush1.msra.mxu0 0.0
      %4347 = vmatprep.subr.mxu0 0.0
      %4348 = vmatpush1.msra.mxu0 0.0
      %4349 = vmatprep.subr.mxu0 0.0
      %4350 = vmatpush1.msra.mxu0 0.0
      %4351 = vmatprep.subr.mxu0 0.0
      %4352 = vmatpush1.msra.mxu0 0.0
      %4353 = vmatprep.subr.mxu0 0.0
      %4354 = vmatpush1.msra.mxu0 0.0
      %4355 = vmatprep.subr.mxu0 0.0
      %4356 = vmatpush1.msra.mxu0 0.0
      %4357 = vmatprep.subr.mxu0 0.0
      %4358 = vmatpush1.msra.mxu0 0.0
      %4359 = vmatprep.subr.mxu0 0.0
      %4360 = vmatpush1.msra.mxu0 0.0
      %4361 = vmatprep.subr.mxu0 0.0
      %4362 = vmatpush1.msra.mxu0 0.0
      %4363 = vmatprep.subr.mxu0 0.0
      %4364 = vmatpush1.msra.mxu0 0.0
      %4365 = vmatprep.subr.mxu0 0.0
      %4366 = vmatpush1.msra.mxu0 0.0
      %4367 = vmatprep.subr.mxu0 0.0
      %4368 = vmatpush1.msra.mxu0 0.0
      %4369 = vmatprep.subr.mxu0 0.0
      %4370 = vmatpush1.msra.mxu0 0.0
      %4371 = vmatprep.subr.mxu0 0.0
      %4372 = vmatpush1.msra.mxu0 0.0
      %4373 = vmatprep.subr.mxu0 0.0
      %4374 = vmatpush1.msra.mxu0 0.0
      %4375 = vmatprep.subr.mxu0 0.0
      %4376 = vmatpush1.msra.mxu0 0.0
      %4377 = vmatprep.mubr.f32.mxu0 0.0
      %v4378 = vand.u32 %v4072, 4294901760
      %v4379 = vsub.f32 %v4072, %v4378
      %v4380 = vand.u32 %v4379, 4294901760
      %4381 = vmatmul.mubr.f32.gmra.mrb[0].mxu0 %v4380
      %v4382 = vpop.f32.mrb[0].mxu0
      %v4383 = vadd.f32 %v4307, %v4382
      %v4384 = vpop.f32.mrb[0].mxu0
      %v4385 = vadd.f32 %v4309, %v4384
      %4386 = vdwg.mxu0
      %v4387 = vand.u32 %v208, 4294901760
      %v4388 = vsub.f32 %v208, %v4387
      %v4389 = vand.u32 %v4388, 4294901760
      %4390 = vmatprep.subr.mxu0 %v4389
      %v4391 = vand.u32 %v206, 4294901760
      %v4392 = vsub.f32 %v206, %v4391
      %v4393 = vand.u32 %v4392, 4294901760
      %4394 = vmatpush1.msra.mxu0 %v4393
      %4395 = vmatprep.subr.mxu0 0.0
      %4396 = vmatpush1.msra.mxu0 0.0
      %4397 = vmatprep.subr.mxu0 0.0
      %4398 = vmatpush1.msra.mxu0 0.0
      %4399 = vmatprep.subr.mxu0 0.0
      %4400 = vmatpush1.msra.mxu0 0.0
      %4401 = vmatprep.subr.mxu0 0.0
      %4402 = vmatpush1.msra.mxu0 0.0
      %4403 = vmatprep.subr.mxu0 0.0
      %4404 = vmatpush1.msra.mxu0 0.0
      %4405 = vmatprep.subr.mxu0 0.0
      %4406 = vmatpush1.msra.mxu0 0.0
      %4407 = vmatprep.subr.mxu0 0.0
      %4408 = vmatpush1.msra.mxu0 0.0
      %4409 = vmatprep.subr.mxu0 0.0
      %4410 = vmatpush1.msra.mxu0 0.0
      %4411 = vmatprep.subr.mxu0 0.0
      %4412 = vmatpush1.msra.mxu0 0.0
      %4413 = vmatprep.subr.mxu0 0.0
      %4414 = vmatpush1.msra.mxu0 0.0
      %4415 = vmatprep.subr.mxu0 0.0
      %4416 = vmatpush1.msra.mxu0 0.0
      %4417 = vmatprep.subr.mxu0 0.0
      %4418 = vmatpush1.msra.mxu0 0.0
      %4419 = vmatprep.subr.mxu0 0.0
      %4420 = vmatpush1.msra.mxu0 0.0
      %4421 = vmatprep.subr.mxu0 0.0
      %4422 = vmatpush1.msra.mxu0 0.0
      %4423 = vmatprep.subr.mxu0 0.0
      %4424 = vmatpush1.msra.mxu0 0.0
      %4425 = vmatprep.subr.mxu0 0.0
      %4426 = vmatpush1.msra.mxu0 0.0
      %4427 = vmatprep.subr.mxu0 0.0
      %4428 = vmatpush1.msra.mxu0 0.0
      %4429 = vmatprep.subr.mxu0 0.0
      %4430 = vmatpush1.msra.mxu0 0.0
      %4431 = vmatprep.subr.mxu0 0.0
      %4432 = vmatpush1.msra.mxu0 0.0
      %4433 = vmatprep.subr.mxu0 0.0
      %4434 = vmatpush1.msra.mxu0 0.0
      %4435 = vmatprep.subr.mxu0 0.0
      %4436 = vmatpush1.msra.mxu0 0.0
      %4437 = vmatprep.subr.mxu0 0.0
      %4438 = vmatpush1.msra.mxu0 0.0
      %4439 = vmatprep.subr.mxu0 0.0
      %4440 = vmatpush1.msra.mxu0 0.0
      %4441 = vmatprep.subr.mxu0 0.0
      %4442 = vmatpush1.msra.mxu0 0.0
      %4443 = vmatprep.subr.mxu0 0.0
      %4444 = vmatpush1.msra.mxu0 0.0
      %4445 = vmatprep.subr.mxu0 0.0
      %4446 = vmatpush1.msra.mxu0 0.0
      %4447 = vmatprep.subr.mxu0 0.0
      %4448 = vmatpush1.msra.mxu0 0.0
      %4449 = vmatprep.subr.mxu0 0.0
      %4450 = vmatpush1.msra.mxu0 0.0
      %4451 = vmatprep.subr.mxu0 0.0
      %4452 = vmatpush1.msra.mxu0 0.0
      %4453 = vmatprep.subr.mxu0 0.0
      %4454 = vmatpush1.msra.mxu0 0.0
      %4455 = vmatprep.subr.mxu0 0.0
      %4456 = vmatpush1.msra.mxu0 0.0
      %4457 = vmatprep.mubr.f32.mxu0 0.0
      %v4458 = vand.u32 %v4072, 4294901760
      %4459 = vmatmul.mubr.f32.gmra.mrb[0].mxu0 %v4458
      %v4460 = vpop.f32.mrb[0].mxu0
      %v4461 = vadd.f32 %v4383, %v4460
      %v4462 = vpop.f32.mrb[0].mxu0
      %v4463 = vadd.f32 %v4385, %v4462
      %4464 = vdwg.mxu0
      %v4465 = vand.u32 %v208, 4294901760
      %4466 = vmatprep.subr.mxu0 %v4465
      %v4467 = vand.u32 %v206, 4294901760
      %4468 = vmatpush1.msra.mxu0 %v4467
      %4469 = vmatprep.subr.mxu0 0.0
      %4470 = vmatpush1.msra.mxu0 0.0
      %4471 = vmatprep.subr.mxu0 0.0
      %4472 = vmatpush1.msra.mxu0 0.0
      %4473 = vmatprep.subr.mxu0 0.0
      %4474 = vmatpush1.msra.mxu0 0.0
      %4475 = vmatprep.subr.mxu0 0.0
      %4476 = vmatpush1.msra.mxu0 0.0
      %4477 = vmatprep.subr.mxu0 0.0
      %4478 = vmatpush1.msra.mxu0 0.0
      %4479 = vmatprep.subr.mxu0 0.0
      %4480 = vmatpush1.msra.mxu0 0.0
      %4481 = vmatprep.subr.mxu0 0.0
      %4482 = vmatpush1.msra.mxu0 0.0
      %4483 = vmatprep.subr.mxu0 0.0
      %4484 = vmatpush1.msra.mxu0 0.0
      %4485 = vmatprep.subr.mxu0 0.0
      %4486 = vmatpush1.msra.mxu0 0.0
      %4487 = vmatprep.subr.mxu0 0.0
      %4488 = vmatpush1.msra.mxu0 0.0
      %4489 = vmatprep.subr.mxu0 0.0
      %4490 = vmatpush1.msra.mxu0 0.0
      %4491 = vmatprep.subr.mxu0 0.0
      %4492 = vmatpush1.msra.mxu0 0.0
      %4493 = vmatprep.subr.mxu0 0.0
      %4494 = vmatpush1.msra.mxu0 0.0
      %4495 = vmatprep.subr.mxu0 0.0
      %4496 = vmatpush1.msra.mxu0 0.0
      %4497 = vmatprep.subr.mxu0 0.0
      %4498 = vmatpush1.msra.mxu0 0.0
      %4499 = vmatprep.subr.mxu0 0.0
      %4500 = vmatpush1.msra.mxu0 0.0
      %4501 = vmatprep.subr.mxu0 0.0
      %4502 = vmatpush1.msra.mxu0 0.0
      %4503 = vmatprep.subr.mxu0 0.0
      %4504 = vmatpush1.msra.mxu0 0.0
      %4505 = vmatprep.subr.mxu0 0.0
      %4506 = vmatpush1.msra.mxu0 0.0
      %4507 = vmatprep.subr.mxu0 0.0
      %4508 = vmatpush1.msra.mxu0 0.0
      %4509 = vmatprep.subr.mxu0 0.0
      %4510 = vmatpush1.msra.mxu0 0.0
      %4511 = vmatprep.subr.mxu0 0.0
      %4512 = vmatpush1.msra.mxu0 0.0
      %4513 = vmatprep.subr.mxu0 0.0
      %4514 = vmatpush1.msra.mxu0 0.0
      %4515 = vmatprep.subr.mxu0 0.0
      %4516 = vmatpush1.msra.mxu0 0.0
      %4517 = vmatprep.subr.mxu0 0.0
      %4518 = vmatpush1.msra.mxu0 0.0
      %4519 = vmatprep.subr.mxu0 0.0
      %4520 = vmatpush1.msra.mxu0 0.0
      %4521 = vmatprep.subr.mxu0 0.0
      %4522 = vmatpush1.msra.mxu0 0.0
      %4523 = vmatprep.subr.mxu0 0.0
      %4524 = vmatpush1.msra.mxu0 0.0
      %4525 = vmatprep.subr.mxu0 0.0
      %4526 = vmatpush1.msra.mxu0 0.0
      %4527 = vmatprep.subr.mxu0 0.0
      %4528 = vmatpush1.msra.mxu0 0.0
      %4529 = vmatprep.subr.mxu0 0.0
      %4530 = vmatpush1.msra.mxu0 0.0
      %4531 = vmatprep.mubr.f32.mxu0 0.0
      %v4532 = vand.u32 %v4072, 4294901760
      %4533 = vmatmul.mubr.f32.gmra.mrb[0].mxu0 %v4532
      %v4534 = vpop.f32.mrb[0].mxu0
      %v4535 = vadd.f32 %v4461, %v4534
      %v4536 = vpop.f32.mrb[0].mxu0
      %v4537 = vadd.f32 %v4463, %v4536
      %4538 = vdwg.mxu0
      %v4539 = vand.u32 %v212, 4294901760
      %4540 = vmatprep.subr.mxu0 %v4539
      %v4541 = vand.u32 %v210, 4294901760
      %4542 = vmatpush1.msra.mxu0 %v4541
      %4543 = vmatprep.subr.mxu0 0.0
      %4544 = vmatpush1.msra.mxu0 0.0
      %4545 = vmatprep.subr.mxu0 0.0
      %4546 = vmatpush1.msra.mxu0 0.0
      %4547 = vmatprep.subr.mxu0 0.0
      %4548 = vmatpush1.msra.mxu0 0.0
      %4549 = vmatprep.subr.mxu0 0.0
      %4550 = vmatpush1.msra.mxu0 0.0
      %4551 = vmatprep.subr.mxu0 0.0
      %4552 = vmatpush1.msra.mxu0 0.0
      %4553 = vmatprep.subr.mxu0 0.0
      %4554 = vmatpush1.msra.mxu0 0.0
      %4555 = vmatprep.subr.mxu0 0.0
      %4556 = vmatpush1.msra.mxu0 0.0
      %4557 = vmatprep.subr.mxu0 0.0
      %4558 = vmatpush1.msra.mxu0 0.0
      %4559 = vmatprep.subr.mxu0 0.0
      %4560 = vmatpush1.msra.mxu0 0.0
      %4561 = vmatprep.subr.mxu0 0.0
      %4562 = vmatpush1.msra.mxu0 0.0
      %4563 = vmatprep.subr.mxu0 0.0
      %4564 = vmatpush1.msra.mxu0 0.0
      %4565 = vmatprep.subr.mxu0 0.0
      %4566 = vmatpush1.msra.mxu0 0.0
      %4567 = vmatprep.subr.mxu0 0.0
      %4568 = vmatpush1.msra.mxu0 0.0
      %4569 = vmatprep.subr.mxu0 0.0
      %4570 = vmatpush1.msra.mxu0 0.0
      %4571 = vmatprep.subr.mxu0 0.0
      %4572 = vmatpush1.msra.mxu0 0.0
      %4573 = vmatprep.subr.mxu0 0.0
      %4574 = vmatpush1.msra.mxu0 0.0
      %4575 = vmatprep.subr.mxu0 0.0
      %4576 = vmatpush1.msra.mxu0 0.0
      %4577 = vmatprep.subr.mxu0 0.0
      %4578 = vmatpush1.msra.mxu0 0.0
      %4579 = vmatprep.subr.mxu0 0.0
      %4580 = vmatpush1.msra.mxu0 0.0
      %4581 = vmatprep.subr.mxu0 0.0
      %4582 = vmatpush1.msra.mxu0 0.0
      %4583 = vmatprep.subr.mxu0 0.0
      %4584 = vmatpush1.msra.mxu0 0.0
      %4585 = vmatprep.subr.mxu0 0.0
      %4586 = vmatpush1.msra.mxu0 0.0
      %4587 = vmatprep.subr.mxu0 0.0
      %4588 = vmatpush1.msra.mxu0 0.0
      %4589 = vmatprep.subr.mxu0 0.0
      %4590 = vmatpush1.msra.mxu0 0.0
      %4591 = vmatprep.subr.mxu0 0.0
      %4592 = vmatpush1.msra.mxu0 0.0
      %4593 = vmatprep.subr.mxu0 0.0
      %4594 = vmatpush1.msra.mxu0 0.0
      %4595 = vmatprep.subr.mxu0 0.0
      %4596 = vmatpush1.msra.mxu0 0.0
      %4597 = vmatprep.subr.mxu0 0.0
      %4598 = vmatpush1.msra.mxu0 0.0
      %4599 = vmatprep.subr.mxu0 0.0
      %4600 = vmatpush1.msra.mxu0 0.0
      %4601 = vmatprep.subr.mxu0 0.0
      %4602 = vmatpush1.msra.mxu0 0.0
      %4603 = vmatprep.subr.mxu0 0.0
      %4604 = vmatpush1.msra.mxu0 0.0
      %4605 = vmatprep.mubr.f32.mxu0 0.0
      %v4606 = vand.u32 %v4072, 4294901760
      %v4607 = vsub.f32 %v4072, %v4606
      %v4608 = vand.u32 %v4607, 4294901760
      %v4609 = vsub.f32 %v4607, %v4608
      %v4610 = vand.u32 %v4609, 4294901760
      %4611 = vmatmul.mubr.f32.gmra.mrb[0].mxu0 %v4610
      %v4612 = vpop.f32.mrb[0].mxu0
      %v4613 = vadd.f32 0.0, %v4612
      %v4614 = vpop.f32.mrb[0].mxu0
      %v4615 = vadd.f32 0.0, %v4614
      %4616 = vdwg.mxu0
      %v4617 = vand.u32 %v212, 4294901760
      %v4618 = vsub.f32 %v212, %v4617
      %v4619 = vand.u32 %v4618, 4294901760
      %v4620 = vsub.f32 %v4618, %v4619
      %v4621 = vand.u32 %v4620, 4294901760
      %4622 = vmatprep.subr.mxu0 %v4621
      %v4623 = vand.u32 %v210, 4294901760
      %v4624 = vsub.f32 %v210, %v4623
      %v4625 = vand.u32 %v4624, 4294901760
      %v4626 = vsub.f32 %v4624, %v4625
      %v4627 = vand.u32 %v4626, 4294901760
      %4628 = vmatpush1.msra.mxu0 %v4627
      %4629 = vmatprep.subr.mxu0 0.0
      %4630 = vmatpush1.msra.mxu0 0.0
      %4631 = vmatprep.subr.mxu0 0.0
      %4632 = vmatpush1.msra.mxu0 0.0
      %4633 = vmatprep.subr.mxu0 0.0
      %4634 = vmatpush1.msra.mxu0 0.0
      %4635 = vmatprep.subr.mxu0 0.0
      %4636 = vmatpush1.msra.mxu0 0.0
      %4637 = vmatprep.subr.mxu0 0.0
      %4638 = vmatpush1.msra.mxu0 0.0
      %4639 = vmatprep.subr.mxu0 0.0
      %4640 = vmatpush1.msra.mxu0 0.0
      %4641 = vmatprep.subr.mxu0 0.0
      %4642 = vmatpush1.msra.mxu0 0.0
      %4643 = vmatprep.subr.mxu0 0.0
      %4644 = vmatpush1.msra.mxu0 0.0
      %4645 = vmatprep.subr.mxu0 0.0
      %4646 = vmatpush1.msra.mxu0 0.0
      %4647 = vmatprep.subr.mxu0 0.0
      %4648 = vmatpush1.msra.mxu0 0.0
      %4649 = vmatprep.subr.mxu0 0.0
      %4650 = vmatpush1.msra.mxu0 0.0
      %4651 = vmatprep.subr.mxu0 0.0
      %4652 = vmatpush1.msra.mxu0 0.0
      %4653 = vmatprep.subr.mxu0 0.0
      %4654 = vmatpush1.msra.mxu0 0.0
      %4655 = vmatprep.subr.mxu0 0.0
      %4656 = vmatpush1.msra.mxu0 0.0
      %4657 = vmatprep.subr.mxu0 0.0
      %4658 = vmatpush1.msra.mxu0 0.0
      %4659 = vmatprep.subr.mxu0 0.0
      %4660 = vmatpush1.msra.mxu0 0.0
      %4661 = vmatprep.subr.mxu0 0.0
      %4662 = vmatpush1.msra.mxu0 0.0
      %4663 = vmatprep.subr.mxu0 0.0
      %4664 = vmatpush1.msra.mxu0 0.0
      %4665 = vmatprep.subr.mxu0 0.0
      %4666 = vmatpush1.msra.mxu0 0.0
      %4667 = vmatprep.subr.mxu0 0.0
      %4668 = vmatpush1.msra.mxu0 0.0
      %4669 = vmatprep.subr.mxu0 0.0
      %4670 = vmatpush1.msra.mxu0 0.0
      %4671 = vmatprep.subr.mxu0 0.0
      %4672 = vmatpush1.msra.mxu0 0.0
      %4673 = vmatprep.subr.mxu0 0.0
      %4674 = vmatpush1.msra.mxu0 0.0
      %4675 = vmatprep.subr.mxu0 0.0
      %4676 = vmatpush1.msra.mxu0 0.0
      %4677 = vmatprep.subr.mxu0 0.0
      %4678 = vmatpush1.msra.mxu0 0.0
      %4679 = vmatprep.subr.mxu0 0.0
      %4680 = vmatpush1.msra.mxu0 0.0
      %4681 = vmatprep.subr.mxu0 0.0
      %4682 = vmatpush1.msra.mxu0 0.0
      %4683 = vmatprep.subr.mxu0 0.0
      %4684 = vmatpush1.msra.mxu0 0.0
      %4685 = vmatprep.subr.mxu0 0.0
      %4686 = vmatpush1.msra.mxu0 0.0
      %4687 = vmatprep.subr.mxu0 0.0
      %4688 = vmatpush1.msra.mxu0 0.0
      %4689 = vmatprep.subr.mxu0 0.0
      %4690 = vmatpush1.msra.mxu0 0.0
      %4691 = vmatprep.mubr.f32.mxu0 0.0
      %v4692 = vand.u32 %v4072, 4294901760
      %4693 = vmatmul.mubr.f32.gmra.mrb[0].mxu0 %v4692
      %v4694 = vpop.f32.mrb[0].mxu0
      %v4695 = vadd.f32 %v4613, %v4694
      %v4696 = vpop.f32.mrb[0].mxu0
      %v4697 = vadd.f32 %v4615, %v4696
      %4698 = vdwg.mxu0
      %v4699 = vand.u32 %v212, 4294901760
      %v4700 = vsub.f32 %v212, %v4699
      %4701 = vmatprep.subr.mxu0 %v4700
      %v4702 = vand.u32 %v210, 4294901760
      %v4703 = vsub.f32 %v210, %v4702
      %4704 = vmatpush1.msra.mxu0 %v4703
      %4705 = vmatprep.subr.mxu0 0.0
      %4706 = vmatpush1.msra.mxu0 0.0
      %4707 = vmatprep.subr.mxu0 0.0
      %4708 = vmatpush1.msra.mxu0 0.0
      %4709 = vmatprep.subr.mxu0 0.0
      %4710 = vmatpush1.msra.mxu0 0.0
      %4711 = vmatprep.subr.mxu0 0.0
      %4712 = vmatpush1.msra.mxu0 0.0
      %4713 = vmatprep.subr.mxu0 0.0
      %4714 = vmatpush1.msra.mxu0 0.0
      %4715 = vmatprep.subr.mxu0 0.0
      %4716 = vmatpush1.msra.mxu0 0.0
      %4717 = vmatprep.subr.mxu0 0.0
      %4718 = vmatpush1.msra.mxu0 0.0
      %4719 = vmatprep.subr.mxu0 0.0
      %4720 = vmatpush1.msra.mxu0 0.0
      %4721 = vmatprep.subr.mxu0 0.0
      %4722 = vmatpush1.msra.mxu0 0.0
      %4723 = vmatprep.subr.mxu0 0.0
      %4724 = vmatpush1.msra.mxu0 0.0
      %4725 = vmatprep.subr.mxu0 0.0
      %4726 = vmatpush1.msra.mxu0 0.0
      %4727 = vmatprep.subr.mxu0 0.0
      %4728 = vmatpush1.msra.mxu0 0.0
      %4729 = vmatprep.subr.mxu0 0.0
      %4730 = vmatpush1.msra.mxu0 0.0
      %4731 = vmatprep.subr.mxu0 0.0
      %4732 = vmatpush1.msra.mxu0 0.0
      %4733 = vmatprep.subr.mxu0 0.0
      %4734 = vmatpush1.msra.mxu0 0.0
      %4735 = vmatprep.subr.mxu0 0.0
      %4736 = vmatpush1.msra.mxu0 0.0
      %4737 = vmatprep.subr.mxu0 0.0
      %4738 = vmatpush1.msra.mxu0 0.0
      %4739 = vmatprep.subr.mxu0 0.0
      %4740 = vmatpush1.msra.mxu0 0.0
      %4741 = vmatprep.subr.mxu0 0.0
      %4742 = vmatpush1.msra.mxu0 0.0
      %4743 = vmatprep.subr.mxu0 0.0
      %4744 = vmatpush1.msra.mxu0 0.0
      %4745 = vmatprep.subr.mxu0 0.0
      %4746 = vmatpush1.msra.mxu0 0.0
      %4747 = vmatprep.subr.mxu0 0.0
      %4748 = vmatpush1.msra.mxu0 0.0
      %4749 = vmatprep.subr.mxu0 0.0
      %4750 = vmatpush1.msra.mxu0 0.0
      %4751 = vmatprep.subr.mxu0 0.0
      %4752 = vmatpush1.msra.mxu0 0.0
      %4753 = vmatprep.subr.mxu0 0.0
      %4754 = vmatpush1.msra.mxu0 0.0
      %4755 = vmatprep.subr.mxu0 0.0
      %4756 = vmatpush1.msra.mxu0 0.0
      %4757 = vmatprep.subr.mxu0 0.0
      %4758 = vmatpush1.msra.mxu0 0.0
      %4759 = vmatprep.subr.mxu0 0.0
      %4760 = vmatpush1.msra.mxu0 0.0
      %4761 = vmatprep.subr.mxu0 0.0
      %4762 = vmatpush1.msra.mxu0 0.0
      %4763 = vmatprep.subr.mxu0 0.0
      %4764 = vmatpush1.msra.mxu0 0.0
      %4765 = vmatprep.subr.mxu0 0.0
      %4766 = vmatpush1.msra.mxu0 0.0
      %4767 = vmatprep.mubr.f32.mxu0 0.0
      %v4768 = vand.u32 %v4072, 4294901760
      %v4769 = vsub.f32 %v4072, %v4768
      %4770 = vmatmul.mubr.f32.gmra.mrb[0].mxu0 %v4769
      %v4771 = vpop.f32.mrb[0].mxu0
      %v4772 = vadd.f32 %v4695, %v4771
      %v4773 = vpop.f32.mrb[0].mxu0
      %v4774 = vadd.f32 %v4697, %v4773
      %4775 = vdwg.mxu0
      %v4776 = vand.u32 %v212, 4294901760
      %4777 = vmatprep.subr.mxu0 %v4776
      %v4778 = vand.u32 %v210, 4294901760
      %4779 = vmatpush1.msra.mxu0 %v4778
      %4780 = vmatprep.subr.mxu0 0.0
      %4781 = vmatpush1.msra.mxu0 0.0
      %4782 = vmatprep.subr.mxu0 0.0
      %4783 = vmatpush1.msra.mxu0 0.0
      %4784 = vmatprep.subr.mxu0 0.0
      %4785 = vmatpush1.msra.mxu0 0.0
      %4786 = vmatprep.subr.mxu0 0.0
      %4787 = vmatpush1.msra.mxu0 0.0
      %4788 = vmatprep.subr.mxu0 0.0
      %4789 = vmatpush1.msra.mxu0 0.0
      %4790 = vmatprep.subr.mxu0 0.0
      %4791 = vmatpush1.msra.mxu0 0.0
      %4792 = vmatprep.subr.mxu0 0.0
      %4793 = vmatpush1.msra.mxu0 0.0
      %4794 = vmatprep.subr.mxu0 0.0
      %4795 = vmatpush1.msra.mxu0 0.0
      %4796 = vmatprep.subr.mxu0 0.0
      %4797 = vmatpush1.msra.mxu0 0.0
      %4798 = vmatprep.subr.mxu0 0.0
      %4799 = vmatpush1.msra.mxu0 0.0
      %4800 = vmatprep.subr.mxu0 0.0
      %4801 = vmatpush1.msra.mxu0 0.0
      %4802 = vmatprep.subr.mxu0 0.0
      %4803 = vmatpush1.msra.mxu0 0.0
      %4804 = vmatprep.subr.mxu0 0.0
      %4805 = vmatpush1.msra.mxu0 0.0
      %4806 = vmatprep.subr.mxu0 0.0
      %4807 = vmatpush1.msra.mxu0 0.0
      %4808 = vmatprep.subr.mxu0 0.0
      %4809 = vmatpush1.msra.mxu0 0.0
      %4810 = vmatprep.subr.mxu0 0.0
      %4811 = vmatpush1.msra.mxu0 0.0
      %4812 = vmatprep.subr.mxu0 0.0
      %4813 = vmatpush1.msra.mxu0 0.0
      %4814 = vmatprep.subr.mxu0 0.0
      %4815 = vmatpush1.msra.mxu0 0.0
      %4816 = vmatprep.subr.mxu0 0.0
      %4817 = vmatpush1.msra.mxu0 0.0
      %4818 = vmatprep.subr.mxu0 0.0
      %4819 = vmatpush1.msra.mxu0 0.0
      %4820 = vmatprep.subr.mxu0 0.0
      %4821 = vmatpush1.msra.mxu0 0.0
      %4822 = vmatprep.subr.mxu0 0.0
      %4823 = vmatpush1.msra.mxu0 0.0
      %4824 = vmatprep.subr.mxu0 0.0
      %4825 = vmatpush1.msra.mxu0 0.0
      %4826 = vmatprep.subr.mxu0 0.0
      %4827 = vmatpush1.msra.mxu0 0.0
      %4828 = vmatprep.subr.mxu0 0.0
      %4829 = vmatpush1.msra.mxu0 0.0
      %4830 = vmatprep.subr.mxu0 0.0
      %4831 = vmatpush1.msra.mxu0 0.0
      %4832 = vmatprep.subr.mxu0 0.0
      %4833 = vmatpush1.msra.mxu0 0.0
      %4834 = vmatprep.subr.mxu0 0.0
      %4835 = vmatpush1.msra.mxu0 0.0
      %4836 = vmatprep.subr.mxu0 0.0
      %4837 = vmatpush1.msra.mxu0 0.0
      %4838 = vmatprep.subr.mxu0 0.0
      %4839 = vmatpush1.msra.mxu0 0.0
      %4840 = vmatprep.subr.mxu0 0.0
      %4841 = vmatpush1.msra.mxu0 0.0
      %4842 = vmatprep.mubr.f32.mxu0 0.0
      %v4843 = vand.u32 %v4072, 4294901760
      %v4844 = vsub.f32 %v4072, %v4843
      %v4845 = vand.u32 %v4844, 4294901760
      %4846 = vmatmul.mubr.f32.gmra.mrb[0].mxu0 %v4845
      %v4847 = vpop.f32.mrb[0].mxu0
      %v4848 = vadd.f32 %v4772, %v4847
      %v4849 = vpop.f32.mrb[0].mxu0
      %v4850 = vadd.f32 %v4774, %v4849
      %4851 = vdwg.mxu0
      %v4852 = vand.u32 %v212, 4294901760
      %v4853 = vsub.f32 %v212, %v4852
      %v4854 = vand.u32 %v4853, 4294901760
      %4855 = vmatprep.subr.mxu0 %v4854
      %v4856 = vand.u32 %v210, 4294901760
      %v4857 = vsub.f32 %v210, %v4856
      %v4858 = vand.u32 %v4857, 4294901760
      %4859 = vmatpush1.msra.mxu0 %v4858
      %4860 = vmatprep.subr.mxu0 0.0
      %4861 = vmatpush1.msra.mxu0 0.0
      %4862 = vmatprep.subr.mxu0 0.0
      %4863 = vmatpush1.msra.mxu0 0.0
      %4864 = vmatprep.subr.mxu0 0.0
      %4865 = vmatpush1.msra.mxu0 0.0
      %4866 = vmatprep.subr.mxu0 0.0
      %4867 = vmatpush1.msra.mxu0 0.0
      %4868 = vmatprep.subr.mxu0 0.0
      %4869 = vmatpush1.msra.mxu0 0.0
      %4870 = vmatprep.subr.mxu0 0.0
      %4871 = vmatpush1.msra.mxu0 0.0
      %4872 = vmatprep.subr.mxu0 0.0
      %4873 = vmatpush1.msra.mxu0 0.0
      %4874 = vmatprep.subr.mxu0 0.0
      %4875 = vmatpush1.msra.mxu0 0.0
      %4876 = vmatprep.subr.mxu0 0.0
      %4877 = vmatpush1.msra.mxu0 0.0
      %4878 = vmatprep.subr.mxu0 0.0
      %4879 = vmatpush1.msra.mxu0 0.0
      %4880 = vmatprep.subr.mxu0 0.0
      %4881 = vmatpush1.msra.mxu0 0.0
      %4882 = vmatprep.subr.mxu0 0.0
      %4883 = vmatpush1.msra.mxu0 0.0
      %4884 = vmatprep.subr.mxu0 0.0
      %4885 = vmatpush1.msra.mxu0 0.0
      %4886 = vmatprep.subr.mxu0 0.0
      %4887 = vmatpush1.msra.mxu0 0.0
      %4888 = vmatprep.subr.mxu0 0.0
      %4889 = vmatpush1.msra.mxu0 0.0
      %4890 = vmatprep.subr.mxu0 0.0
      %4891 = vmatpush1.msra.mxu0 0.0
      %4892 = vmatprep.subr.mxu0 0.0
      %4893 = vmatpush1.msra.mxu0 0.0
      %4894 = vmatprep.subr.mxu0 0.0
      %4895 = vmatpush1.msra.mxu0 0.0
      %4896 = vmatprep.subr.mxu0 0.0
      %4897 = vmatpush1.msra.mxu0 0.0
      %4898 = vmatprep.subr.mxu0 0.0
      %4899 = vmatpush1.msra.mxu0 0.0
      %4900 = vmatprep.subr.mxu0 0.0
      %4901 = vmatpush1.msra.mxu0 0.0
      %4902 = vmatprep.subr.mxu0 0.0
      %4903 = vmatpush1.msra.mxu0 0.0
      %4904 = vmatprep.subr.mxu0 0.0
      %4905 = vmatpush1.msra.mxu0 0.0
      %4906 = vmatprep.subr.mxu0 0.0
      %4907 = vmatpush1.msra.mxu0 0.0
      %4908 = vmatprep.subr.mxu0 0.0
      %4909 = vmatpush1.msra.mxu0 0.0
      %4910 = vmatprep.subr.mxu0 0.0
      %4911 = vmatpush1.msra.mxu0 0.0
      %4912 = vmatprep.subr.mxu0 0.0
      %4913 = vmatpush1.msra.mxu0 0.0
      %4914 = vmatprep.subr.mxu0 0.0
      %4915 = vmatpush1.msra.mxu0 0.0
      %4916 = vmatprep.subr.mxu0 0.0
      %4917 = vmatpush1.msra.mxu0 0.0
      %4918 = vmatprep.subr.mxu0 0.0
      %4919 = vmatpush1.msra.mxu0 0.0
      %4920 = vmatprep.subr.mxu0 0.0
      %4921 = vmatpush1.msra.mxu0 0.0
      %4922 = vmatprep.mubr.f32.mxu0 0.0
      %v4923 = vand.u32 %v4072, 4294901760
      %4924 = vmatmul.mubr.f32.gmra.mrb[0].mxu0 %v4923
      %v4925 = vpop.f32.mrb[0].mxu0
      %v4926 = vadd.f32 %v4848, %v4925
      %v4927 = vpop.f32.mrb[0].mxu0
      %v4928 = vadd.f32 %v4850, %v4927
      %4929 = vdwg.mxu0
      %v4930 = vand.u32 %v212, 4294901760
      %4931 = vmatprep.subr.mxu0 %v4930
      %v4932 = vand.u32 %v210, 4294901760
      %4933 = vmatpush1.msra.mxu0 %v4932
      %4934 = vmatprep.subr.mxu0 0.0
      %4935 = vmatpush1.msra.mxu0 0.0
      %4936 = vmatprep.subr.mxu0 0.0
      %4937 = vmatpush1.msra.mxu0 0.0
      %4938 = vmatprep.subr.mxu0 0.0
      %4939 = vmatpush1.msra.mxu0 0.0
      %4940 = vmatprep.subr.mxu0 0.0
      %4941 = vmatpush1.msra.mxu0 0.0
      %4942 = vmatprep.subr.mxu0 0.0
      %4943 = vmatpush1.msra.mxu0 0.0
      %4944 = vmatprep.subr.mxu0 0.0
      %4945 = vmatpush1.msra.mxu0 0.0
      %4946 = vmatprep.subr.mxu0 0.0
      %4947 = vmatpush1.msra.mxu0 0.0
      %4948 = vmatprep.subr.mxu0 0.0
      %4949 = vmatpush1.msra.mxu0 0.0
      %4950 = vmatprep.subr.mxu0 0.0
      %4951 = vmatpush1.msra.mxu0 0.0
      %4952 = vmatprep.subr.mxu0 0.0
      %4953 = vmatpush1.msra.mxu0 0.0
      %4954 = vmatprep.subr.mxu0 0.0
      %4955 = vmatpush1.msra.mxu0 0.0
      %4956 = vmatprep.subr.mxu0 0.0
      %4957 = vmatpush1.msra.mxu0 0.0
      %4958 = vmatprep.subr.mxu0 0.0
      %4959 = vmatpush1.msra.mxu0 0.0
      %4960 = vmatprep.subr.mxu0 0.0
      %4961 = vmatpush1.msra.mxu0 0.0
      %4962 = vmatprep.subr.mxu0 0.0
      %4963 = vmatpush1.msra.mxu0 0.0
      %4964 = vmatprep.subr.mxu0 0.0
      %4965 = vmatpush1.msra.mxu0 0.0
      %4966 = vmatprep.subr.mxu0 0.0
      %4967 = vmatpush1.msra.mxu0 0.0
      %4968 = vmatprep.subr.mxu0 0.0
      %4969 = vmatpush1.msra.mxu0 0.0
      %4970 = vmatprep.subr.mxu0 0.0
      %4971 = vmatpush1.msra.mxu0 0.0
      %4972 = vmatprep.subr.mxu0 0.0
      %4973 = vmatpush1.msra.mxu0 0.0
      %4974 = vmatprep.subr.mxu0 0.0
      %4975 = vmatpush1.msra.mxu0 0.0
      %4976 = vmatprep.subr.mxu0 0.0
      %4977 = vmatpush1.msra.mxu0 0.0
      %4978 = vmatprep.subr.mxu0 0.0
      %4979 = vmatpush1.msra.mxu0 0.0
      %4980 = vmatprep.subr.mxu0 0.0
      %4981 = vmatpush1.msra.mxu0 0.0
      %4982 = vmatprep.subr.mxu0 0.0
      %4983 = vmatpush1.msra.mxu0 0.0
      %4984 = vmatprep.subr.mxu0 0.0
      %4985 = vmatpush1.msra.mxu0 0.0
      %4986 = vmatprep.subr.mxu0 0.0
      %4987 = vmatpush1.msra.mxu0 0.0
      %4988 = vmatprep.subr.mxu0 0.0
      %4989 = vmatpush1.msra.mxu0 0.0
      %4990 = vmatprep.subr.mxu0 0.0
      %4991 = vmatpush1.msra.mxu0 0.0
      %4992 = vmatprep.subr.mxu0 0.0
      %4993 = vmatpush1.msra.mxu0 0.0
      %4994 = vmatprep.subr.mxu0 0.0
      %4995 = vmatpush1.msra.mxu0 0.0
      %4996 = vmatprep.mubr.f32.mxu0 0.0
      %v4997 = vand.u32 %v4072, 4294901760
      %4998 = vmatmul.mubr.f32.gmra.mrb[0].mxu0 %v4997
      %v4999 = vpop.f32.mrb[0].mxu0
      %v5000 = vadd.f32 %v4926, %v4999
      %v5001 = vpop.f32.mrb[0].mxu0
      %v5002 = vadd.f32 %v4928, %v5001
      %5003 = vdwg.mxu0
      %vm5004 = vcmp.eq.s32.totalorder %v195, 4
      %v5005 = vsel %vm5004, 1, 0
      %v5006 = vlaneseq
      %v5007 = vshrl.u32 %v5006, 7
      %v5008 = vsub.s32 0, %v5007
      %v5009 = vrot.slane %v5005, %v5008
      %v5010 = vlaneseq
      %v5011 = vshrl.u32 %v5010, 7
      %v5012 = vsub.s32 1, %v5011
      %v5013 = vrot.slane %v5005, %v5012
      %v5014 = vlaneseq
      %v5015 = vshrl.u32 %v5014, 7
      %v5016 = vsub.s32 2, %v5015
      %v5017 = vrot.slane %v5005, %v5016
      %v5018 = vlaneseq
      %v5019 = vshrl.u32 %v5018, 7
      %v5020 = vsub.s32 3, %v5019
      %v5021 = vrot.slane %v5005, %v5020
      %vm5022 = vcmp.eq.s32.totalorder %v5009, 1
      %vm5023 = vcmp.eq.s32.totalorder %v5013, 1
      %vm5024 = vcmp.eq.s32.totalorder %v5017, 1
      %vm5025 = vcmp.eq.s32.totalorder %v5021, 1
      %v5026 = vsel %vm5022, %v4535, 0.0
      %v5027 = vsel %vm5023, %v4537, 0.0
      %v5028 = vsel %vm5024, %v5000, 0.0
      %v5029 = vsel %vm5025, %v5002, 0.0
      %v5030 = vadd.f32 %v4065, %v5026
      %v5031 = vadd.f32 %v4066, %v5027
      %v5032 = vadd.f32 %v4067, %v5028
      %v5033 = vadd.f32 %v4068, %v5029
      %s5034 = scalar_lea.vmem %s0, 40
      %v5035 = vld [vmem:[%s5034] sm:$0xff]
      %v5037 = vsel %vm201, %v5035, 0
      %v5039 = vand.u32 %v208, 4294901760
      %5040 = vmatprep.subr.mxu0 %v5039
      %v5041 = vand.u32 %v206, 4294901760
      %5042 = vmatpush1.msra.mxu0 %v5041
      %5043 = vmatprep.subr.mxu0 0.0
      %5044 = vmatpush1.msra.mxu0 0.0
      %5045 = vmatprep.subr.mxu0 0.0
      %5046 = vmatpush1.msra.mxu0 0.0
      %5047 = vmatprep.subr.mxu0 0.0
      %5048 = vmatpush1.msra.mxu0 0.0
      %5049 = vmatprep.subr.mxu0 0.0
      %5050 = vmatpush1.msra.mxu0 0.0
      %5051 = vmatprep.subr.mxu0 0.0
      %5052 = vmatpush1.msra.mxu0 0.0
      %5053 = vmatprep.subr.mxu0 0.0
      %5054 = vmatpush1.msra.mxu0 0.0
      %5055 = vmatprep.subr.mxu0 0.0
      %5056 = vmatpush1.msra.mxu0 0.0
      %5057 = vmatprep.subr.mxu0 0.0
      %5058 = vmatpush1.msra.mxu0 0.0
      %5059 = vmatprep.subr.mxu0 0.0
      %5060 = vmatpush1.msra.mxu0 0.0
      %5061 = vmatprep.subr.mxu0 0.0
      %5062 = vmatpush1.msra.mxu0 0.0
      %5063 = vmatprep.subr.mxu0 0.0
      %5064 = vmatpush1.msra.mxu0 0.0
      %5065 = vmatprep.subr.mxu0 0.0
      %5066 = vmatpush1.msra.mxu0 0.0
      %5067 = vmatprep.subr.mxu0 0.0
      %5068 = vmatpush1.msra.mxu0 0.0
      %5069 = vmatprep.subr.mxu0 0.0
      %5070 = vmatpush1.msra.mxu0 0.0
      %5071 = vmatprep.subr.mxu0 0.0
      %5072 = vmatpush1.msra.mxu0 0.0
      %5073 = vmatprep.subr.mxu0 0.0
      %5074 = vmatpush1.msra.mxu0 0.0
      %5075 = vmatprep.subr.mxu0 0.0
      %5076 = vmatpush1.msra.mxu0 0.0
      %5077 = vmatprep.subr.mxu0 0.0
      %5078 = vmatpush1.msra.mxu0 0.0
      %5079 = vmatprep.subr.mxu0 0.0
      %5080 = vmatpush1.msra.mxu0 0.0
      %5081 = vmatprep.subr.mxu0 0.0
      %5082 = vmatpush1.msra.mxu0 0.0
      %5083 = vmatprep.subr.mxu0 0.0
      %5084 = vmatpush1.msra.mxu0 0.0
      %5085 = vmatprep.subr.mxu0 0.0
      %5086 = vmatpush1.msra.mxu0 0.0
      %5087 = vmatprep.subr.mxu0 0.0
      %5088 = vmatpush1.msra.mxu0 0.0
      %5089 = vmatprep.subr.mxu0 0.0
      %5090 = vmatpush1.msra.mxu0 0.0
      %5091 = vmatprep.subr.mxu0 0.0
      %5092 = vmatpush1.msra.mxu0 0.0
      %5093 = vmatprep.subr.mxu0 0.0
      %5094 = vmatpush1.msra.mxu0 0.0
      %5095 = vmatprep.subr.mxu0 0.0
      %5096 = vmatpush1.msra.mxu0 0.0
      %5097 = vmatprep.subr.mxu0 0.0
      %5098 = vmatpush1.msra.mxu0 0.0
      %5099 = vmatprep.subr.mxu0 0.0
      %5100 = vmatpush1.msra.mxu0 0.0
      %5101 = vmatprep.subr.mxu0 0.0
      %5102 = vmatpush1.msra.mxu0 0.0
      %5103 = vmatprep.subr.mxu0 0.0
      %5104 = vmatpush1.msra.mxu0 0.0
      %5105 = vmatprep.mubr.f32.mxu0 0.0
      %v5106 = vand.u32 %v5037, 4294901760
      %v5107 = vsub.f32 %v5037, %v5106
      %v5108 = vand.u32 %v5107, 4294901760
      %v5109 = vsub.f32 %v5107, %v5108
      %v5110 = vand.u32 %v5109, 4294901760
      %5111 = vmatmul.mubr.f32.gmra.mrb[0].mxu0 %v5110
      %v5112 = vpop.f32.mrb[0].mxu0
      %v5113 = vadd.f32 0.0, %v5112
      %v5114 = vpop.f32.mrb[0].mxu0
      %v5115 = vadd.f32 0.0, %v5114
      %5116 = vdwg.mxu0
      %v5117 = vand.u32 %v208, 4294901760
      %v5118 = vsub.f32 %v208, %v5117
      %v5119 = vand.u32 %v5118, 4294901760
      %v5120 = vsub.f32 %v5118, %v5119
      %v5121 = vand.u32 %v5120, 4294901760
      %5122 = vmatprep.subr.mxu0 %v5121
      %v5123 = vand.u32 %v206, 4294901760
      %v5124 = vsub.f32 %v206, %v5123
      %v5125 = vand.u32 %v5124, 4294901760
      %v5126 = vsub.f32 %v5124, %v5125
      %v5127 = vand.u32 %v5126, 4294901760
      %5128 = vmatpush1.msra.mxu0 %v5127
      %5129 = vmatprep.subr.mxu0 0.0
      %5130 = vmatpush1.msra.mxu0 0.0
      %5131 = vmatprep.subr.mxu0 0.0
      %5132 = vmatpush1.msra.mxu0 0.0
      %5133 = vmatprep.subr.mxu0 0.0
      %5134 = vmatpush1.msra.mxu0 0.0
      %5135 = vmatprep.subr.mxu0 0.0
      %5136 = vmatpush1.msra.mxu0 0.0
      %5137 = vmatprep.subr.mxu0 0.0
      %5138 = vmatpush1.msra.mxu0 0.0
      %5139 = vmatprep.subr.mxu0 0.0
      %5140 = vmatpush1.msra.mxu0 0.0
      %5141 = vmatprep.subr.mxu0 0.0
      %5142 = vmatpush1.msra.mxu0 0.0
      %5143 = vmatprep.subr.mxu0 0.0
      %5144 = vmatpush1.msra.mxu0 0.0
      %5145 = vmatprep.subr.mxu0 0.0
      %5146 = vmatpush1.msra.mxu0 0.0
      %5147 = vmatprep.subr.mxu0 0.0
      %5148 = vmatpush1.msra.mxu0 0.0
      %5149 = vmatprep.subr.mxu0 0.0
      %5150 = vmatpush1.msra.mxu0 0.0
      %5151 = vmatprep.subr.mxu0 0.0
      %5152 = vmatpush1.msra.mxu0 0.0
      %5153 = vmatprep.subr.mxu0 0.0
      %5154 = vmatpush1.msra.mxu0 0.0
      %5155 = vmatprep.subr.mxu0 0.0
      %5156 = vmatpush1.msra.mxu0 0.0
      %5157 = vmatprep.subr.mxu0 0.0
      %5158 = vmatpush1.msra.mxu0 0.0
      %5159 = vmatprep.subr.mxu0 0.0
      %5160 = vmatpush1.msra.mxu0 0.0
      %5161 = vmatprep.subr.mxu0 0.0
      %5162 = vmatpush1.msra.mxu0 0.0
      %5163 = vmatprep.subr.mxu0 0.0
      %5164 = vmatpush1.msra.mxu0 0.0
      %5165 = vmatprep.subr.mxu0 0.0
      %5166 = vmatpush1.msra.mxu0 0.0
      %5167 = vmatprep.subr.mxu0 0.0
      %5168 = vmatpush1.msra.mxu0 0.0
      %5169 = vmatprep.subr.mxu0 0.0
      %5170 = vmatpush1.msra.mxu0 0.0
      %5171 = vmatprep.subr.mxu0 0.0
      %5172 = vmatpush1.msra.mxu0 0.0
      %5173 = vmatprep.subr.mxu0 0.0
      %5174 = vmatpush1.msra.mxu0 0.0
      %5175 = vmatprep.subr.mxu0 0.0
      %5176 = vmatpush1.msra.mxu0 0.0
      %5177 = vmatprep.subr.mxu0 0.0
      %5178 = vmatpush1.msra.mxu0 0.0
      %5179 = vmatprep.subr.mxu0 0.0
      %5180 = vmatpush1.msra.mxu0 0.0
      %5181 = vmatprep.subr.mxu0 0.0
      %5182 = vmatpush1.msra.mxu0 0.0
      %5183 = vmatprep.subr.mxu0 0.0
      %5184 = vmatpush1.msra.mxu0 0.0
      %5185 = vmatprep.subr.mxu0 0.0
      %5186 = vmatpush1.msra.mxu0 0.0
      %5187 = vmatprep.subr.mxu0 0.0
      %5188 = vmatpush1.msra.mxu0 0.0
      %5189 = vmatprep.subr.mxu0 0.0
      %5190 = vmatpush1.msra.mxu0 0.0
      %5191 = vmatprep.mubr.f32.mxu0 0.0
      %v5192 = vand.u32 %v5037, 4294901760
      %5193 = vmatmul.mubr.f32.gmra.mrb[0].mxu0 %v5192
      %v5194 = vpop.f32.mrb[0].mxu0
      %v5195 = vadd.f32 %v5113, %v5194
      %v5196 = vpop.f32.mrb[0].mxu0
      %v5197 = vadd.f32 %v5115, %v5196
      %5198 = vdwg.mxu0
      %v5199 = vand.u32 %v208, 4294901760
      %v5200 = vsub.f32 %v208, %v5199
      %5201 = vmatprep.subr.mxu0 %v5200
      %v5202 = vand.u32 %v206, 4294901760
      %v5203 = vsub.f32 %v206, %v5202
      %5204 = vmatpush1.msra.mxu0 %v5203
      %5205 = vmatprep.subr.mxu0 0.0
      %5206 = vmatpush1.msra.mxu0 0.0
      %5207 = vmatprep.subr.mxu0 0.0
      %5208 = vmatpush1.msra.mxu0 0.0
      %5209 = vmatprep.subr.mxu0 0.0
      %5210 = vmatpush1.msra.mxu0 0.0
      %5211 = vmatprep.subr.mxu0 0.0
      %5212 = vmatpush1.msra.mxu0 0.0
      %5213 = vmatprep.subr.mxu0 0.0
      %5214 = vmatpush1.msra.mxu0 0.0
      %5215 = vmatprep.subr.mxu0 0.0
      %5216 = vmatpush1.msra.mxu0 0.0
      %5217 = vmatprep.subr.mxu0 0.0
      %5218 = vmatpush1.msra.mxu0 0.0
      %5219 = vmatprep.subr.mxu0 0.0
      %5220 = vmatpush1.msra.mxu0 0.0
      %5221 = vmatprep.subr.mxu0 0.0
      %5222 = vmatpush1.msra.mxu0 0.0
      %5223 = vmatprep.subr.mxu0 0.0
      %5224 = vmatpush1.msra.mxu0 0.0
      %5225 = vmatprep.subr.mxu0 0.0
      %5226 = vmatpush1.msra.mxu0 0.0
      %5227 = vmatprep.subr.mxu0 0.0
      %5228 = vmatpush1.msra.mxu0 0.0
      %5229 = vmatprep.subr.mxu0 0.0
      %5230 = vmatpush1.msra.mxu0 0.0
      %5231 = vmatprep.subr.mxu0 0.0
      %5232 = vmatpush1.msra.mxu0 0.0
      %5233 = vmatprep.subr.mxu0 0.0
      %5234 = vmatpush1.msra.mxu0 0.0
      %5235 = vmatprep.subr.mxu0 0.0
      %5236 = vmatpush1.msra.mxu0 0.0
      %5237 = vmatprep.subr.mxu0 0.0
      %5238 = vmatpush1.msra.mxu0 0.0
      %5239 = vmatprep.subr.mxu0 0.0
      %5240 = vmatpush1.msra.mxu0 0.0
      %5241 = vmatprep.subr.mxu0 0.0
      %5242 = vmatpush1.msra.mxu0 0.0
      %5243 = vmatprep.subr.mxu0 0.0
      %5244 = vmatpush1.msra.mxu0 0.0
      %5245 = vmatprep.subr.mxu0 0.0
      %5246 = vmatpush1.msra.mxu0 0.0
      %5247 = vmatprep.subr.mxu0 0.0
      %5248 = vmatpush1.msra.mxu0 0.0
      %5249 = vmatprep.subr.mxu0 0.0
      %5250 = vmatpush1.msra.mxu0 0.0
      %5251 = vmatprep.subr.mxu0 0.0
      %5252 = vmatpush1.msra.mxu0 0.0
      %5253 = vmatprep.subr.mxu0 0.0
      %5254 = vmatpush1.msra.mxu0 0.0
      %5255 = vmatprep.subr.mxu0 0.0
      %5256 = vmatpush1.msra.mxu0 0.0
      %5257 = vmatprep.subr.mxu0 0.0
      %5258 = vmatpush1.msra.mxu0 0.0
      %5259 = vmatprep.subr.mxu0 0.0
      %5260 = vmatpush1.msra.mxu0 0.0
      %5261 = vmatprep.subr.mxu0 0.0
      %5262 = vmatpush1.msra.mxu0 0.0
      %5263 = vmatprep.subr.mxu0 0.0
      %5264 = vmatpush1.msra.mxu0 0.0
      %5265 = vmatprep.subr.mxu0 0.0
      %5266 = vmatpush1.msra.mxu0 0.0
      %5267 = vmatprep.mubr.f32.mxu0 0.0
      %v5268 = vand.u32 %v5037, 4294901760
      %v5269 = vsub.f32 %v5037, %v5268
      %5270 = vmatmul.mubr.f32.gmra.mrb[0].mxu0 %v5269
      %v5271 = vpop.f32.mrb[0].mxu0
      %v5272 = vadd.f32 %v5195, %v5271
      %v5273 = vpop.f32.mrb[0].mxu0
      %v5274 = vadd.f32 %v5197, %v5273
      %5275 = vdwg.mxu0
      %v5276 = vand.u32 %v208, 4294901760
      %5277 = vmatprep.subr.mxu0 %v5276
      %v5278 = vand.u32 %v206, 4294901760
      %5279 = vmatpush1.msra.mxu0 %v5278
      %5280 = vmatprep.subr.mxu0 0.0
      %5281 = vmatpush1.msra.mxu0 0.0
      %5282 = vmatprep.subr.mxu0 0.0
      %5283 = vmatpush1.msra.mxu0 0.0
      %5284 = vmatprep.subr.mxu0 0.0
      %5285 = vmatpush1.msra.mxu0 0.0
      %5286 = vmatprep.subr.mxu0 0.0
      %5287 = vmatpush1.msra.mxu0 0.0
      %5288 = vmatprep.subr.mxu0 0.0
      %5289 = vmatpush1.msra.mxu0 0.0
      %5290 = vmatprep.subr.mxu0 0.0
      %5291 = vmatpush1.msra.mxu0 0.0
      %5292 = vmatprep.subr.mxu0 0.0
      %5293 = vmatpush1.msra.mxu0 0.0
      %5294 = vmatprep.subr.mxu0 0.0
      %5295 = vmatpush1.msra.mxu0 0.0
      %5296 = vmatprep.subr.mxu0 0.0
      %5297 = vmatpush1.msra.mxu0 0.0
      %5298 = vmatprep.subr.mxu0 0.0
      %5299 = vmatpush1.msra.mxu0 0.0
      %5300 = vmatprep.subr.mxu0 0.0
      %5301 = vmatpush1.msra.mxu0 0.0
      %5302 = vmatprep.subr.mxu0 0.0
      %5303 = vmatpush1.msra.mxu0 0.0
      %5304 = vmatprep.subr.mxu0 0.0
      %5305 = vmatpush1.msra.mxu0 0.0
      %5306 = vmatprep.subr.mxu0 0.0
      %5307 = vmatpush1.msra.mxu0 0.0
      %5308 = vmatprep.subr.mxu0 0.0
      %5309 = vmatpush1.msra.mxu0 0.0
      %5310 = vmatprep.subr.mxu0 0.0
      %5311 = vmatpush1.msra.mxu0 0.0
      %5312 = vmatprep.subr.mxu0 0.0
      %5313 = vmatpush1.msra.mxu0 0.0
      %5314 = vmatprep.subr.mxu0 0.0
      %5315 = vmatpush1.msra.mxu0 0.0
      %5316 = vmatprep.subr.mxu0 0.0
      %5317 = vmatpush1.msra.mxu0 0.0
      %5318 = vmatprep.subr.mxu0 0.0
      %5319 = vmatpush1.msra.mxu0 0.0
      %5320 = vmatprep.subr.mxu0 0.0
      %5321 = vmatpush1.msra.mxu0 0.0
      %5322 = vmatprep.subr.mxu0 0.0
      %5323 = vmatpush1.msra.mxu0 0.0
      %5324 = vmatprep.subr.mxu0 0.0
      %5325 = vmatpush1.msra.mxu0 0.0
      %5326 = vmatprep.subr.mxu0 0.0
      %5327 = vmatpush1.msra.mxu0 0.0
      %5328 = vmatprep.subr.mxu0 0.0
      %5329 = vmatpush1.msra.mxu0 0.0
      %5330 = vmatprep.subr.mxu0 0.0
      %5331 = vmatpush1.msra.mxu0 0.0
      %5332 = vmatprep.subr.mxu0 0.0
      %5333 = vmatpush1.msra.mxu0 0.0
      %5334 = vmatprep.subr.mxu0 0.0
      %5335 = vmatpush1.msra.mxu0 0.0
      %5336 = vmatprep.subr.mxu0 0.0
      %5337 = vmatpush1.msra.mxu0 0.0
      %5338 = vmatprep.subr.mxu0 0.0
      %5339 = vmatpush1.msra.mxu0 0.0
      %5340 = vmatprep.subr.mxu0 0.0
      %5341 = vmatpush1.msra.mxu0 0.0
      %5342 = vmatprep.mubr.f32.mxu0 0.0
      %v5343 = vand.u32 %v5037, 4294901760
      %v5344 = vsub.f32 %v5037, %v5343
      %v5345 = vand.u32 %v5344, 4294901760
      %5346 = vmatmul.mubr.f32.gmra.mrb[0].mxu0 %v5345
      %v5347 = vpop.f32.mrb[0].mxu0
      %v5348 = vadd.f32 %v5272, %v5347
      %v5349 = vpop.f32.mrb[0].mxu0
      %v5350 = vadd.f32 %v5274, %v5349
      %5351 = vdwg.mxu0
      %v5352 = vand.u32 %v208, 4294901760
      %v5353 = vsub.f32 %v208, %v5352
      %v5354 = vand.u32 %v5353, 4294901760
      %5355 = vmatprep.subr.mxu0 %v5354
      %v5356 = vand.u32 %v206, 4294901760
      %v5357 = vsub.f32 %v206, %v5356
      %v5358 = vand.u32 %v5357, 4294901760
      %5359 = vmatpush1.msra.mxu0 %v5358
      %5360 = vmatprep.subr.mxu0 0.0
      %5361 = vmatpush1.msra.mxu0 0.0
      %5362 = vmatprep.subr.mxu0 0.0
      %5363 = vmatpush1.msra.mxu0 0.0
      %5364 = vmatprep.subr.mxu0 0.0
      %5365 = vmatpush1.msra.mxu0 0.0
      %5366 = vmatprep.subr.mxu0 0.0
      %5367 = vmatpush1.msra.mxu0 0.0
      %5368 = vmatprep.subr.mxu0 0.0
      %5369 = vmatpush1.msra.mxu0 0.0
      %5370 = vmatprep.subr.mxu0 0.0
      %5371 = vmatpush1.msra.mxu0 0.0
      %5372 = vmatprep.subr.mxu0 0.0
      %5373 = vmatpush1.msra.mxu0 0.0
      %5374 = vmatprep.subr.mxu0 0.0
      %5375 = vmatpush1.msra.mxu0 0.0
      %5376 = vmatprep.subr.mxu0 0.0
      %5377 = vmatpush1.msra.mxu0 0.0
      %5378 = vmatprep.subr.mxu0 0.0
      %5379 = vmatpush1.msra.mxu0 0.0
      %5380 = vmatprep.subr.mxu0 0.0
      %5381 = vmatpush1.msra.mxu0 0.0
      %5382 = vmatprep.subr.mxu0 0.0
      %5383 = vmatpush1.msra.mxu0 0.0
      %5384 = vmatprep.subr.mxu0 0.0
      %5385 = vmatpush1.msra.mxu0 0.0
      %5386 = vmatprep.subr.mxu0 0.0
      %5387 = vmatpush1.msra.mxu0 0.0
      %5388 = vmatprep.subr.mxu0 0.0
      %5389 = vmatpush1.msra.mxu0 0.0
      %5390 = vmatprep.subr.mxu0 0.0
      %5391 = vmatpush1.msra.mxu0 0.0
      %5392 = vmatprep.subr.mxu0 0.0
      %5393 = vmatpush1.msra.mxu0 0.0
      %5394 = vmatprep.subr.mxu0 0.0
      %5395 = vmatpush1.msra.mxu0 0.0
      %5396 = vmatprep.subr.mxu0 0.0
      %5397 = vmatpush1.msra.mxu0 0.0
      %5398 = vmatprep.subr.mxu0 0.0
      %5399 = vmatpush1.msra.mxu0 0.0
      %5400 = vmatprep.subr.mxu0 0.0
      %5401 = vmatpush1.msra.mxu0 0.0
      %5402 = vmatprep.subr.mxu0 0.0
      %5403 = vmatpush1.msra.mxu0 0.0
      %5404 = vmatprep.subr.mxu0 0.0
      %5405 = vmatpush1.msra.mxu0 0.0
      %5406 = vmatprep.subr.mxu0 0.0
      %5407 = vmatpush1.msra.mxu0 0.0
      %5408 = vmatprep.subr.mxu0 0.0
      %5409 = vmatpush1.msra.mxu0 0.0
      %5410 = vmatprep.subr.mxu0 0.0
      %5411 = vmatpush1.msra.mxu0 0.0
      %5412 = vmatprep.subr.mxu0 0.0
      %5413 = vmatpush1.msra.mxu0 0.0
      %5414 = vmatprep.subr.mxu0 0.0
      %5415 = vmatpush1.msra.mxu0 0.0
      %5416 = vmatprep.subr.mxu0 0.0
      %5417 = vmatpush1.msra.mxu0 0.0
      %5418 = vmatprep.subr.mxu0 0.0
      %5419 = vmatpush1.msra.mxu0 0.0
      %5420 = vmatprep.subr.mxu0 0.0
      %5421 = vmatpush1.msra.mxu0 0.0
      %5422 = vmatprep.mubr.f32.mxu0 0.0
      %v5423 = vand.u32 %v5037, 4294901760
      %5424 = vmatmul.mubr.f32.gmra.mrb[0].mxu0 %v5423
      %v5425 = vpop.f32.mrb[0].mxu0
      %v5426 = vadd.f32 %v5348, %v5425
      %v5427 = vpop.f32.mrb[0].mxu0
      %v5428 = vadd.f32 %v5350, %v5427
      %5429 = vdwg.mxu0
      %v5430 = vand.u32 %v208, 4294901760
      %5431 = vmatprep.subr.mxu0 %v5430
      %v5432 = vand.u32 %v206, 4294901760
      %5433 = vmatpush1.msra.mxu0 %v5432
      %5434 = vmatprep.subr.mxu0 0.0
      %5435 = vmatpush1.msra.mxu0 0.0
      %5436 = vmatprep.subr.mxu0 0.0
      %5437 = vmatpush1.msra.mxu0 0.0
      %5438 = vmatprep.subr.mxu0 0.0
      %5439 = vmatpush1.msra.mxu0 0.0
      %5440 = vmatprep.subr.mxu0 0.0
      %5441 = vmatpush1.msra.mxu0 0.0
      %5442 = vmatprep.subr.mxu0 0.0
      %5443 = vmatpush1.msra.mxu0 0.0
      %5444 = vmatprep.subr.mxu0 0.0
      %5445 = vmatpush1.msra.mxu0 0.0
      %5446 = vmatprep.subr.mxu0 0.0
      %5447 = vmatpush1.msra.mxu0 0.0
      %5448 = vmatprep.subr.mxu0 0.0
      %5449 = vmatpush1.msra.mxu0 0.0
      %5450 = vmatprep.subr.mxu0 0.0
      %5451 = vmatpush1.msra.mxu0 0.0
      %5452 = vmatprep.subr.mxu0 0.0
      %5453 = vmatpush1.msra.mxu0 0.0
      %5454 = vmatprep.subr.mxu0 0.0
      %5455 = vmatpush1.msra.mxu0 0.0
      %5456 = vmatprep.subr.mxu0 0.0
      %5457 = vmatpush1.msra.mxu0 0.0
      %5458 = vmatprep.subr.mxu0 0.0
      %5459 = vmatpush1.msra.mxu0 0.0
      %5460 = vmatprep.subr.mxu0 0.0
      %5461 = vmatpush1.msra.mxu0 0.0
      %5462 = vmatprep.subr.mxu0 0.0
      %5463 = vmatpush1.msra.mxu0 0.0
      %5464 = vmatprep.subr.mxu0 0.0
      %5465 = vmatpush1.msra.mxu0 0.0
      %5466 = vmatprep.subr.mxu0 0.0
      %5467 = vmatpush1.msra.mxu0 0.0
      %5468 = vmatprep.subr.mxu0 0.0
      %5469 = vmatpush1.msra.mxu0 0.0
      %5470 = vmatprep.subr.mxu0 0.0
      %5471 = vmatpush1.msra.mxu0 0.0
      %5472 = vmatprep.subr.mxu0 0.0
      %5473 = vmatpush1.msra.mxu0 0.0
      %5474 = vmatprep.subr.mxu0 0.0
      %5475 = vmatpush1.msra.mxu0 0.0
      %5476 = vmatprep.subr.mxu0 0.0
      %5477 = vmatpush1.msra.mxu0 0.0
      %5478 = vmatprep.subr.mxu0 0.0
      %5479 = vmatpush1.msra.mxu0 0.0
      %5480 = vmatprep.subr.mxu0 0.0
      %5481 = vmatpush1.msra.mxu0 0.0
      %5482 = vmatprep.subr.mxu0 0.0
      %5483 = vmatpush1.msra.mxu0 0.0
      %5484 = vmatprep.subr.mxu0 0.0
      %5485 = vmatpush1.msra.mxu0 0.0
      %5486 = vmatprep.subr.mxu0 0.0
      %5487 = vmatpush1.msra.mxu0 0.0
      %5488 = vmatprep.subr.mxu0 0.0
      %5489 = vmatpush1.msra.mxu0 0.0
      %5490 = vmatprep.subr.mxu0 0.0
      %5491 = vmatpush1.msra.mxu0 0.0
      %5492 = vmatprep.subr.mxu0 0.0
      %5493 = vmatpush1.msra.mxu0 0.0
      %5494 = vmatprep.subr.mxu0 0.0
      %5495 = vmatpush1.msra.mxu0 0.0
      %5496 = vmatprep.mubr.f32.mxu0 0.0
      %v5497 = vand.u32 %v5037, 4294901760
      %5498 = vmatmul.mubr.f32.gmra.mrb[0].mxu0 %v5497
      %v5499 = vpop.f32.mrb[0].mxu0
      %v5500 = vadd.f32 %v5426, %v5499
      %v5501 = vpop.f32.mrb[0].mxu0
      %v5502 = vadd.f32 %v5428, %v5501
      %5503 = vdwg.mxu0
      %v5504 = vand.u32 %v212, 4294901760
      %5505 = vmatprep.subr.mxu0 %v5504
      %v5506 = vand.u32 %v210, 4294901760
      %5507 = vmatpush1.msra.mxu0 %v5506
      %5508 = vmatprep.subr.mxu0 0.0
      %5509 = vmatpush1.msra.mxu0 0.0
      %5510 = vmatprep.subr.mxu0 0.0
      %5511 = vmatpush1.msra.mxu0 0.0
      %5512 = vmatprep.subr.mxu0 0.0
      %5513 = vmatpush1.msra.mxu0 0.0
      %5514 = vmatprep.subr.mxu0 0.0
      %5515 = vmatpush1.msra.mxu0 0.0
      %5516 = vmatprep.subr.mxu0 0.0
      %5517 = vmatpush1.msra.mxu0 0.0
      %5518 = vmatprep.subr.mxu0 0.0
      %5519 = vmatpush1.msra.mxu0 0.0
      %5520 = vmatprep.subr.mxu0 0.0
      %5521 = vmatpush1.msra.mxu0 0.0
      %5522 = vmatprep.subr.mxu0 0.0
      %5523 = vmatpush1.msra.mxu0 0.0
      %5524 = vmatprep.subr.mxu0 0.0
      %5525 = vmatpush1.msra.mxu0 0.0
      %5526 = vmatprep.subr.mxu0 0.0
      %5527 = vmatpush1.msra.mxu0 0.0
      %5528 = vmatprep.subr.mxu0 0.0
      %5529 = vmatpush1.msra.mxu0 0.0
      %5530 = vmatprep.subr.mxu0 0.0
      %5531 = vmatpush1.msra.mxu0 0.0
      %5532 = vmatprep.subr.mxu0 0.0
      %5533 = vmatpush1.msra.mxu0 0.0
      %5534 = vmatprep.subr.mxu0 0.0
      %5535 = vmatpush1.msra.mxu0 0.0
      %5536 = vmatprep.subr.mxu0 0.0
      %5537 = vmatpush1.msra.mxu0 0.0
      %5538 = vmatprep.subr.mxu0 0.0
      %5539 = vmatpush1.msra.mxu0 0.0
      %5540 = vmatprep.subr.mxu0 0.0
      %5541 = vmatpush1.msra.mxu0 0.0
      %5542 = vmatprep.subr.mxu0 0.0
      %5543 = vmatpush1.msra.mxu0 0.0
      %5544 = vmatprep.subr.mxu0 0.0
      %5545 = vmatpush1.msra.mxu0 0.0
      %5546 = vmatprep.subr.mxu0 0.0
      %5547 = vmatpush1.msra.mxu0 0.0
      %5548 = vmatprep.subr.mxu0 0.0
      %5549 = vmatpush1.msra.mxu0 0.0
      %5550 = vmatprep.subr.mxu0 0.0
      %5551 = vmatpush1.msra.mxu0 0.0
      %5552 = vmatprep.subr.mxu0 0.0
      %5553 = vmatpush1.msra.mxu0 0.0
      %5554 = vmatprep.subr.mxu0 0.0
      %5555 = vmatpush1.msra.mxu0 0.0
      %5556 = vmatprep.subr.mxu0 0.0
      %5557 = vmatpush1.msra.mxu0 0.0
      %5558 = vmatprep.subr.mxu0 0.0
      %5559 = vmatpush1.msra.mxu0 0.0
      %5560 = vmatprep.subr.mxu0 0.0
      %5561 = vmatpush1.msra.mxu0 0.0
      %5562 = vmatprep.subr.mxu0 0.0
      %5563 = vmatpush1.msra.mxu0 0.0
      %5564 = vmatprep.subr.mxu0 0.0
      %5565 = vmatpush1.msra.mxu0 0.0
      %5566 = vmatprep.subr.mxu0 0.0
      %5567 = vmatpush1.msra.mxu0 0.0
      %5568 = vmatprep.subr.mxu0 0.0
      %5569 = vmatpush1.msra.mxu0 0.0
      %5570 = vmatprep.mubr.f32.mxu0 0.0
      %v5571 = vand.u32 %v5037, 4294901760
      %v5572 = vsub.f32 %v5037, %v5571
      %v5573 = vand.u32 %v5572, 4294901760
      %v5574 = vsub.f32 %v5572, %v5573
      %v5575 = vand.u32 %v5574, 4294901760
      %5576 = vmatmul.mubr.f32.gmra.mrb[0].mxu0 %v5575
      %v5577 = vpop.f32.mrb[0].mxu0
      %v5578 = vadd.f32 0.0, %v5577
      %v5579 = vpop.f32.mrb[0].mxu0
      %v5580 = vadd.f32 0.0, %v5579
      %5581 = vdwg.mxu0
      %v5582 = vand.u32 %v212, 4294901760
      %v5583 = vsub.f32 %v212, %v5582
      %v5584 = vand.u32 %v5583, 4294901760
      %v5585 = vsub.f32 %v5583, %v5584
      %v5586 = vand.u32 %v5585, 4294901760
      %5587 = vmatprep.subr.mxu0 %v5586
      %v5588 = vand.u32 %v210, 4294901760
      %v5589 = vsub.f32 %v210, %v5588
      %v5590 = vand.u32 %v5589, 4294901760
      %v5591 = vsub.f32 %v5589, %v5590
      %v5592 = vand.u32 %v5591, 4294901760
      %5593 = vmatpush1.msra.mxu0 %v5592
      %5594 = vmatprep.subr.mxu0 0.0
      %5595 = vmatpush1.msra.mxu0 0.0
      %5596 = vmatprep.subr.mxu0 0.0
      %5597 = vmatpush1.msra.mxu0 0.0
      %5598 = vmatprep.subr.mxu0 0.0
      %5599 = vmatpush1.msra.mxu0 0.0
      %5600 = vmatprep.subr.mxu0 0.0
      %5601 = vmatpush1.msra.mxu0 0.0
      %5602 = vmatprep.subr.mxu0 0.0
      %5603 = vmatpush1.msra.mxu0 0.0
      %5604 = vmatprep.subr.mxu0 0.0
      %5605 = vmatpush1.msra.mxu0 0.0
      %5606 = vmatprep.subr.mxu0 0.0
      %5607 = vmatpush1.msra.mxu0 0.0
      %5608 = vmatprep.subr.mxu0 0.0
      %5609 = vmatpush1.msra.mxu0 0.0
      %5610 = vmatprep.subr.mxu0 0.0
      %5611 = vmatpush1.msra.mxu0 0.0
      %5612 = vmatprep.subr.mxu0 0.0
      %5613 = vmatpush1.msra.mxu0 0.0
      %5614 = vmatprep.subr.mxu0 0.0
      %5615 = vmatpush1.msra.mxu0 0.0
      %5616 = vmatprep.subr.mxu0 0.0
      %5617 = vmatpush1.msra.mxu0 0.0
      %5618 = vmatprep.subr.mxu0 0.0
      %5619 = vmatpush1.msra.mxu0 0.0
      %5620 = vmatprep.subr.mxu0 0.0
      %5621 = vmatpush1.msra.mxu0 0.0
      %5622 = vmatprep.subr.mxu0 0.0
      %5623 = vmatpush1.msra.mxu0 0.0
      %5624 = vmatprep.subr.mxu0 0.0
      %5625 = vmatpush1.msra.mxu0 0.0
      %5626 = vmatprep.subr.mxu0 0.0
      %5627 = vmatpush1.msra.mxu0 0.0
      %5628 = vmatprep.subr.mxu0 0.0
      %5629 = vmatpush1.msra.mxu0 0.0
      %5630 = vmatprep.subr.mxu0 0.0
      %5631 = vmatpush1.msra.mxu0 0.0
      %5632 = vmatprep.subr.mxu0 0.0
      %5633 = vmatpush1.msra.mxu0 0.0
      %5634 = vmatprep.subr.mxu0 0.0
      %5635 = vmatpush1.msra.mxu0 0.0
      %5636 = vmatprep.subr.mxu0 0.0
      %5637 = vmatpush1.msra.mxu0 0.0
      %5638 = vmatprep.subr.mxu0 0.0
      %5639 = vmatpush1.msra.mxu0 0.0
      %5640 = vmatprep.subr.mxu0 0.0
      %5641 = vmatpush1.msra.mxu0 0.0
      %5642 = vmatprep.subr.mxu0 0.0
      %5643 = vmatpush1.msra.mxu0 0.0
      %5644 = vmatprep.subr.mxu0 0.0
      %5645 = vmatpush1.msra.mxu0 0.0
      %5646 = vmatprep.subr.mxu0 0.0
      %5647 = vmatpush1.msra.mxu0 0.0
      %5648 = vmatprep.subr.mxu0 0.0
      %5649 = vmatpush1.msra.mxu0 0.0
      %5650 = vmatprep.subr.mxu0 0.0
      %5651 = vmatpush1.msra.mxu0 0.0
      %5652 = vmatprep.subr.mxu0 0.0
      %5653 = vmatpush1.msra.mxu0 0.0
      %5654 = vmatprep.subr.mxu0 0.0
      %5655 = vmatpush1.msra.mxu0 0.0
      %5656 = vmatprep.mubr.f32.mxu0 0.0
      %v5657 = vand.u32 %v5037, 4294901760
      %5658 = vmatmul.mubr.f32.gmra.mrb[0].mxu0 %v5657
      %v5659 = vpop.f32.mrb[0].mxu0
      %v5660 = vadd.f32 %v5578, %v5659
      %v5661 = vpop.f32.mrb[0].mxu0
      %v5662 = vadd.f32 %v5580, %v5661
      %5663 = vdwg.mxu0
      %v5664 = vand.u32 %v212, 4294901760
      %v5665 = vsub.f32 %v212, %v5664
      %5666 = vmatprep.subr.mxu0 %v5665
      %v5667 = vand.u32 %v210, 4294901760
      %v5668 = vsub.f32 %v210, %v5667
      %5669 = vmatpush1.msra.mxu0 %v5668
      %5670 = vmatprep.subr.mxu0 0.0
      %5671 = vmatpush1.msra.mxu0 0.0
      %5672 = vmatprep.subr.mxu0 0.0
      %5673 = vmatpush1.msra.mxu0 0.0
      %5674 = vmatprep.subr.mxu0 0.0
      %5675 = vmatpush1.msra.mxu0 0.0
      %5676 = vmatprep.subr.mxu0 0.0
      %5677 = vmatpush1.msra.mxu0 0.0
      %5678 = vmatprep.subr.mxu0 0.0
      %5679 = vmatpush1.msra.mxu0 0.0
      %5680 = vmatprep.subr.mxu0 0.0
      %5681 = vmatpush1.msra.mxu0 0.0
      %5682 = vmatprep.subr.mxu0 0.0
      %5683 = vmatpush1.msra.mxu0 0.0
      %5684 = vmatprep.subr.mxu0 0.0
      %5685 = vmatpush1.msra.mxu0 0.0
      %5686 = vmatprep.subr.mxu0 0.0
      %5687 = vmatpush1.msra.mxu0 0.0
      %5688 = vmatprep.subr.mxu0 0.0
      %5689 = vmatpush1.msra.mxu0 0.0
      %5690 = vmatprep.subr.mxu0 0.0
      %5691 = vmatpush1.msra.mxu0 0.0
      %5692 = vmatprep.subr.mxu0 0.0
      %5693 = vmatpush1.msra.mxu0 0.0
      %5694 = vmatprep.subr.mxu0 0.0
      %5695 = vmatpush1.msra.mxu0 0.0
      %5696 = vmatprep.subr.mxu0 0.0
      %5697 = vmatpush1.msra.mxu0 0.0
      %5698 = vmatprep.subr.mxu0 0.0
      %5699 = vmatpush1.msra.mxu0 0.0
      %5700 = vmatprep.subr.mxu0 0.0
      %5701 = vmatpush1.msra.mxu0 0.0
      %5702 = vmatprep.subr.mxu0 0.0
      %5703 = vmatpush1.msra.mxu0 0.0
      %5704 = vmatprep.subr.mxu0 0.0
      %5705 = vmatpush1.msra.mxu0 0.0
      %5706 = vmatprep.subr.mxu0 0.0
      %5707 = vmatpush1.msra.mxu0 0.0
      %5708 = vmatprep.subr.mxu0 0.0
      %5709 = vmatpush1.msra.mxu0 0.0
      %5710 = vmatprep.subr.mxu0 0.0
      %5711 = vmatpush1.msra.mxu0 0.0
      %5712 = vmatprep.subr.mxu0 0.0
      %5713 = vmatpush1.msra.mxu0 0.0
      %5714 = vmatprep.subr.mxu0 0.0
      %5715 = vmatpush1.msra.mxu0 0.0
      %5716 = vmatprep.subr.mxu0 0.0
      %5717 = vmatpush1.msra.mxu0 0.0
      %5718 = vmatprep.subr.mxu0 0.0
      %5719 = vmatpush1.msra.mxu0 0.0
      %5720 = vmatprep.subr.mxu0 0.0
      %5721 = vmatpush1.msra.mxu0 0.0
      %5722 = vmatprep.subr.mxu0 0.0
      %5723 = vmatpush1.msra.mxu0 0.0
      %5724 = vmatprep.subr.mxu0 0.0
      %5725 = vmatpush1.msra.mxu0 0.0
      %5726 = vmatprep.subr.mxu0 0.0
      %5727 = vmatpush1.msra.mxu0 0.0
      %5728 = vmatprep.subr.mxu0 0.0
      %5729 = vmatpush1.msra.mxu0 0.0
      %5730 = vmatprep.subr.mxu0 0.0
      %5731 = vmatpush1.msra.mxu0 0.0
      %5732 = vmatprep.mubr.f32.mxu0 0.0
      %v5733 = vand.u32 %v5037, 4294901760
      %v5734 = vsub.f32 %v5037, %v5733
      %5735 = vmatmul.mubr.f32.gmra.mrb[0].mxu0 %v5734
      %v5736 = vpop.f32.mrb[0].mxu0
      %v5737 = vadd.f32 %v5660, %v5736
      %v5738 = vpop.f32.mrb[0].mxu0
      %v5739 = vadd.f32 %v5662, %v5738
      %5740 = vdwg.mxu0
      %v5741 = vand.u32 %v212, 4294901760
      %5742 = vmatprep.subr.mxu0 %v5741
      %v5743 = vand.u32 %v210, 4294901760
      %5744 = vmatpush1.msra.mxu0 %v5743
      %5745 = vmatprep.subr.mxu0 0.0
      %5746 = vmatpush1.msra.mxu0 0.0
      %5747 = vmatprep.subr.mxu0 0.0
      %5748 = vmatpush1.msra.mxu0 0.0
      %5749 = vmatprep.subr.mxu0 0.0
      %5750 = vmatpush1.msra.mxu0 0.0
      %5751 = vmatprep.subr.mxu0 0.0
      %5752 = vmatpush1.msra.mxu0 0.0
      %5753 = vmatprep.subr.mxu0 0.0
      %5754 = vmatpush1.msra.mxu0 0.0
      %5755 = vmatprep.subr.mxu0 0.0
      %5756 = vmatpush1.msra.mxu0 0.0
      %5757 = vmatprep.subr.mxu0 0.0
      %5758 = vmatpush1.msra.mxu0 0.0
      %5759 = vmatprep.subr.mxu0 0.0
      %5760 = vmatpush1.msra.mxu0 0.0
      %5761 = vmatprep.subr.mxu0 0.0
      %5762 = vmatpush1.msra.mxu0 0.0
      %5763 = vmatprep.subr.mxu0 0.0
      %5764 = vmatpush1.msra.mxu0 0.0
      %5765 = vmatprep.subr.mxu0 0.0
      %5766 = vmatpush1.msra.mxu0 0.0
      %5767 = vmatprep.subr.mxu0 0.0
      %5768 = vmatpush1.msra.mxu0 0.0
      %5769 = vmatprep.subr.mxu0 0.0
      %5770 = vmatpush1.msra.mxu0 0.0
      %5771 = vmatprep.subr.mxu0 0.0
      %5772 = vmatpush1.msra.mxu0 0.0
      %5773 = vmatprep.subr.mxu0 0.0
      %5774 = vmatpush1.msra.mxu0 0.0
      %5775 = vmatprep.subr.mxu0 0.0
      %5776 = vmatpush1.msra.mxu0 0.0
      %5777 = vmatprep.subr.mxu0 0.0
      %5778 = vmatpush1.msra.mxu0 0.0
      %5779 = vmatprep.subr.mxu0 0.0
      %5780 = vmatpush1.msra.mxu0 0.0
      %5781 = vmatprep.subr.mxu0 0.0
      %5782 = vmatpush1.msra.mxu0 0.0
      %5783 = vmatprep.subr.mxu0 0.0
      %5784 = vmatpush1.msra.mxu0 0.0
      %5785 = vmatprep.subr.mxu0 0.0
      %5786 = vmatpush1.msra.mxu0 0.0
      %5787 = vmatprep.subr.mxu0 0.0
      %5788 = vmatpush1.msra.mxu0 0.0
      %5789 = vmatprep.subr.mxu0 0.0
      %5790 = vmatpush1.msra.mxu0 0.0
      %5791 = vmatprep.subr.mxu0 0.0
      %5792 = vmatpush1.msra.mxu0 0.0
      %5793 = vmatprep.subr.mxu0 0.0
      %5794 = vmatpush1.msra.mxu0 0.0
      %5795 = vmatprep.subr.mxu0 0.0
      %5796 = vmatpush1.msra.mxu0 0.0
      %5797 = vmatprep.subr.mxu0 0.0
      %5798 = vmatpush1.msra.mxu0 0.0
      %5799 = vmatprep.subr.mxu0 0.0
      %5800 = vmatpush1.msra.mxu0 0.0
      %5801 = vmatprep.subr.mxu0 0.0
      %5802 = vmatpush1.msra.mxu0 0.0
      %5803 = vmatprep.subr.mxu0 0.0
      %5804 = vmatpush1.msra.mxu0 0.0
      %5805 = vmatprep.subr.mxu0 0.0
      %5806 = vmatpush1.msra.mxu0 0.0
      %5807 = vmatprep.mubr.f32.mxu0 0.0
      %v5808 = vand.u32 %v5037, 4294901760
      %v5809 = vsub.f32 %v5037, %v5808
      %v5810 = vand.u32 %v5809, 4294901760
      %5811 = vmatmul.mubr.f32.gmra.mrb[0].mxu0 %v5810
      %v5812 = vpop.f32.mrb[0].mxu0
      %v5813 = vadd.f32 %v5737, %v5812
      %v5814 = vpop.f32.mrb[0].mxu0
      %v5815 = vadd.f32 %v5739, %v5814
      %5816 = vdwg.mxu0
      %v5817 = vand.u32 %v212, 4294901760
      %v5818 = vsub.f32 %v212, %v5817
      %v5819 = vand.u32 %v5818, 4294901760
      %5820 = vmatprep.subr.mxu0 %v5819
      %v5821 = vand.u32 %v210, 4294901760
      %v5822 = vsub.f32 %v210, %v5821
      %v5823 = vand.u32 %v5822, 4294901760
      %5824 = vmatpush1.msra.mxu0 %v5823
      %5825 = vmatprep.subr.mxu0 0.0
      %5826 = vmatpush1.msra.mxu0 0.0
      %5827 = vmatprep.subr.mxu0 0.0
      %5828 = vmatpush1.msra.mxu0 0.0
      %5829 = vmatprep.subr.mxu0 0.0
      %5830 = vmatpush1.msra.mxu0 0.0
      %5831 = vmatprep.subr.mxu0 0.0
      %5832 = vmatpush1.msra.mxu0 0.0
      %5833 = vmatprep.subr.mxu0 0.0
      %5834 = vmatpush1.msra.mxu0 0.0
      %5835 = vmatprep.subr.mxu0 0.0
      %5836 = vmatpush1.msra.mxu0 0.0
      %5837 = vmatprep.subr.mxu0 0.0
      %5838 = vmatpush1.msra.mxu0 0.0
      %5839 = vmatprep.subr.mxu0 0.0
      %5840 = vmatpush1.msra.mxu0 0.0
      %5841 = vmatprep.subr.mxu0 0.0
      %5842 = vmatpush1.msra.mxu0 0.0
      %5843 = vmatprep.subr.mxu0 0.0
      %5844 = vmatpush1.msra.mxu0 0.0
      %5845 = vmatprep.subr.mxu0 0.0
      %5846 = vmatpush1.msra.mxu0 0.0
      %5847 = vmatprep.subr.mxu0 0.0
      %5848 = vmatpush1.msra.mxu0 0.0
      %5849 = vmatprep.subr.mxu0 0.0
      %5850 = vmatpush1.msra.mxu0 0.0
      %5851 = vmatprep.subr.mxu0 0.0
      %5852 = vmatpush1.msra.mxu0 0.0
      %5853 = vmatprep.subr.mxu0 0.0
      %5854 = vmatpush1.msra.mxu0 0.0
      %5855 = vmatprep.subr.mxu0 0.0
      %5856 = vmatpush1.msra.mxu0 0.0
      %5857 = vmatprep.subr.mxu0 0.0
      %5858 = vmatpush1.msra.mxu0 0.0
      %5859 = vmatprep.subr.mxu0 0.0
      %5860 = vmatpush1.msra.mxu0 0.0
      %5861 = vmatprep.subr.mxu0 0.0
      %5862 = vmatpush1.msra.mxu0 0.0
      %5863 = vmatprep.subr.mxu0 0.0
      %5864 = vmatpush1.msra.mxu0 0.0
      %5865 = vmatprep.subr.mxu0 0.0
      %5866 = vmatpush1.msra.mxu0 0.0
      %5867 = vmatprep.subr.mxu0 0.0
      %5868 = vmatpush1.msra.mxu0 0.0
      %5869 = vmatprep.subr.mxu0 0.0
      %5870 = vmatpush1.msra.mxu0 0.0
      %5871 = vmatprep.subr.mxu0 0.0
      %5872 = vmatpush1.msra.mxu0 0.0
      %5873 = vmatprep.subr.mxu0 0.0
      %5874 = vmatpush1.msra.mxu0 0.0
      %5875 = vmatprep.subr.mxu0 0.0
      %5876 = vmatpush1.msra.mxu0 0.0
      %5877 = vmatprep.subr.mxu0 0.0
      %5878 = vmatpush1.msra.mxu0 0.0
      %5879 = vmatprep.subr.mxu0 0.0
      %5880 = vmatpush1.msra.mxu0 0.0
      %5881 = vmatprep.subr.mxu0 0.0
      %5882 = vmatpush1.msra.mxu0 0.0
      %5883 = vmatprep.subr.mxu0 0.0
      %5884 = vmatpush1.msra.mxu0 0.0
      %5885 = vmatprep.subr.mxu0 0.0
      %5886 = vmatpush1.msra.mxu0 0.0
      %5887 = vmatprep.mubr.f32.mxu0 0.0
      %v5888 = vand.u32 %v5037, 4294901760
      %5889 = vmatmul.mubr.f32.gmra.mrb[0].mxu0 %v5888
      %v5890 = vpop.f32.mrb[0].mxu0
      %v5891 = vadd.f32 %v5813, %v5890
      %v5892 = vpop.f32.mrb[0].mxu0
      %v5893 = vadd.f32 %v5815, %v5892
      %5894 = vdwg.mxu0
      %v5895 = vand.u32 %v212, 4294901760
      %5896 = vmatprep.subr.mxu0 %v5895
      %v5897 = vand.u32 %v210, 4294901760
      %5898 = vmatpush1.msra.mxu0 %v5897
      %5899 = vmatprep.subr.mxu0 0.0
      %5900 = vmatpush1.msra.mxu0 0.0
      %5901 = vmatprep.subr.mxu0 0.0
      %5902 = vmatpush1.msra.mxu0 0.0
      %5903 = vmatprep.subr.mxu0 0.0
      %5904 = vmatpush1.msra.mxu0 0.0
      %5905 = vmatprep.subr.mxu0 0.0
      %5906 = vmatpush1.msra.mxu0 0.0
      %5907 = vmatprep.subr.mxu0 0.0
      %5908 = vmatpush1.msra.mxu0 0.0
      %5909 = vmatprep.subr.mxu0 0.0
      %5910 = vmatpush1.msra.mxu0 0.0
      %5911 = vmatprep.subr.mxu0 0.0
      %5912 = vmatpush1.msra.mxu0 0.0
      %5913 = vmatprep.subr.mxu0 0.0
      %5914 = vmatpush1.msra.mxu0 0.0
      %5915 = vmatprep.subr.mxu0 0.0
      %5916 = vmatpush1.msra.mxu0 0.0
      %5917 = vmatprep.subr.mxu0 0.0
      %5918 = vmatpush1.msra.mxu0 0.0
      %5919 = vmatprep.subr.mxu0 0.0
      %5920 = vmatpush1.msra.mxu0 0.0
      %5921 = vmatprep.subr.mxu0 0.0
      %5922 = vmatpush1.msra.mxu0 0.0
      %5923 = vmatprep.subr.mxu0 0.0
      %5924 = vmatpush1.msra.mxu0 0.0
      %5925 = vmatprep.subr.mxu0 0.0
      %5926 = vmatpush1.msra.mxu0 0.0
      %5927 = vmatprep.subr.mxu0 0.0
      %5928 = vmatpush1.msra.mxu0 0.0
      %5929 = vmatprep.subr.mxu0 0.0
      %5930 = vmatpush1.msra.mxu0 0.0
      %5931 = vmatprep.subr.mxu0 0.0
      %5932 = vmatpush1.msra.mxu0 0.0
      %5933 = vmatprep.subr.mxu0 0.0
      %5934 = vmatpush1.msra.mxu0 0.0
      %5935 = vmatprep.subr.mxu0 0.0
      %5936 = vmatpush1.msra.mxu0 0.0
      %5937 = vmatprep.subr.mxu0 0.0
      %5938 = vmatpush1.msra.mxu0 0.0
      %5939 = vmatprep.subr.mxu0 0.0
      %5940 = vmatpush1.msra.mxu0 0.0
      %5941 = vmatprep.subr.mxu0 0.0
      %5942 = vmatpush1.msra.mxu0 0.0
      %5943 = vmatprep.subr.mxu0 0.0
      %5944 = vmatpush1.msra.mxu0 0.0
      %5945 = vmatprep.subr.mxu0 0.0
      %5946 = vmatpush1.msra.mxu0 0.0
      %5947 = vmatprep.subr.mxu0 0.0
      %5948 = vmatpush1.msra.mxu0 0.0
      %5949 = vmatprep.subr.mxu0 0.0
      %5950 = vmatpush1.msra.mxu0 0.0
      %5951 = vmatprep.subr.mxu0 0.0
      %5952 = vmatpush1.msra.mxu0 0.0
      %5953 = vmatprep.subr.mxu0 0.0
      %5954 = vmatpush1.msra.mxu0 0.0
      %5955 = vmatprep.subr.mxu0 0.0
      %5956 = vmatpush1.msra.mxu0 0.0
      %5957 = vmatprep.subr.mxu0 0.0
      %5958 = vmatpush1.msra.mxu0 0.0
      %5959 = vmatprep.subr.mxu0 0.0
      %5960 = vmatpush1.msra.mxu0 0.0
      %5961 = vmatprep.mubr.f32.mxu0 0.0
      %v5962 = vand.u32 %v5037, 4294901760
      %5963 = vmatmul.mubr.f32.gmra.mrb[0].mxu0 %v5962
      %v5964 = vpop.f32.mrb[0].mxu0
      %v5965 = vadd.f32 %v5891, %v5964
      %v5966 = vpop.f32.mrb[0].mxu0
      %v5967 = vadd.f32 %v5893, %v5966
      %5968 = vdwg.mxu0
      %vm5969 = vcmp.eq.s32.totalorder %v195, 5
      %v5970 = vsel %vm5969, 1, 0
      %v5971 = vlaneseq
      %v5972 = vshrl.u32 %v5971, 7
      %v5973 = vsub.s32 0, %v5972
      %v5974 = vrot.slane %v5970, %v5973
      %v5975 = vlaneseq
      %v5976 = vshrl.u32 %v5975, 7
      %v5977 = vsub.s32 1, %v5976
      %v5978 = vrot.slane %v5970, %v5977
      %v5979 = vlaneseq
      %v5980 = vshrl.u32 %v5979, 7
      %v5981 = vsub.s32 2, %v5980
      %v5982 = vrot.slane %v5970, %v5981
      %v5983 = vlaneseq
      %v5984 = vshrl.u32 %v5983, 7
      %v5985 = vsub.s32 3, %v5984
      %v5986 = vrot.slane %v5970, %v5985
      %vm5987 = vcmp.eq.s32.totalorder %v5974, 1
      %vm5988 = vcmp.eq.s32.totalorder %v5978, 1
      %vm5989 = vcmp.eq.s32.totalorder %v5982, 1
      %vm5990 = vcmp.eq.s32.totalorder %v5986, 1
      %v5991 = vsel %vm5987, %v5500, 0.0
      %v5992 = vsel %vm5988, %v5502, 0.0
      %v5993 = vsel %vm5989, %v5965, 0.0
      %v5994 = vsel %vm5990, %v5967, 0.0
      %v5995 = vadd.f32 %v5030, %v5991
      %v5996 = vadd.f32 %v5031, %v5992
      %v5997 = vadd.f32 %v5032, %v5993
      %v5998 = vadd.f32 %v5033, %v5994
      %s5999 = scalar_lea.vmem %s0, 48
      %v6000 = vld [vmem:[%s5999] sm:$0xff]
      %v6002 = vsel %vm201, %v6000, 0
      %v6004 = vand.u32 %v208, 4294901760
      %6005 = vmatprep.subr.mxu0 %v6004
      %v6006 = vand.u32 %v206, 4294901760
      %6007 = vmatpush1.msra.mxu0 %v6006
      %6008 = vmatprep.subr.mxu0 0.0
      %6009 = vmatpush1.msra.mxu0 0.0
      %6010 = vmatprep.subr.mxu0 0.0
      %6011 = vmatpush1.msra.mxu0 0.0
      %6012 = vmatprep.subr.mxu0 0.0
      %6013 = vmatpush1.msra.mxu0 0.0
      %6014 = vmatprep.subr.mxu0 0.0
      %6015 = vmatpush1.msra.mxu0 0.0
      %6016 = vmatprep.subr.mxu0 0.0
      %6017 = vmatpush1.msra.mxu0 0.0
      %6018 = vmatprep.subr.mxu0 0.0
      %6019 = vmatpush1.msra.mxu0 0.0
      %6020 = vmatprep.subr.mxu0 0.0
      %6021 = vmatpush1.msra.mxu0 0.0
      %6022 = vmatprep.subr.mxu0 0.0
      %6023 = vmatpush1.msra.mxu0 0.0
      %6024 = vmatprep.subr.mxu0 0.0
      %6025 = vmatpush1.msra.mxu0 0.0
      %6026 = vmatprep.subr.mxu0 0.0
      %6027 = vmatpush1.msra.mxu0 0.0
      %6028 = vmatprep.subr.mxu0 0.0
      %6029 = vmatpush1.msra.mxu0 0.0
      %6030 = vmatprep.subr.mxu0 0.0
      %6031 = vmatpush1.msra.mxu0 0.0
      %6032 = vmatprep.subr.mxu0 0.0
      %6033 = vmatpush1.msra.mxu0 0.0
      %6034 = vmatprep.subr.mxu0 0.0
      %6035 = vmatpush1.msra.mxu0 0.0
      %6036 = vmatprep.subr.mxu0 0.0
      %6037 = vmatpush1.msra.mxu0 0.0
      %6038 = vmatprep.subr.mxu0 0.0
      %6039 = vmatpush1.msra.mxu0 0.0
      %6040 = vmatprep.subr.mxu0 0.0
      %6041 = vmatpush1.msra.mxu0 0.0
      %6042 = vmatprep.subr.mxu0 0.0
      %6043 = vmatpush1.msra.mxu0 0.0
      %6044 = vmatprep.subr.mxu0 0.0
      %6045 = vmatpush1.msra.mxu0 0.0
      %6046 = vmatprep.subr.mxu0 0.0
      %6047 = vmatpush1.msra.mxu0 0.0
      %6048 = vmatprep.subr.mxu0 0.0
      %6049 = vmatpush1.msra.mxu0 0.0
      %6050 = vmatprep.subr.mxu0 0.0
      %6051 = vmatpush1.msra.mxu0 0.0
      %6052 = vmatprep.subr.mxu0 0.0
      %6053 = vmatpush1.msra.mxu0 0.0
      %6054 = vmatprep.subr.mxu0 0.0
      %6055 = vmatpush1.msra.mxu0 0.0
      %6056 = vmatprep.subr.mxu0 0.0
      %6057 = vmatpush1.msra.mxu0 0.0
      %6058 = vmatprep.subr.mxu0 0.0
      %6059 = vmatpush1.msra.mxu0 0.0
      %6060 = vmatprep.subr.mxu0 0.0
      %6061 = vmatpush1.msra.mxu0 0.0
      %6062 = vmatprep.subr.mxu0 0.0
      %6063 = vmatpush1.msra.mxu0 0.0
      %6064 = vmatprep.subr.mxu0 0.0
      %6065 = vmatpush1.msra.mxu0 0.0
      %6066 = vmatprep.subr.mxu0 0.0
      %6067 = vmatpush1.msra.mxu0 0.0
      %6068 = vmatprep.subr.mxu0 0.0
      %6069 = vmatpush1.msra.mxu0 0.0
      %6070 = vmatprep.mubr.f32.mxu0 0.0
      %v6071 = vand.u32 %v6002, 4294901760
      %v6072 = vsub.f32 %v6002, %v6071
      %v6073 = vand.u32 %v6072, 4294901760
      %v6074 = vsub.f32 %v6072, %v6073
      %v6075 = vand.u32 %v6074, 4294901760
      %6076 = vmatmul.mubr.f32.gmra.mrb[0].mxu0 %v6075
      %v6077 = vpop.f32.mrb[0].mxu0
      %v6078 = vadd.f32 0.0, %v6077
      %v6079 = vpop.f32.mrb[0].mxu0
      %v6080 = vadd.f32 0.0, %v6079
      %6081 = vdwg.mxu0
      %v6082 = vand.u32 %v208, 4294901760
      %v6083 = vsub.f32 %v208, %v6082
      %v6084 = vand.u32 %v6083, 4294901760
      %v6085 = vsub.f32 %v6083, %v6084
      %v6086 = vand.u32 %v6085, 4294901760
      %6087 = vmatprep.subr.mxu0 %v6086
      %v6088 = vand.u32 %v206, 4294901760
      %v6089 = vsub.f32 %v206, %v6088
      %v6090 = vand.u32 %v6089, 4294901760
      %v6091 = vsub.f32 %v6089, %v6090
      %v6092 = vand.u32 %v6091, 4294901760
      %6093 = vmatpush1.msra.mxu0 %v6092
      %6094 = vmatprep.subr.mxu0 0.0
      %6095 = vmatpush1.msra.mxu0 0.0
      %6096 = vmatprep.subr.mxu0 0.0
      %6097 = vmatpush1.msra.mxu0 0.0
      %6098 = vmatprep.subr.mxu0 0.0
      %6099 = vmatpush1.msra.mxu0 0.0
      %6100 = vmatprep.subr.mxu0 0.0
      %6101 = vmatpush1.msra.mxu0 0.0
      %6102 = vmatprep.subr.mxu0 0.0
      %6103 = vmatpush1.msra.mxu0 0.0
      %6104 = vmatprep.subr.mxu0 0.0
      %6105 = vmatpush1.msra.mxu0 0.0
      %6106 = vmatprep.subr.mxu0 0.0
      %6107 = vmatpush1.msra.mxu0 0.0
      %6108 = vmatprep.subr.mxu0 0.0
      %6109 = vmatpush1.msra.mxu0 0.0
      %6110 = vmatprep.subr.mxu0 0.0
      %6111 = vmatpush1.msra.mxu0 0.0
      %6112 = vmatprep.subr.mxu0 0.0
      %6113 = vmatpush1.msra.mxu0 0.0
      %6114 = vmatprep.subr.mxu0 0.0
      %6115 = vmatpush1.msra.mxu0 0.0
      %6116 = vmatprep.subr.mxu0 0.0
      %6117 = vmatpush1.msra.mxu0 0.0
      %6118 = vmatprep.subr.mxu0 0.0
      %6119 = vmatpush1.msra.mxu0 0.0
      %6120 = vmatprep.subr.mxu0 0.0
      %6121 = vmatpush1.msra.mxu0 0.0
      %6122 = vmatprep.subr.mxu0 0.0
      %6123 = vmatpush1.msra.mxu0 0.0
      %6124 = vmatprep.subr.mxu0 0.0
      %6125 = vmatpush1.msra.mxu0 0.0
      %6126 = vmatprep.subr.mxu0 0.0
      %6127 = vmatpush1.msra.mxu0 0.0
      %6128 = vmatprep.subr.mxu0 0.0
      %6129 = vmatpush1.msra.mxu0 0.0
      %6130 = vmatprep.subr.mxu0 0.0
      %6131 = vmatpush1.msra.mxu0 0.0
      %6132 = vmatprep.subr.mxu0 0.0
      %6133 = vmatpush1.msra.mxu0 0.0
      %6134 = vmatprep.subr.mxu0 0.0
      %6135 = vmatpush1.msra.mxu0 0.0
      %6136 = vmatprep.subr.mxu0 0.0
      %6137 = vmatpush1.msra.mxu0 0.0
      %6138 = vmatprep.subr.mxu0 0.0
      %6139 = vmatpush1.msra.mxu0 0.0
      %6140 = vmatprep.subr.mxu0 0.0
      %6141 = vmatpush1.msra.mxu0 0.0
      %6142 = vmatprep.subr.mxu0 0.0
      %6143 = vmatpush1.msra.mxu0 0.0
      %6144 = vmatprep.subr.mxu0 0.0
      %6145 = vmatpush1.msra.mxu0 0.0
      %6146 = vmatprep.subr.mxu0 0.0
      %6147 = vmatpush1.msra.mxu0 0.0
      %6148 = vmatprep.subr.mxu0 0.0
      %6149 = vmatpush1.msra.mxu0 0.0
      %6150 = vmatprep.subr.mxu0 0.0
      %6151 = vmatpush1.msra.mxu0 0.0
      %6152 = vmatprep.subr.mxu0 0.0
      %6153 = vmatpush1.msra.mxu0 0.0
      %6154 = vmatprep.subr.mxu0 0.0
      %6155 = vmatpush1.msra.mxu0 0.0
      %6156 = vmatprep.mubr.f32.mxu0 0.0
      %v6157 = vand.u32 %v6002, 4294901760
      %6158 = vmatmul.mubr.f32.gmra.mrb[0].mxu0 %v6157
      %v6159 = vpop.f32.mrb[0].mxu0
      %v6160 = vadd.f32 %v6078, %v6159
      %v6161 = vpop.f32.mrb[0].mxu0
      %v6162 = vadd.f32 %v6080, %v6161
      %6163 = vdwg.mxu0
      %v6164 = vand.u32 %v208, 4294901760
      %v6165 = vsub.f32 %v208, %v6164
      %6166 = vmatprep.subr.mxu0 %v6165
      %v6167 = vand.u32 %v206, 4294901760
      %v6168 = vsub.f32 %v206, %v6167
      %6169 = vmatpush1.msra.mxu0 %v6168
      %6170 = vmatprep.subr.mxu0 0.0
      %6171 = vmatpush1.msra.mxu0 0.0
      %6172 = vmatprep.subr.mxu0 0.0
      %6173 = vmatpush1.msra.mxu0 0.0
      %6174 = vmatprep.subr.mxu0 0.0
      %6175 = vmatpush1.msra.mxu0 0.0
      %6176 = vmatprep.subr.mxu0 0.0
      %6177 = vmatpush1.msra.mxu0 0.0
      %6178 = vmatprep.subr.mxu0 0.0
      %6179 = vmatpush1.msra.mxu0 0.0
      %6180 = vmatprep.subr.mxu0 0.0
      %6181 = vmatpush1.msra.mxu0 0.0
      %6182 = vmatprep.subr.mxu0 0.0
      %6183 = vmatpush1.msra.mxu0 0.0
      %6184 = vmatprep.subr.mxu0 0.0
      %6185 = vmatpush1.msra.mxu0 0.0
      %6186 = vmatprep.subr.mxu0 0.0
      %6187 = vmatpush1.msra.mxu0 0.0
      %6188 = vmatprep.subr.mxu0 0.0
      %6189 = vmatpush1.msra.mxu0 0.0
      %6190 = vmatprep.subr.mxu0 0.0
      %6191 = vmatpush1.msra.mxu0 0.0
      %6192 = vmatprep.subr.mxu0 0.0
      %6193 = vmatpush1.msra.mxu0 0.0
      %6194 = vmatprep.subr.mxu0 0.0
      %6195 = vmatpush1.msra.mxu0 0.0
      %6196 = vmatprep.subr.mxu0 0.0
      %6197 = vmatpush1.msra.mxu0 0.0
      %6198 = vmatprep.subr.mxu0 0.0
      %6199 = vmatpush1.msra.mxu0 0.0
      %6200 = vmatprep.subr.mxu0 0.0
      %6201 = vmatpush1.msra.mxu0 0.0
      %6202 = vmatprep.subr.mxu0 0.0
      %6203 = vmatpush1.msra.mxu0 0.0
      %6204 = vmatprep.subr.mxu0 0.0
      %6205 = vmatpush1.msra.mxu0 0.0
      %6206 = vmatprep.subr.mxu0 0.0
      %6207 = vmatpush1.msra.mxu0 0.0
      %6208 = vmatprep.subr.mxu0 0.0
      %6209 = vmatpush1.msra.mxu0 0.0
      %6210 = vmatprep.subr.mxu0 0.0
      %6211 = vmatpush1.msra.mxu0 0.0
      %6212 = vmatprep.subr.mxu0 0.0
      %6213 = vmatpush1.msra.mxu0 0.0
      %6214 = vmatprep.subr.mxu0 0.0
      %6215 = vmatpush1.msra.mxu0 0.0
      %6216 = vmatprep.subr.mxu0 0.0
      %6217 = vmatpush1.msra.mxu0 0.0
      %6218 = vmatprep.subr.mxu0 0.0
      %6219 = vmatpush1.msra.mxu0 0.0
      %6220 = vmatprep.subr.mxu0 0.0
      %6221 = vmatpush1.msra.mxu0 0.0
      %6222 = vmatprep.subr.mxu0 0.0
      %6223 = vmatpush1.msra.mxu0 0.0
      %6224 = vmatprep.subr.mxu0 0.0
      %6225 = vmatpush1.msra.mxu0 0.0
      %6226 = vmatprep.subr.mxu0 0.0
      %6227 = vmatpush1.msra.mxu0 0.0
      %6228 = vmatprep.subr.mxu0 0.0
      %6229 = vmatpush1.msra.mxu0 0.0
      %6230 = vmatprep.subr.mxu0 0.0
      %6231 = vmatpush1.msra.mxu0 0.0
      %6232 = vmatprep.mubr.f32.mxu0 0.0
      %v6233 = vand.u32 %v6002, 4294901760
      %v6234 = vsub.f32 %v6002, %v6233
      %6235 = vmatmul.mubr.f32.gmra.mrb[0].mxu0 %v6234
      %v6236 = vpop.f32.mrb[0].mxu0
      %v6237 = vadd.f32 %v6160, %v6236
      %v6238 = vpop.f32.mrb[0].mxu0
      %v6239 = vadd.f32 %v6162, %v6238
      %6240 = vdwg.mxu0
      %v6241 = vand.u32 %v208, 4294901760
      %6242 = vmatprep.subr.mxu0 %v6241
      %v6243 = vand.u32 %v206, 4294901760
      %6244 = vmatpush1.msra.mxu0 %v6243
      %6245 = vmatprep.subr.mxu0 0.0
      %6246 = vmatpush1.msra.mxu0 0.0
      %6247 = vmatprep.subr.mxu0 0.0
      %6248 = vmatpush1.msra.mxu0 0.0
      %6249 = vmatprep.subr.mxu0 0.0
      %6250 = vmatpush1.msra.mxu0 0.0
      %6251 = vmatprep.subr.mxu0 0.0
      %6252 = vmatpush1.msra.mxu0 0.0
      %6253 = vmatprep.subr.mxu0 0.0
      %6254 = vmatpush1.msra.mxu0 0.0
      %6255 = vmatprep.subr.mxu0 0.0
      %6256 = vmatpush1.msra.mxu0 0.0
      %6257 = vmatprep.subr.mxu0 0.0
      %6258 = vmatpush1.msra.mxu0 0.0
      %6259 = vmatprep.subr.mxu0 0.0
      %6260 = vmatpush1.msra.mxu0 0.0
      %6261 = vmatprep.subr.mxu0 0.0
      %6262 = vmatpush1.msra.mxu0 0.0
      %6263 = vmatprep.subr.mxu0 0.0
      %6264 = vmatpush1.msra.mxu0 0.0
      %6265 = vmatprep.subr.mxu0 0.0
      %6266 = vmatpush1.msra.mxu0 0.0
      %6267 = vmatprep.subr.mxu0 0.0
      %6268 = vmatpush1.msra.mxu0 0.0
      %6269 = vmatprep.subr.mxu0 0.0
      %6270 = vmatpush1.msra.mxu0 0.0
      %6271 = vmatprep.subr.mxu0 0.0
      %6272 = vmatpush1.msra.mxu0 0.0
      %6273 = vmatprep.subr.mxu0 0.0
      %6274 = vmatpush1.msra.mxu0 0.0
      %6275 = vmatprep.subr.mxu0 0.0
      %6276 = vmatpush1.msra.mxu0 0.0
      %6277 = vmatprep.subr.mxu0 0.0
      %6278 = vmatpush1.msra.mxu0 0.0
      %6279 = vmatprep.subr.mxu0 0.0
      %6280 = vmatpush1.msra.mxu0 0.0
      %6281 = vmatprep.subr.mxu0 0.0
      %6282 = vmatpush1.msra.mxu0 0.0
      %6283 = vmatprep.subr.mxu0 0.0
      %6284 = vmatpush1.msra.mxu0 0.0
      %6285 = vmatprep.subr.mxu0 0.0
      %6286 = vmatpush1.msra.mxu0 0.0
      %6287 = vmatprep.subr.mxu0 0.0
      %6288 = vmatpush1.msra.mxu0 0.0
      %6289 = vmatprep.subr.mxu0 0.0
      %6290 = vmatpush1.msra.mxu0 0.0
      %6291 = vmatprep.subr.mxu0 0.0
      %6292 = vmatpush1.msra.mxu0 0.0
      %6293 = vmatprep.subr.mxu0 0.0
      %6294 = vmatpush1.msra.mxu0 0.0
      %6295 = vmatprep.subr.mxu0 0.0
      %6296 = vmatpush1.msra.mxu0 0.0
      %6297 = vmatprep.subr.mxu0 0.0
      %6298 = vmatpush1.msra.mxu0 0.0
      %6299 = vmatprep.subr.mxu0 0.0
      %6300 = vmatpush1.msra.mxu0 0.0
      %6301 = vmatprep.subr.mxu0 0.0
      %6302 = vmatpush1.msra.mxu0 0.0
      %6303 = vmatprep.subr.mxu0 0.0
      %6304 = vmatpush1.msra.mxu0 0.0
      %6305 = vmatprep.subr.mxu0 0.0
      %6306 = vmatpush1.msra.mxu0 0.0
      %6307 = vmatprep.mubr.f32.mxu0 0.0
      %v6308 = vand.u32 %v6002, 4294901760
      %v6309 = vsub.f32 %v6002, %v6308
      %v6310 = vand.u32 %v6309, 4294901760
      %6311 = vmatmul.mubr.f32.gmra.mrb[0].mxu0 %v6310
      %v6312 = vpop.f32.mrb[0].mxu0
      %v6313 = vadd.f32 %v6237, %v6312
      %v6314 = vpop.f32.mrb[0].mxu0
      %v6315 = vadd.f32 %v6239, %v6314
      %6316 = vdwg.mxu0
      %v6317 = vand.u32 %v208, 4294901760
      %v6318 = vsub.f32 %v208, %v6317
      %v6319 = vand.u32 %v6318, 4294901760
      %6320 = vmatprep.subr.mxu0 %v6319
      %v6321 = vand.u32 %v206, 4294901760
      %v6322 = vsub.f32 %v206, %v6321
      %v6323 = vand.u32 %v6322, 4294901760
      %6324 = vmatpush1.msra.mxu0 %v6323
      %6325 = vmatprep.subr.mxu0 0.0
      %6326 = vmatpush1.msra.mxu0 0.0
      %6327 = vmatprep.subr.mxu0 0.0
      %6328 = vmatpush1.msra.mxu0 0.0
      %6329 = vmatprep.subr.mxu0 0.0
      %6330 = vmatpush1.msra.mxu0 0.0
      %6331 = vmatprep.subr.mxu0 0.0
      %6332 = vmatpush1.msra.mxu0 0.0
      %6333 = vmatprep.subr.mxu0 0.0
      %6334 = vmatpush1.msra.mxu0 0.0
      %6335 = vmatprep.subr.mxu0 0.0
      %6336 = vmatpush1.msra.mxu0 0.0
      %6337 = vmatprep.subr.mxu0 0.0
      %6338 = vmatpush1.msra.mxu0 0.0
      %6339 = vmatprep.subr.mxu0 0.0
      %6340 = vmatpush1.msra.mxu0 0.0
      %6341 = vmatprep.subr.mxu0 0.0
      %6342 = vmatpush1.msra.mxu0 0.0
      %6343 = vmatprep.subr.mxu0 0.0
      %6344 = vmatpush1.msra.mxu0 0.0
      %6345 = vmatprep.subr.mxu0 0.0
      %6346 = vmatpush1.msra.mxu0 0.0
      %6347 = vmatprep.subr.mxu0 0.0
      %6348 = vmatpush1.msra.mxu0 0.0
      %6349 = vmatprep.subr.mxu0 0.0
      %6350 = vmatpush1.msra.mxu0 0.0
      %6351 = vmatprep.subr.mxu0 0.0
      %6352 = vmatpush1.msra.mxu0 0.0
      %6353 = vmatprep.subr.mxu0 0.0
      %6354 = vmatpush1.msra.mxu0 0.0
      %6355 = vmatprep.subr.mxu0 0.0
      %6356 = vmatpush1.msra.mxu0 0.0
      %6357 = vmatprep.subr.mxu0 0.0
      %6358 = vmatpush1.msra.mxu0 0.0
      %6359 = vmatprep.subr.mxu0 0.0
      %6360 = vmatpush1.msra.mxu0 0.0
      %6361 = vmatprep.subr.mxu0 0.0
      %6362 = vmatpush1.msra.mxu0 0.0
      %6363 = vmatprep.subr.mxu0 0.0
      %6364 = vmatpush1.msra.mxu0 0.0
      %6365 = vmatprep.subr.mxu0 0.0
      %6366 = vmatpush1.msra.mxu0 0.0
      %6367 = vmatprep.subr.mxu0 0.0
      %6368 = vmatpush1.msra.mxu0 0.0
      %6369 = vmatprep.subr.mxu0 0.0
      %6370 = vmatpush1.msra.mxu0 0.0
      %6371 = vmatprep.subr.mxu0 0.0
      %6372 = vmatpush1.msra.mxu0 0.0
      %6373 = vmatprep.subr.mxu0 0.0
      %6374 = vmatpush1.msra.mxu0 0.0
      %6375 = vmatprep.subr.mxu0 0.0
      %6376 = vmatpush1.msra.mxu0 0.0
      %6377 = vmatprep.subr.mxu0 0.0
      %6378 = vmatpush1.msra.mxu0 0.0
      %6379 = vmatprep.subr.mxu0 0.0
      %6380 = vmatpush1.msra.mxu0 0.0
      %6381 = vmatprep.subr.mxu0 0.0
      %6382 = vmatpush1.msra.mxu0 0.0
      %6383 = vmatprep.subr.mxu0 0.0
      %6384 = vmatpush1.msra.mxu0 0.0
      %6385 = vmatprep.subr.mxu0 0.0
      %6386 = vmatpush1.msra.mxu0 0.0
      %6387 = vmatprep.mubr.f32.mxu0 0.0
      %v6388 = vand.u32 %v6002, 4294901760
      %6389 = vmatmul.mubr.f32.gmra.mrb[0].mxu0 %v6388
      %v6390 = vpop.f32.mrb[0].mxu0
      %v6391 = vadd.f32 %v6313, %v6390
      %v6392 = vpop.f32.mrb[0].mxu0
      %v6393 = vadd.f32 %v6315, %v6392
      %6394 = vdwg.mxu0
      %v6395 = vand.u32 %v208, 4294901760
      %6396 = vmatprep.subr.mxu0 %v6395
      %v6397 = vand.u32 %v206, 4294901760
      %6398 = vmatpush1.msra.mxu0 %v6397
      %6399 = vmatprep.subr.mxu0 0.0
      %6400 = vmatpush1.msra.mxu0 0.0
      %6401 = vmatprep.subr.mxu0 0.0
      %6402 = vmatpush1.msra.mxu0 0.0
      %6403 = vmatprep.subr.mxu0 0.0
      %6404 = vmatpush1.msra.mxu0 0.0
      %6405 = vmatprep.subr.mxu0 0.0
      %6406 = vmatpush1.msra.mxu0 0.0
      %6407 = vmatprep.subr.mxu0 0.0
      %6408 = vmatpush1.msra.mxu0 0.0
      %6409 = vmatprep.subr.mxu0 0.0
      %6410 = vmatpush1.msra.mxu0 0.0
      %6411 = vmatprep.subr.mxu0 0.0
      %6412 = vmatpush1.msra.mxu0 0.0
      %6413 = vmatprep.subr.mxu0 0.0
      %6414 = vmatpush1.msra.mxu0 0.0
      %6415 = vmatprep.subr.mxu0 0.0
      %6416 = vmatpush1.msra.mxu0 0.0
      %6417 = vmatprep.subr.mxu0 0.0
      %6418 = vmatpush1.msra.mxu0 0.0
      %6419 = vmatprep.subr.mxu0 0.0
      %6420 = vmatpush1.msra.mxu0 0.0
      %6421 = vmatprep.subr.mxu0 0.0
      %6422 = vmatpush1.msra.mxu0 0.0
      %6423 = vmatprep.subr.mxu0 0.0
      %6424 = vmatpush1.msra.mxu0 0.0
      %6425 = vmatprep.subr.mxu0 0.0
      %6426 = vmatpush1.msra.mxu0 0.0
      %6427 = vmatprep.subr.mxu0 0.0
      %6428 = vmatpush1.msra.mxu0 0.0
      %6429 = vmatprep.subr.mxu0 0.0
      %6430 = vmatpush1.msra.mxu0 0.0
      %6431 = vmatprep.subr.mxu0 0.0
      %6432 = vmatpush1.msra.mxu0 0.0
      %6433 = vmatprep.subr.mxu0 0.0
      %6434 = vmatpush1.msra.mxu0 0.0
      %6435 = vmatprep.subr.mxu0 0.0
      %6436 = vmatpush1.msra.mxu0 0.0
      %6437 = vmatprep.subr.mxu0 0.0
      %6438 = vmatpush1.msra.mxu0 0.0
      %6439 = vmatprep.subr.mxu0 0.0
      %6440 = vmatpush1.msra.mxu0 0.0
      %6441 = vmatprep.subr.mxu0 0.0
      %6442 = vmatpush1.msra.mxu0 0.0
      %6443 = vmatprep.subr.mxu0 0.0
      %6444 = vmatpush1.msra.mxu0 0.0
      %6445 = vmatprep.subr.mxu0 0.0
      %6446 = vmatpush1.msra.mxu0 0.0
      %6447 = vmatprep.subr.mxu0 0.0
      %6448 = vmatpush1.msra.mxu0 0.0
      %6449 = vmatprep.subr.mxu0 0.0
      %6450 = vmatpush1.msra.mxu0 0.0
      %6451 = vmatprep.subr.mxu0 0.0
      %6452 = vmatpush1.msra.mxu0 0.0
      %6453 = vmatprep.subr.mxu0 0.0
      %6454 = vmatpush1.msra.mxu0 0.0
      %6455 = vmatprep.subr.mxu0 0.0
      %6456 = vmatpush1.msra.mxu0 0.0
      %6457 = vmatprep.subr.mxu0 0.0
      %6458 = vmatpush1.msra.mxu0 0.0
      %6459 = vmatprep.subr.mxu0 0.0
      %6460 = vmatpush1.msra.mxu0 0.0
      %6461 = vmatprep.mubr.f32.mxu0 0.0
      %v6462 = vand.u32 %v6002, 4294901760
      %6463 = vmatmul.mubr.f32.gmra.mrb[0].mxu0 %v6462
      %v6464 = vpop.f32.mrb[0].mxu0
      %v6465 = vadd.f32 %v6391, %v6464
      %v6466 = vpop.f32.mrb[0].mxu0
      %v6467 = vadd.f32 %v6393, %v6466
      %6468 = vdwg.mxu0
      %v6469 = vand.u32 %v212, 4294901760
      %6470 = vmatprep.subr.mxu0 %v6469
      %v6471 = vand.u32 %v210, 4294901760
      %6472 = vmatpush1.msra.mxu0 %v6471
      %6473 = vmatprep.subr.mxu0 0.0
      %6474 = vmatpush1.msra.mxu0 0.0
      %6475 = vmatprep.subr.mxu0 0.0
      %6476 = vmatpush1.msra.mxu0 0.0
      %6477 = vmatprep.subr.mxu0 0.0
      %6478 = vmatpush1.msra.mxu0 0.0
      %6479 = vmatprep.subr.mxu0 0.0
      %6480 = vmatpush1.msra.mxu0 0.0
      %6481 = vmatprep.subr.mxu0 0.0
      %6482 = vmatpush1.msra.mxu0 0.0
      %6483 = vmatprep.subr.mxu0 0.0
      %6484 = vmatpush1.msra.mxu0 0.0
      %6485 = vmatprep.subr.mxu0 0.0
      %6486 = vmatpush1.msra.mxu0 0.0
      %6487 = vmatprep.subr.mxu0 0.0
      %6488 = vmatpush1.msra.mxu0 0.0
      %6489 = vmatprep.subr.mxu0 0.0
      %6490 = vmatpush1.msra.mxu0 0.0
      %6491 = vmatprep.subr.mxu0 0.0
      %6492 = vmatpush1.msra.mxu0 0.0
      %6493 = vmatprep.subr.mxu0 0.0
      %6494 = vmatpush1.msra.mxu0 0.0
      %6495 = vmatprep.subr.mxu0 0.0
      %6496 = vmatpush1.msra.mxu0 0.0
      %6497 = vmatprep.subr.mxu0 0.0
      %6498 = vmatpush1.msra.mxu0 0.0
      %6499 = vmatprep.subr.mxu0 0.0
      %6500 = vmatpush1.msra.mxu0 0.0
      %6501 = vmatprep.subr.mxu0 0.0
      %6502 = vmatpush1.msra.mxu0 0.0
      %6503 = vmatprep.subr.mxu0 0.0
      %6504 = vmatpush1.msra.mxu0 0.0
      %6505 = vmatprep.subr.mxu0 0.0
      %6506 = vmatpush1.msra.mxu0 0.0
      %6507 = vmatprep.subr.mxu0 0.0
      %6508 = vmatpush1.msra.mxu0 0.0
      %6509 = vmatprep.subr.mxu0 0.0
      %6510 = vmatpush1.msra.mxu0 0.0
      %6511 = vmatprep.subr.mxu0 0.0
      %6512 = vmatpush1.msra.mxu0 0.0
      %6513 = vmatprep.subr.mxu0 0.0
      %6514 = vmatpush1.msra.mxu0 0.0
      %6515 = vmatprep.subr.mxu0 0.0
      %6516 = vmatpush1.msra.mxu0 0.0
      %6517 = vmatprep.subr.mxu0 0.0
      %6518 = vmatpush1.msra.mxu0 0.0
      %6519 = vmatprep.subr.mxu0 0.0
      %6520 = vmatpush1.msra.mxu0 0.0
      %6521 = vmatprep.subr.mxu0 0.0
      %6522 = vmatpush1.msra.mxu0 0.0
      %6523 = vmatprep.subr.mxu0 0.0
      %6524 = vmatpush1.msra.mxu0 0.0
      %6525 = vmatprep.subr.mxu0 0.0
      %6526 = vmatpush1.msra.mxu0 0.0
      %6527 = vmatprep.subr.mxu0 0.0
      %6528 = vmatpush1.msra.mxu0 0.0
      %6529 = vmatprep.subr.mxu0 0.0
      %6530 = vmatpush1.msra.mxu0 0.0
      %6531 = vmatprep.subr.mxu0 0.0
      %6532 = vmatpush1.msra.mxu0 0.0
      %6533 = vmatprep.subr.mxu0 0.0
      %6534 = vmatpush1.msra.mxu0 0.0
      %6535 = vmatprep.mubr.f32.mxu0 0.0
      %v6536 = vand.u32 %v6002, 4294901760
      %v6537 = vsub.f32 %v6002, %v6536
      %v6538 = vand.u32 %v6537, 4294901760
      %v6539 = vsub.f32 %v6537, %v6538
      %v6540 = vand.u32 %v6539, 4294901760
      %6541 = vmatmul.mubr.f32.gmra.mrb[0].mxu0 %v6540
      %v6542 = vpop.f32.mrb[0].mxu0
      %v6543 = vadd.f32 0.0, %v6542
      %v6544 = vpop.f32.mrb[0].mxu0
      %v6545 = vadd.f32 0.0, %v6544
      %6546 = vdwg.mxu0
      %v6547 = vand.u32 %v212, 4294901760
      %v6548 = vsub.f32 %v212, %v6547
      %v6549 = vand.u32 %v6548, 4294901760
      %v6550 = vsub.f32 %v6548, %v6549
      %v6551 = vand.u32 %v6550, 4294901760
      %6552 = vmatprep.subr.mxu0 %v6551
      %v6553 = vand.u32 %v210, 4294901760
      %v6554 = vsub.f32 %v210, %v6553
      %v6555 = vand.u32 %v6554, 4294901760
      %v6556 = vsub.f32 %v6554, %v6555
      %v6557 = vand.u32 %v6556, 4294901760
      %6558 = vmatpush1.msra.mxu0 %v6557
      %6559 = vmatprep.subr.mxu0 0.0
      %6560 = vmatpush1.msra.mxu0 0.0
      %6561 = vmatprep.subr.mxu0 0.0
      %6562 = vmatpush1.msra.mxu0 0.0
      %6563 = vmatprep.subr.mxu0 0.0
      %6564 = vmatpush1.msra.mxu0 0.0
      %6565 = vmatprep.subr.mxu0 0.0
      %6566 = vmatpush1.msra.mxu0 0.0
      %6567 = vmatprep.subr.mxu0 0.0
      %6568 = vmatpush1.msra.mxu0 0.0
      %6569 = vmatprep.subr.mxu0 0.0
      %6570 = vmatpush1.msra.mxu0 0.0
      %6571 = vmatprep.subr.mxu0 0.0
      %6572 = vmatpush1.msra.mxu0 0.0
      %6573 = vmatprep.subr.mxu0 0.0
      %6574 = vmatpush1.msra.mxu0 0.0
      %6575 = vmatprep.subr.mxu0 0.0
      %6576 = vmatpush1.msra.mxu0 0.0
      %6577 = vmatprep.subr.mxu0 0.0
      %6578 = vmatpush1.msra.mxu0 0.0
      %6579 = vmatprep.subr.mxu0 0.0
      %6580 = vmatpush1.msra.mxu0 0.0
      %6581 = vmatprep.subr.mxu0 0.0
      %6582 = vmatpush1.msra.mxu0 0.0
      %6583 = vmatprep.subr.mxu0 0.0
      %6584 = vmatpush1.msra.mxu0 0.0
      %6585 = vmatprep.subr.mxu0 0.0
      %6586 = vmatpush1.msra.mxu0 0.0
      %6587 = vmatprep.subr.mxu0 0.0
      %6588 = vmatpush1.msra.mxu0 0.0
      %6589 = vmatprep.subr.mxu0 0.0
      %6590 = vmatpush1.msra.mxu0 0.0
      %6591 = vmatprep.subr.mxu0 0.0
      %6592 = vmatpush1.msra.mxu0 0.0
      %6593 = vmatprep.subr.mxu0 0.0
      %6594 = vmatpush1.msra.mxu0 0.0
      %6595 = vmatprep.subr.mxu0 0.0
      %6596 = vmatpush1.msra.mxu0 0.0
      %6597 = vmatprep.subr.mxu0 0.0
      %6598 = vmatpush1.msra.mxu0 0.0
      %6599 = vmatprep.subr.mxu0 0.0
      %6600 = vmatpush1.msra.mxu0 0.0
      %6601 = vmatprep.subr.mxu0 0.0
      %6602 = vmatpush1.msra.mxu0 0.0
      %6603 = vmatprep.subr.mxu0 0.0
      %6604 = vmatpush1.msra.mxu0 0.0
      %6605 = vmatprep.subr.mxu0 0.0
      %6606 = vmatpush1.msra.mxu0 0.0
      %6607 = vmatprep.subr.mxu0 0.0
      %6608 = vmatpush1.msra.mxu0 0.0
      %6609 = vmatprep.subr.mxu0 0.0
      %6610 = vmatpush1.msra.mxu0 0.0
      %6611 = vmatprep.subr.mxu0 0.0
      %6612 = vmatpush1.msra.mxu0 0.0
      %6613 = vmatprep.subr.mxu0 0.0
      %6614 = vmatpush1.msra.mxu0 0.0
      %6615 = vmatprep.subr.mxu0 0.0
      %6616 = vmatpush1.msra.mxu0 0.0
      %6617 = vmatprep.subr.mxu0 0.0
      %6618 = vmatpush1.msra.mxu0 0.0
      %6619 = vmatprep.subr.mxu0 0.0
      %6620 = vmatpush1.msra.mxu0 0.0
      %6621 = vmatprep.mubr.f32.mxu0 0.0
      %v6622 = vand.u32 %v6002, 4294901760
      %6623 = vmatmul.mubr.f32.gmra.mrb[0].mxu0 %v6622
      %v6624 = vpop.f32.mrb[0].mxu0
      %v6625 = vadd.f32 %v6543, %v6624
      %v6626 = vpop.f32.mrb[0].mxu0
      %v6627 = vadd.f32 %v6545, %v6626
      %6628 = vdwg.mxu0
      %v6629 = vand.u32 %v212, 4294901760
      %v6630 = vsub.f32 %v212, %v6629
      %6631 = vmatprep.subr.mxu0 %v6630
      %v6632 = vand.u32 %v210, 4294901760
      %v6633 = vsub.f32 %v210, %v6632
      %6634 = vmatpush1.msra.mxu0 %v6633
      %6635 = vmatprep.subr.mxu0 0.0
      %6636 = vmatpush1.msra.mxu0 0.0
      %6637 = vmatprep.subr.mxu0 0.0
      %6638 = vmatpush1.msra.mxu0 0.0
      %6639 = vmatprep.subr.mxu0 0.0
      %6640 = vmatpush1.msra.mxu0 0.0
      %6641 = vmatprep.subr.mxu0 0.0
      %6642 = vmatpush1.msra.mxu0 0.0
      %6643 = vmatprep.subr.mxu0 0.0
      %6644 = vmatpush1.msra.mxu0 0.0
      %6645 = vmatprep.subr.mxu0 0.0
      %6646 = vmatpush1.msra.mxu0 0.0
      %6647 = vmatprep.subr.mxu0 0.0
      %6648 = vmatpush1.msra.mxu0 0.0
      %6649 = vmatprep.subr.mxu0 0.0
      %6650 = vmatpush1.msra.mxu0 0.0
      %6651 = vmatprep.subr.mxu0 0.0
      %6652 = vmatpush1.msra.mxu0 0.0
      %6653 = vmatprep.subr.mxu0 0.0
      %6654 = vmatpush1.msra.mxu0 0.0
      %6655 = vmatprep.subr.mxu0 0.0
      %6656 = vmatpush1.msra.mxu0 0.0
      %6657 = vmatprep.subr.mxu0 0.0
      %6658 = vmatpush1.msra.mxu0 0.0
      %6659 = vmatprep.subr.mxu0 0.0
      %6660 = vmatpush1.msra.mxu0 0.0
      %6661 = vmatprep.subr.mxu0 0.0
      %6662 = vmatpush1.msra.mxu0 0.0
      %6663 = vmatprep.subr.mxu0 0.0
      %6664 = vmatpush1.msra.mxu0 0.0
      %6665 = vmatprep.subr.mxu0 0.0
      %6666 = vmatpush1.msra.mxu0 0.0
      %6667 = vmatprep.subr.mxu0 0.0
      %6668 = vmatpush1.msra.mxu0 0.0
      %6669 = vmatprep.subr.mxu0 0.0
      %6670 = vmatpush1.msra.mxu0 0.0
      %6671 = vmatprep.subr.mxu0 0.0
      %6672 = vmatpush1.msra.mxu0 0.0
      %6673 = vmatprep.subr.mxu0 0.0
      %6674 = vmatpush1.msra.mxu0 0.0
      %6675 = vmatprep.subr.mxu0 0.0
      %6676 = vmatpush1.msra.mxu0 0.0
      %6677 = vmatprep.subr.mxu0 0.0
      %6678 = vmatpush1.msra.mxu0 0.0
      %6679 = vmatprep.subr.mxu0 0.0
      %6680 = vmatpush1.msra.mxu0 0.0
      %6681 = vmatprep.subr.mxu0 0.0
      %6682 = vmatpush1.msra.mxu0 0.0
      %6683 = vmatprep.subr.mxu0 0.0
      %6684 = vmatpush1.msra.mxu0 0.0
      %6685 = vmatprep.subr.mxu0 0.0
      %6686 = vmatpush1.msra.mxu0 0.0
      %6687 = vmatprep.subr.mxu0 0.0
      %6688 = vmatpush1.msra.mxu0 0.0
      %6689 = vmatprep.subr.mxu0 0.0
      %6690 = vmatpush1.msra.mxu0 0.0
      %6691 = vmatprep.subr.mxu0 0.0
      %6692 = vmatpush1.msra.mxu0 0.0
      %6693 = vmatprep.subr.mxu0 0.0
      %6694 = vmatpush1.msra.mxu0 0.0
      %6695 = vmatprep.subr.mxu0 0.0
      %6696 = vmatpush1.msra.mxu0 0.0
      %6697 = vmatprep.mubr.f32.mxu0 0.0
      %v6698 = vand.u32 %v6002, 4294901760
      %v6699 = vsub.f32 %v6002, %v6698
      %6700 = vmatmul.mubr.f32.gmra.mrb[0].mxu0 %v6699
      %v6701 = vpop.f32.mrb[0].mxu0
      %v6702 = vadd.f32 %v6625, %v6701
      %v6703 = vpop.f32.mrb[0].mxu0
      %v6704 = vadd.f32 %v6627, %v6703
      %6705 = vdwg.mxu0
      %v6706 = vand.u32 %v212, 4294901760
      %6707 = vmatprep.subr.mxu0 %v6706
      %v6708 = vand.u32 %v210, 4294901760
      %6709 = vmatpush1.msra.mxu0 %v6708
      %6710 = vmatprep.subr.mxu0 0.0
      %6711 = vmatpush1.msra.mxu0 0.0
      %6712 = vmatprep.subr.mxu0 0.0
      %6713 = vmatpush1.msra.mxu0 0.0
      %6714 = vmatprep.subr.mxu0 0.0
      %6715 = vmatpush1.msra.mxu0 0.0
      %6716 = vmatprep.subr.mxu0 0.0
      %6717 = vmatpush1.msra.mxu0 0.0
      %6718 = vmatprep.subr.mxu0 0.0
      %6719 = vmatpush1.msra.mxu0 0.0
      %6720 = vmatprep.subr.mxu0 0.0
      %6721 = vmatpush1.msra.mxu0 0.0
      %6722 = vmatprep.subr.mxu0 0.0
      %6723 = vmatpush1.msra.mxu0 0.0
      %6724 = vmatprep.subr.mxu0 0.0
      %6725 = vmatpush1.msra.mxu0 0.0
      %6726 = vmatprep.subr.mxu0 0.0
      %6727 = vmatpush1.msra.mxu0 0.0
      %6728 = vmatprep.subr.mxu0 0.0
      %6729 = vmatpush1.msra.mxu0 0.0
      %6730 = vmatprep.subr.mxu0 0.0
      %6731 = vmatpush1.msra.mxu0 0.0
      %6732 = vmatprep.subr.mxu0 0.0
      %6733 = vmatpush1.msra.mxu0 0.0
      %6734 = vmatprep.subr.mxu0 0.0
      %6735 = vmatpush1.msra.mxu0 0.0
      %6736 = vmatprep.subr.mxu0 0.0
      %6737 = vmatpush1.msra.mxu0 0.0
      %6738 = vmatprep.subr.mxu0 0.0
      %6739 = vmatpush1.msra.mxu0 0.0
      %6740 = vmatprep.subr.mxu0 0.0
      %6741 = vmatpush1.msra.mxu0 0.0
      %6742 = vmatprep.subr.mxu0 0.0
      %6743 = vmatpush1.msra.mxu0 0.0
      %6744 = vmatprep.subr.mxu0 0.0
      %6745 = vmatpush1.msra.mxu0 0.0
      %6746 = vmatprep.subr.mxu0 0.0
      %6747 = vmatpush1.msra.mxu0 0.0
      %6748 = vmatprep.subr.mxu0 0.0
      %6749 = vmatpush1.msra.mxu0 0.0
      %6750 = vmatprep.subr.mxu0 0.0
      %6751 = vmatpush1.msra.mxu0 0.0
      %6752 = vmatprep.subr.mxu0 0.0
      %6753 = vmatpush1.msra.mxu0 0.0
      %6754 = vmatprep.subr.mxu0 0.0
      %6755 = vmatpush1.msra.mxu0 0.0
      %6756 = vmatprep.subr.mxu0 0.0
      %6757 = vmatpush1.msra.mxu0 0.0
      %6758 = vmatprep.subr.mxu0 0.0
      %6759 = vmatpush1.msra.mxu0 0.0
      %6760 = vmatprep.subr.mxu0 0.0
      %6761 = vmatpush1.msra.mxu0 0.0
      %6762 = vmatprep.subr.mxu0 0.0
      %6763 = vmatpush1.msra.mxu0 0.0
      %6764 = vmatprep.subr.mxu0 0.0
      %6765 = vmatpush1.msra.mxu0 0.0
      %6766 = vmatprep.subr.mxu0 0.0
      %6767 = vmatpush1.msra.mxu0 0.0
      %6768 = vmatprep.subr.mxu0 0.0
      %6769 = vmatpush1.msra.mxu0 0.0
      %6770 = vmatprep.subr.mxu0 0.0
      %6771 = vmatpush1.msra.mxu0 0.0
      %6772 = vmatprep.mubr.f32.mxu0 0.0
      %v6773 = vand.u32 %v6002, 4294901760
      %v6774 = vsub.f32 %v6002, %v6773
      %v6775 = vand.u32 %v6774, 4294901760
      %6776 = vmatmul.mubr.f32.gmra.mrb[0].mxu0 %v6775
      %v6777 = vpop.f32.mrb[0].mxu0
      %v6778 = vadd.f32 %v6702, %v6777
      %v6779 = vpop.f32.mrb[0].mxu0
      %v6780 = vadd.f32 %v6704, %v6779
      %6781 = vdwg.mxu0
      %v6782 = vand.u32 %v212, 4294901760
      %v6783 = vsub.f32 %v212, %v6782
      %v6784 = vand.u32 %v6783, 4294901760
      %6785 = vmatprep.subr.mxu0 %v6784
      %v6786 = vand.u32 %v210, 4294901760
      %v6787 = vsub.f32 %v210, %v6786
      %v6788 = vand.u32 %v6787, 4294901760
      %6789 = vmatpush1.msra.mxu0 %v6788
      %6790 = vmatprep.subr.mxu0 0.0
      %6791 = vmatpush1.msra.mxu0 0.0
      %6792 = vmatprep.subr.mxu0 0.0
      %6793 = vmatpush1.msra.mxu0 0.0
      %6794 = vmatprep.subr.mxu0 0.0
      %6795 = vmatpush1.msra.mxu0 0.0
      %6796 = vmatprep.subr.mxu0 0.0
      %6797 = vmatpush1.msra.mxu0 0.0
      %6798 = vmatprep.subr.mxu0 0.0
      %6799 = vmatpush1.msra.mxu0 0.0
      %6800 = vmatprep.subr.mxu0 0.0
      %6801 = vmatpush1.msra.mxu0 0.0
      %6802 = vmatprep.subr.mxu0 0.0
      %6803 = vmatpush1.msra.mxu0 0.0
      %6804 = vmatprep.subr.mxu0 0.0
      %6805 = vmatpush1.msra.mxu0 0.0
      %6806 = vmatprep.subr.mxu0 0.0
      %6807 = vmatpush1.msra.mxu0 0.0
      %6808 = vmatprep.subr.mxu0 0.0
      %6809 = vmatpush1.msra.mxu0 0.0
      %6810 = vmatprep.subr.mxu0 0.0
      %6811 = vmatpush1.msra.mxu0 0.0
      %6812 = vmatprep.subr.mxu0 0.0
      %6813 = vmatpush1.msra.mxu0 0.0
      %6814 = vmatprep.subr.mxu0 0.0
      %6815 = vmatpush1.msra.mxu0 0.0
      %6816 = vmatprep.subr.mxu0 0.0
      %6817 = vmatpush1.msra.mxu0 0.0
      %6818 = vmatprep.subr.mxu0 0.0
      %6819 = vmatpush1.msra.mxu0 0.0
      %6820 = vmatprep.subr.mxu0 0.0
      %6821 = vmatpush1.msra.mxu0 0.0
      %6822 = vmatprep.subr.mxu0 0.0
      %6823 = vmatpush1.msra.mxu0 0.0
      %6824 = vmatprep.subr.mxu0 0.0
      %6825 = vmatpush1.msra.mxu0 0.0
      %6826 = vmatprep.subr.mxu0 0.0
      %6827 = vmatpush1.msra.mxu0 0.0
      %6828 = vmatprep.subr.mxu0 0.0
      %6829 = vmatpush1.msra.mxu0 0.0
      %6830 = vmatprep.subr.mxu0 0.0
      %6831 = vmatpush1.msra.mxu0 0.0
      %6832 = vmatprep.subr.mxu0 0.0
      %6833 = vmatpush1.msra.mxu0 0.0
      %6834 = vmatprep.subr.mxu0 0.0
      %6835 = vmatpush1.msra.mxu0 0.0
      %6836 = vmatprep.subr.mxu0 0.0
      %6837 = vmatpush1.msra.mxu0 0.0
      %6838 = vmatprep.subr.mxu0 0.0
      %6839 = vmatpush1.msra.mxu0 0.0
      %6840 = vmatprep.subr.mxu0 0.0
      %6841 = vmatpush1.msra.mxu0 0.0
      %6842 = vmatprep.subr.mxu0 0.0
      %6843 = vmatpush1.msra.mxu0 0.0
      %6844 = vmatprep.subr.mxu0 0.0
      %6845 = vmatpush1.msra.mxu0 0.0
      %6846 = vmatprep.subr.mxu0 0.0
      %6847 = vmatpush1.msra.mxu0 0.0
      %6848 = vmatprep.subr.mxu0 0.0
      %6849 = vmatpush1.msra.mxu0 0.0
      %6850 = vmatprep.subr.mxu0 0.0
      %6851 = vmatpush1.msra.mxu0 0.0
      %6852 = vmatprep.mubr.f32.mxu0 0.0
      %v6853 = vand.u32 %v6002, 4294901760
      %6854 = vmatmul.mubr.f32.gmra.mrb[0].mxu0 %v6853
      %v6855 = vpop.f32.mrb[0].mxu0
      %v6856 = vadd.f32 %v6778, %v6855
      %v6857 = vpop.f32.mrb[0].mxu0
      %v6858 = vadd.f32 %v6780, %v6857
      %6859 = vdwg.mxu0
      %v6860 = vand.u32 %v212, 4294901760
      %6861 = vmatprep.subr.mxu0 %v6860
      %v6862 = vand.u32 %v210, 4294901760
      %6863 = vmatpush1.msra.mxu0 %v6862
      %6864 = vmatprep.subr.mxu0 0.0
      %6865 = vmatpush1.msra.mxu0 0.0
      %6866 = vmatprep.subr.mxu0 0.0
      %6867 = vmatpush1.msra.mxu0 0.0
      %6868 = vmatprep.subr.mxu0 0.0
      %6869 = vmatpush1.msra.mxu0 0.0
      %6870 = vmatprep.subr.mxu0 0.0
      %6871 = vmatpush1.msra.mxu0 0.0
      %6872 = vmatprep.subr.mxu0 0.0
      %6873 = vmatpush1.msra.mxu0 0.0
      %6874 = vmatprep.subr.mxu0 0.0
      %6875 = vmatpush1.msra.mxu0 0.0
      %6876 = vmatprep.subr.mxu0 0.0
      %6877 = vmatpush1.msra.mxu0 0.0
      %6878 = vmatprep.subr.mxu0 0.0
      %6879 = vmatpush1.msra.mxu0 0.0
      %6880 = vmatprep.subr.mxu0 0.0
      %6881 = vmatpush1.msra.mxu0 0.0
      %6882 = vmatprep.subr.mxu0 0.0
      %6883 = vmatpush1.msra.mxu0 0.0
      %6884 = vmatprep.subr.mxu0 0.0
      %6885 = vmatpush1.msra.mxu0 0.0
      %6886 = vmatprep.subr.mxu0 0.0
      %6887 = vmatpush1.msra.mxu0 0.0
      %6888 = vmatprep.subr.mxu0 0.0
      %6889 = vmatpush1.msra.mxu0 0.0
      %6890 = vmatprep.subr.mxu0 0.0
      %6891 = vmatpush1.msra.mxu0 0.0
      %6892 = vmatprep.subr.mxu0 0.0
      %6893 = vmatpush1.msra.mxu0 0.0
      %6894 = vmatprep.subr.mxu0 0.0
      %6895 = vmatpush1.msra.mxu0 0.0
      %6896 = vmatprep.subr.mxu0 0.0
      %6897 = vmatpush1.msra.mxu0 0.0
      %6898 = vmatprep.subr.mxu0 0.0
      %6899 = vmatpush1.msra.mxu0 0.0
      %6900 = vmatprep.subr.mxu0 0.0
      %6901 = vmatpush1.msra.mxu0 0.0
      %6902 = vmatprep.subr.mxu0 0.0
      %6903 = vmatpush1.msra.mxu0 0.0
      %6904 = vmatprep.subr.mxu0 0.0
      %6905 = vmatpush1.msra.mxu0 0.0
      %6906 = vmatprep.subr.mxu0 0.0
      %6907 = vmatpush1.msra.mxu0 0.0
      %6908 = vmatprep.subr.mxu0 0.0
      %6909 = vmatpush1.msra.mxu0 0.0
      %6910 = vmatprep.subr.mxu0 0.0
      %6911 = vmatpush1.msra.mxu0 0.0
      %6912 = vmatprep.subr.mxu0 0.0
      %6913 = vmatpush1.msra.mxu0 0.0
      %6914 = vmatprep.subr.mxu0 0.0
      %6915 = vmatpush1.msra.mxu0 0.0
      %6916 = vmatprep.subr.mxu0 0.0
      %6917 = vmatpush1.msra.mxu0 0.0
      %6918 = vmatprep.subr.mxu0 0.0
      %6919 = vmatpush1.msra.mxu0 0.0
      %6920 = vmatprep.subr.mxu0 0.0
      %6921 = vmatpush1.msra.mxu0 0.0
      %6922 = vmatprep.subr.mxu0 0.0
      %6923 = vmatpush1.msra.mxu0 0.0
      %6924 = vmatprep.subr.mxu0 0.0
      %6925 = vmatpush1.msra.mxu0 0.0
      %6926 = vmatprep.mubr.f32.mxu0 0.0
      %v6927 = vand.u32 %v6002, 4294901760
      %6928 = vmatmul.mubr.f32.gmra.mrb[0].mxu0 %v6927
      %v6929 = vpop.f32.mrb[0].mxu0
      %v6930 = vadd.f32 %v6856, %v6929
      %v6931 = vpop.f32.mrb[0].mxu0
      %v6932 = vadd.f32 %v6858, %v6931
      %6933 = vdwg.mxu0
      %vm6934 = vcmp.eq.s32.totalorder %v195, 6
      %v6935 = vsel %vm6934, 1, 0
      %v6936 = vlaneseq
      %v6937 = vshrl.u32 %v6936, 7
      %v6938 = vsub.s32 0, %v6937
      %v6939 = vrot.slane %v6935, %v6938
      %v6940 = vlaneseq
      %v6941 = vshrl.u32 %v6940, 7
      %v6942 = vsub.s32 1, %v6941
      %v6943 = vrot.slane %v6935, %v6942
      %v6944 = vlaneseq
      %v6945 = vshrl.u32 %v6944, 7
      %v6946 = vsub.s32 2, %v6945
      %v6947 = vrot.slane %v6935, %v6946
      %v6948 = vlaneseq
      %v6949 = vshrl.u32 %v6948, 7
      %v6950 = vsub.s32 3, %v6949
      %v6951 = vrot.slane %v6935, %v6950
      %vm6952 = vcmp.eq.s32.totalorder %v6939, 1
      %vm6953 = vcmp.eq.s32.totalorder %v6943, 1
      %vm6954 = vcmp.eq.s32.totalorder %v6947, 1
      %vm6955 = vcmp.eq.s32.totalorder %v6951, 1
      %v6956 = vsel %vm6952, %v6465, 0.0
      %v6957 = vsel %vm6953, %v6467, 0.0
      %v6958 = vsel %vm6954, %v6930, 0.0
      %v6959 = vsel %vm6955, %v6932, 0.0
      %v6960 = vadd.f32 %v5995, %v6956
      %v6961 = vadd.f32 %v5996, %v6957
      %v6962 = vadd.f32 %v5997, %v6958
      %v6963 = vadd.f32 %v5998, %v6959
      %s6964 = scalar_lea.vmem %s0, 56
      %v6965 = vld [vmem:[%s6964] sm:$0xff]
      %v6967 = vsel %vm201, %v6965, 0
      %v6969 = vand.u32 %v208, 4294901760
      %6970 = vmatprep.subr.mxu0 %v6969
      %v6971 = vand.u32 %v206, 4294901760
      %6972 = vmatpush1.msra.mxu0 %v6971
      %6973 = vmatprep.subr.mxu0 0.0
      %6974 = vmatpush1.msra.mxu0 0.0
      %6975 = vmatprep.subr.mxu0 0.0
      %6976 = vmatpush1.msra.mxu0 0.0
      %6977 = vmatprep.subr.mxu0 0.0
      %6978 = vmatpush1.msra.mxu0 0.0
      %6979 = vmatprep.subr.mxu0 0.0
      %6980 = vmatpush1.msra.mxu0 0.0
      %6981 = vmatprep.subr.mxu0 0.0
      %6982 = vmatpush1.msra.mxu0 0.0
      %6983 = vmatprep.subr.mxu0 0.0
      %6984 = vmatpush1.msra.mxu0 0.0
      %6985 = vmatprep.subr.mxu0 0.0
      %6986 = vmatpush1.msra.mxu0 0.0
      %6987 = vmatprep.subr.mxu0 0.0
      %6988 = vmatpush1.msra.mxu0 0.0
      %6989 = vmatprep.subr.mxu0 0.0
      %6990 = vmatpush1.msra.mxu0 0.0
      %6991 = vmatprep.subr.mxu0 0.0
      %6992 = vmatpush1.msra.mxu0 0.0
      %6993 = vmatprep.subr.mxu0 0.0
      %6994 = vmatpush1.msra.mxu0 0.0
      %6995 = vmatprep.subr.mxu0 0.0
      %6996 = vmatpush1.msra.mxu0 0.0
      %6997 = vmatprep.subr.mxu0 0.0
      %6998 = vmatpush1.msra.mxu0 0.0
      %6999 = vmatprep.subr.mxu0 0.0
      %7000 = vmatpush1.msra.mxu0 0.0
      %7001 = vmatprep.subr.mxu0 0.0
      %7002 = vmatpush1.msra.mxu0 0.0
      %7003 = vmatprep.subr.mxu0 0.0
      %7004 = vmatpush1.msra.mxu0 0.0
      %7005 = vmatprep.subr.mxu0 0.0
      %7006 = vmatpush1.msra.mxu0 0.0
      %7007 = vmatprep.subr.mxu0 0.0
      %7008 = vmatpush1.msra.mxu0 0.0
      %7009 = vmatprep.subr.mxu0 0.0
      %7010 = vmatpush1.msra.mxu0 0.0
      %7011 = vmatprep.subr.mxu0 0.0
      %7012 = vmatpush1.msra.mxu0 0.0
      %7013 = vmatprep.subr.mxu0 0.0
      %7014 = vmatpush1.msra.mxu0 0.0
      %7015 = vmatprep.subr.mxu0 0.0
      %7016 = vmatpush1.msra.mxu0 0.0
      %7017 = vmatprep.subr.mxu0 0.0
      %7018 = vmatpush1.msra.mxu0 0.0
      %7019 = vmatprep.subr.mxu0 0.0
      %7020 = vmatpush1.msra.mxu0 0.0
      %7021 = vmatprep.subr.mxu0 0.0
      %7022 = vmatpush1.msra.mxu0 0.0
      %7023 = vmatprep.subr.mxu0 0.0
      %7024 = vmatpush1.msra.mxu0 0.0
      %7025 = vmatprep.subr.mxu0 0.0
      %7026 = vmatpush1.msra.mxu0 0.0
      %7027 = vmatprep.subr.mxu0 0.0
      %7028 = vmatpush1.msra.mxu0 0.0
      %7029 = vmatprep.subr.mxu0 0.0
      %7030 = vmatpush1.msra.mxu0 0.0
      %7031 = vmatprep.subr.mxu0 0.0
      %7032 = vmatpush1.msra.mxu0 0.0
      %7033 = vmatprep.subr.mxu0 0.0
      %7034 = vmatpush1.msra.mxu0 0.0
      %7035 = vmatprep.mubr.f32.mxu0 0.0
      %v7036 = vand.u32 %v6967, 4294901760
      %v7037 = vsub.f32 %v6967, %v7036
      %v7038 = vand.u32 %v7037, 4294901760
      %v7039 = vsub.f32 %v7037, %v7038
      %v7040 = vand.u32 %v7039, 4294901760
      %7041 = vmatmul.mubr.f32.gmra.mrb[0].mxu0 %v7040
      %v7042 = vpop.f32.mrb[0].mxu0
      %v7043 = vadd.f32 0.0, %v7042
      %v7044 = vpop.f32.mrb[0].mxu0
      %v7045 = vadd.f32 0.0, %v7044
      %7046 = vdwg.mxu0
      %v7047 = vand.u32 %v208, 4294901760
      %v7048 = vsub.f32 %v208, %v7047
      %v7049 = vand.u32 %v7048, 4294901760
      %v7050 = vsub.f32 %v7048, %v7049
      %v7051 = vand.u32 %v7050, 4294901760
      %7052 = vmatprep.subr.mxu0 %v7051
      %v7053 = vand.u32 %v206, 4294901760
      %v7054 = vsub.f32 %v206, %v7053
      %v7055 = vand.u32 %v7054, 4294901760
      %v7056 = vsub.f32 %v7054, %v7055
      %v7057 = vand.u32 %v7056, 4294901760
      %7058 = vmatpush1.msra.mxu0 %v7057
      %7059 = vmatprep.subr.mxu0 0.0
      %7060 = vmatpush1.msra.mxu0 0.0
      %7061 = vmatprep.subr.mxu0 0.0
      %7062 = vmatpush1.msra.mxu0 0.0
      %7063 = vmatprep.subr.mxu0 0.0
      %7064 = vmatpush1.msra.mxu0 0.0
      %7065 = vmatprep.subr.mxu0 0.0
      %7066 = vmatpush1.msra.mxu0 0.0
      %7067 = vmatprep.subr.mxu0 0.0
      %7068 = vmatpush1.msra.mxu0 0.0
      %7069 = vmatprep.subr.mxu0 0.0
      %7070 = vmatpush1.msra.mxu0 0.0
      %7071 = vmatprep.subr.mxu0 0.0
      %7072 = vmatpush1.msra.mxu0 0.0
      %7073 = vmatprep.subr.mxu0 0.0
      %7074 = vmatpush1.msra.mxu0 0.0
      %7075 = vmatprep.subr.mxu0 0.0
      %7076 = vmatpush1.msra.mxu0 0.0
      %7077 = vmatprep.subr.mxu0 0.0
      %7078 = vmatpush1.msra.mxu0 0.0
      %7079 = vmatprep.subr.mxu0 0.0
      %7080 = vmatpush1.msra.mxu0 0.0
      %7081 = vmatprep.subr.mxu0 0.0
      %7082 = vmatpush1.msra.mxu0 0.0
      %7083 = vmatprep.subr.mxu0 0.0
      %7084 = vmatpush1.msra.mxu0 0.0
      %7085 = vmatprep.subr.mxu0 0.0
      %7086 = vmatpush1.msra.mxu0 0.0
      %7087 = vmatprep.subr.mxu0 0.0
      %7088 = vmatpush1.msra.mxu0 0.0
      %7089 = vmatprep.subr.mxu0 0.0
      %7090 = vmatpush1.msra.mxu0 0.0
      %7091 = vmatprep.subr.mxu0 0.0
      %7092 = vmatpush1.msra.mxu0 0.0
      %7093 = vmatprep.subr.mxu0 0.0
      %7094 = vmatpush1.msra.mxu0 0.0
      %7095 = vmatprep.subr.mxu0 0.0
      %7096 = vmatpush1.msra.mxu0 0.0
      %7097 = vmatprep.subr.mxu0 0.0
      %7098 = vmatpush1.msra.mxu0 0.0
      %7099 = vmatprep.subr.mxu0 0.0
      %7100 = vmatpush1.msra.mxu0 0.0
      %7101 = vmatprep.subr.mxu0 0.0
      %7102 = vmatpush1.msra.mxu0 0.0
      %7103 = vmatprep.subr.mxu0 0.0
      %7104 = vmatpush1.msra.mxu0 0.0
      %7105 = vmatprep.subr.mxu0 0.0
      %7106 = vmatpush1.msra.mxu0 0.0
      %7107 = vmatprep.subr.mxu0 0.0
      %7108 = vmatpush1.msra.mxu0 0.0
      %7109 = vmatprep.subr.mxu0 0.0
      %7110 = vmatpush1.msra.mxu0 0.0
      %7111 = vmatprep.subr.mxu0 0.0
      %7112 = vmatpush1.msra.mxu0 0.0
      %7113 = vmatprep.subr.mxu0 0.0
      %7114 = vmatpush1.msra.mxu0 0.0
      %7115 = vmatprep.subr.mxu0 0.0
      %7116 = vmatpush1.msra.mxu0 0.0
      %7117 = vmatprep.subr.mxu0 0.0
      %7118 = vmatpush1.msra.mxu0 0.0
      %7119 = vmatprep.subr.mxu0 0.0
      %7120 = vmatpush1.msra.mxu0 0.0
      %7121 = vmatprep.mubr.f32.mxu0 0.0
      %v7122 = vand.u32 %v6967, 4294901760
      %7123 = vmatmul.mubr.f32.gmra.mrb[0].mxu0 %v7122
      %v7124 = vpop.f32.mrb[0].mxu0
      %v7125 = vadd.f32 %v7043, %v7124
      %v7126 = vpop.f32.mrb[0].mxu0
      %v7127 = vadd.f32 %v7045, %v7126
      %7128 = vdwg.mxu0
      %v7129 = vand.u32 %v208, 4294901760
      %v7130 = vsub.f32 %v208, %v7129
      %7131 = vmatprep.subr.mxu0 %v7130
      %v7132 = vand.u32 %v206, 4294901760
      %v7133 = vsub.f32 %v206, %v7132
      %7134 = vmatpush1.msra.mxu0 %v7133
      %7135 = vmatprep.subr.mxu0 0.0
      %7136 = vmatpush1.msra.mxu0 0.0
      %7137 = vmatprep.subr.mxu0 0.0
      %7138 = vmatpush1.msra.mxu0 0.0
      %7139 = vmatprep.subr.mxu0 0.0
      %7140 = vmatpush1.msra.mxu0 0.0
      %7141 = vmatprep.subr.mxu0 0.0
      %7142 = vmatpush1.msra.mxu0 0.0
      %7143 = vmatprep.subr.mxu0 0.0
      %7144 = vmatpush1.msra.mxu0 0.0
      %7145 = vmatprep.subr.mxu0 0.0
      %7146 = vmatpush1.msra.mxu0 0.0
      %7147 = vmatprep.subr.mxu0 0.0
      %7148 = vmatpush1.msra.mxu0 0.0
      %7149 = vmatprep.subr.mxu0 0.0
      %7150 = vmatpush1.msra.mxu0 0.0
      %7151 = vmatprep.subr.mxu0 0.0
      %7152 = vmatpush1.msra.mxu0 0.0
      %7153 = vmatprep.subr.mxu0 0.0
      %7154 = vmatpush1.msra.mxu0 0.0
      %7155 = vmatprep.subr.mxu0 0.0
      %7156 = vmatpush1.msra.mxu0 0.0
      %7157 = vmatprep.subr.mxu0 0.0
      %7158 = vmatpush1.msra.mxu0 0.0
      %7159 = vmatprep.subr.mxu0 0.0
      %7160 = vmatpush1.msra.mxu0 0.0
      %7161 = vmatprep.subr.mxu0 0.0
      %7162 = vmatpush1.msra.mxu0 0.0
      %7163 = vmatprep.subr.mxu0 0.0
      %7164 = vmatpush1.msra.mxu0 0.0
      %7165 = vmatprep.subr.mxu0 0.0
      %7166 = vmatpush1.msra.mxu0 0.0
      %7167 = vmatprep.subr.mxu0 0.0
      %7168 = vmatpush1.msra.mxu0 0.0
      %7169 = vmatprep.subr.mxu0 0.0
      %7170 = vmatpush1.msra.mxu0 0.0
      %7171 = vmatprep.subr.mxu0 0.0
      %7172 = vmatpush1.msra.mxu0 0.0
      %7173 = vmatprep.subr.mxu0 0.0
      %7174 = vmatpush1.msra.mxu0 0.0
      %7175 = vmatprep.subr.mxu0 0.0
      %7176 = vmatpush1.msra.mxu0 0.0
      %7177 = vmatprep.subr.mxu0 0.0
      %7178 = vmatpush1.msra.mxu0 0.0
      %7179 = vmatprep.subr.mxu0 0.0
      %7180 = vmatpush1.msra.mxu0 0.0
      %7181 = vmatprep.subr.mxu0 0.0
      %7182 = vmatpush1.msra.mxu0 0.0
      %7183 = vmatprep.subr.mxu0 0.0
      %7184 = vmatpush1.msra.mxu0 0.0
      %7185 = vmatprep.subr.mxu0 0.0
      %7186 = vmatpush1.msra.mxu0 0.0
      %7187 = vmatprep.subr.mxu0 0.0
      %7188 = vmatpush1.msra.mxu0 0.0
      %7189 = vmatprep.subr.mxu0 0.0
      %7190 = vmatpush1.msra.mxu0 0.0
      %7191 = vmatprep.subr.mxu0 0.0
      %7192 = vmatpush1.msra.mxu0 0.0
      %7193 = vmatprep.subr.mxu0 0.0
      %7194 = vmatpush1.msra.mxu0 0.0
      %7195 = vmatprep.subr.mxu0 0.0
      %7196 = vmatpush1.msra.mxu0 0.0
      %7197 = vmatprep.mubr.f32.mxu0 0.0
      %v7198 = vand.u32 %v6967, 4294901760
      %v7199 = vsub.f32 %v6967, %v7198
      %7200 = vmatmul.mubr.f32.gmra.mrb[0].mxu0 %v7199
      %v7201 = vpop.f32.mrb[0].mxu0
      %v7202 = vadd.f32 %v7125, %v7201
      %v7203 = vpop.f32.mrb[0].mxu0
      %v7204 = vadd.f32 %v7127, %v7203
      %7205 = vdwg.mxu0
      %v7206 = vand.u32 %v208, 4294901760
      %7207 = vmatprep.subr.mxu0 %v7206
      %v7208 = vand.u32 %v206, 4294901760
      %7209 = vmatpush1.msra.mxu0 %v7208
      %7210 = vmatprep.subr.mxu0 0.0
      %7211 = vmatpush1.msra.mxu0 0.0
      %7212 = vmatprep.subr.mxu0 0.0
      %7213 = vmatpush1.msra.mxu0 0.0
      %7214 = vmatprep.subr.mxu0 0.0
      %7215 = vmatpush1.msra.mxu0 0.0
      %7216 = vmatprep.subr.mxu0 0.0
      %7217 = vmatpush1.msra.mxu0 0.0
      %7218 = vmatprep.subr.mxu0 0.0
      %7219 = vmatpush1.msra.mxu0 0.0
      %7220 = vmatprep.subr.mxu0 0.0
      %7221 = vmatpush1.msra.mxu0 0.0
      %7222 = vmatprep.subr.mxu0 0.0
      %7223 = vmatpush1.msra.mxu0 0.0
      %7224 = vmatprep.subr.mxu0 0.0
      %7225 = vmatpush1.msra.mxu0 0.0
      %7226 = vmatprep.subr.mxu0 0.0
      %7227 = vmatpush1.msra.mxu0 0.0
      %7228 = vmatprep.subr.mxu0 0.0
      %7229 = vmatpush1.msra.mxu0 0.0
      %7230 = vmatprep.subr.mxu0 0.0
      %7231 = vmatpush1.msra.mxu0 0.0
      %7232 = vmatprep.subr.mxu0 0.0
      %7233 = vmatpush1.msra.mxu0 0.0
      %7234 = vmatprep.subr.mxu0 0.0
      %7235 = vmatpush1.msra.mxu0 0.0
      %7236 = vmatprep.subr.mxu0 0.0
      %7237 = vmatpush1.msra.mxu0 0.0
      %7238 = vmatprep.subr.mxu0 0.0
      %7239 = vmatpush1.msra.mxu0 0.0
      %7240 = vmatprep.subr.mxu0 0.0
      %7241 = vmatpush1.msra.mxu0 0.0
      %7242 = vmatprep.subr.mxu0 0.0
      %7243 = vmatpush1.msra.mxu0 0.0
      %7244 = vmatprep.subr.mxu0 0.0
      %7245 = vmatpush1.msra.mxu0 0.0
      %7246 = vmatprep.subr.mxu0 0.0
      %7247 = vmatpush1.msra.mxu0 0.0
      %7248 = vmatprep.subr.mxu0 0.0
      %7249 = vmatpush1.msra.mxu0 0.0
      %7250 = vmatprep.subr.mxu0 0.0
      %7251 = vmatpush1.msra.mxu0 0.0
      %7252 = vmatprep.subr.mxu0 0.0
      %7253 = vmatpush1.msra.mxu0 0.0
      %7254 = vmatprep.subr.mxu0 0.0
      %7255 = vmatpush1.msra.mxu0 0.0
      %7256 = vmatprep.subr.mxu0 0.0
      %7257 = vmatpush1.msra.mxu0 0.0
      %7258 = vmatprep.subr.mxu0 0.0
      %7259 = vmatpush1.msra.mxu0 0.0
      %7260 = vmatprep.subr.mxu0 0.0
      %7261 = vmatpush1.msra.mxu0 0.0
      %7262 = vmatprep.subr.mxu0 0.0
      %7263 = vmatpush1.msra.mxu0 0.0
      %7264 = vmatprep.subr.mxu0 0.0
      %7265 = vmatpush1.msra.mxu0 0.0
      %7266 = vmatprep.subr.mxu0 0.0
      %7267 = vmatpush1.msra.mxu0 0.0
      %7268 = vmatprep.subr.mxu0 0.0
      %7269 = vmatpush1.msra.mxu0 0.0
      %7270 = vmatprep.subr.mxu0 0.0
      %7271 = vmatpush1.msra.mxu0 0.0
      %7272 = vmatprep.mubr.f32.mxu0 0.0
      %v7273 = vand.u32 %v6967, 4294901760
      %v7274 = vsub.f32 %v6967, %v7273
      %v7275 = vand.u32 %v7274, 4294901760
      %7276 = vmatmul.mubr.f32.gmra.mrb[0].mxu0 %v7275
      %v7277 = vpop.f32.mrb[0].mxu0
      %v7278 = vadd.f32 %v7202, %v7277
      %v7279 = vpop.f32.mrb[0].mxu0
      %v7280 = vadd.f32 %v7204, %v7279
      %7281 = vdwg.mxu0
      %v7282 = vand.u32 %v208, 4294901760
      %v7283 = vsub.f32 %v208, %v7282
      %v7284 = vand.u32 %v7283, 4294901760
      %7285 = vmatprep.subr.mxu0 %v7284
      %v7286 = vand.u32 %v206, 4294901760
      %v7287 = vsub.f32 %v206, %v7286
      %v7288 = vand.u32 %v7287, 4294901760
      %7289 = vmatpush1.msra.mxu0 %v7288
      %7290 = vmatprep.subr.mxu0 0.0
      %7291 = vmatpush1.msra.mxu0 0.0
      %7292 = vmatprep.subr.mxu0 0.0
      %7293 = vmatpush1.msra.mxu0 0.0
      %7294 = vmatprep.subr.mxu0 0.0
      %7295 = vmatpush1.msra.mxu0 0.0
      %7296 = vmatprep.subr.mxu0 0.0
      %7297 = vmatpush1.msra.mxu0 0.0
      %7298 = vmatprep.subr.mxu0 0.0
      %7299 = vmatpush1.msra.mxu0 0.0
      %7300 = vmatprep.subr.mxu0 0.0
      %7301 = vmatpush1.msra.mxu0 0.0
      %7302 = vmatprep.subr.mxu0 0.0
      %7303 = vmatpush1.msra.mxu0 0.0
      %7304 = vmatprep.subr.mxu0 0.0
      %7305 = vmatpush1.msra.mxu0 0.0
      %7306 = vmatprep.subr.mxu0 0.0
      %7307 = vmatpush1.msra.mxu0 0.0
      %7308 = vmatprep.subr.mxu0 0.0
      %7309 = vmatpush1.msra.mxu0 0.0
      %7310 = vmatprep.subr.mxu0 0.0
      %7311 = vmatpush1.msra.mxu0 0.0
      %7312 = vmatprep.subr.mxu0 0.0
      %7313 = vmatpush1.msra.mxu0 0.0
      %7314 = vmatprep.subr.mxu0 0.0
      %7315 = vmatpush1.msra.mxu0 0.0
      %7316 = vmatprep.subr.mxu0 0.0
      %7317 = vmatpush1.msra.mxu0 0.0
      %7318 = vmatprep.subr.mxu0 0.0
      %7319 = vmatpush1.msra.mxu0 0.0
      %7320 = vmatprep.subr.mxu0 0.0
      %7321 = vmatpush1.msra.mxu0 0.0
      %7322 = vmatprep.subr.mxu0 0.0
      %7323 = vmatpush1.msra.mxu0 0.0
      %7324 = vmatprep.subr.mxu0 0.0
      %7325 = vmatpush1.msra.mxu0 0.0
      %7326 = vmatprep.subr.mxu0 0.0
      %7327 = vmatpush1.msra.mxu0 0.0
      %7328 = vmatprep.subr.mxu0 0.0
      %7329 = vmatpush1.msra.mxu0 0.0
      %7330 = vmatprep.subr.mxu0 0.0
      %7331 = vmatpush1.msra.mxu0 0.0
      %7332 = vmatprep.subr.mxu0 0.0
      %7333 = vmatpush1.msra.mxu0 0.0
      %7334 = vmatprep.subr.mxu0 0.0
      %7335 = vmatpush1.msra.mxu0 0.0
      %7336 = vmatprep.subr.mxu0 0.0
      %7337 = vmatpush1.msra.mxu0 0.0
      %7338 = vmatprep.subr.mxu0 0.0
      %7339 = vmatpush1.msra.mxu0 0.0
      %7340 = vmatprep.subr.mxu0 0.0
      %7341 = vmatpush1.msra.mxu0 0.0
      %7342 = vmatprep.subr.mxu0 0.0
      %7343 = vmatpush1.msra.mxu0 0.0
      %7344 = vmatprep.subr.mxu0 0.0
      %7345 = vmatpush1.msra.mxu0 0.0
      %7346 = vmatprep.subr.mxu0 0.0
      %7347 = vmatpush1.msra.mxu0 0.0
      %7348 = vmatprep.subr.mxu0 0.0
      %7349 = vmatpush1.msra.mxu0 0.0
      %7350 = vmatprep.subr.mxu0 0.0
      %7351 = vmatpush1.msra.mxu0 0.0
      %7352 = vmatprep.mubr.f32.mxu0 0.0
      %v7353 = vand.u32 %v6967, 4294901760
      %7354 = vmatmul.mubr.f32.gmra.mrb[0].mxu0 %v7353
      %v7355 = vpop.f32.mrb[0].mxu0
      %v7356 = vadd.f32 %v7278, %v7355
      %v7357 = vpop.f32.mrb[0].mxu0
      %v7358 = vadd.f32 %v7280, %v7357
      %7359 = vdwg.mxu0
      %v7360 = vand.u32 %v208, 4294901760
      %7361 = vmatprep.subr.mxu0 %v7360
      %v7362 = vand.u32 %v206, 4294901760
      %7363 = vmatpush1.msra.mxu0 %v7362
      %7364 = vmatprep.subr.mxu0 0.0
      %7365 = vmatpush1.msra.mxu0 0.0
      %7366 = vmatprep.subr.mxu0 0.0
      %7367 = vmatpush1.msra.mxu0 0.0
      %7368 = vmatprep.subr.mxu0 0.0
      %7369 = vmatpush1.msra.mxu0 0.0
      %7370 = vmatprep.subr.mxu0 0.0
      %7371 = vmatpush1.msra.mxu0 0.0
      %7372 = vmatprep.subr.mxu0 0.0
      %7373 = vmatpush1.msra.mxu0 0.0
      %7374 = vmatprep.subr.mxu0 0.0
      %7375 = vmatpush1.msra.mxu0 0.0
      %7376 = vmatprep.subr.mxu0 0.0
      %7377 = vmatpush1.msra.mxu0 0.0
      %7378 = vmatprep.subr.mxu0 0.0
      %7379 = vmatpush1.msra.mxu0 0.0
      %7380 = vmatprep.subr.mxu0 0.0
      %7381 = vmatpush1.msra.mxu0 0.0
      %7382 = vmatprep.subr.mxu0 0.0
      %7383 = vmatpush1.msra.mxu0 0.0
      %7384 = vmatprep.subr.mxu0 0.0
      %7385 = vmatpush1.msra.mxu0 0.0
      %7386 = vmatprep.subr.mxu0 0.0
      %7387 = vmatpush1.msra.mxu0 0.0
      %7388 = vmatprep.subr.mxu0 0.0
      %7389 = vmatpush1.msra.mxu0 0.0
      %7390 = vmatprep.subr.mxu0 0.0
      %7391 = vmatpush1.msra.mxu0 0.0
      %7392 = vmatprep.subr.mxu0 0.0
      %7393 = vmatpush1.msra.mxu0 0.0
      %7394 = vmatprep.subr.mxu0 0.0
      %7395 = vmatpush1.msra.mxu0 0.0
      %7396 = vmatprep.subr.mxu0 0.0
      %7397 = vmatpush1.msra.mxu0 0.0
      %7398 = vmatprep.subr.mxu0 0.0
      %7399 = vmatpush1.msra.mxu0 0.0
      %7400 = vmatprep.subr.mxu0 0.0
      %7401 = vmatpush1.msra.mxu0 0.0
      %7402 = vmatprep.subr.mxu0 0.0
      %7403 = vmatpush1.msra.mxu0 0.0
      %7404 = vmatprep.subr.mxu0 0.0
      %7405 = vmatpush1.msra.mxu0 0.0
      %7406 = vmatprep.subr.mxu0 0.0
      %7407 = vmatpush1.msra.mxu0 0.0
      %7408 = vmatprep.subr.mxu0 0.0
      %7409 = vmatpush1.msra.mxu0 0.0
      %7410 = vmatprep.subr.mxu0 0.0
      %7411 = vmatpush1.msra.mxu0 0.0
      %7412 = vmatprep.subr.mxu0 0.0
      %7413 = vmatpush1.msra.mxu0 0.0
      %7414 = vmatprep.subr.mxu0 0.0
      %7415 = vmatpush1.msra.mxu0 0.0
      %7416 = vmatprep.subr.mxu0 0.0
      %7417 = vmatpush1.msra.mxu0 0.0
      %7418 = vmatprep.subr.mxu0 0.0
      %7419 = vmatpush1.msra.mxu0 0.0
      %7420 = vmatprep.subr.mxu0 0.0
      %7421 = vmatpush1.msra.mxu0 0.0
      %7422 = vmatprep.subr.mxu0 0.0
      %7423 = vmatpush1.msra.mxu0 0.0
      %7424 = vmatprep.subr.mxu0 0.0
      %7425 = vmatpush1.msra.mxu0 0.0
      %7426 = vmatprep.mubr.f32.mxu0 0.0
      %v7427 = vand.u32 %v6967, 4294901760
      %7428 = vmatmul.mubr.f32.gmra.mrb[0].mxu0 %v7427
      %v7429 = vpop.f32.mrb[0].mxu0
      %v7430 = vadd.f32 %v7356, %v7429
      %v7431 = vpop.f32.mrb[0].mxu0
      %v7432 = vadd.f32 %v7358, %v7431
      %7433 = vdwg.mxu0
      %v7434 = vand.u32 %v212, 4294901760
      %7435 = vmatprep.subr.mxu0 %v7434
      %v7436 = vand.u32 %v210, 4294901760
      %7437 = vmatpush1.msra.mxu0 %v7436
      %7438 = vmatprep.subr.mxu0 0.0
      %7439 = vmatpush1.msra.mxu0 0.0
      %7440 = vmatprep.subr.mxu0 0.0
      %7441 = vmatpush1.msra.mxu0 0.0
      %7442 = vmatprep.subr.mxu0 0.0
      %7443 = vmatpush1.msra.mxu0 0.0
      %7444 = vmatprep.subr.mxu0 0.0
      %7445 = vmatpush1.msra.mxu0 0.0
      %7446 = vmatprep.subr.mxu0 0.0
      %7447 = vmatpush1.msra.mxu0 0.0
      %7448 = vmatprep.subr.mxu0 0.0
      %7449 = vmatpush1.msra.mxu0 0.0
      %7450 = vmatprep.subr.mxu0 0.0
      %7451 = vmatpush1.msra.mxu0 0.0
      %7452 = vmatprep.subr.mxu0 0.0
      %7453 = vmatpush1.msra.mxu0 0.0
      %7454 = vmatprep.subr.mxu0 0.0
      %7455 = vmatpush1.msra.mxu0 0.0
      %7456 = vmatprep.subr.mxu0 0.0
      %7457 = vmatpush1.msra.mxu0 0.0
      %7458 = vmatprep.subr.mxu0 0.0
      %7459 = vmatpush1.msra.mxu0 0.0
      %7460 = vmatprep.subr.mxu0 0.0
      %7461 = vmatpush1.msra.mxu0 0.0
      %7462 = vmatprep.subr.mxu0 0.0
      %7463 = vmatpush1.msra.mxu0 0.0
      %7464 = vmatprep.subr.mxu0 0.0
      %7465 = vmatpush1.msra.mxu0 0.0
      %7466 = vmatprep.subr.mxu0 0.0
      %7467 = vmatpush1.msra.mxu0 0.0
      %7468 = vmatprep.subr.mxu0 0.0
      %7469 = vmatpush1.msra.mxu0 0.0
      %7470 = vmatprep.subr.mxu0 0.0
      %7471 = vmatpush1.msra.mxu0 0.0
      %7472 = vmatprep.subr.mxu0 0.0
      %7473 = vmatpush1.msra.mxu0 0.0
      %7474 = vmatprep.subr.mxu0 0.0
      %7475 = vmatpush1.msra.mxu0 0.0
      %7476 = vmatprep.subr.mxu0 0.0
      %7477 = vmatpush1.msra.mxu0 0.0
      %7478 = vmatprep.subr.mxu0 0.0
      %7479 = vmatpush1.msra.mxu0 0.0
      %7480 = vmatprep.subr.mxu0 0.0
      %7481 = vmatpush1.msra.mxu0 0.0
      %7482 = vmatprep.subr.mxu0 0.0
      %7483 = vmatpush1.msra.mxu0 0.0
      %7484 = vmatprep.subr.mxu0 0.0
      %7485 = vmatpush1.msra.mxu0 0.0
      %7486 = vmatprep.subr.mxu0 0.0
      %7487 = vmatpush1.msra.mxu0 0.0
      %7488 = vmatprep.subr.mxu0 0.0
      %7489 = vmatpush1.msra.mxu0 0.0
      %7490 = vmatprep.subr.mxu0 0.0
      %7491 = vmatpush1.msra.mxu0 0.0
      %7492 = vmatprep.subr.mxu0 0.0
      %7493 = vmatpush1.msra.mxu0 0.0
      %7494 = vmatprep.subr.mxu0 0.0
      %7495 = vmatpush1.msra.mxu0 0.0
      %7496 = vmatprep.subr.mxu0 0.0
      %7497 = vmatpush1.msra.mxu0 0.0
      %7498 = vmatprep.subr.mxu0 0.0
      %7499 = vmatpush1.msra.mxu0 0.0
      %7500 = vmatprep.mubr.f32.mxu0 0.0
      %v7501 = vand.u32 %v6967, 4294901760
      %v7502 = vsub.f32 %v6967, %v7501
      %v7503 = vand.u32 %v7502, 4294901760
      %v7504 = vsub.f32 %v7502, %v7503
      %v7505 = vand.u32 %v7504, 4294901760
      %7506 = vmatmul.mubr.f32.gmra.mrb[0].mxu0 %v7505
      %v7507 = vpop.f32.mrb[0].mxu0
      %v7508 = vadd.f32 0.0, %v7507
      %v7509 = vpop.f32.mrb[0].mxu0
      %v7510 = vadd.f32 0.0, %v7509
      %7511 = vdwg.mxu0
      %v7512 = vand.u32 %v212, 4294901760
      %v7513 = vsub.f32 %v212, %v7512
      %v7514 = vand.u32 %v7513, 4294901760
      %v7515 = vsub.f32 %v7513, %v7514
      %v7516 = vand.u32 %v7515, 4294901760
      %7517 = vmatprep.subr.mxu0 %v7516
      %v7518 = vand.u32 %v210, 4294901760
      %v7519 = vsub.f32 %v210, %v7518
      %v7520 = vand.u32 %v7519, 4294901760
      %v7521 = vsub.f32 %v7519, %v7520
      %v7522 = vand.u32 %v7521, 4294901760
      %7523 = vmatpush1.msra.mxu0 %v7522
      %7524 = vmatprep.subr.mxu0 0.0
      %7525 = vmatpush1.msra.mxu0 0.0
      %7526 = vmatprep.subr.mxu0 0.0
      %7527 = vmatpush1.msra.mxu0 0.0
      %7528 = vmatprep.subr.mxu0 0.0
      %7529 = vmatpush1.msra.mxu0 0.0
      %7530 = vmatprep.subr.mxu0 0.0
      %7531 = vmatpush1.msra.mxu0 0.0
      %7532 = vmatprep.subr.mxu0 0.0
      %7533 = vmatpush1.msra.mxu0 0.0
      %7534 = vmatprep.subr.mxu0 0.0
      %7535 = vmatpush1.msra.mxu0 0.0
      %7536 = vmatprep.subr.mxu0 0.0
      %7537 = vmatpush1.msra.mxu0 0.0
      %7538 = vmatprep.subr.mxu0 0.0
      %7539 = vmatpush1.msra.mxu0 0.0
      %7540 = vmatprep.subr.mxu0 0.0
      %7541 = vmatpush1.msra.mxu0 0.0
      %7542 = vmatprep.subr.mxu0 0.0
      %7543 = vmatpush1.msra.mxu0 0.0
      %7544 = vmatprep.subr.mxu0 0.0
      %7545 = vmatpush1.msra.mxu0 0.0
      %7546 = vmatprep.subr.mxu0 0.0
      %7547 = vmatpush1.msra.mxu0 0.0
      %7548 = vmatprep.subr.mxu0 0.0
      %7549 = vmatpush1.msra.mxu0 0.0
      %7550 = vmatprep.subr.mxu0 0.0
      %7551 = vmatpush1.msra.mxu0 0.0
      %7552 = vmatprep.subr.mxu0 0.0
      %7553 = vmatpush1.msra.mxu0 0.0
      %7554 = vmatprep.subr.mxu0 0.0
      %7555 = vmatpush1.msra.mxu0 0.0
      %7556 = vmatprep.subr.mxu0 0.0
      %7557 = vmatpush1.msra.mxu0 0.0
      %7558 = vmatprep.subr.mxu0 0.0
      %7559 = vmatpush1.msra.mxu0 0.0
      %7560 = vmatprep.subr.mxu0 0.0
      %7561 = vmatpush1.msra.mxu0 0.0
      %7562 = vmatprep.subr.mxu0 0.0
      %7563 = vmatpush1.msra.mxu0 0.0
      %7564 = vmatprep.subr.mxu0 0.0
      %7565 = vmatpush1.msra.mxu0 0.0
      %7566 = vmatprep.subr.mxu0 0.0
      %7567 = vmatpush1.msra.mxu0 0.0
      %7568 = vmatprep.subr.mxu0 0.0
      %7569 = vmatpush1.msra.mxu0 0.0
      %7570 = vmatprep.subr.mxu0 0.0
      %7571 = vmatpush1.msra.mxu0 0.0
      %7572 = vmatprep.subr.mxu0 0.0
      %7573 = vmatpush1.msra.mxu0 0.0
      %7574 = vmatprep.subr.mxu0 0.0
      %7575 = vmatpush1.msra.mxu0 0.0
      %7576 = vmatprep.subr.mxu0 0.0
      %7577 = vmatpush1.msra.mxu0 0.0
      %7578 = vmatprep.subr.mxu0 0.0
      %7579 = vmatpush1.msra.mxu0 0.0
      %7580 = vmatprep.subr.mxu0 0.0
      %7581 = vmatpush1.msra.mxu0 0.0
      %7582 = vmatprep.subr.mxu0 0.0
      %7583 = vmatpush1.msra.mxu0 0.0
      %7584 = vmatprep.subr.mxu0 0.0
      %7585 = vmatpush1.msra.mxu0 0.0
      %7586 = vmatprep.mubr.f32.mxu0 0.0
      %v7587 = vand.u32 %v6967, 4294901760
      %7588 = vmatmul.mubr.f32.gmra.mrb[0].mxu0 %v7587
      %v7589 = vpop.f32.mrb[0].mxu0
      %v7590 = vadd.f32 %v7508, %v7589
      %v7591 = vpop.f32.mrb[0].mxu0
      %v7592 = vadd.f32 %v7510, %v7591
      %7593 = vdwg.mxu0
      %v7594 = vand.u32 %v212, 4294901760
      %v7595 = vsub.f32 %v212, %v7594
      %7596 = vmatprep.subr.mxu0 %v7595
      %v7597 = vand.u32 %v210, 4294901760
      %v7598 = vsub.f32 %v210, %v7597
      %7599 = vmatpush1.msra.mxu0 %v7598
      %7600 = vmatprep.subr.mxu0 0.0
      %7601 = vmatpush1.msra.mxu0 0.0
      %7602 = vmatprep.subr.mxu0 0.0
      %7603 = vmatpush1.msra.mxu0 0.0
      %7604 = vmatprep.subr.mxu0 0.0
      %7605 = vmatpush1.msra.mxu0 0.0
      %7606 = vmatprep.subr.mxu0 0.0
      %7607 = vmatpush1.msra.mxu0 0.0
      %7608 = vmatprep.subr.mxu0 0.0
      %7609 = vmatpush1.msra.mxu0 0.0
      %7610 = vmatprep.subr.mxu0 0.0
      %7611 = vmatpush1.msra.mxu0 0.0
      %7612 = vmatprep.subr.mxu0 0.0
      %7613 = vmatpush1.msra.mxu0 0.0
      %7614 = vmatprep.subr.mxu0 0.0
      %7615 = vmatpush1.msra.mxu0 0.0
      %7616 = vmatprep.subr.mxu0 0.0
      %7617 = vmatpush1.msra.mxu0 0.0
      %7618 = vmatprep.subr.mxu0 0.0
      %7619 = vmatpush1.msra.mxu0 0.0
      %7620 = vmatprep.subr.mxu0 0.0
      %7621 = vmatpush1.msra.mxu0 0.0
      %7622 = vmatprep.subr.mxu0 0.0
      %7623 = vmatpush1.msra.mxu0 0.0
      %7624 = vmatprep.subr.mxu0 0.0
      %7625 = vmatpush1.msra.mxu0 0.0
      %7626 = vmatprep.subr.mxu0 0.0
      %7627 = vmatpush1.msra.mxu0 0.0
      %7628 = vmatprep.subr.mxu0 0.0
      %7629 = vmatpush1.msra.mxu0 0.0
      %7630 = vmatprep.subr.mxu0 0.0
      %7631 = vmatpush1.msra.mxu0 0.0
      %7632 = vmatprep.subr.mxu0 0.0
      %7633 = vmatpush1.msra.mxu0 0.0
      %7634 = vmatprep.subr.mxu0 0.0
      %7635 = vmatpush1.msra.mxu0 0.0
      %7636 = vmatprep.subr.mxu0 0.0
      %7637 = vmatpush1.msra.mxu0 0.0
      %7638 = vmatprep.subr.mxu0 0.0
      %7639 = vmatpush1.msra.mxu0 0.0
      %7640 = vmatprep.subr.mxu0 0.0
      %7641 = vmatpush1.msra.mxu0 0.0
      %7642 = vmatprep.subr.mxu0 0.0
      %7643 = vmatpush1.msra.mxu0 0.0
      %7644 = vmatprep.subr.mxu0 0.0
      %7645 = vmatpush1.msra.mxu0 0.0
      %7646 = vmatprep.subr.mxu0 0.0
      %7647 = vmatpush1.msra.mxu0 0.0
      %7648 = vmatprep.subr.mxu0 0.0
      %7649 = vmatpush1.msra.mxu0 0.0
      %7650 = vmatprep.subr.mxu0 0.0
      %7651 = vmatpush1.msra.mxu0 0.0
      %7652 = vmatprep.subr.mxu0 0.0
      %7653 = vmatpush1.msra.mxu0 0.0
      %7654 = vmatprep.subr.mxu0 0.0
      %7655 = vmatpush1.msra.mxu0 0.0
      %7656 = vmatprep.subr.mxu0 0.0
      %7657 = vmatpush1.msra.mxu0 0.0
      %7658 = vmatprep.subr.mxu0 0.0
      %7659 = vmatpush1.msra.mxu0 0.0
      %7660 = vmatprep.subr.mxu0 0.0
      %7661 = vmatpush1.msra.mxu0 0.0
      %7662 = vmatprep.mubr.f32.mxu0 0.0
      %v7663 = vand.u32 %v6967, 4294901760
      %v7664 = vsub.f32 %v6967, %v7663
      %7665 = vmatmul.mubr.f32.gmra.mrb[0].mxu0 %v7664
      %v7666 = vpop.f32.mrb[0].mxu0
      %v7667 = vadd.f32 %v7590, %v7666
      %v7668 = vpop.f32.mrb[0].mxu0
      %v7669 = vadd.f32 %v7592, %v7668
      %7670 = vdwg.mxu0
      %v7671 = vand.u32 %v212, 4294901760
      %7672 = vmatprep.subr.mxu0 %v7671
      %v7673 = vand.u32 %v210, 4294901760
      %7674 = vmatpush1.msra.mxu0 %v7673
      %7675 = vmatprep.subr.mxu0 0.0
      %7676 = vmatpush1.msra.mxu0 0.0
      %7677 = vmatprep.subr.mxu0 0.0
      %7678 = vmatpush1.msra.mxu0 0.0
      %7679 = vmatprep.subr.mxu0 0.0
      %7680 = vmatpush1.msra.mxu0 0.0
      %7681 = vmatprep.subr.mxu0 0.0
      %7682 = vmatpush1.msra.mxu0 0.0
      %7683 = vmatprep.subr.mxu0 0.0
      %7684 = vmatpush1.msra.mxu0 0.0
      %7685 = vmatprep.subr.mxu0 0.0
      %7686 = vmatpush1.msra.mxu0 0.0
      %7687 = vmatprep.subr.mxu0 0.0
      %7688 = vmatpush1.msra.mxu0 0.0
      %7689 = vmatprep.subr.mxu0 0.0
      %7690 = vmatpush1.msra.mxu0 0.0
      %7691 = vmatprep.subr.mxu0 0.0
      %7692 = vmatpush1.msra.mxu0 0.0
      %7693 = vmatprep.subr.mxu0 0.0
      %7694 = vmatpush1.msra.mxu0 0.0
      %7695 = vmatprep.subr.mxu0 0.0
      %7696 = vmatpush1.msra.mxu0 0.0
      %7697 = vmatprep.subr.mxu0 0.0
      %7698 = vmatpush1.msra.mxu0 0.0
      %7699 = vmatprep.subr.mxu0 0.0
      %7700 = vmatpush1.msra.mxu0 0.0
      %7701 = vmatprep.subr.mxu0 0.0
      %7702 = vmatpush1.msra.mxu0 0.0
      %7703 = vmatprep.subr.mxu0 0.0
      %7704 = vmatpush1.msra.mxu0 0.0
      %7705 = vmatprep.subr.mxu0 0.0
      %7706 = vmatpush1.msra.mxu0 0.0
      %7707 = vmatprep.subr.mxu0 0.0
      %7708 = vmatpush1.msra.mxu0 0.0
      %7709 = vmatprep.subr.mxu0 0.0
      %7710 = vmatpush1.msra.mxu0 0.0
      %7711 = vmatprep.subr.mxu0 0.0
      %7712 = vmatpush1.msra.mxu0 0.0
      %7713 = vmatprep.subr.mxu0 0.0
      %7714 = vmatpush1.msra.mxu0 0.0
      %7715 = vmatprep.subr.mxu0 0.0
      %7716 = vmatpush1.msra.mxu0 0.0
      %7717 = vmatprep.subr.mxu0 0.0
      %7718 = vmatpush1.msra.mxu0 0.0
      %7719 = vmatprep.subr.mxu0 0.0
      %7720 = vmatpush1.msra.mxu0 0.0
      %7721 = vmatprep.subr.mxu0 0.0
      %7722 = vmatpush1.msra.mxu0 0.0
      %7723 = vmatprep.subr.mxu0 0.0
      %7724 = vmatpush1.msra.mxu0 0.0
      %7725 = vmatprep.subr.mxu0 0.0
      %7726 = vmatpush1.msra.mxu0 0.0
      %7727 = vmatprep.subr.mxu0 0.0
      %7728 = vmatpush1.msra.mxu0 0.0
      %7729 = vmatprep.subr.mxu0 0.0
      %7730 = vmatpush1.msra.mxu0 0.0
      %7731 = vmatprep.subr.mxu0 0.0
      %7732 = vmatpush1.msra.mxu0 0.0
      %7733 = vmatprep.subr.mxu0 0.0
      %7734 = vmatpush1.msra.mxu0 0.0
      %7735 = vmatprep.subr.mxu0 0.0
      %7736 = vmatpush1.msra.mxu0 0.0
      %7737 = vmatprep.mubr.f32.mxu0 0.0
      %v7738 = vand.u32 %v6967, 4294901760
      %v7739 = vsub.f32 %v6967, %v7738
      %v7740 = vand.u32 %v7739, 4294901760
      %7741 = vmatmul.mubr.f32.gmra.mrb[0].mxu0 %v7740
      %v7742 = vpop.f32.mrb[0].mxu0
      %v7743 = vadd.f32 %v7667, %v7742
      %v7744 = vpop.f32.mrb[0].mxu0
      %v7745 = vadd.f32 %v7669, %v7744
      %7746 = vdwg.mxu0
      %v7747 = vand.u32 %v212, 4294901760
      %v7748 = vsub.f32 %v212, %v7747
      %v7749 = vand.u32 %v7748, 4294901760
      %7750 = vmatprep.subr.mxu0 %v7749
      %v7751 = vand.u32 %v210, 4294901760
      %v7752 = vsub.f32 %v210, %v7751
      %v7753 = vand.u32 %v7752, 4294901760
      %7754 = vmatpush1.msra.mxu0 %v7753
      %7755 = vmatprep.subr.mxu0 0.0
      %7756 = vmatpush1.msra.mxu0 0.0
      %7757 = vmatprep.subr.mxu0 0.0
      %7758 = vmatpush1.msra.mxu0 0.0
      %7759 = vmatprep.subr.mxu0 0.0
      %7760 = vmatpush1.msra.mxu0 0.0
      %7761 = vmatprep.subr.mxu0 0.0
      %7762 = vmatpush1.msra.mxu0 0.0
      %7763 = vmatprep.subr.mxu0 0.0
      %7764 = vmatpush1.msra.mxu0 0.0
      %7765 = vmatprep.subr.mxu0 0.0
      %7766 = vmatpush1.msra.mxu0 0.0
      %7767 = vmatprep.subr.mxu0 0.0
      %7768 = vmatpush1.msra.mxu0 0.0
      %7769 = vmatprep.subr.mxu0 0.0
      %7770 = vmatpush1.msra.mxu0 0.0
      %7771 = vmatprep.subr.mxu0 0.0
      %7772 = vmatpush1.msra.mxu0 0.0
      %7773 = vmatprep.subr.mxu0 0.0
      %7774 = vmatpush1.msra.mxu0 0.0
      %7775 = vmatprep.subr.mxu0 0.0
      %7776 = vmatpush1.msra.mxu0 0.0
      %7777 = vmatprep.subr.mxu0 0.0
      %7778 = vmatpush1.msra.mxu0 0.0
      %7779 = vmatprep.subr.mxu0 0.0
      %7780 = vmatpush1.msra.mxu0 0.0
      %7781 = vmatprep.subr.mxu0 0.0
      %7782 = vmatpush1.msra.mxu0 0.0
      %7783 = vmatprep.subr.mxu0 0.0
      %7784 = vmatpush1.msra.mxu0 0.0
      %7785 = vmatprep.subr.mxu0 0.0
      %7786 = vmatpush1.msra.mxu0 0.0
      %7787 = vmatprep.subr.mxu0 0.0
      %7788 = vmatpush1.msra.mxu0 0.0
      %7789 = vmatprep.subr.mxu0 0.0
      %7790 = vmatpush1.msra.mxu0 0.0
      %7791 = vmatprep.subr.mxu0 0.0
      %7792 = vmatpush1.msra.mxu0 0.0
      %7793 = vmatprep.subr.mxu0 0.0
      %7794 = vmatpush1.msra.mxu0 0.0
      %7795 = vmatprep.subr.mxu0 0.0
      %7796 = vmatpush1.msra.mxu0 0.0
      %7797 = vmatprep.subr.mxu0 0.0
      %7798 = vmatpush1.msra.mxu0 0.0
      %7799 = vmatprep.subr.mxu0 0.0
      %7800 = vmatpush1.msra.mxu0 0.0
      %7801 = vmatprep.subr.mxu0 0.0
      %7802 = vmatpush1.msra.mxu0 0.0
      %7803 = vmatprep.subr.mxu0 0.0
      %7804 = vmatpush1.msra.mxu0 0.0
      %7805 = vmatprep.subr.mxu0 0.0
      %7806 = vmatpush1.msra.mxu0 0.0
      %7807 = vmatprep.subr.mxu0 0.0
      %7808 = vmatpush1.msra.mxu0 0.0
      %7809 = vmatprep.subr.mxu0 0.0
      %7810 = vmatpush1.msra.mxu0 0.0
      %7811 = vmatprep.subr.mxu0 0.0
      %7812 = vmatpush1.msra.mxu0 0.0
      %7813 = vmatprep.subr.mxu0 0.0
      %7814 = vmatpush1.msra.mxu0 0.0
      %7815 = vmatprep.subr.mxu0 0.0
      %7816 = vmatpush1.msra.mxu0 0.0
      %7817 = vmatprep.mubr.f32.mxu0 0.0
      %v7818 = vand.u32 %v6967, 4294901760
      %7819 = vmatmul.mubr.f32.gmra.mrb[0].mxu0 %v7818
      %v7820 = vpop.f32.mrb[0].mxu0
      %v7821 = vadd.f32 %v7743, %v7820
      %v7822 = vpop.f32.mrb[0].mxu0
      %v7823 = vadd.f32 %v7745, %v7822
      %7824 = vdwg.mxu0
      %v7825 = vand.u32 %v212, 4294901760
      %7826 = vmatprep.subr.mxu0 %v7825
      %v7827 = vand.u32 %v210, 4294901760
      %7828 = vmatpush1.msra.mxu0 %v7827
      %7829 = vmatprep.subr.mxu0 0.0
      %7830 = vmatpush1.msra.mxu0 0.0
      %7831 = vmatprep.subr.mxu0 0.0
      %7832 = vmatpush1.msra.mxu0 0.0
      %7833 = vmatprep.subr.mxu0 0.0
      %7834 = vmatpush1.msra.mxu0 0.0
      %7835 = vmatprep.subr.mxu0 0.0
      %7836 = vmatpush1.msra.mxu0 0.0
      %7837 = vmatprep.subr.mxu0 0.0
      %7838 = vmatpush1.msra.mxu0 0.0
      %7839 = vmatprep.subr.mxu0 0.0
      %7840 = vmatpush1.msra.mxu0 0.0
      %7841 = vmatprep.subr.mxu0 0.0
      %7842 = vmatpush1.msra.mxu0 0.0
      %7843 = vmatprep.subr.mxu0 0.0
      %7844 = vmatpush1.msra.mxu0 0.0
      %7845 = vmatprep.subr.mxu0 0.0
      %7846 = vmatpush1.msra.mxu0 0.0
      %7847 = vmatprep.subr.mxu0 0.0
      %7848 = vmatpush1.msra.mxu0 0.0
      %7849 = vmatprep.subr.mxu0 0.0
      %7850 = vmatpush1.msra.mxu0 0.0
      %7851 = vmatprep.subr.mxu0 0.0
      %7852 = vmatpush1.msra.mxu0 0.0
      %7853 = vmatprep.subr.mxu0 0.0
      %7854 = vmatpush1.msra.mxu0 0.0
      %7855 = vmatprep.subr.mxu0 0.0
      %7856 = vmatpush1.msra.mxu0 0.0
      %7857 = vmatprep.subr.mxu0 0.0
      %7858 = vmatpush1.msra.mxu0 0.0
      %7859 = vmatprep.subr.mxu0 0.0
      %7860 = vmatpush1.msra.mxu0 0.0
      %7861 = vmatprep.subr.mxu0 0.0
      %7862 = vmatpush1.msra.mxu0 0.0
      %7863 = vmatprep.subr.mxu0 0.0
      %7864 = vmatpush1.msra.mxu0 0.0
      %7865 = vmatprep.subr.mxu0 0.0
      %7866 = vmatpush1.msra.mxu0 0.0
      %7867 = vmatprep.subr.mxu0 0.0
      %7868 = vmatpush1.msra.mxu0 0.0
      %7869 = vmatprep.subr.mxu0 0.0
      %7870 = vmatpush1.msra.mxu0 0.0
      %7871 = vmatprep.subr.mxu0 0.0
      %7872 = vmatpush1.msra.mxu0 0.0
      %7873 = vmatprep.subr.mxu0 0.0
      %7874 = vmatpush1.msra.mxu0 0.0
      %7875 = vmatprep.subr.mxu0 0.0
      %7876 = vmatpush1.msra.mxu0 0.0
      %7877 = vmatprep.subr.mxu0 0.0
      %7878 = vmatpush1.msra.mxu0 0.0
      %7879 = vmatprep.subr.mxu0 0.0
      %7880 = vmatpush1.msra.mxu0 0.0
      %7881 = vmatprep.subr.mxu0 0.0
      %7882 = vmatpush1.msra.mxu0 0.0
      %7883 = vmatprep.subr.mxu0 0.0
      %7884 = vmatpush1.msra.mxu0 0.0
      %7885 = vmatprep.subr.mxu0 0.0
      %7886 = vmatpush1.msra.mxu0 0.0
      %7887 = vmatprep.subr.mxu0 0.0
      %7888 = vmatpush1.msra.mxu0 0.0
      %7889 = vmatprep.subr.mxu0 0.0
      %7890 = vmatpush1.msra.mxu0 0.0
      %7891 = vmatprep.mubr.f32.mxu0 0.0
      %v7892 = vand.u32 %v6967, 4294901760
      %7893 = vmatmul.mubr.f32.gmra.mrb[0].mxu0 %v7892
      %v7894 = vpop.f32.mrb[0].mxu0
      %v7895 = vadd.f32 %v7821, %v7894
      %v7896 = vpop.f32.mrb[0].mxu0
      %v7897 = vadd.f32 %v7823, %v7896
      %7898 = vdwg.mxu0
      %vm7899 = vcmp.eq.s32.totalorder %v195, 7
      %v7900 = vsel %vm7899, 1, 0
      %v7901 = vlaneseq
      %v7902 = vshrl.u32 %v7901, 7
      %v7903 = vsub.s32 0, %v7902
      %v7904 = vrot.slane %v7900, %v7903
      %v7905 = vlaneseq
      %v7906 = vshrl.u32 %v7905, 7
      %v7907 = vsub.s32 1, %v7906
      %v7908 = vrot.slane %v7900, %v7907
      %v7909 = vlaneseq
      %v7910 = vshrl.u32 %v7909, 7
      %v7911 = vsub.s32 2, %v7910
      %v7912 = vrot.slane %v7900, %v7911
      %v7913 = vlaneseq
      %v7914 = vshrl.u32 %v7913, 7
      %v7915 = vsub.s32 3, %v7914
      %v7916 = vrot.slane %v7900, %v7915
      %vm7917 = vcmp.eq.s32.totalorder %v7904, 1
      %vm7918 = vcmp.eq.s32.totalorder %v7908, 1
      %vm7919 = vcmp.eq.s32.totalorder %v7912, 1
      %vm7920 = vcmp.eq.s32.totalorder %v7916, 1
      %v7921 = vsel %vm7917, %v7430, 0.0
      %v7922 = vsel %vm7918, %v7432, 0.0
      %v7923 = vsel %vm7919, %v7895, 0.0
      %v7924 = vsel %vm7920, %v7897, 0.0
      %v7925 = vadd.f32 %v6960, %v7921
      %v7926 = vadd.f32 %v6961, %v7922
      %v7927 = vadd.f32 %v6962, %v7923
      %v7928 = vadd.f32 %v6963, %v7924
      %7929 = vst [vmem:[%s191] sm:$0xff] %v7925
      %7930 = vst [vmem:[%s191 + $0x8] sm:$0xff] %v7926
      %7931 = vst [vmem:[%s191 + $0x10] sm:$0xff] %v7927
      %7932 = vst [vmem:[%s191 + $0x18] sm:$0xff] %v7928
      %s7933 = smul.u32 4, %s14
      %p7934 = scmp.lt.s32.totalorder %s7933, 7
      %s7935 = scalar_select %p7934, %s7933, 7
      %s7936 = smul.addr %s7935, 8
      %s7937 = scalar_lea.vmem %s3, %s7936
      // Predicated region
      $region33: #{urdf_forward_pallas.1} parent=31 // pred_check
        %p7938 = pneg %p105
      $region34: #{urdf_forward_pallas.1} parent=31 // pred_check_branch
        %7940 = sbr.rel (%p7938) target = $region36
      $region35: #{urdf_forward_pallas.1} parent=31 // pred_region
        %s7941 = smul.u32 4, %s14
      $region36: #{urdf_forward_pallas.1} parent=31 // pred_fallthru
        _
    $region32: #{urdf_forward_pallas.1} parent=5 // pred_fallthru
      _
    %p7942 = scmp.le.s32.totalorder 2, %s9
    // Predicated region
    $region37: #{urdf_forward_pallas.1} parent=5 // pred_check
      %p7943 = pneg %p7942
    $region38: #{urdf_forward_pallas.1} parent=5 // pred_check_branch
      %7945 = sbr.rel (%p7943) target = $region40
    $region39: #{urdf_forward_pallas.1} parent=5 // pred_region
      %s7946 = ssub.s32 %s9, 2
      // Predicated region
      $region41: #{urdf_forward_pallas.1} parent=39 // pred_check
        %p7947 = pneg %p111
      $region42: #{urdf_forward_pallas.1} parent=39 // pred_check_branch
        %7949 = sbr.rel (%p7947) target = $region44
      $region43: #{urdf_forward_pallas.1} parent=39 // pred_region
        %s7950 = smul.u32 4, %s15
        %p7951 = scmp.lt.s32.totalorder %s7950, 7
        %s7952 = scalar_select %p7951, %s7950, 7
        %s7953 = smul.addr %s7952, 8
        %s7954 = scalar_lea.vmem %s3, %s7953
      $region44: #{urdf_forward_pallas.1} parent=39 // pred_fallthru
        _
    $region40: #{urdf_forward_pallas.1} parent=5 // pred_fallthru
      _
  $region6: #{urdf_forward_pallas.1} parent=0 // loop_footer
    %s13 = sadd.s32 1, %s9
  $region7: #{urdf_forward_pallas.1} parent=0 // loop_footer_branch
    %8 = sbr.rel target = $region3
  $region8: #{urdf_forward_pallas.1} parent=0 // loop_exit
    _

</llo_original>
